<compile_context>
chip_gen: v7x
topology: tpu7x:2x2x1
jax: 0.10.0
libtpu: 0.0.40
codegen_flags: <defaults>
</compile_context>

<pallas_src>
import jax
import jax.numpy as jnp
import numpy as np
from jax.experimental import pallas as pl
from jax.experimental.pallas import tpu as pltpu


def _round_up(v, m):
    return ((v + m - 1) // m) * m


# ---------------------------------------------------------------------------
# Fully fused tracker kernel (per batch element); static geometry baked in via closure.
# ---------------------------------------------------------------------------
def _make_fused_kernel(Ns, Nsp, Nz, Hsf, Wsf, Htf, Wtf,
                       Hcs, Wcs, Hck, Wck, Ho, Wo, No, Nopad, Cf, Ch):
    f32, bf16 = jnp.float32, jnp.bfloat16

    def conv3x3_relu(src, Hout, Wout, w_ref, b_ref):
        """Single-dot 3x3 VALID conv: in-kernel im2col (lane-concat of the 9 taps, bf16) then
        ONE MXU dot with K = 9*Cin (vs 9 under-filled K=Cin dots + 9 f32 adds before)."""
        Cin = src.shape[-1]
        cols = [src[dy:dy + Hout, dx:dx + Wout, :] for dy in range(3) for dx in range(3)]
        patch = jnp.concatenate(cols, axis=-1).reshape(Hout * Wout, 9 * Cin)   # (N, 9*Cin) bf16
        y = jnp.dot(patch, w_ref[...], preferred_element_type=f32)
        return jnp.maximum(y + b_ref[...], 0.0)                                # (N, Cout) f32

    def kernel(pxz_ref, fw_ref, fb_ref, ckw_ref, ckb_ref, csw_ref, csb_ref,
               h1w_ref, h1b_ref, h2w_ref, h2b_ref, out_ref):
        # ---- fused feature stem: ONE matmul covers both crops, one bias+ReLU pass, bf16 out ----
        stem = jnp.dot(pxz_ref[...], fw_ref[...], preferred_element_type=f32)
        stem = jnp.maximum(stem + fb_ref[...], 0.0).astype(bf16)     # cast once, held in bf16
        sfeat = stem[0:Ns].reshape(Hsf, Wsf, Cf)                     # search features
        tfeat = stem[Nsp:Nsp + Nz].reshape(Htf, Wtf, Cf)             # template features

        # ---- DepthCorr conv_search / conv_kernel (cls & loc channel-concatenated, Ch=64) ----
        cs = conv3x3_relu(sfeat, Hcs, Wcs, csw_ref, csb_ref)         # (Hcs*Wcs, Ch) f32
        ck = conv3x3_relu(tfeat, Hck, Wck, ckw_ref, ckb_ref)         # (Hck*Wck, Ch) f32
        cs3 = cs.reshape(Hcs, Wcs, Ch)
        ck3 = ck.reshape(Hck, Wck, Ch)

        # ---- depthwise (per-channel) valid cross-correlation, f32 on the VPU ----
        # dj shift (sublane axis) hoisted out of the di loop: 6 shift relayouts instead of 36;
        # the di slice only selects along the outermost dim (no data movement).
        acc = jnp.zeros((Ho, Wo, Ch), f32)
        for dj in range(Wck):
            shifted = cs3[:, dj:dj + Wo, :]                          # (Hcs, Wo, Ch)
            for di in range(Hck):
                win = shifted[di:di + Ho]                            # (Ho, Wo, Ch) outer select
                acc = acc + win * ck3[di:di + 1, dj:dj + 1, :]       # f32 FMA
        corr = acc.reshape(No, Ch)                                   # (121, 64)

        # ---- pad spatial rows 121 -> 128: full sublane tiles for head matmuls + dense store ----
        if Nopad > No:
            corr = jnp.concatenate([corr, jnp.zeros((Nopad - No, Ch), f32)], axis=0)

        # ---- fused 1x1 head: conv + ReLU + conv (block-diag cls/loc, lane-padded to 128) ----
        h = jnp.maximum(jnp.dot(corr.astype(bf16), h1w_ref[...],
                                preferred_element_type=f32) + h1b_ref[...], 0.0)
        out_ref[...] = jnp.dot(h.astype(bf16), h2w_ref[...],
                               preferred_element_type=f32) + h2b_ref[...]

    return kernel


# ---------------------------------------------------------------------------
# Wrapper glue (NCHW boundary, stem im2col, weight fusion, pallas_call)
# ---------------------------------------------------------------------------
def _im2col3x3(x_nhwc):
    """3x3 VALID im2col for the toy stem (Cin=3): (B,H,W,C) -> (B, Ho*Wo, 9*C)."""
    B, H, W, C = x_nhwc.shape
    Ho, Wo = H - 2, W - 2
    cols = [x_nhwc[:, dy:dy + Ho, dx:dx + Wo, :] for dy in range(3) for dx in range(3)]
    return jnp.concatenate(cols, axis=-1).reshape(B, Ho * Wo, 9 * C)


def _fuse_rpn_params(params):
    """Concatenate cls/loc branches (channel concat + block-diagonal heads), reshape conv weights
    to tap-stacked 2D matrices, cast matmul weights to bf16, pad the head output to 128 lanes."""
    bf16, f32 = jnp.bfloat16, jnp.float32
    cls, loc = params["cls"], params["loc"]
    cf = params["feat_w"].shape[3]
    hid = cls["h1_w"].shape[0]
    ch = 2 * hid
    c_score = cls["h2_w"].shape[1]
    c_delta = loc["h2_w"].shape[1]
    cpad = ((c_score + c_delta + 127) // 128) * 128

    fw = params["feat_w"].reshape(-1, cf).astype(bf16)                       # (9*Cin, Cf)
    fb = params["feat_b"].reshape(1, cf).astype(f32)
    ckw = jnp.concatenate([cls["ck_w"], loc["ck_w"]], axis=-1).reshape(-1, ch).astype(bf16)
    ckb = jnp.concatenate([cls["ck_b"], loc["ck_b"]]).reshape(1, ch).astype(f32)
    csw = jnp.concatenate([cls["cs_w"], loc["cs_w"]], axis=-1).reshape(-1, ch).astype(bf16)
    csb = jnp.concatenate([cls["cs_b"], loc["cs_b"]]).reshape(1, ch).astype(f32)
    h1w = (jnp.zeros((ch, ch), f32)
           .at[:hid, :hid].set(cls["h1_w"])
           .at[hid:, hid:].set(loc["h1_w"])).astype(bf16)
    h1b = jnp.concatenate([cls["h1_b"], loc["h1_b"]]).reshape(1, ch).astype(f32)
    h2w = (jnp.zeros((ch, cpad), f32)
           .at[:hid, :c_score].set(cls["h2_w"])
           .at[hid:, c_score:c_score + c_delta].set(loc["h2_w"])).astype(bf16)
    h2b = (jnp.zeros((1, cpad), f32)
           .at[0, :c_score].set(cls["h2_b"])
           .at[0, c_score:c_score + c_delta].set(loc["h2_b"]))
    return dict(fw=fw, fb=fb, ckw=ckw, ckb=ckb, csw=csw, csb=csb,
                h1w=h1w, h1b=h1b, h2w=h2w, h2b=h2b,
                c_score=c_score, c_delta=c_delta)


def dataloop_tracker_forward(params, x_nchw, z_nchw):
    # DataloopTracker.forward(x, z):
    #   search = features(x); template = features(z); score, delta = rpn(template, search)
    x = jnp.transpose(x_nchw, (0, 2, 3, 1)).astype(jnp.float32)
    z = jnp.transpose(z_nchw, (0, 2, 3, 1)).astype(jnp.float32)
    B, Hx, Wx, _ = x.shape
    _, Hz, Wz, _ = z.shape

    fused = _fuse_rpn_params(params)
    Cf = fused["fw"].shape[1]
    Ch = fused["h1w"].shape[0]
    Cpad = fused["h2w"].shape[1]
    Kp = fused["fw"].shape[0]
    c_score, c_delta = fused["c_score"], fused["c_delta"]

    # 3x3 VALID conv geometry for the whole chain.
    Hsf, Wsf = Hx - 2, Wx - 2            # stem(search)
    Htf, Wtf = Hz - 2, Wz - 2            # stem(template)
    Hcs, Wcs = Hsf - 2, Wsf - 2          # conv_search out
    Hck, Wck = Htf - 2, Wtf - 2          # conv_kernel out
    Ho, Wo = Hcs - Hck + 1, Wcs - Wck + 1
    No = Ho * Wo
    Nopad = _round_up(No, 8)             # 121 -> 128: dense sublane tiles for head + out store
    Ns, Nz = Hsf * Wsf, Htf * Wtf
    Nsp, Nzp = _round_up(Ns, 8), _round_up(Nz, 8)
    Npxz = Nsp + Nzp

    # Stem im2col kept in the wrapper only because Cin=3 (toy stem); search+template patches are
    # row-concatenated (search rows padded to a sublane multiple) so the kernel runs ONE stem dot.
    # The feature-level 3x3 convs do their im2col fully in-kernel.
    px = _im2col3x3(x).astype(jnp.bfloat16)
    pz = _im2col3x3(z).astype(jnp.bfloat16)
    px = jnp.pad(px, ((0, 0), (0, Nsp - Ns), (0, 0)))
    pz = jnp.pad(pz, ((0, 0), (0, Nzp - Nz), (0, 0)))
    pxz = jnp.concatenate([px, pz], axis=1)                       # (B, Npxz, 9*Cin) bf16

    kernel = _make_fused_kernel(Ns, Nsp, Nz, Hsf, Wsf, Htf, Wtf,
                                Hcs, Wcs, Hck, Wck, Ho, Wo, No, Nopad, Cf, Ch)

    out = pl.pallas_call(
        kernel,
        out_shape=jax.ShapeDtypeStruct((B, Nopad, Cpad), jnp.float32),
        grid=(B,),
        in_specs=[
            pl.BlockSpec((None, Npxz, Kp), lambda b: (b, 0, 0)),
            pl.BlockSpec((Kp, Cf), lambda b: (0, 0)),
            pl.BlockSpec((1, Cf), lambda b: (0, 0)),
            pl.BlockSpec((9 * Cf, Ch), lambda b: (0, 0)),
            pl.BlockSpec((1, Ch), lambda b: (0, 0)),
            pl.BlockSpec((9 * Cf, Ch), lambda b: (0, 0)),
            pl.BlockSpec((1, Ch), lambda b: (0, 0)),
            pl.BlockSpec((Ch, Ch), lambda b: (0, 0)),
            pl.BlockSpec((1, Ch), lambda b: (0, 0)),
            pl.BlockSpec((Ch, Cpad), lambda b: (0, 0)),
            pl.BlockSpec((1, Cpad), lambda b: (0, 0)),
        ],
        out_specs=pl.BlockSpec((None, Nopad, Cpad), lambda b: (b, 0, 0)),
        compiler_params=pltpu.CompilerParams(dimension_semantics=("parallel",)),
    )(pxz, fused["fw"], fused["fb"], fused["ckw"], fused["ckb"],
      fused["csw"], fused["csb"], fused["h1w"], fused["h1b"],
      fused["h2w"], fused["h2b"])

    out = out[:, :No, :].reshape(B, Ho, Wo, Cpad)
    score = jnp.transpose(out[..., :c_score], (0, 3, 1, 2))                     # (B, 2k, Ho, Wo)
    delta = jnp.transpose(out[..., c_score:c_score + c_delta], (0, 3, 1, 2))    # (B, 4k, Ho, Wo)
    return score, delta


# ---------------------------------------------------------------------------
# Deterministic parameter init (BN in eval mode is folded into conv weight/bias)
# ---------------------------------------------------------------------------
def init_params(key, c_in=3, c_feat=32, hidden=32, anchor_num=5):
    ks = jax.random.split(key, 18)

    def w(k, shape, scale=0.1):
        return scale * jax.random.normal(k, shape, jnp.float32)

    def branch(keys, out_ch):
        return {
            "ck_w": w(keys[0], (3, 3, c_feat, hidden)),
            "ck_b": w(keys[1], (hidden,)),
            "cs_w": w(keys[2], (3, 3, c_feat, hidden)),
            "cs_b": w(keys[3], (hidden,)),
            "h1_w": w(keys[4], (hidden, hidden)),
            "h1_b": w(keys[5], (hidden,)),
            "h2_w": w(keys[6], (hidden, out_ch)),
            "h2_b": w(keys[7], (out_ch,)),
        }

    return {
        "feat_w": w(ks[0], (3, 3, c_in, c_feat)),
        "feat_b": w(ks[1], (c_feat,)),
        "cls": branch(ks[2:10], 2 * anchor_num),   # score: 2k channels
        "loc": branch(ks[10:18], 4 * anchor_num),  # delta: 4k channels
    }


# ---------------------------------------------------------------------------
# Pure-JAX f32 reference (correctness check of fusion / block-diag construction / bf16 path)
# ---------------------------------------------------------------------------
def _ref_conv3x3_relu(x, w, b):
    y = jax.lax.conv_general_dilated(
        x, w, window_strides=(1, 1), padding="VALID",
        dimension_numbers=("NHWC", "HWIO", "NHWC"))
    return jnp.maximum(y + b, 0.0)


def _ref_dwcorr(s, k):
    B, Hs, Ws, C = s.shape
    _, Hk, Wk, _ = k.shape
    Ho, Wo = Hs - Hk + 1, Ws - Wk + 1
    out = jnp.zeros((B, Ho, Wo, C), jnp.float32)
    for di in range(Hk):
        for dj in range(Wk):
            out = out + s[:, di:di + Ho, dj:dj + Wo, :] * k[:, di:di + 1, dj:dj + 1, :]
    return out


def _ref_depth_corr(p, t, s):
    kf = _ref_conv3x3_relu(t, p["ck_w"], p["ck_b"])
    sf = _ref_conv3x3_relu(s, p["cs_w"], p["cs_b"])
    corr = _ref_dwcorr(sf, kf)
    h = jnp.maximum(corr @ p["h1_w"] + p["h1_b"], 0.0)
    return h @ p["h2_w"] + p["h2_b"]


def _ref_forward(params, x_nchw, z_nchw):
    x = jnp.transpose(x_nchw, (0, 2, 3, 1))
    z = jnp.transpose(z_nchw, (0, 2, 3, 1))
    s = _ref_conv3x3_relu(x, params["feat_w"], params["feat_b"])
    t = _ref_conv3x3_relu(z, params["feat_w"], params["feat_b"])
    score = _ref_depth_corr(params["cls"], t, s)
    delta = _ref_depth_corr(params["loc"], t, s)
    return (jnp.transpose(score, (0, 3, 1, 2)),
            jnp.transpose(delta, (0, 3, 1, 2)))


if __name__ == "__main__":
    key = jax.random.PRNGKey(0)
    pkey, xkey, zkey = jax.random.split(key, 3)
    params = init_params(pkey)

    # SiamMask feeds a 255x255 search crop and a 127x127 template crop (NCHW); small analogous
    # shapes here.  B=2 so the grid's "parallel" batch axis has work for both v7x TensorCores.
    x = jax.random.normal(xkey, (2, 3, 20, 20), jnp.float32)  # search image   (NCHW)
    z = jax.random.normal(zkey, (2, 3, 10, 10), jnp.float32)  # template image (NCHW)

    fwd = jax.jit(dataloop_tracker_forward)
    score, delta = fwd(params, x, z)
    jax.block_until_ready((score, delta))

    # Sanity check against a pure-f32 JAX reference (bf16 MXU operands -> looser tolerance).
    ref_score, ref_delta = _ref_forward(params, x, z)
    np.testing.assert_allclose(np.asarray(score), np.asarray(ref_score), rtol=5e-2, atol=5e-2)
    np.testing.assert_allclose(np.asarray(delta), np.asarray(ref_delta), rtol=5e-2, atol=5e-2)
    assert score.shape == (2, 10, 11, 11)   # 2 * anchor_num channels
    assert delta.shape == (2, 20, 11, 11)   # 4 * anchor_num channels

    print("KERNEL_OK")
</pallas_src>

<mosaic_0001>
module attributes {stable_mosaic.version = 11 : i64} {
  func.func @kernel(%arg0: i32, %arg1: memref<1x392x27xbf16, #tpu.memory_space<vmem>>, %arg2: memref<27x32xbf16, #tpu.memory_space<vmem>>, %arg3: memref<1x32xf32, #tpu.memory_space<vmem>>, %arg4: memref<288x64xbf16, #tpu.memory_space<vmem>>, %arg5: memref<1x64xf32, #tpu.memory_space<vmem>>, %arg6: memref<288x64xbf16, #tpu.memory_space<vmem>>, %arg7: memref<1x64xf32, #tpu.memory_space<vmem>>, %arg8: memref<64x64xbf16, #tpu.memory_space<vmem>>, %arg9: memref<1x64xf32, #tpu.memory_space<vmem>>, %arg10: memref<64x128xbf16, #tpu.memory_space<vmem>>, %arg11: memref<1x128xf32, #tpu.memory_space<vmem>>, %arg12: memref<1x128x128xf32, #tpu.memory_space<vmem>>) attributes {dimension_semantics = [#tpu.dimension_semantics<parallel>], iteration_bounds = array<i64: 2>, scalar_prefetch = 0 : i64, scratch_operands = 0 : i64, tpu.core_type = #tpu.core_type<tc>, window_params = [{transform_indices = @transform_0, window_bounds = array<i64: 1, 392, 27>}, {pipeline_mode = #tpu.pipeline_mode<synchronous>, transform_indices = @transform_1, window_bounds = array<i64: 27, 32>}, {pipeline_mode = #tpu.pipeline_mode<synchronous>, transform_indices = @transform_2, window_bounds = array<i64: 1, 32>}, {pipeline_mode = #tpu.pipeline_mode<synchronous>, transform_indices = @transform_3, window_bounds = array<i64: 288, 64>}, {pipeline_mode = #tpu.pipeline_mode<synchronous>, transform_indices = @transform_4, window_bounds = array<i64: 1, 64>}, {pipeline_mode = #tpu.pipeline_mode<synchronous>, transform_indices = @transform_5, window_bounds = array<i64: 288, 64>}, {pipeline_mode = #tpu.pipeline_mode<synchronous>, transform_indices = @transform_6, window_bounds = array<i64: 1, 64>}, {pipeline_mode = #tpu.pipeline_mode<synchronous>, transform_indices = @transform_7, window_bounds = array<i64: 64, 64>}, {pipeline_mode = #tpu.pipeline_mode<synchronous>, transform_indices = @transform_8, window_bounds = array<i64: 1, 64>}, {pipeline_mode = #tpu.pipeline_mode<synchronous>, transform_indices = @transform_9, window_bounds = array<i64: 64, 128>}, {pipeline_mode = #tpu.pipeline_mode<synchronous>, transform_indices = @transform_10, window_bounds = array<i64: 1, 128>}, {transform_indices = @transform_11, window_bounds = array<i64: 1, 128, 128>}]} {
    %c0 = arith.constant 0 : index
    %c0_0 = arith.constant 0 : index
    %c0_1 = arith.constant 0 : index
    %0 = vector.load %arg1[%c0, %c0_0, %c0_1] : memref<1x392x27xbf16, #tpu.memory_space<vmem>>, vector<1x392x27xbf16>
    %1 = vector.shape_cast %0 : vector<1x392x27xbf16> to vector<392x27xbf16>
    %c0_2 = arith.constant 0 : index
    %c0_3 = arith.constant 0 : index
    %2 = vector.load %arg2[%c0_2, %c0_3] : memref<27x32xbf16, #tpu.memory_space<vmem>>, vector<27x32xbf16>
    %cst = arith.constant dense<0.000000e+00> : vector<392x32xf32>
    %3 = tpu.matmul %1, %2, %cst {dimension_numbers = #tpu.dot_dimension_numbers<[1], [0], [0], [1], [0, 0, 1, 1], [], []>} : vector<392x27xbf16>, vector<27x32xbf16>, vector<392x32xf32> -> vector<392x32xf32>
    %c0_4 = arith.constant 0 : index
    %c0_5 = arith.constant 0 : index
    %4 = vector.load %arg3[%c0_4, %c0_5] : memref<1x32xf32, #tpu.memory_space<vmem>>, vector<1x32xf32>
    %5 = vector.broadcast %4 : vector<1x32xf32> to vector<392x32xf32>
    %6 = arith.addf %3, %5 : vector<392x32xf32>
    %cst_6 = arith.constant 0.000000e+00 : f32
    %7 = vector.broadcast %cst_6 : f32 to vector<392x32xf32>
    %8 = arith.maximumf %6, %7 : vector<392x32xf32>
    %9 = arith.truncf %8 : vector<392x32xf32> to vector<392x32xbf16>
    %10 = vector.extract_strided_slice %9 {offsets = [0, 0], sizes = [324, 32], strides = [1, 1]} : vector<392x32xbf16> to vector<324x32xbf16>
    %11 = vector.shape_cast %10 : vector<324x32xbf16> to vector<18x18x32xbf16>
    %12 = vector.extract_strided_slice %9 {offsets = [328, 0], sizes = [64, 32], strides = [1, 1]} : vector<392x32xbf16> to vector<64x32xbf16>
    %13 = vector.shape_cast %12 : vector<64x32xbf16> to vector<8x8x32xbf16>
    %14 = vector.extract_strided_slice %11 {offsets = [0, 0, 0], sizes = [16, 16, 32], strides = [1, 1, 1]} : vector<18x18x32xbf16> to vector<16x16x32xbf16>
    %15 = vector.extract_strided_slice %11 {offsets = [0, 1, 0], sizes = [16, 16, 32], strides = [1, 1, 1]} : vector<18x18x32xbf16> to vector<16x16x32xbf16>
    %16 = vector.extract_strided_slice %11 {offsets = [0, 2, 0], sizes = [16, 16, 32], strides = [1, 1, 1]} : vector<18x18x32xbf16> to vector<16x16x32xbf16>
    %17 = vector.extract_strided_slice %11 {offsets = [1, 0, 0], sizes = [16, 16, 32], strides = [1, 1, 1]} : vector<18x18x32xbf16> to vector<16x16x32xbf16>
    %18 = vector.extract_strided_slice %11 {offsets = [1, 1, 0], sizes = [16, 16, 32], strides = [1, 1, 1]} : vector<18x18x32xbf16> to vector<16x16x32xbf16>
    %19 = vector.extract_strided_slice %11 {offsets = [1, 2, 0], sizes = [16, 16, 32], strides = [1, 1, 1]} : vector<18x18x32xbf16> to vector<16x16x32xbf16>
    %20 = vector.extract_strided_slice %11 {offsets = [2, 0, 0], sizes = [16, 16, 32], strides = [1, 1, 1]} : vector<18x18x32xbf16> to vector<16x16x32xbf16>
    %21 = vector.extract_strided_slice %11 {offsets = [2, 1, 0], sizes = [16, 16, 32], strides = [1, 1, 1]} : vector<18x18x32xbf16> to vector<16x16x32xbf16>
    %22 = vector.extract_strided_slice %11 {offsets = [2, 2, 0], sizes = [16, 16, 32], strides = [1, 1, 1]} : vector<18x18x32xbf16> to vector<16x16x32xbf16>
    %23 = tpu.concatenate %14, %15, %16, %17, %18, %19, %20, %21, %22 in 2 : vector<16x16x32xbf16>, vector<16x16x32xbf16>, vector<16x16x32xbf16>, vector<16x16x32xbf16>, vector<16x16x32xbf16>, vector<16x16x32xbf16>, vector<16x16x32xbf16>, vector<16x16x32xbf16>, vector<16x16x32xbf16> -> vector<16x16x288xbf16>
    %24 = vector.shape_cast %23 : vector<16x16x288xbf16> to vector<256x288xbf16>
    %c0_7 = arith.constant 0 : index
    %c0_8 = arith.constant 0 : index
    %25 = vector.load %arg6[%c0_7, %c0_8] : memref<288x64xbf16, #tpu.memory_space<vmem>>, vector<288x64xbf16>
    %cst_9 = arith.constant dense<0.000000e+00> : vector<256x64xf32>
    %26 = tpu.matmul %24, %25, %cst_9 {dimension_numbers = #tpu.dot_dimension_numbers<[1], [0], [0], [1], [0, 0, 1, 1], [], []>} : vector<256x288xbf16>, vector<288x64xbf16>, vector<256x64xf32> -> vector<256x64xf32>
    %c0_10 = arith.constant 0 : index
    %c0_11 = arith.constant 0 : index
    %27 = vector.load %arg7[%c0_10, %c0_11] : memref<1x64xf32, #tpu.memory_space<vmem>>, vector<1x64xf32>
    %28 = vector.broadcast %27 : vector<1x64xf32> to vector<256x64xf32>
    %29 = arith.addf %26, %28 : vector<256x64xf32>
    %cst_12 = arith.constant 0.000000e+00 : f32
    %30 = vector.broadcast %cst_12 : f32 to vector<256x64xf32>
    %31 = arith.maximumf %29, %30 : vector<256x64xf32>
    %32 = vector.extract_strided_slice %13 {offsets = [0, 0, 0], sizes = [6, 6, 32], strides = [1, 1, 1]} : vector<8x8x32xbf16> to vector<6x6x32xbf16>
    %33 = vector.extract_strided_slice %13 {offsets = [0, 1, 0], sizes = [6, 6, 32], strides = [1, 1, 1]} : vector<8x8x32xbf16> to vector<6x6x32xbf16>
    %34 = vector.extract_strided_slice %13 {offsets = [0, 2, 0], sizes = [6, 6, 32], strides = [1, 1, 1]} : vector<8x8x32xbf16> to vector<6x6x32xbf16>
    %35 = vector.extract_strided_slice %13 {offsets = [1, 0, 0], sizes = [6, 6, 32], strides = [1, 1, 1]} : vector<8x8x32xbf16> to vector<6x6x32xbf16>
    %36 = vector.extract_strided_slice %13 {offsets = [1, 1, 0], sizes = [6, 6, 32], strides = [1, 1, 1]} : vector<8x8x32xbf16> to vector<6x6x32xbf16>
    %37 = vector.extract_strided_slice %13 {offsets = [1, 2, 0], sizes = [6, 6, 32], strides = [1, 1, 1]} : vector<8x8x32xbf16> to vector<6x6x32xbf16>
    %38 = vector.extract_strided_slice %13 {offsets = [2, 0, 0], sizes = [6, 6, 32], strides = [1, 1, 1]} : vector<8x8x32xbf16> to vector<6x6x32xbf16>
    %39 = vector.extract_strided_slice %13 {offsets = [2, 1, 0], sizes = [6, 6, 32], strides = [1, 1, 1]} : vector<8x8x32xbf16> to vector<6x6x32xbf16>
    %40 = vector.extract_strided_slice %13 {offsets = [2, 2, 0], sizes = [6, 6, 32], strides = [1, 1, 1]} : vector<8x8x32xbf16> to vector<6x6x32xbf16>
    %41 = tpu.concatenate %32, %33, %34, %35, %36, %37, %38, %39, %40 in 2 : vector<6x6x32xbf16>, vector<6x6x32xbf16>, vector<6x6x32xbf16>, vector<6x6x32xbf16>, vector<6x6x32xbf16>, vector<6x6x32xbf16>, vector<6x6x32xbf16>, vector<6x6x32xbf16>, vector<6x6x32xbf16> -> vector<6x6x288xbf16>
    %42 = vector.shape_cast %41 : vector<6x6x288xbf16> to vector<36x288xbf16>
    %c0_13 = arith.constant 0 : index
    %c0_14 = arith.constant 0 : index
    %43 = vector.load %arg4[%c0_13, %c0_14] : memref<288x64xbf16, #tpu.memory_space<vmem>>, vector<288x64xbf16>
    %cst_15 = arith.constant dense<0.000000e+00> : vector<36x64xf32>
    %44 = tpu.matmul %42, %43, %cst_15 {dimension_numbers = #tpu.dot_dimension_numbers<[1], [0], [0], [1], [0, 0, 1, 1], [], []>} : vector<36x288xbf16>, vector<288x64xbf16>, vector<36x64xf32> -> vector<36x64xf32>
    %c0_16 = arith.constant 0 : index
    %c0_17 = arith.constant 0 : index
    %45 = vector.load %arg5[%c0_16, %c0_17] : memref<1x64xf32, #tpu.memory_space<vmem>>, vector<1x64xf32>
    %46 = vector.broadcast %45 : vector<1x64xf32> to vector<36x64xf32>
    %47 = arith.addf %44, %46 : vector<36x64xf32>
    %cst_18 = arith.constant 0.000000e+00 : f32
    %48 = vector.broadcast %cst_18 : f32 to vector<36x64xf32>
    %49 = arith.maximumf %47, %48 : vector<36x64xf32>
    %50 = vector.shape_cast %31 : vector<256x64xf32> to vector<16x16x64xf32>
    %51 = vector.shape_cast %49 : vector<36x64xf32> to vector<6x6x64xf32>
    %cst_19 = arith.constant 0.000000e+00 : f32
    %52 = vector.broadcast %cst_19 : f32 to vector<11x11x64xf32>
    %53 = vector.extract_strided_slice %50 {offsets = [0, 0, 0], sizes = [16, 11, 64], strides = [1, 1, 1]} : vector<16x16x64xf32> to vector<16x11x64xf32>
    %54 = vector.extract_strided_slice %53 {offsets = [0, 0, 0], sizes = [11, 11, 64], strides = [1, 1, 1]} : vector<16x11x64xf32> to vector<11x11x64xf32>
    %55 = vector.extract_strided_slice %51 {offsets = [0, 0, 0], sizes = [1, 1, 64], strides = [1, 1, 1]} : vector<6x6x64xf32> to vector<1x1x64xf32>
    %56 = vector.broadcast %55 : vector<1x1x64xf32> to vector<11x11x64xf32>
    %57 = arith.mulf %54, %56 : vector<11x11x64xf32>
    %58 = arith.addf %52, %57 : vector<11x11x64xf32>
    %59 = vector.extract_strided_slice %53 {offsets = [1, 0, 0], sizes = [11, 11, 64], strides = [1, 1, 1]} : vector<16x11x64xf32> to vector<11x11x64xf32>
    %60 = vector.extract_strided_slice %51 {offsets = [1, 0, 0], sizes = [1, 1, 64], strides = [1, 1, 1]} : vector<6x6x64xf32> to vector<1x1x64xf32>
    %61 = vector.broadcast %60 : vector<1x1x64xf32> to vector<11x11x64xf32>
    %62 = arith.mulf %59, %61 : vector<11x11x64xf32>
    %63 = arith.addf %58, %62 : vector<11x11x64xf32>
    %64 = vector.extract_strided_slice %53 {offsets = [2, 0, 0], sizes = [11, 11, 64], strides = [1, 1, 1]} : vector<16x11x64xf32> to vector<11x11x64xf32>
    %65 = vector.extract_strided_slice %51 {offsets = [2, 0, 0], sizes = [1, 1, 64], strides = [1, 1, 1]} : vector<6x6x64xf32> to vector<1x1x64xf32>
    %66 = vector.broadcast %65 : vector<1x1x64xf32> to vector<11x11x64xf32>
    %67 = arith.mulf %64, %66 : vector<11x11x64xf32>
    %68 = arith.addf %63, %67 : vector<11x11x64xf32>
    %69 = vector.extract_strided_slice %53 {offsets = [3, 0, 0], sizes = [11, 11, 64], strides = [1, 1, 1]} : vector<16x11x64xf32> to vector<11x11x64xf32>
    %70 = vector.extract_strided_slice %51 {offsets = [3, 0, 0], sizes = [1, 1, 64], strides = [1, 1, 1]} : vector<6x6x64xf32> to vector<1x1x64xf32>
    %71 = vector.broadcast %70 : vector<1x1x64xf32> to vector<11x11x64xf32>
    %72 = arith.mulf %69, %71 : vector<11x11x64xf32>
    %73 = arith.addf %68, %72 : vector<11x11x64xf32>
    %74 = vector.extract_strided_slice %53 {offsets = [4, 0, 0], sizes = [11, 11, 64], strides = [1, 1, 1]} : vector<16x11x64xf32> to vector<11x11x64xf32>
    %75 = vector.extract_strided_slice %51 {offsets = [4, 0, 0], sizes = [1, 1, 64], strides = [1, 1, 1]} : vector<6x6x64xf32> to vector<1x1x64xf32>
    %76 = vector.broadcast %75 : vector<1x1x64xf32> to vector<11x11x64xf32>
    %77 = arith.mulf %74, %76 : vector<11x11x64xf32>
    %78 = arith.addf %73, %77 : vector<11x11x64xf32>
    %79 = vector.extract_strided_slice %53 {offsets = [5, 0, 0], sizes = [11, 11, 64], strides = [1, 1, 1]} : vector<16x11x64xf32> to vector<11x11x64xf32>
    %80 = vector.extract_strided_slice %51 {offsets = [5, 0, 0], sizes = [1, 1, 64], strides = [1, 1, 1]} : vector<6x6x64xf32> to vector<1x1x64xf32>
    %81 = vector.broadcast %80 : vector<1x1x64xf32> to vector<11x11x64xf32>
    %82 = arith.mulf %79, %81 : vector<11x11x64xf32>
    %83 = arith.addf %78, %82 : vector<11x11x64xf32>
    %84 = vector.extract_strided_slice %50 {offsets = [0, 1, 0], sizes = [16, 11, 64], strides = [1, 1, 1]} : vector<16x16x64xf32> to vector<16x11x64xf32>
    %85 = vector.extract_strided_slice %84 {offsets = [0, 0, 0], sizes = [11, 11, 64], strides = [1, 1, 1]} : vector<16x11x64xf32> to vector<11x11x64xf32>
    %86 = vector.extract_strided_slice %51 {offsets = [0, 1, 0], sizes = [1, 1, 64], strides = [1, 1, 1]} : vector<6x6x64xf32> to vector<1x1x64xf32>
    %87 = vector.broadcast %86 : vector<1x1x64xf32> to vector<11x11x64xf32>
    %88 = arith.mulf %85, %87 : vector<11x11x64xf32>
    %89 = arith.addf %83, %88 : vector<11x11x64xf32>
    %90 = vector.extract_strided_slice %84 {offsets = [1, 0, 0], sizes = [11, 11, 64], strides = [1, 1, 1]} : vector<16x11x64xf32> to vector<11x11x64xf32>
    %91 = vector.extract_strided_slice %51 {offsets = [1, 1, 0], sizes = [1, 1, 64], strides = [1, 1, 1]} : vector<6x6x64xf32> to vector<1x1x64xf32>
    %92 = vector.broadcast %91 : vector<1x1x64xf32> to vector<11x11x64xf32>
    %93 = arith.mulf %90, %92 : vector<11x11x64xf32>
    %94 = arith.addf %89, %93 : vector<11x11x64xf32>
    %95 = vector.extract_strided_slice %84 {offsets = [2, 0, 0], sizes = [11, 11, 64], strides = [1, 1, 1]} : vector<16x11x64xf32> to vector<11x11x64xf32>
    %96 = vector.extract_strided_slice %51 {offsets = [2, 1, 0], sizes = [1, 1, 64], strides = [1, 1, 1]} : vector<6x6x64xf32> to vector<1x1x64xf32>
    %97 = vector.broadcast %96 : vector<1x1x64xf32> to vector<11x11x64xf32>
    %98 = arith.mulf %95, %97 : vector<11x11x64xf32>
    %99 = arith.addf %94, %98 : vector<11x11x64xf32>
    %100 = vector.extract_strided_slice %84 {offsets = [3, 0, 0], sizes = [11, 11, 64], strides = [1, 1, 1]} : vector<16x11x64xf32> to vector<11x11x64xf32>
    %101 = vector.extract_strided_slice %51 {offsets = [3, 1, 0], sizes = [1, 1, 64], strides = [1, 1, 1]} : vector<6x6x64xf32> to vector<1x1x64xf32>
    %102 = vector.broadcast %101 : vector<1x1x64xf32> to vector<11x11x64xf32>
    %103 = arith.mulf %100, %102 : vector<11x11x64xf32>
    %104 = arith.addf %99, %103 : vector<11x11x64xf32>
    %105 = vector.extract_strided_slice %84 {offsets = [4, 0, 0], sizes = [11, 11, 64], strides = [1, 1, 1]} : vector<16x11x64xf32> to vector<11x11x64xf32>
    %106 = vector.extract_strided_slice %51 {offsets = [4, 1, 0], sizes = [1, 1, 64], strides = [1, 1, 1]} : vector<6x6x64xf32> to vector<1x1x64xf32>
    %107 = vector.broadcast %106 : vector<1x1x64xf32> to vector<11x11x64xf32>
    %108 = arith.mulf %105, %107 : vector<11x11x64xf32>
    %109 = arith.addf %104, %108 : vector<11x11x64xf32>
    %110 = vector.extract_strided_slice %84 {offsets = [5, 0, 0], sizes = [11, 11, 64], strides = [1, 1, 1]} : vector<16x11x64xf32> to vector<11x11x64xf32>
    %111 = vector.extract_strided_slice %51 {offsets = [5, 1, 0], sizes = [1, 1, 64], strides = [1, 1, 1]} : vector<6x6x64xf32> to vector<1x1x64xf32>
    %112 = vector.broadcast %111 : vector<1x1x64xf32> to vector<11x11x64xf32>
    %113 = arith.mulf %110, %112 : vector<11x11x64xf32>
    %114 = arith.addf %109, %113 : vector<11x11x64xf32>
    %115 = vector.extract_strided_slice %50 {offsets = [0, 2, 0], sizes = [16, 11, 64], strides = [1, 1, 1]} : vector<16x16x64xf32> to vector<16x11x64xf32>
    %116 = vector.extract_strided_slice %115 {offsets = [0, 0, 0], sizes = [11, 11, 64], strides = [1, 1, 1]} : vector<16x11x64xf32> to vector<11x11x64xf32>
    %117 = vector.extract_strided_slice %51 {offsets = [0, 2, 0], sizes = [1, 1, 64], strides = [1, 1, 1]} : vector<6x6x64xf32> to vector<1x1x64xf32>
    %118 = vector.broadcast %117 : vector<1x1x64xf32> to vector<11x11x64xf32>
    %119 = arith.mulf %116, %118 : vector<11x11x64xf32>
    %120 = arith.addf %114, %119 : vector<11x11x64xf32>
    %121 = vector.extract_strided_slice %115 {offsets = [1, 0, 0], sizes = [11, 11, 64], strides = [1, 1, 1]} : vector<16x11x64xf32> to vector<11x11x64xf32>
    %122 = vector.extract_strided_slice %51 {offsets = [1, 2, 0], sizes = [1, 1, 64], strides = [1, 1, 1]} : vector<6x6x64xf32> to vector<1x1x64xf32>
    %123 = vector.broadcast %122 : vector<1x1x64xf32> to vector<11x11x64xf32>
    %124 = arith.mulf %121, %123 : vector<11x11x64xf32>
    %125 = arith.addf %120, %124 : vector<11x11x64xf32>
    %126 = vector.extract_strided_slice %115 {offsets = [2, 0, 0], sizes = [11, 11, 64], strides = [1, 1, 1]} : vector<16x11x64xf32> to vector<11x11x64xf32>
    %127 = vector.extract_strided_slice %51 {offsets = [2, 2, 0], sizes = [1, 1, 64], strides = [1, 1, 1]} : vector<6x6x64xf32> to vector<1x1x64xf32>
    %128 = vector.broadcast %127 : vector<1x1x64xf32> to vector<11x11x64xf32>
    %129 = arith.mulf %126, %128 : vector<11x11x64xf32>
    %130 = arith.addf %125, %129 : vector<11x11x64xf32>
    %131 = vector.extract_strided_slice %115 {offsets = [3, 0, 0], sizes = [11, 11, 64], strides = [1, 1, 1]} : vector<16x11x64xf32> to vector<11x11x64xf32>
    %132 = vector.extract_strided_slice %51 {offsets = [3, 2, 0], sizes = [1, 1, 64], strides = [1, 1, 1]} : vector<6x6x64xf32> to vector<1x1x64xf32>
    %133 = vector.broadcast %132 : vector<1x1x64xf32> to vector<11x11x64xf32>
    %134 = arith.mulf %131, %133 : vector<11x11x64xf32>
    %135 = arith.addf %130, %134 : vector<11x11x64xf32>
    %136 = vector.extract_strided_slice %115 {offsets = [4, 0, 0], sizes = [11, 11, 64], strides = [1, 1, 1]} : vector<16x11x64xf32> to vector<11x11x64xf32>
    %137 = vector.extract_strided_slice %51 {offsets = [4, 2, 0], sizes = [1, 1, 64], strides = [1, 1, 1]} : vector<6x6x64xf32> to vector<1x1x64xf32>
    %138 = vector.broadcast %137 : vector<1x1x64xf32> to vector<11x11x64xf32>
    %139 = arith.mulf %136, %138 : vector<11x11x64xf32>
    %140 = arith.addf %135, %139 : vector<11x11x64xf32>
    %141 = vector.extract_strided_slice %115 {offsets = [5, 0, 0], sizes = [11, 11, 64], strides = [1, 1, 1]} : vector<16x11x64xf32> to vector<11x11x64xf32>
    %142 = vector.extract_strided_slice %51 {offsets = [5, 2, 0], sizes = [1, 1, 64], strides = [1, 1, 1]} : vector<6x6x64xf32> to vector<1x1x64xf32>
    %143 = vector.broadcast %142 : vector<1x1x64xf32> to vector<11x11x64xf32>
    %144 = arith.mulf %141, %143 : vector<11x11x64xf32>
    %145 = arith.addf %140, %144 : vector<11x11x64xf32>
    %146 = vector.extract_strided_slice %50 {offsets = [0, 3, 0], sizes = [16, 11, 64], strides = [1, 1, 1]} : vector<16x16x64xf32> to vector<16x11x64xf32>
    %147 = vector.extract_strided_slice %146 {offsets = [0, 0, 0], sizes = [11, 11, 64], strides = [1, 1, 1]} : vector<16x11x64xf32> to vector<11x11x64xf32>
    %148 = vector.extract_strided_slice %51 {offsets = [0, 3, 0], sizes = [1, 1, 64], strides = [1, 1, 1]} : vector<6x6x64xf32> to vector<1x1x64xf32>
    %149 = vector.broadcast %148 : vector<1x1x64xf32> to vector<11x11x64xf32>
    %150 = arith.mulf %147, %149 : vector<11x11x64xf32>
    %151 = arith.addf %145, %150 : vector<11x11x64xf32>
    %152 = vector.extract_strided_slice %146 {offsets = [1, 0, 0], sizes = [11, 11, 64], strides = [1, 1, 1]} : vector<16x11x64xf32> to vector<11x11x64xf32>
    %153 = vector.extract_strided_slice %51 {offsets = [1, 3, 0], sizes = [1, 1, 64], strides = [1, 1, 1]} : vector<6x6x64xf32> to vector<1x1x64xf32>
    %154 = vector.broadcast %153 : vector<1x1x64xf32> to vector<11x11x64xf32>
    %155 = arith.mulf %152, %154 : vector<11x11x64xf32>
    %156 = arith.addf %151, %155 : vector<11x11x64xf32>
    %157 = vector.extract_strided_slice %146 {offsets = [2, 0, 0], sizes = [11, 11, 64], strides = [1, 1, 1]} : vector<16x11x64xf32> to vector<11x11x64xf32>
    %158 = vector.extract_strided_slice %51 {offsets = [2, 3, 0], sizes = [1, 1, 64], strides = [1, 1, 1]} : vector<6x6x64xf32> to vector<1x1x64xf32>
    %159 = vector.broadcast %158 : vector<1x1x64xf32> to vector<11x11x64xf32>
    %160 = arith.mulf %157, %159 : vector<11x11x64xf32>
    %161 = arith.addf %156, %160 : vector<11x11x64xf32>
    %162 = vector.extract_strided_slice %146 {offsets = [3, 0, 0], sizes = [11, 11, 64], strides = [1, 1, 1]} : vector<16x11x64xf32> to vector<11x11x64xf32>
    %163 = vector.extract_strided_slice %51 {offsets = [3, 3, 0], sizes = [1, 1, 64], strides = [1, 1, 1]} : vector<6x6x64xf32> to vector<1x1x64xf32>
    %164 = vector.broadcast %163 : vector<1x1x64xf32> to vector<11x11x64xf32>
    %165 = arith.mulf %162, %164 : vector<11x11x64xf32>
    %166 = arith.addf %161, %165 : vector<11x11x64xf32>
    %167 = vector.extract_strided_slice %146 {offsets = [4, 0, 0], sizes = [11, 11, 64], strides = [1, 1, 1]} : vector<16x11x64xf32> to vector<11x11x64xf32>
    %168 = vector.extract_strided_slice %51 {offsets = [4, 3, 0], sizes = [1, 1, 64], strides = [1, 1, 1]} : vector<6x6x64xf32> to vector<1x1x64xf32>
    %169 = vector.broadcast %168 : vector<1x1x64xf32> to vector<11x11x64xf32>
    %170 = arith.mulf %167, %169 : vector<11x11x64xf32>
    %171 = arith.addf %166, %170 : vector<11x11x64xf32>
    %172 = vector.extract_strided_slice %146 {offsets = [5, 0, 0], sizes = [11, 11, 64], strides = [1, 1, 1]} : vector<16x11x64xf32> to vector<11x11x64xf32>
    %173 = vector.extract_strided_slice %51 {offsets = [5, 3, 0], sizes = [1, 1, 64], strides = [1, 1, 1]} : vector<6x6x64xf32> to vector<1x1x64xf32>
    %174 = vector.broadcast %173 : vector<1x1x64xf32> to vector<11x11x64xf32>
    %175 = arith.mulf %172, %174 : vector<11x11x64xf32>
    %176 = arith.addf %171, %175 : vector<11x11x64xf32>
    %177 = vector.extract_strided_slice %50 {offsets = [0, 4, 0], sizes = [16, 11, 64], strides = [1, 1, 1]} : vector<16x16x64xf32> to vector<16x11x64xf32>
    %178 = vector.extract_strided_slice %177 {offsets = [0, 0, 0], sizes = [11, 11, 64], strides = [1, 1, 1]} : vector<16x11x64xf32> to vector<11x11x64xf32>
    %179 = vector.extract_strided_slice %51 {offsets = [0, 4, 0], sizes = [1, 1, 64], strides = [1, 1, 1]} : vector<6x6x64xf32> to vector<1x1x64xf32>
    %180 = vector.broadcast %179 : vector<1x1x64xf32> to vector<11x11x64xf32>
    %181 = arith.mulf %178, %180 : vector<11x11x64xf32>
    %182 = arith.addf %176, %181 : vector<11x11x64xf32>
    %183 = vector.extract_strided_slice %177 {offsets = [1, 0, 0], sizes = [11, 11, 64], strides = [1, 1, 1]} : vector<16x11x64xf32> to vector<11x11x64xf32>
    %184 = vector.extract_strided_slice %51 {offsets = [1, 4, 0], sizes = [1, 1, 64], strides = [1, 1, 1]} : vector<6x6x64xf32> to vector<1x1x64xf32>
    %185 = vector.broadcast %184 : vector<1x1x64xf32> to vector<11x11x64xf32>
    %186 = arith.mulf %183, %185 : vector<11x11x64xf32>
    %187 = arith.addf %182, %186 : vector<11x11x64xf32>
    %188 = vector.extract_strided_slice %177 {offsets = [2, 0, 0], sizes = [11, 11, 64], strides = [1, 1, 1]} : vector<16x11x64xf32> to vector<11x11x64xf32>
    %189 = vector.extract_strided_slice %51 {offsets = [2, 4, 0], sizes = [1, 1, 64], strides = [1, 1, 1]} : vector<6x6x64xf32> to vector<1x1x64xf32>
    %190 = vector.broadcast %189 : vector<1x1x64xf32> to vector<11x11x64xf32>
    %191 = arith.mulf %188, %190 : vector<11x11x64xf32>
    %192 = arith.addf %187, %191 : vector<11x11x64xf32>
    %193 = vector.extract_strided_slice %177 {offsets = [3, 0, 0], sizes = [11, 11, 64], strides = [1, 1, 1]} : vector<16x11x64xf32> to vector<11x11x64xf32>
    %194 = vector.extract_strided_slice %51 {offsets = [3, 4, 0], sizes = [1, 1, 64], strides = [1, 1, 1]} : vector<6x6x64xf32> to vector<1x1x64xf32>
    %195 = vector.broadcast %194 : vector<1x1x64xf32> to vector<11x11x64xf32>
    %196 = arith.mulf %193, %195 : vector<11x11x64xf32>
    %197 = arith.addf %192, %196 : vector<11x11x64xf32>
    %198 = vector.extract_strided_slice %177 {offsets = [4, 0, 0], sizes = [11, 11, 64], strides = [1, 1, 1]} : vector<16x11x64xf32> to vector<11x11x64xf32>
    %199 = vector.extract_strided_slice %51 {offsets = [4, 4, 0], sizes = [1, 1, 64], strides = [1, 1, 1]} : vector<6x6x64xf32> to vector<1x1x64xf32>
    %200 = vector.broadcast %199 : vector<1x1x64xf32> to vector<11x11x64xf32>
    %201 = arith.mulf %198, %200 : vector<11x11x64xf32>
    %202 = arith.addf %197, %201 : vector<11x11x64xf32>
    %203 = vector.extract_strided_slice %177 {offsets = [5, 0, 0], sizes = [11, 11, 64], strides = [1, 1, 1]} : vector<16x11x64xf32> to vector<11x11x64xf32>
    %204 = vector.extract_strided_slice %51 {offsets = [5, 4, 0], sizes = [1, 1, 64], strides = [1, 1, 1]} : vector<6x6x64xf32> to vector<1x1x64xf32>
    %205 = vector.broadcast %204 : vector<1x1x64xf32> to vector<11x11x64xf32>
    %206 = arith.mulf %203, %205 : vector<11x11x64xf32>
    %207 = arith.addf %202, %206 : vector<11x11x64xf32>
    %208 = vector.extract_strided_slice %50 {offsets = [0, 5, 0], sizes = [16, 11, 64], strides = [1, 1, 1]} : vector<16x16x64xf32> to vector<16x11x64xf32>
    %209 = vector.extract_strided_slice %208 {offsets = [0, 0, 0], sizes = [11, 11, 64], strides = [1, 1, 1]} : vector<16x11x64xf32> to vector<11x11x64xf32>
    %210 = vector.extract_strided_slice %51 {offsets = [0, 5, 0], sizes = [1, 1, 64], strides = [1, 1, 1]} : vector<6x6x64xf32> to vector<1x1x64xf32>
    %211 = vector.broadcast %210 : vector<1x1x64xf32> to vector<11x11x64xf32>
    %212 = arith.mulf %209, %211 : vector<11x11x64xf32>
    %213 = arith.addf %207, %212 : vector<11x11x64xf32>
    %214 = vector.extract_strided_slice %208 {offsets = [1, 0, 0], sizes = [11, 11, 64], strides = [1, 1, 1]} : vector<16x11x64xf32> to vector<11x11x64xf32>
    %215 = vector.extract_strided_slice %51 {offsets = [1, 5, 0], sizes = [1, 1, 64], strides = [1, 1, 1]} : vector<6x6x64xf32> to vector<1x1x64xf32>
    %216 = vector.broadcast %215 : vector<1x1x64xf32> to vector<11x11x64xf32>
    %217 = arith.mulf %214, %216 : vector<11x11x64xf32>
    %218 = arith.addf %213, %217 : vector<11x11x64xf32>
    %219 = vector.extract_strided_slice %208 {offsets = [2, 0, 0], sizes = [11, 11, 64], strides = [1, 1, 1]} : vector<16x11x64xf32> to vector<11x11x64xf32>
    %220 = vector.extract_strided_slice %51 {offsets = [2, 5, 0], sizes = [1, 1, 64], strides = [1, 1, 1]} : vector<6x6x64xf32> to vector<1x1x64xf32>
    %221 = vector.broadcast %220 : vector<1x1x64xf32> to vector<11x11x64xf32>
    %222 = arith.mulf %219, %221 : vector<11x11x64xf32>
    %223 = arith.addf %218, %222 : vector<11x11x64xf32>
    %224 = vector.extract_strided_slice %208 {offsets = [3, 0, 0], sizes = [11, 11, 64], strides = [1, 1, 1]} : vector<16x11x64xf32> to vector<11x11x64xf32>
    %225 = vector.extract_strided_slice %51 {offsets = [3, 5, 0], sizes = [1, 1, 64], strides = [1, 1, 1]} : vector<6x6x64xf32> to vector<1x1x64xf32>
    %226 = vector.broadcast %225 : vector<1x1x64xf32> to vector<11x11x64xf32>
    %227 = arith.mulf %224, %226 : vector<11x11x64xf32>
    %228 = arith.addf %223, %227 : vector<11x11x64xf32>
    %229 = vector.extract_strided_slice %208 {offsets = [4, 0, 0], sizes = [11, 11, 64], strides = [1, 1, 1]} : vector<16x11x64xf32> to vector<11x11x64xf32>
    %230 = vector.extract_strided_slice %51 {offsets = [4, 5, 0], sizes = [1, 1, 64], strides = [1, 1, 1]} : vector<6x6x64xf32> to vector<1x1x64xf32>
    %231 = vector.broadcast %230 : vector<1x1x64xf32> to vector<11x11x64xf32>
    %232 = arith.mulf %229, %231 : vector<11x11x64xf32>
    %233 = arith.addf %228, %232 : vector<11x11x64xf32>
    %234 = vector.extract_strided_slice %208 {offsets = [5, 0, 0], sizes = [11, 11, 64], strides = [1, 1, 1]} : vector<16x11x64xf32> to vector<11x11x64xf32>
    %235 = vector.extract_strided_slice %51 {offsets = [5, 5, 0], sizes = [1, 1, 64], strides = [1, 1, 1]} : vector<6x6x64xf32> to vector<1x1x64xf32>
    %236 = vector.broadcast %235 : vector<1x1x64xf32> to vector<11x11x64xf32>
    %237 = arith.mulf %234, %236 : vector<11x11x64xf32>
    %238 = arith.addf %233, %237 : vector<11x11x64xf32>
    %239 = vector.shape_cast %238 : vector<11x11x64xf32> to vector<121x64xf32>
    %cst_20 = arith.constant 0.000000e+00 : f32
    %240 = vector.broadcast %cst_20 : f32 to vector<7x64xf32>
    %241 = tpu.concatenate %239, %240 in 0 : vector<121x64xf32>, vector<7x64xf32> -> vector<128x64xf32>
    %242 = arith.truncf %241 : vector<128x64xf32> to vector<128x64xbf16>
    %c0_21 = arith.constant 0 : index
    %c0_22 = arith.constant 0 : index
    %243 = vector.load %arg8[%c0_21, %c0_22] : memref<64x64xbf16, #tpu.memory_space<vmem>>, vector<64x64xbf16>
    %cst_23 = arith.constant dense<0.000000e+00> : vector<128x64xf32>
    %244 = tpu.matmul %242, %243, %cst_23 {dimension_numbers = #tpu.dot_dimension_numbers<[1], [0], [0], [1], [0, 0, 1, 1], [], []>} : vector<128x64xbf16>, vector<64x64xbf16>, vector<128x64xf32> -> vector<128x64xf32>
    %c0_24 = arith.constant 0 : index
    %c0_25 = arith.constant 0 : index
    %245 = vector.load %arg9[%c0_24, %c0_25] : memref<1x64xf32, #tpu.memory_space<vmem>>, vector<1x64xf32>
    %246 = vector.broadcast %245 : vector<1x64xf32> to vector<128x64xf32>
    %247 = arith.addf %244, %246 : vector<128x64xf32>
    %cst_26 = arith.constant 0.000000e+00 : f32
    %248 = vector.broadcast %cst_26 : f32 to vector<128x64xf32>
    %249 = arith.maximumf %247, %248 : vector<128x64xf32>
    %250 = arith.truncf %249 : vector<128x64xf32> to vector<128x64xbf16>
    %c0_27 = arith.constant 0 : index
    %c0_28 = arith.constant 0 : index
    %251 = vector.load %arg10[%c0_27, %c0_28] : memref<64x128xbf16, #tpu.memory_space<vmem>>, vector<64x128xbf16>
    %cst_29 = arith.constant dense<0.000000e+00> : vector<128x128xf32>
    %252 = tpu.matmul %250, %251, %cst_29 {dimension_numbers = #tpu.dot_dimension_numbers<[1], [0], [0], [1], [0, 0, 1, 1], [], []>} : vector<128x64xbf16>, vector<64x128xbf16>, vector<128x128xf32> -> vector<128x128xf32>
    %c0_30 = arith.constant 0 : index
    %c0_31 = arith.constant 0 : index
    %253 = vector.load %arg11[%c0_30, %c0_31] : memref<1x128xf32, #tpu.memory_space<vmem>>, vector<1x128xf32>
    %254 = vector.broadcast %253 : vector<1x128xf32> to vector<128x128xf32>
    %255 = arith.addf %252, %254 : vector<128x128xf32>
    %c0_32 = arith.constant 0 : index
    %c0_33 = arith.constant 0 : index
    %c0_34 = arith.constant 0 : index
    %256 = vector.load %arg12[%c0_32, %c0_33, %c0_34] : memref<1x128x128xf32, #tpu.memory_space<vmem>>, vector<1x128x128xf32>
    %257 = vector.shape_cast %256 : vector<1x128x128xf32> to vector<128x128xf32>
    %258 = vector.shape_cast %255 : vector<128x128xf32> to vector<1x128x128xf32>
    tpu.vector_store %arg12[%c0_32, %c0_33, %c0_34], %258 {strides = array<i32>} : memref<1x128x128xf32, #tpu.memory_space<vmem>>, vector<1x128x128xf32>,
    return
  }
  func.func @transform_0(%arg0: i32) -> (i32, i32, i32) {
    %c0_i32 = arith.constant 0 : i32
    %c0_i32_0 = arith.constant 0 : i32
    %c0_i32_1 = arith.constant 0 : i32
    return %arg0, %c0_i32, %c0_i32_0 : i32, i32, i32
  }
  func.func @transform_1(%arg0: i32) -> (i32, i32) {
    %c0_i32 = arith.constant 0 : i32
    %c0_i32_0 = arith.constant 0 : i32
    %c0_i32_1 = arith.constant 0 : i32
    return %c0_i32, %c0_i32_0 : i32, i32
  }
  func.func @transform_2(%arg0: i32) -> (i32, i32) {
    %c0_i32 = arith.constant 0 : i32
    %c0_i32_0 = arith.constant 0 : i32
    %c0_i32_1 = arith.constant 0 : i32
    return %c0_i32, %c0_i32_0 : i32, i32
  }
  func.func @transform_3(%arg0: i32) -> (i32, i32) {
    %c0_i32 = arith.constant 0 : i32
    %c0_i32_0 = arith.constant 0 : i32
    %c0_i32_1 = arith.constant 0 : i32
    return %c0_i32, %c0_i32_0 : i32, i32
  }
  func.func @transform_4(%arg0: i32) -> (i32, i32) {
    %c0_i32 = arith.constant 0 : i32
    %c0_i32_0 = arith.constant 0 : i32
    %c0_i32_1 = arith.constant 0 : i32
    return %c0_i32, %c0_i32_0 : i32, i32
  }
  func.func @transform_5(%arg0: i32) -> (i32, i32) {
    %c0_i32 = arith.constant 0 : i32
    %c0_i32_0 = arith.constant 0 : i32
    %c0_i32_1 = arith.constant 0 : i32
    return %c0_i32, %c0_i32_0 : i32, i32
  }
  func.func @transform_6(%arg0: i32) -> (i32, i32) {
    %c0_i32 = arith.constant 0 : i32
    %c0_i32_0 = arith.constant 0 : i32
    %c0_i32_1 = arith.constant 0 : i32
    return %c0_i32, %c0_i32_0 : i32, i32
  }
  func.func @transform_7(%arg0: i32) -> (i32, i32) {
    %c0_i32 = arith.constant 0 : i32
    %c0_i32_0 = arith.constant 0 : i32
    %c0_i32_1 = arith.constant 0 : i32
    return %c0_i32, %c0_i32_0 : i32, i32
  }
  func.func @transform_8(%arg0: i32) -> (i32, i32) {
    %c0_i32 = arith.constant 0 : i32
    %c0_i32_0 = arith.constant 0 : i32
    %c0_i32_1 = arith.constant 0 : i32
    return %c0_i32, %c0_i32_0 : i32, i32
  }
  func.func @transform_9(%arg0: i32) -> (i32, i32) {
    %c0_i32 = arith.constant 0 : i32
    %c0_i32_0 = arith.constant 0 : i32
    %c0_i32_1 = arith.constant 0 : i32
    return %c0_i32, %c0_i32_0 : i32, i32
  }
  func.func @transform_10(%arg0: i32) -> (i32, i32) {
    %c0_i32 = arith.constant 0 : i32
    %c0_i32_0 = arith.constant 0 : i32
    %c0_i32_1 = arith.constant 0 : i32
    return %c0_i32, %c0_i32_0 : i32, i32
  }
  func.func @transform_11(%arg0: i32) -> (i32, i32, i32) {
    %c0_i32 = arith.constant 0 : i32
    %c0_i32_0 = arith.constant 0 : i32
    %c0_i32_1 = arith.constant 0 : i32
    return %arg0, %c0_i32, %c0_i32_0 : i32, i32, i32
  }
}

</mosaic_0001>

<llo_original>
// kernel: dataloop_tracker_forward.1
$region0: #{dataloop_tracker_forward.1}
  #allocation0 [shape = 'u32[]', space=smem, size = 0x4, offset = 0x4, fixed_abs, tag = 'smem constant byte address 0x4 - core index']
  #allocation1 [shape = 'u32[144,128]{1,0:T(1,128)}', space=vmem, size = 0x12000, scoped, tag = 'internal scratch']
  %s0 = inlined_call_operand.vmem [shape: bf16[2,392,27], index: 0, kind: input, shape index: {}]
  %s1 = inlined_call_operand.vmem [shape: bf16[27,32], index: 1, kind: input, shape index: {}]
  %s2 = inlined_call_operand.vmem [shape: f32[1,32], index: 2, kind: input, shape index: {}]
  %s3 = inlined_call_operand.vmem [shape: bf16[288,64], index: 3, kind: input, shape index: {}]
  %s4 = inlined_call_operand.vmem [shape: f32[1,64], index: 4, kind: input, shape index: {}]
  %s5 = inlined_call_operand.vmem [shape: bf16[288,64], index: 5, kind: input, shape index: {}]
  %s6 = inlined_call_operand.vmem [shape: f32[1,64], index: 6, kind: input, shape index: {}]
  %s7 = inlined_call_operand.vmem [shape: bf16[64,64], index: 7, kind: input, shape index: {}]
  %s8 = inlined_call_operand.vmem [shape: f32[1,64], index: 8, kind: input, shape index: {}]
  %s9 = inlined_call_operand.vmem [shape: bf16[64,128], index: 9, kind: input, shape index: {}]
  %s10 = inlined_call_operand.vmem [shape: f32[1,128], index: 10, kind: input, shape index: {}]
  %s11 = inlined_call_operand.vmem [shape: f32[2,128,128], index: 11, kind: output, shape index: {}]
  %s12 = sld [smem:[#allocation0]]
  $region77: #{dataloop_tracker_forward.1} parent=0
    _
  %s14 = ssub.s32 1, %s12
  %s15 = scalar_select 0, %s14, %s12
  loop: start=0, step=1, limit=4
  $region2: #{dataloop_tracker_forward.1} parent=0 // loop_pre_header
    _
  $region3: #{dataloop_tracker_forward.1} parent=0 // loop_header
    %s17 = sphi 0, %s21
    %p18 = scmp.ge.s32.totalorder %s17, 4
    %s27 = sphi 0, %s29
    %s30 = sphi 0, %s27
    %s31 = sphi 0, %s30
    %s47 = sphi 0, %s31
    %s51 = sphi 0, %s51
    %s53 = sphi 0, %s51
    %s54 = sphi 0, %s53
    %s68 = sphi 0, %s54
    %s72 = sphi 0, %s72
    %s74 = sphi 0, %s72
    %s75 = sphi 0, %s74
    %s89 = sphi 0, %s75
    %s93 = sphi 0, %s93
    %s95 = sphi 0, %s93
    %s96 = sphi 0, %s95
    %s110 = sphi 0, %s96
    %s114 = sphi 0, %s114
    %s116 = sphi 0, %s114
    %s117 = sphi 0, %s116
    %s131 = sphi 0, %s117
    %s135 = sphi 0, %s135
    %s137 = sphi 0, %s135
    %s138 = sphi 0, %s137
    %s152 = sphi 0, %s138
    %s156 = sphi 0, %s156
    %s158 = sphi 0, %s156
    %s159 = sphi 0, %s158
    %s173 = sphi 0, %s159
    %s177 = sphi 0, %s177
    %s179 = sphi 0, %s177
    %s180 = sphi 0, %s179
    %s194 = sphi 0, %s180
    %s198 = sphi 0, %s198
    %s200 = sphi 0, %s198
    %s201 = sphi 0, %s200
    %s215 = sphi 0, %s201
    %s219 = sphi 0, %s219
    %s221 = sphi 0, %s219
    %s222 = sphi 0, %s221
    %s236 = sphi 0, %s222
    %s240 = sphi 0, %s240
    %s242 = sphi 0, %s240
    %s243 = sphi 0, %s242
    %s257 = sphi 0, %s243
    %s263 = sphi 0, %s265
    %s266 = sphi 0, %s263
    %s267 = sphi 0, %s266
    %s283 = sphi 0, %s267
  $region4: #{dataloop_tracker_forward.1} parent=0 // loop_header_branch
    %20 = sbr.rel (%p18) target = $region8
  $region5: #{dataloop_tracker_forward.1} parent=0 // loop_body
    %s22 = ssub.s32 %s17, 1
    %s23 = ssub.s32 %s17, 2
    %s24 = sadd.s32 %s17, 1
    %s25 = ssub.s32 %s17, %s24
    %p26 = scmp.eq.s32.totalorder %s25, 0
    %s28 = sadd.s32 %s27, 1
    %s29 = scalar_select %p26, %s27, %s28
    %p32 = pneg %p26
    %p33 = scmp.eq.s32.totalorder %s17, 1
    %p34 = por %p32, %p33
    %p35 = scmp.ne.s32.totalorder %s27, %s30
    %p36 = scmp.eq.s32.totalorder %s17, 0
    %p37 = por %p35, %p36
    %p38 = scmp.ne.s32.totalorder %s27, %s30
    %p39 = scmp.eq.s32.totalorder %s22, 1
    %p40 = por %p38, %p39
    %p41 = scmp.ne.s32.totalorder %s30, %s31
    %p42 = scmp.eq.s32.totalorder %s22, 0
    %p43 = por %p41, %p42
    %p44 = scmp.ne.s32.totalorder %s30, %s31
    %p45 = scmp.eq.s32.totalorder %s23, 1
    %p46 = por %p44, %p45
    %p48 = scmp.ne.s32.totalorder %s31, %s47
    %p49 = scmp.eq.s32.totalorder %s23, 0
    %p50 = por %p48, %p49
    %s52 = sadd.s32 %s51, 1
    %p55 = scmp.eq.s32.totalorder %s17, 1
    %p56 = scmp.ne.s32.totalorder %s51, %s53
    %p57 = scmp.eq.s32.totalorder %s17, 0
    %p58 = por %p56, %p57
    %p59 = scmp.ne.s32.totalorder %s51, %s53
    %p60 = scmp.eq.s32.totalorder %s22, 1
    %p61 = por %p59, %p60
    %p62 = scmp.ne.s32.totalorder %s53, %s54
    %p63 = scmp.eq.s32.totalorder %s22, 0
    %p64 = por %p62, %p63
    %p65 = scmp.ne.s32.totalorder %s53, %s54
    %p66 = scmp.eq.s32.totalorder %s23, 1
    %p67 = por %p65, %p66
    %p69 = scmp.ne.s32.totalorder %s54, %s68
    %p70 = scmp.eq.s32.totalorder %s23, 0
    %p71 = por %p69, %p70
    %s73 = sadd.s32 %s72, 1
    %p76 = scmp.eq.s32.totalorder %s17, 1
    %p77 = scmp.ne.s32.totalorder %s72, %s74
    %p78 = scmp.eq.s32.totalorder %s17, 0
    %p79 = por %p77, %p78
    %p80 = scmp.ne.s32.totalorder %s72, %s74
    %p81 = scmp.eq.s32.totalorder %s22, 1
    %p82 = por %p80, %p81
    %p83 = scmp.ne.s32.totalorder %s74, %s75
    %p84 = scmp.eq.s32.totalorder %s22, 0
    %p85 = por %p83, %p84
    %p86 = scmp.ne.s32.totalorder %s74, %s75
    %p87 = scmp.eq.s32.totalorder %s23, 1
    %p88 = por %p86, %p87
    %p90 = scmp.ne.s32.totalorder %s75, %s89
    %p91 = scmp.eq.s32.totalorder %s23, 0
    %p92 = por %p90, %p91
    %s94 = sadd.s32 %s93, 1
    %p97 = scmp.eq.s32.totalorder %s17, 1
    %p98 = scmp.ne.s32.totalorder %s93, %s95
    %p99 = scmp.eq.s32.totalorder %s17, 0
    %p100 = por %p98, %p99
    %p101 = scmp.ne.s32.totalorder %s93, %s95
    %p102 = scmp.eq.s32.totalorder %s22, 1
    %p103 = por %p101, %p102
    %p104 = scmp.ne.s32.totalorder %s95, %s96
    %p105 = scmp.eq.s32.totalorder %s22, 0
    %p106 = por %p104, %p105
    %p107 = scmp.ne.s32.totalorder %s95, %s96
    %p108 = scmp.eq.s32.totalorder %s23, 1
    %p109 = por %p107, %p108
    %p111 = scmp.ne.s32.totalorder %s96, %s110
    %p112 = scmp.eq.s32.totalorder %s23, 0
    %p113 = por %p111, %p112
    %s115 = sadd.s32 %s114, 1
    %p118 = scmp.eq.s32.totalorder %s17, 1
    %p119 = scmp.ne.s32.totalorder %s114, %s116
    %p120 = scmp.eq.s32.totalorder %s17, 0
    %p121 = por %p119, %p120
    %p122 = scmp.ne.s32.totalorder %s114, %s116
    %p123 = scmp.eq.s32.totalorder %s22, 1
    %p124 = por %p122, %p123
    %p125 = scmp.ne.s32.totalorder %s116, %s117
    %p126 = scmp.eq.s32.totalorder %s22, 0
    %p127 = por %p125, %p126
    %p128 = scmp.ne.s32.totalorder %s116, %s117
    %p129 = scmp.eq.s32.totalorder %s23, 1
    %p130 = por %p128, %p129
    %p132 = scmp.ne.s32.totalorder %s117, %s131
    %p133 = scmp.eq.s32.totalorder %s23, 0
    %p134 = por %p132, %p133
    %s136 = sadd.s32 %s135, 1
    %p139 = scmp.eq.s32.totalorder %s17, 1
    %p140 = scmp.ne.s32.totalorder %s135, %s137
    %p141 = scmp.eq.s32.totalorder %s17, 0
    %p142 = por %p140, %p141
    %p143 = scmp.ne.s32.totalorder %s135, %s137
    %p144 = scmp.eq.s32.totalorder %s22, 1
    %p145 = por %p143, %p144
    %p146 = scmp.ne.s32.totalorder %s137, %s138
    %p147 = scmp.eq.s32.totalorder %s22, 0
    %p148 = por %p146, %p147
    %p149 = scmp.ne.s32.totalorder %s137, %s138
    %p150 = scmp.eq.s32.totalorder %s23, 1
    %p151 = por %p149, %p150
    %p153 = scmp.ne.s32.totalorder %s138, %s152
    %p154 = scmp.eq.s32.totalorder %s23, 0
    %p155 = por %p153, %p154
    %s157 = sadd.s32 %s156, 1
    %p160 = scmp.eq.s32.totalorder %s17, 1
    %p161 = scmp.ne.s32.totalorder %s156, %s158
    %p162 = scmp.eq.s32.totalorder %s17, 0
    %p163 = por %p161, %p162
    %p164 = scmp.ne.s32.totalorder %s156, %s158
    %p165 = scmp.eq.s32.totalorder %s22, 1
    %p166 = por %p164, %p165
    %p167 = scmp.ne.s32.totalorder %s158, %s159
    %p168 = scmp.eq.s32.totalorder %s22, 0
    %p169 = por %p167, %p168
    %p170 = scmp.ne.s32.totalorder %s158, %s159
    %p171 = scmp.eq.s32.totalorder %s23, 1
    %p172 = por %p170, %p171
    %p174 = scmp.ne.s32.totalorder %s159, %s173
    %p175 = scmp.eq.s32.totalorder %s23, 0
    %p176 = por %p174, %p175
    %s178 = sadd.s32 %s177, 1
    %p181 = scmp.eq.s32.totalorder %s17, 1
    %p182 = scmp.ne.s32.totalorder %s177, %s179
    %p183 = scmp.eq.s32.totalorder %s17, 0
    %p184 = por %p182, %p183
    %p185 = scmp.ne.s32.totalorder %s177, %s179
    %p186 = scmp.eq.s32.totalorder %s22, 1
    %p187 = por %p185, %p186
    %p188 = scmp.ne.s32.totalorder %s179, %s180
    %p189 = scmp.eq.s32.totalorder %s22, 0
    %p190 = por %p188, %p189
    %p191 = scmp.ne.s32.totalorder %s179, %s180
    %p192 = scmp.eq.s32.totalorder %s23, 1
    %p193 = por %p191, %p192
    %p195 = scmp.ne.s32.totalorder %s180, %s194
    %p196 = scmp.eq.s32.totalorder %s23, 0
    %p197 = por %p195, %p196
    %s199 = sadd.s32 %s198, 1
    %p202 = scmp.eq.s32.totalorder %s17, 1
    %p203 = scmp.ne.s32.totalorder %s198, %s200
    %p204 = scmp.eq.s32.totalorder %s17, 0
    %p205 = por %p203, %p204
    %p206 = scmp.ne.s32.totalorder %s198, %s200
    %p207 = scmp.eq.s32.totalorder %s22, 1
    %p208 = por %p206, %p207
    %p209 = scmp.ne.s32.totalorder %s200, %s201
    %p210 = scmp.eq.s32.totalorder %s22, 0
    %p211 = por %p209, %p210
    %p212 = scmp.ne.s32.totalorder %s200, %s201
    %p213 = scmp.eq.s32.totalorder %s23, 1
    %p214 = por %p212, %p213
    %p216 = scmp.ne.s32.totalorder %s201, %s215
    %p217 = scmp.eq.s32.totalorder %s23, 0
    %p218 = por %p216, %p217
    %s220 = sadd.s32 %s219, 1
    %p223 = scmp.eq.s32.totalorder %s17, 1
    %p224 = scmp.ne.s32.totalorder %s219, %s221
    %p225 = scmp.eq.s32.totalorder %s17, 0
    %p226 = por %p224, %p225
    %p227 = scmp.ne.s32.totalorder %s219, %s221
    %p228 = scmp.eq.s32.totalorder %s22, 1
    %p229 = por %p227, %p228
    %p230 = scmp.ne.s32.totalorder %s221, %s222
    %p231 = scmp.eq.s32.totalorder %s22, 0
    %p232 = por %p230, %p231
    %p233 = scmp.ne.s32.totalorder %s221, %s222
    %p234 = scmp.eq.s32.totalorder %s23, 1
    %p235 = por %p233, %p234
    %p237 = scmp.ne.s32.totalorder %s222, %s236
    %p238 = scmp.eq.s32.totalorder %s23, 0
    %p239 = por %p237, %p238
    %s241 = sadd.s32 %s240, 1
    %p244 = scmp.eq.s32.totalorder %s17, 1
    %p245 = scmp.ne.s32.totalorder %s240, %s242
    %p246 = scmp.eq.s32.totalorder %s17, 0
    %p247 = por %p245, %p246
    %p248 = scmp.ne.s32.totalorder %s240, %s242
    %p249 = scmp.eq.s32.totalorder %s22, 1
    %p250 = por %p248, %p249
    %p251 = scmp.ne.s32.totalorder %s242, %s243
    %p252 = scmp.eq.s32.totalorder %s22, 0
    %p253 = por %p251, %p252
    %p254 = scmp.ne.s32.totalorder %s242, %s243
    %p255 = scmp.eq.s32.totalorder %s23, 1
    %p256 = por %p254, %p255
    %p258 = scmp.ne.s32.totalorder %s243, %s257
    %p259 = scmp.eq.s32.totalorder %s23, 0
    %p260 = por %p258, %p259
    %s261 = ssub.s32 %s17, %s24
    %p262 = scmp.eq.s32.totalorder %s261, 0
    %s264 = sadd.s32 %s263, 1
    %s265 = scalar_select %p262, %s263, %s264
    %p268 = pneg %p262
    %p269 = scmp.eq.s32.totalorder %s17, 1
    %p270 = por %p268, %p269
    %p271 = scmp.ne.s32.totalorder %s263, %s266
    %p272 = scmp.eq.s32.totalorder %s17, 0
    %p273 = por %p271, %p272
    %p274 = scmp.ne.s32.totalorder %s263, %s266
    %p275 = scmp.eq.s32.totalorder %s22, 1
    %p276 = por %p274, %p275
    %p277 = scmp.ne.s32.totalorder %s266, %s267
    %p278 = scmp.eq.s32.totalorder %s22, 0
    %p279 = por %p277, %p278
    %p280 = scmp.ne.s32.totalorder %s266, %s267
    %p281 = scmp.eq.s32.totalorder %s23, 1
    %p282 = por %p280, %p281
    %p284 = scmp.ne.s32.totalorder %s267, %s283
    %p285 = scmp.eq.s32.totalorder %s23, 0
    %p286 = por %p284, %p285
    %p287 = scmp.le.s32.totalorder 1, %s17
    %p288 = scmp.lt.s32.totalorder %s17, 3
    %p289 = pnand %p287, %p288
    %p290 = pneg %p289
    // Predicated region
    $region9: #{dataloop_tracker_forward.1} parent=5 // pred_check
      _
    $region10: #{dataloop_tracker_forward.1} parent=5 // pred_check_branch
      %292 = sbr.rel (%p289) target = $region12
    $region11: #{dataloop_tracker_forward.1} parent=5 // pred_region
      %s293 = ssub.s32 %s17, 1
      // Predicated region
      $region13: #{dataloop_tracker_forward.1} parent=11 // pred_check
        %p294 = pneg %p64
      $region14: #{dataloop_tracker_forward.1} parent=11 // pred_check_branch
        %296 = sbr.rel (%p294) target = $region16
      $region15: #{dataloop_tracker_forward.1} parent=11 // pred_region
        _
      $region16: #{dataloop_tracker_forward.1} parent=11 // pred_fallthru
        _
      // Predicated region
      $region17: #{dataloop_tracker_forward.1} parent=11 // pred_check
        %p297 = pneg %p85
      $region18: #{dataloop_tracker_forward.1} parent=11 // pred_check_branch
        %299 = sbr.rel (%p297) target = $region20
      $region19: #{dataloop_tracker_forward.1} parent=11 // pred_region
        _
      $region20: #{dataloop_tracker_forward.1} parent=11 // pred_fallthru
        _
      // Predicated region
      $region21: #{dataloop_tracker_forward.1} parent=11 // pred_check
        %p300 = pneg %p106
      $region22: #{dataloop_tracker_forward.1} parent=11 // pred_check_branch
        %302 = sbr.rel (%p300) target = $region24
      $region23: #{dataloop_tracker_forward.1} parent=11 // pred_region
        _
      $region24: #{dataloop_tracker_forward.1} parent=11 // pred_fallthru
        _
      // Predicated region
      $region25: #{dataloop_tracker_forward.1} parent=11 // pred_check
        %p303 = pneg %p127
      $region26: #{dataloop_tracker_forward.1} parent=11 // pred_check_branch
        %305 = sbr.rel (%p303) target = $region28
      $region27: #{dataloop_tracker_forward.1} parent=11 // pred_region
        _
      $region28: #{dataloop_tracker_forward.1} parent=11 // pred_fallthru
        _
      // Predicated region
      $region29: #{dataloop_tracker_forward.1} parent=11 // pred_check
        %p306 = pneg %p148
      $region30: #{dataloop_tracker_forward.1} parent=11 // pred_check_branch
        %308 = sbr.rel (%p306) target = $region32
      $region31: #{dataloop_tracker_forward.1} parent=11 // pred_region
        _
      $region32: #{dataloop_tracker_forward.1} parent=11 // pred_fallthru
        _
      // Predicated region
      $region33: #{dataloop_tracker_forward.1} parent=11 // pred_check
        %p309 = pneg %p169
      $region34: #{dataloop_tracker_forward.1} parent=11 // pred_check_branch
        %311 = sbr.rel (%p309) target = $region36
      $region35: #{dataloop_tracker_forward.1} parent=11 // pred_region
        _
      $region36: #{dataloop_tracker_forward.1} parent=11 // pred_fallthru
        _
      // Predicated region
      $region37: #{dataloop_tracker_forward.1} parent=11 // pred_check
        %p312 = pneg %p190
      $region38: #{dataloop_tracker_forward.1} parent=11 // pred_check_branch
        %314 = sbr.rel (%p312) target = $region40
      $region39: #{dataloop_tracker_forward.1} parent=11 // pred_region
        _
      $region40: #{dataloop_tracker_forward.1} parent=11 // pred_fallthru
        _
      // Predicated region
      $region41: #{dataloop_tracker_forward.1} parent=11 // pred_check
        %p315 = pneg %p211
      $region42: #{dataloop_tracker_forward.1} parent=11 // pred_check_branch
        %317 = sbr.rel (%p315) target = $region44
      $region43: #{dataloop_tracker_forward.1} parent=11 // pred_region
        _
      $region44: #{dataloop_tracker_forward.1} parent=11 // pred_fallthru
        _
      // Predicated region
      $region45: #{dataloop_tracker_forward.1} parent=11 // pred_check
        %p318 = pneg %p232
      $region46: #{dataloop_tracker_forward.1} parent=11 // pred_check_branch
        %320 = sbr.rel (%p318) target = $region48
      $region47: #{dataloop_tracker_forward.1} parent=11 // pred_region
        _
      $region48: #{dataloop_tracker_forward.1} parent=11 // pred_fallthru
        _
      // Predicated region
      $region49: #{dataloop_tracker_forward.1} parent=11 // pred_check
        %p321 = pneg %p253
      $region50: #{dataloop_tracker_forward.1} parent=11 // pred_check_branch
        %323 = sbr.rel (%p321) target = $region52
      $region51: #{dataloop_tracker_forward.1} parent=11 // pred_region
        _
      $region52: #{dataloop_tracker_forward.1} parent=11 // pred_fallthru
        _
    $region12: #{dataloop_tracker_forward.1} parent=5 // pred_fallthru
      _
    %p324 = scmp.lt.s32.totalorder %s17, 2
    // Predicated region
    $region53: #{dataloop_tracker_forward.1} parent=5 // pred_check
      %p325 = pneg %p324
    $region54: #{dataloop_tracker_forward.1} parent=5 // pred_check_branch
      %327 = sbr.rel (%p325) target = $region56
    $region55: #{dataloop_tracker_forward.1} parent=5 // pred_region
      // Predicated region
      $region57: #{dataloop_tracker_forward.1} parent=55 // pred_check
        %p328 = pneg %p37
      $region58: #{dataloop_tracker_forward.1} parent=55 // pred_check_branch
        %330 = sbr.rel (%p328) target = $region60
      $region59: #{dataloop_tracker_forward.1} parent=55 // pred_region
        %p331 = scmp.lt.s32.totalorder %s17, 1
        %s332 = scalar_select %p331, %s17, 1
        %s333 = smul.addr %s332, 49
        %s334 = smul.addr %s333, 4
        %s335 = scalar_lea.vmem %s0, %s334
      $region60: #{dataloop_tracker_forward.1} parent=55 // pred_fallthru
        _
    $region56: #{dataloop_tracker_forward.1} parent=5 // pred_fallthru
      _
    %p336 = scmp.le.s32.totalorder 1, %s17
    %p337 = scmp.lt.s32.totalorder %s17, 3
    %p338 = pnand %p336, %p337
    %p339 = pneg %p338
    // Predicated region
    $region61: #{dataloop_tracker_forward.1} parent=5 // pred_check
      _
    $region62: #{dataloop_tracker_forward.1} parent=5 // pred_check_branch
      %341 = sbr.rel (%p338) target = $region64
    $region63: #{dataloop_tracker_forward.1} parent=5 // pred_region
      %s342 = ssub.s32 %s17, 1
      %p343 = scmp.lt.s32.totalorder %s22, 1
      %s344 = scalar_select %p343, %s22, 1
      %s345 = smul.addr %s344, 49
      %s346 = smul.addr %s345, 4
      %s347 = scalar_lea.vmem %s0, %s346
      %p348 = pneg %p43
      %p349 = pneg %p40
      %p350 = pneg %p64
      %p351 = pneg %p61
      %p352 = pneg %p85
      %p353 = pneg %p82
      %p354 = pneg %p106
      %p355 = pneg %p103
      %p356 = pneg %p127
      %p357 = pneg %p124
      %p358 = pneg %p148
      %p359 = pneg %p145
      %p360 = pneg %p169
      %p361 = pneg %p166
      %p362 = pneg %p190
      %p363 = pneg %p187
      %p364 = pneg %p211
      %p365 = pneg %p208
      %p366 = pneg %p232
      %p367 = pneg %p229
      %p368 = pneg %p253
      %p369 = pneg %p250
      %p370 = pneg %p279
      %p371 = pneg %p276
      %p372 = scmp.lt.s32.totalorder %s22, 1
      %s373 = scalar_select %p372, %s22, 1
      %s374 = smul.addr %s373, 16
      %s375 = smul.addr %s374, 8
      %s376 = scalar_lea.vmem %s11, %s375
      %p377 = scmp.lt.s32.totalorder %s22, 1
      %s378 = scalar_select %p377, %s22, 1
      %s379 = smul.addr %s378, 49
      %s380 = smul.addr %s379, 4
      %s381 = scalar_lea.vmem %s0, %s380
      %p382 = scmp.lt.s32.totalorder %s22, 1
      %s383 = scalar_select %p382, %s22, 1
      %s384 = smul.addr %s383, 16
      %s385 = smul.addr %s384, 8
      %s386 = scalar_lea.vmem %s11, %s385
      %v388 = vld [vmem:[%s381] sm:$0xf]
      %v389 = vld [vmem:[%s381 + $0x4] sm:$0xf]
      %v390 = vld [vmem:[%s381 + $0x8] sm:$0xf]
      %v391 = vld [vmem:[%s381 + $0xc] sm:$0xf]
      %v392 = vld [vmem:[%s381 + $0x10] sm:$0xf]
      %v393 = vld [vmem:[%s381 + $0x14] sm:$0xf]
      %v394 = vld [vmem:[%s381 + $0x18] sm:$0xf]
      %v395 = vld [vmem:[%s381 + $0x1c] sm:$0xf]
      %v396 = vld [vmem:[%s381 + $0x20] sm:$0xf]
      %v397 = vld [vmem:[%s381 + $0x24] sm:$0xf]
      %v398 = vld [vmem:[%s381 + $0x28] sm:$0xf]
      %v399 = vld [vmem:[%s381 + $0x2c] sm:$0xf]
      %v400 = vld [vmem:[%s381 + $0x30] sm:$0xf]
      %v401 = vld [vmem:[%s381 + $0x34] sm:$0xf]
      %v402 = vld [vmem:[%s381 + $0x38] sm:$0xf]
      %v403 = vld [vmem:[%s381 + $0x3c] sm:$0xf]
      %v404 = vld [vmem:[%s381 + $0x40] sm:$0xf]
      %v405 = vld [vmem:[%s381 + $0x44] sm:$0xf]
      %v406 = vld [vmem:[%s381 + $0x48] sm:$0xf]
      %v407 = vld [vmem:[%s381 + $0x4c] sm:$0xf]
      %v408 = vld [vmem:[%s381 + $0x50] sm:$0xf]
      %v409 = vld [vmem:[%s381 + $0x54] sm:$0xf]
      %v410 = vld [vmem:[%s381 + $0x58] sm:$0xf]
      %v411 = vld [vmem:[%s381 + $0x5c] sm:$0xf]
      %v412 = vld [vmem:[%s381 + $0x60] sm:$0xf]
      %v413 = vld [vmem:[%s381 + $0x64] sm:$0xf]
      %v414 = vld [vmem:[%s381 + $0x68] sm:$0xf]
      %v415 = vld [vmem:[%s381 + $0x6c] sm:$0xf]
      %v416 = vld [vmem:[%s381 + $0x70] sm:$0xf]
      %v417 = vld [vmem:[%s381 + $0x74] sm:$0xf]
      %v418 = vld [vmem:[%s381 + $0x78] sm:$0xf]
      %v419 = vld [vmem:[%s381 + $0x7c] sm:$0xf]
      %v420 = vld [vmem:[%s381 + $0x80] sm:$0xf]
      %v421 = vld [vmem:[%s381 + $0x84] sm:$0xf]
      %v422 = vld [vmem:[%s381 + $0x88] sm:$0xf]
      %v423 = vld [vmem:[%s381 + $0x8c] sm:$0xf]
      %v424 = vld [vmem:[%s381 + $0x90] sm:$0xf]
      %v425 = vld [vmem:[%s381 + $0x94] sm:$0xf]
      %v426 = vld [vmem:[%s381 + $0x98] sm:$0xf]
      %v427 = vld [vmem:[%s381 + $0x9c] sm:$0xf]
      %v428 = vld [vmem:[%s381 + $0xa0] sm:$0xf]
      %v429 = vld [vmem:[%s381 + $0xa4] sm:$0xf]
      %v430 = vld [vmem:[%s381 + $0xa8] sm:$0xf]
      %v431 = vld [vmem:[%s381 + $0xac] sm:$0xf]
      %v432 = vld [vmem:[%s381 + $0xb0] sm:$0xf]
      %v433 = vld [vmem:[%s381 + $0xb4] sm:$0xf]
      %v434 = vld [vmem:[%s381 + $0xb8] sm:$0xf]
      %v435 = vld [vmem:[%s381 + $0xbc] sm:$0xf]
      %v436 = vld [vmem:[%s381 + $0xc0] sm:$0xf]
      %v437 = vld [vmem:[%s1] sm:$0xf]
      %v438 = vld [vmem:[%s1 + $0x4] sm:$0xf]
      %v439 = vld [vmem:[%s1 + $0x8] sm:$0xf]
      %v440 = vld [vmem:[%s1 + $0xc] sm:$0x3]
      %v441 = vld [vmem:[%s2] sm:$0x1]
      %v443 = vlaneseq
      %v444 = vshrl.u32 %v443, 7
      %v445 = vsub.s32 0, %v444
      %v446 = vrot.slane %v441, %v445
      %v497 = vunpack.c.l.b16 %v388
      %v498 = vunpack.c.l.b16 %v389
      %v499 = vunpack.c.l.b16 %v390
      %v500 = vunpack.c.l.b16 %v391
      %v501 = vunpack.c.l.b16 %v392
      %v502 = vunpack.c.l.b16 %v393
      %v503 = vunpack.c.l.b16 %v394
      %v504 = vunpack.c.l.b16 %v395
      %v505 = vunpack.c.l.b16 %v396
      %v506 = vunpack.c.l.b16 %v397
      %v507 = vunpack.c.l.b16 %v398
      %v508 = vunpack.c.l.b16 %v399
      %v509 = vunpack.c.l.b16 %v400
      %v510 = vunpack.c.l.b16 %v401
      %v511 = vunpack.c.l.b16 %v402
      %v512 = vunpack.c.l.b16 %v403
      %v513 = vunpack.c.l.b16 %v404
      %v514 = vunpack.c.l.b16 %v405
      %v515 = vunpack.c.l.b16 %v406
      %v516 = vunpack.c.l.b16 %v407
      %v517 = vunpack.c.l.b16 %v408
      %v518 = vunpack.c.l.b16 %v409
      %v519 = vunpack.c.l.b16 %v410
      %v520 = vunpack.c.l.b16 %v411
      %v521 = vunpack.c.l.b16 %v412
      %v522 = vunpack.c.l.b16 %v413
      %v523 = vunpack.c.l.b16 %v414
      %v524 = vunpack.c.l.b16 %v415
      %v525 = vunpack.c.l.b16 %v416
      %v526 = vunpack.c.l.b16 %v417
      %v527 = vunpack.c.l.b16 %v418
      %v528 = vunpack.c.l.b16 %v419
      %v529 = vunpack.c.l.b16 %v420
      %v530 = vunpack.c.l.b16 %v421
      %v531 = vunpack.c.l.b16 %v422
      %v532 = vunpack.c.l.b16 %v423
      %v533 = vunpack.c.l.b16 %v424
      %v534 = vunpack.c.l.b16 %v425
      %v535 = vunpack.c.l.b16 %v426
      %v536 = vunpack.c.l.b16 %v427
      %v537 = vunpack.c.l.b16 %v428
      %v538 = vunpack.c.l.b16 %v429
      %v539 = vunpack.c.l.b16 %v430
      %v540 = vunpack.c.l.b16 %v431
      %v541 = vunpack.c.l.b16 %v432
      %v542 = vunpack.c.l.b16 %v433
      %v543 = vunpack.c.l.b16 %v434
      %v544 = vunpack.c.l.b16 %v435
      %v545 = vunpack.c.l.b16 %v436
      %v546 = vpack.c.b16 %v498, %v497
      %v547 = vpack.c.b16 %v500, %v499
      %v548 = vpack.c.b16 %v502, %v501
      %v549 = vpack.c.b16 %v504, %v503
      %v550 = vpack.c.b16 %v506, %v505
      %v551 = vpack.c.b16 %v508, %v507
      %v552 = vpack.c.b16 %v510, %v509
      %v553 = vpack.c.b16 %v512, %v511
      %v554 = vpack.c.b16 %v514, %v513
      %v555 = vpack.c.b16 %v516, %v515
      %v556 = vpack.c.b16 %v518, %v517
      %v557 = vpack.c.b16 %v520, %v519
      %v558 = vpack.c.b16 %v522, %v521
      %v559 = vpack.c.b16 %v524, %v523
      %v560 = vpack.c.b16 %v526, %v525
      %v561 = vpack.c.b16 %v528, %v527
      %v562 = vpack.c.b16 %v530, %v529
      %v563 = vpack.c.b16 %v532, %v531
      %v564 = vpack.c.b16 %v534, %v533
      %v565 = vpack.c.b16 %v536, %v535
      %v566 = vpack.c.b16 %v538, %v537
      %v567 = vpack.c.b16 %v540, %v539
      %v568 = vpack.c.b16 %v542, %v541
      %v569 = vpack.c.b16 %v544, %v543
      %v570 = vpack.c.b16 %v545, %v545
      %v575 = vunpack.c.l.b16 %v437
      %v576 = vunpack.c.l.b16 %v438
      %v577 = vunpack.c.l.b16 %v439
      %v578 = vunpack.c.l.b16 %v440
      %v579 = vpack.c.b16 %v576, %v575
      %v580 = vpack.c.b16 %v578, %v577
      %vm582 = vcmask 220160
      %v584 = vsel %vm582, %v546, 0
      %v587 = vsel %vm582, %v547, 0
      %v590 = vsel %vm582, %v548, 0
      %v593 = vsel %vm582, %v549, 0
      %v596 = vsel %vm582, %v550, 0
      %v599 = vsel %vm582, %v551, 0
      %v602 = vsel %vm582, %v552, 0
      %v605 = vsel %vm582, %v553, 0
      %v608 = vsel %vm582, %v554, 0
      %v611 = vsel %vm582, %v555, 0
      %v614 = vsel %vm582, %v556, 0
      %v617 = vsel %vm582, %v557, 0
      %v620 = vsel %vm582, %v558, 0
      %v623 = vsel %vm582, %v559, 0
      %v626 = vsel %vm582, %v560, 0
      %v629 = vsel %vm582, %v561, 0
      %v632 = vsel %vm582, %v562, 0
      %v635 = vsel %vm582, %v563, 0
      %v638 = vsel %vm582, %v564, 0
      %v641 = vsel %vm582, %v565, 0
      %v644 = vsel %vm582, %v566, 0
      %v647 = vsel %vm582, %v567, 0
      %v650 = vsel %vm582, %v568, 0
      %v653 = vsel %vm582, %v569, 0
      %v656 = vsel %vm582, %v570, 0
      %vm658 = vcmask 1044480
      %vm659 = vcmask 1045504
      %v660 = vsel %vm658, 4294967295, 65535
      %v661 = vsel %vm659, %v660, 0
      %v663 = vand.u32 %v580, %v661
      %665 = vmatprep.subr.bf16.mxu0 0
      %666 = vmatpush1.bf16.msra.mxu0 %v579
      %667 = vmatprep.subr.bf16.mxu0 0
      %668 = vmatpush1.bf16.msra.mxu0 %v663
      %669 = vmatprep.subr.bf16.mxu0 0
      %670 = vmatpush1.bf16.msra.mxu0 0
      %671 = vmatprep.subr.bf16.mxu0 0
      %672 = vmatpush1.bf16.msra.mxu0 0
      %673 = vmatprep.subr.bf16.mxu0 0
      %674 = vmatpush1.bf16.msra.mxu0 0
      %675 = vmatprep.subr.bf16.mxu0 0
      %676 = vmatpush1.bf16.msra.mxu0 0
      %677 = vmatprep.subr.bf16.mxu0 0
      %678 = vmatpush1.bf16.msra.mxu0 0
      %679 = vmatprep.subr.bf16.mxu0 0
      %680 = vmatpush1.bf16.msra.mxu0 0
      %681 = vmatprep.subr.bf16.mxu0 0
      %682 = vmatpush1.bf16.msra.mxu0 0
      %683 = vmatprep.subr.bf16.mxu0 0
      %684 = vmatpush1.bf16.msra.mxu0 0
      %685 = vmatprep.subr.bf16.mxu0 0
      %686 = vmatpush1.bf16.msra.mxu0 0
      %687 = vmatprep.subr.bf16.mxu0 0
      %688 = vmatpush1.bf16.msra.mxu0 0
      %689 = vmatprep.subr.bf16.mxu0 0
      %690 = vmatpush1.bf16.msra.mxu0 0
      %691 = vmatprep.subr.bf16.mxu0 0
      %692 = vmatpush1.bf16.msra.mxu0 0
      %693 = vmatprep.subr.bf16.mxu0 0
      %694 = vmatpush1.bf16.msra.mxu0 0
      %695 = vmatprep.subr.bf16.mxu0 0
      %696 = vmatpush1.bf16.msra.mxu0 0
      %697 = vmatprep.mubr.bf16.mxu0 0
      %698 = vmatmul.mubr.bf16.gmra.mrb[0].mxu0 %v584
      %v699 = vpop.f32.mrb[0].mxu0
      %v700 = vadd.f32 %v446, %v699
      %v701 = vpop.f32.mrb[0].mxu0
      %v702 = vpop.f32.mrb[0].mxu0
      %v703 = vadd.f32 %v446, %v702
      %v704 = vpop.f32.mrb[0].mxu0
      %705 = vmatprep.mubr.bf16.mxu0 0
      %706 = vmatmul.mubr.bf16.gmra.mrb[0].mxu0 %v587
      %v707 = vpop.f32.mrb[0].mxu0
      %v708 = vadd.f32 %v446, %v707
      %v709 = vpop.f32.mrb[0].mxu0
      %v710 = vpop.f32.mrb[0].mxu0
      %v711 = vadd.f32 %v446, %v710
      %v712 = vpop.f32.mrb[0].mxu0
      %713 = vmatprep.mubr.bf16.mxu0 0
      %714 = vmatmul.mubr.bf16.gmra.mrb[0].mxu0 %v590
      %v715 = vpop.f32.mrb[0].mxu0
      %v716 = vadd.f32 %v446, %v715
      %v717 = vpop.f32.mrb[0].mxu0
      %v718 = vpop.f32.mrb[0].mxu0
      %v719 = vadd.f32 %v446, %v718
      %v720 = vpop.f32.mrb[0].mxu0
      %721 = vmatprep.mubr.bf16.mxu0 0
      %722 = vmatmul.mubr.bf16.gmra.mrb[0].mxu0 %v593
      %v723 = vpop.f32.mrb[0].mxu0
      %v724 = vadd.f32 %v446, %v723
      %v725 = vpop.f32.mrb[0].mxu0
      %v726 = vpop.f32.mrb[0].mxu0
      %v727 = vadd.f32 %v446, %v726
      %v728 = vpop.f32.mrb[0].mxu0
      %729 = vmatprep.mubr.bf16.mxu0 0
      %730 = vmatmul.mubr.bf16.gmra.mrb[0].mxu0 %v596
      %v731 = vpop.f32.mrb[0].mxu0
      %v732 = vadd.f32 %v446, %v731
      %v733 = vpop.f32.mrb[0].mxu0
      %v734 = vpop.f32.mrb[0].mxu0
      %v735 = vadd.f32 %v446, %v734
      %v736 = vpop.f32.mrb[0].mxu0
      %737 = vmatprep.mubr.bf16.mxu0 0
      %738 = vmatmul.mubr.bf16.gmra.mrb[0].mxu0 %v599
      %v739 = vpop.f32.mrb[0].mxu0
      %v740 = vadd.f32 %v446, %v739
      %v741 = vpop.f32.mrb[0].mxu0
      %v742 = vpop.f32.mrb[0].mxu0
      %v743 = vadd.f32 %v446, %v742
      %v744 = vpop.f32.mrb[0].mxu0
      %745 = vmatprep.mubr.bf16.mxu0 0
      %746 = vmatmul.mubr.bf16.gmra.mrb[0].mxu0 %v602
      %v747 = vpop.f32.mrb[0].mxu0
      %v748 = vadd.f32 %v446, %v747
      %v749 = vpop.f32.mrb[0].mxu0
      %v750 = vpop.f32.mrb[0].mxu0
      %v751 = vadd.f32 %v446, %v750
      %v752 = vpop.f32.mrb[0].mxu0
      %753 = vmatprep.mubr.bf16.mxu0 0
      %754 = vmatmul.mubr.bf16.gmra.mrb[0].mxu0 %v605
      %v755 = vpop.f32.mrb[0].mxu0
      %v756 = vadd.f32 %v446, %v755
      %v757 = vpop.f32.mrb[0].mxu0
      %v758 = vpop.f32.mrb[0].mxu0
      %v759 = vadd.f32 %v446, %v758
      %v760 = vpop.f32.mrb[0].mxu0
      %761 = vmatprep.mubr.bf16.mxu0 0
      %762 = vmatmul.mubr.bf16.gmra.mrb[0].mxu0 %v608
      %v763 = vpop.f32.mrb[0].mxu0
      %v764 = vadd.f32 %v446, %v763
      %v765 = vpop.f32.mrb[0].mxu0
      %v766 = vpop.f32.mrb[0].mxu0
      %v767 = vadd.f32 %v446, %v766
      %v768 = vpop.f32.mrb[0].mxu0
      %769 = vmatprep.mubr.bf16.mxu0 0
      %770 = vmatmul.mubr.bf16.gmra.mrb[0].mxu0 %v611
      %v771 = vpop.f32.mrb[0].mxu0
      %v772 = vadd.f32 %v446, %v771
      %v773 = vpop.f32.mrb[0].mxu0
      %v774 = vpop.f32.mrb[0].mxu0
      %v775 = vadd.f32 %v446, %v774
      %v776 = vpop.f32.mrb[0].mxu0
      %777 = vmatprep.mubr.bf16.mxu0 0
      %778 = vmatmul.mubr.bf16.gmra.mrb[0].mxu0 %v614
      %v779 = vpop.f32.mrb[0].mxu0
      %v780 = vadd.f32 %v446, %v779
      %v781 = vpop.f32.mrb[0].mxu0
      %v782 = vpop.f32.mrb[0].mxu0
      %v783 = vadd.f32 %v446, %v782
      %v784 = vpop.f32.mrb[0].mxu0
      %785 = vmatprep.mubr.bf16.mxu0 0
      %786 = vmatmul.mubr.bf16.gmra.mrb[0].mxu0 %v617
      %v787 = vpop.f32.mrb[0].mxu0
      %v788 = vadd.f32 %v446, %v787
      %v789 = vpop.f32.mrb[0].mxu0
      %v790 = vpop.f32.mrb[0].mxu0
      %v791 = vadd.f32 %v446, %v790
      %v792 = vpop.f32.mrb[0].mxu0
      %793 = vmatprep.mubr.bf16.mxu0 0
      %794 = vmatmul.mubr.bf16.gmra.mrb[0].mxu0 %v620
      %v795 = vpop.f32.mrb[0].mxu0
      %v796 = vadd.f32 %v446, %v795
      %v797 = vpop.f32.mrb[0].mxu0
      %v798 = vpop.f32.mrb[0].mxu0
      %v799 = vadd.f32 %v446, %v798
      %v800 = vpop.f32.mrb[0].mxu0
      %801 = vmatprep.mubr.bf16.mxu0 0
      %802 = vmatmul.mubr.bf16.gmra.mrb[0].mxu0 %v623
      %v803 = vpop.f32.mrb[0].mxu0
      %v804 = vadd.f32 %v446, %v803
      %v805 = vpop.f32.mrb[0].mxu0
      %v806 = vpop.f32.mrb[0].mxu0
      %v807 = vadd.f32 %v446, %v806
      %v808 = vpop.f32.mrb[0].mxu0
      %809 = vmatprep.mubr.bf16.mxu0 0
      %810 = vmatmul.mubr.bf16.gmra.mrb[0].mxu0 %v626
      %v811 = vpop.f32.mrb[0].mxu0
      %v812 = vadd.f32 %v446, %v811
      %v813 = vpop.f32.mrb[0].mxu0
      %v814 = vpop.f32.mrb[0].mxu0
      %v815 = vadd.f32 %v446, %v814
      %v816 = vpop.f32.mrb[0].mxu0
      %817 = vmatprep.mubr.bf16.mxu0 0
      %818 = vmatmul.mubr.bf16.gmra.mrb[0].mxu0 %v629
      %v819 = vpop.f32.mrb[0].mxu0
      %v820 = vadd.f32 %v446, %v819
      %v821 = vpop.f32.mrb[0].mxu0
      %v822 = vpop.f32.mrb[0].mxu0
      %v823 = vadd.f32 %v446, %v822
      %v824 = vpop.f32.mrb[0].mxu0
      %825 = vmatprep.mubr.bf16.mxu0 0
      %826 = vmatmul.mubr.bf16.gmra.mrb[0].mxu0 %v632
      %v827 = vpop.f32.mrb[0].mxu0
      %v828 = vadd.f32 %v446, %v827
      %v829 = vpop.f32.mrb[0].mxu0
      %v830 = vpop.f32.mrb[0].mxu0
      %v831 = vadd.f32 %v446, %v830
      %v832 = vpop.f32.mrb[0].mxu0
      %833 = vmatprep.mubr.bf16.mxu0 0
      %834 = vmatmul.mubr.bf16.gmra.mrb[0].mxu0 %v635
      %v835 = vpop.f32.mrb[0].mxu0
      %v836 = vadd.f32 %v446, %v835
      %v837 = vpop.f32.mrb[0].mxu0
      %v838 = vpop.f32.mrb[0].mxu0
      %v839 = vadd.f32 %v446, %v838
      %v840 = vpop.f32.mrb[0].mxu0
      %841 = vmatprep.mubr.bf16.mxu0 0
      %842 = vmatmul.mubr.bf16.gmra.mrb[0].mxu0 %v638
      %v843 = vpop.f32.mrb[0].mxu0
      %v844 = vadd.f32 %v446, %v843
      %v845 = vpop.f32.mrb[0].mxu0
      %v846 = vpop.f32.mrb[0].mxu0
      %v847 = vadd.f32 %v446, %v846
      %v848 = vpop.f32.mrb[0].mxu0
      %849 = vmatprep.mubr.bf16.mxu0 0
      %850 = vmatmul.mubr.bf16.gmra.mrb[0].mxu0 %v641
      %v851 = vpop.f32.mrb[0].mxu0
      %v852 = vadd.f32 %v446, %v851
      %v853 = vpop.f32.mrb[0].mxu0
      %v854 = vpop.f32.mrb[0].mxu0
      %v855 = vadd.f32 %v446, %v854
      %v856 = vpop.f32.mrb[0].mxu0
      %857 = vmatprep.mubr.bf16.mxu0 0
      %858 = vmatmul.mubr.bf16.gmra.mrb[0].mxu0 %v644
      %v859 = vpop.f32.mrb[0].mxu0
      %v860 = vadd.f32 %v446, %v859
      %v861 = vpop.f32.mrb[0].mxu0
      %v862 = vpop.f32.mrb[0].mxu0
      %v863 = vadd.f32 %v446, %v862
      %v864 = vpop.f32.mrb[0].mxu0
      %865 = vmatprep.mubr.bf16.mxu0 0
      %866 = vmatmul.mubr.bf16.gmra.mrb[0].mxu0 %v647
      %v867 = vpop.f32.mrb[0].mxu0
      %v868 = vadd.f32 %v446, %v867
      %v869 = vpop.f32.mrb[0].mxu0
      %v870 = vpop.f32.mrb[0].mxu0
      %v871 = vadd.f32 %v446, %v870
      %v872 = vpop.f32.mrb[0].mxu0
      %873 = vmatprep.mubr.bf16.mxu0 0
      %874 = vmatmul.mubr.bf16.gmra.mrb[0].mxu0 %v650
      %v875 = vpop.f32.mrb[0].mxu0
      %v876 = vadd.f32 %v446, %v875
      %v877 = vpop.f32.mrb[0].mxu0
      %v878 = vpop.f32.mrb[0].mxu0
      %v879 = vadd.f32 %v446, %v878
      %v880 = vpop.f32.mrb[0].mxu0
      %881 = vmatprep.mubr.bf16.mxu0 0
      %882 = vmatmul.mubr.bf16.gmra.mrb[0].mxu0 %v653
      %v883 = vpop.f32.mrb[0].mxu0
      %v884 = vadd.f32 %v446, %v883
      %v885 = vpop.f32.mrb[0].mxu0
      %v886 = vpop.f32.mrb[0].mxu0
      %v887 = vadd.f32 %v446, %v886
      %v888 = vpop.f32.mrb[0].mxu0
      %889 = vmatprep.mubr.bf16.mxu0 0
      %890 = vmatmul.mubr.bf16.gmra.mrb[0].mxu0 %v656
      %v891 = vpop.f32.mrb[0].mxu0
      %v892 = vadd.f32 %v446, %v891
      %v893 = vpop.f32.mrb[0].mxu0
      %v894 = vpop.f32.mrb[0].mxu0
      %v895 = vpop.f32.mrb[0].mxu0
      %896 = vdwg.mxu0
      %v897 = vmax.f32 %v700, 0.0
      %v898 = vmax.f32 %v703, 0.0
      %v899 = vmax.f32 %v708, 0.0
      %v900 = vmax.f32 %v711, 0.0
      %v901 = vmax.f32 %v716, 0.0
      %v902 = vmax.f32 %v719, 0.0
      %v903 = vmax.f32 %v724, 0.0
      %v904 = vmax.f32 %v727, 0.0
      %v905 = vmax.f32 %v732, 0.0
      %v906 = vmax.f32 %v735, 0.0
      %v907 = vmax.f32 %v740, 0.0
      %v908 = vmax.f32 %v743, 0.0
      %v909 = vmax.f32 %v748, 0.0
      %v910 = vmax.f32 %v751, 0.0
      %v911 = vmax.f32 %v756, 0.0
      %v912 = vmax.f32 %v759, 0.0
      %v913 = vmax.f32 %v764, 0.0
      %v914 = vmax.f32 %v767, 0.0
      %v915 = vmax.f32 %v772, 0.0
      %v916 = vmax.f32 %v775, 0.0
      %v917 = vmax.f32 %v780, 0.0
      %v918 = vmax.f32 %v783, 0.0
      %v919 = vmax.f32 %v788, 0.0
      %v920 = vmax.f32 %v791, 0.0
      %v921 = vmax.f32 %v796, 0.0
      %v922 = vmax.f32 %v799, 0.0
      %v923 = vmax.f32 %v804, 0.0
      %v924 = vmax.f32 %v807, 0.0
      %v925 = vmax.f32 %v812, 0.0
      %v926 = vmax.f32 %v815, 0.0
      %v927 = vmax.f32 %v820, 0.0
      %v928 = vmax.f32 %v823, 0.0
      %v929 = vmax.f32 %v828, 0.0
      %v930 = vmax.f32 %v831, 0.0
      %v931 = vmax.f32 %v836, 0.0
      %v932 = vmax.f32 %v839, 0.0
      %v933 = vmax.f32 %v844, 0.0
      %v934 = vmax.f32 %v847, 0.0
      %v935 = vmax.f32 %v852, 0.0
      %v936 = vmax.f32 %v855, 0.0
      %v937 = vmax.f32 %v860, 0.0
      %v938 = vmax.f32 %v863, 0.0
      %v939 = vmax.f32 %v868, 0.0
      %v940 = vmax.f32 %v871, 0.0
      %v941 = vmax.f32 %v876, 0.0
      %v942 = vmax.f32 %v879, 0.0
      %v943 = vmax.f32 %v884, 0.0
      %v944 = vmax.f32 %v887, 0.0
      %v945 = vmax.f32 %v892, 0.0
      %v946 = vpack.c.bf16 %v898, %v897
      %v947 = vpack.c.bf16 %v900, %v899
      %v948 = vpack.c.bf16 %v902, %v901
      %v949 = vpack.c.bf16 %v904, %v903
      %v950 = vpack.c.bf16 %v906, %v905
      %v951 = vpack.c.bf16 %v908, %v907
      %v952 = vpack.c.bf16 %v910, %v909
      %v953 = vpack.c.bf16 %v912, %v911
      %v954 = vpack.c.bf16 %v914, %v913
      %v955 = vpack.c.bf16 %v916, %v915
      %v956 = vpack.c.bf16 %v918, %v917
      %v957 = vpack.c.bf16 %v920, %v919
      %v958 = vpack.c.bf16 %v922, %v921
      %v959 = vpack.c.bf16 %v924, %v923
      %v960 = vpack.c.bf16 %v926, %v925
      %v961 = vpack.c.bf16 %v928, %v927
      %v962 = vpack.c.bf16 %v930, %v929
      %v963 = vpack.c.bf16 %v932, %v931
      %v964 = vpack.c.bf16 %v934, %v933
      %v965 = vpack.c.bf16 %v936, %v935
      %v966 = vpack.c.bf16 %v938, %v937
      %v967 = vpack.c.bf16 %v940, %v939
      %v968 = vpack.c.bf16 %v942, %v941
      %v969 = vpack.c.bf16 %v944, %v943
      %v970 = vpack.c.bf16 %v945, %v945
      %v992 = vcombine.high %v946, %v946
      %v994 = vunpack.c.l.s4 1966171168
      %v995 = vunpack.c.0.s8 %v994
      %v996 = vlaneseq
      %v997 = vshrl.u32 %v996, 7
      %v998 = vsub.s32 %v995, %v997
      %v999 = vrot.slane %v946, %v998
      %v1001 = vunpack.c.l.s4 1966171168
      %v1002 = vunpack.c.0.s8 %v1001
      %v1003 = vlaneseq
      %v1004 = vshrl.u32 %v1003, 7
      %v1005 = vsub.s32 %v1002, %v1004
      %v1006 = vrot.slane %v992, %v1005
      %v1007 = vcombine.high %v999, %v999
      %v1008 = vcombine.high %v1006, %v1006
      %v1010 = vunpack.c.l.s4 1966171168
      %v1011 = vunpack.c.0.s8 %v1010
      %v1012 = vlaneseq
      %v1013 = vshrl.u32 %v1012, 7
      %v1014 = vsub.s32 %v1011, %v1013
      %v1015 = vrot.slane %v999, %v1014
      %v1017 = vunpack.c.l.s4 1966171168
      %v1018 = vunpack.c.0.s8 %v1017
      %v1019 = vlaneseq
      %v1020 = vshrl.u32 %v1019, 7
      %v1021 = vsub.s32 %v1018, %v1020
      %v1022 = vrot.slane %v1006, %v1021
      %v1024 = vunpack.c.l.s4 1966171168
      %v1025 = vunpack.c.0.s8 %v1024
      %v1026 = vlaneseq
      %v1027 = vshrl.u32 %v1026, 7
      %v1028 = vsub.s32 %v1025, %v1027
      %v1029 = vrot.slane %v1007, %v1028
      %v1031 = vunpack.c.l.s4 1966171168
      %v1032 = vunpack.c.0.s8 %v1031
      %v1033 = vlaneseq
      %v1034 = vshrl.u32 %v1033, 7
      %v1035 = vsub.s32 %v1032, %v1034
      %v1036 = vrot.slane %v1008, %v1035
      %v1037 = vcombine.high %v1015, %v1015
      %v1038 = vcombine.high %v1022, %v1022
      %v1039 = vcombine.high %v1029, %v1029
      %v1040 = vcombine.high %v1036, %v1036
      %v1041 = vcombine.high %v947, %v947
      %v1043 = vunpack.c.l.s4 1966171168
      %v1044 = vunpack.c.0.s8 %v1043
      %v1045 = vlaneseq
      %v1046 = vshrl.u32 %v1045, 7
      %v1047 = vsub.s32 %v1044, %v1046
      %v1048 = vrot.slane %v947, %v1047
      %v1050 = vunpack.c.l.s4 1966171168
      %v1051 = vunpack.c.0.s8 %v1050
      %v1052 = vlaneseq
      %v1053 = vshrl.u32 %v1052, 7
      %v1054 = vsub.s32 %v1051, %v1053
      %v1055 = vrot.slane %v1041, %v1054
      %v1056 = vcombine.high %v1048, %v1048
      %v1057 = vcombine.high %v1055, %v1055
      %v1059 = vunpack.c.l.s4 1966171168
      %v1060 = vunpack.c.0.s8 %v1059
      %v1061 = vlaneseq
      %v1062 = vshrl.u32 %v1061, 7
      %v1063 = vsub.s32 %v1060, %v1062
      %v1064 = vrot.slane %v1048, %v1063
      %v1066 = vunpack.c.l.s4 1966171168
      %v1067 = vunpack.c.0.s8 %v1066
      %v1068 = vlaneseq
      %v1069 = vshrl.u32 %v1068, 7
      %v1070 = vsub.s32 %v1067, %v1069
      %v1071 = vrot.slane %v1055, %v1070
      %v1073 = vunpack.c.l.s4 1966171168
      %v1074 = vunpack.c.0.s8 %v1073
      %v1075 = vlaneseq
      %v1076 = vshrl.u32 %v1075, 7
      %v1077 = vsub.s32 %v1074, %v1076
      %v1078 = vrot.slane %v1056, %v1077
      %v1080 = vunpack.c.l.s4 1966171168
      %v1081 = vunpack.c.0.s8 %v1080
      %v1082 = vlaneseq
      %v1083 = vshrl.u32 %v1082, 7
      %v1084 = vsub.s32 %v1081, %v1083
      %v1085 = vrot.slane %v1057, %v1084
      %v1086 = vcombine.high %v1064, %v1064
      %v1087 = vcombine.high %v1071, %v1071
      %v1088 = vcombine.high %v1078, %v1078
      %v1089 = vcombine.high %v1085, %v1085
      %v1090 = vcombine.high %v948, %v948
      %v1092 = vunpack.c.l.s4 1966171168
      %v1093 = vunpack.c.0.s8 %v1092
      %v1094 = vlaneseq
      %v1095 = vshrl.u32 %v1094, 7
      %v1096 = vsub.s32 %v1093, %v1095
      %v1097 = vrot.slane %v948, %v1096
      %v1099 = vunpack.c.l.s4 1966171168
      %v1100 = vunpack.c.0.s8 %v1099
      %v1101 = vlaneseq
      %v1102 = vshrl.u32 %v1101, 7
      %v1103 = vsub.s32 %v1100, %v1102
      %v1104 = vrot.slane %v1090, %v1103
      %v1105 = vcombine.high %v1097, %v1097
      %v1106 = vcombine.high %v1104, %v1104
      %v1108 = vunpack.c.l.s4 1966171168
      %v1109 = vunpack.c.0.s8 %v1108
      %v1110 = vlaneseq
      %v1111 = vshrl.u32 %v1110, 7
      %v1112 = vsub.s32 %v1109, %v1111
      %v1113 = vrot.slane %v1097, %v1112
      %v1115 = vunpack.c.l.s4 1966171168
      %v1116 = vunpack.c.0.s8 %v1115
      %v1117 = vlaneseq
      %v1118 = vshrl.u32 %v1117, 7
      %v1119 = vsub.s32 %v1116, %v1118
      %v1120 = vrot.slane %v1104, %v1119
      %v1122 = vunpack.c.l.s4 1966171168
      %v1123 = vunpack.c.0.s8 %v1122
      %v1124 = vlaneseq
      %v1125 = vshrl.u32 %v1124, 7
      %v1126 = vsub.s32 %v1123, %v1125
      %v1127 = vrot.slane %v1105, %v1126
      %v1129 = vunpack.c.l.s4 1966171168
      %v1130 = vunpack.c.0.s8 %v1129
      %v1131 = vlaneseq
      %v1132 = vshrl.u32 %v1131, 7
      %v1133 = vsub.s32 %v1130, %v1132
      %v1134 = vrot.slane %v1106, %v1133
      %v1135 = vcombine.high %v1113, %v1113
      %v1136 = vcombine.high %v1120, %v1120
      %v1137 = vcombine.high %v1127, %v1127
      %v1138 = vcombine.high %v1134, %v1134
      %v1139 = vcombine.high %v949, %v949
      %v1141 = vunpack.c.l.s4 1966171168
      %v1142 = vunpack.c.0.s8 %v1141
      %v1143 = vlaneseq
      %v1144 = vshrl.u32 %v1143, 7
      %v1145 = vsub.s32 %v1142, %v1144
      %v1146 = vrot.slane %v949, %v1145
      %v1148 = vunpack.c.l.s4 1966171168
      %v1149 = vunpack.c.0.s8 %v1148
      %v1150 = vlaneseq
      %v1151 = vshrl.u32 %v1150, 7
      %v1152 = vsub.s32 %v1149, %v1151
      %v1153 = vrot.slane %v1139, %v1152
      %v1154 = vcombine.high %v1146, %v1146
      %v1155 = vcombine.high %v1153, %v1153
      %v1157 = vunpack.c.l.s4 1966171168
      %v1158 = vunpack.c.0.s8 %v1157
      %v1159 = vlaneseq
      %v1160 = vshrl.u32 %v1159, 7
      %v1161 = vsub.s32 %v1158, %v1160
      %v1162 = vrot.slane %v1146, %v1161
      %v1164 = vunpack.c.l.s4 1966171168
      %v1165 = vunpack.c.0.s8 %v1164
      %v1166 = vlaneseq
      %v1167 = vshrl.u32 %v1166, 7
      %v1168 = vsub.s32 %v1165, %v1167
      %v1169 = vrot.slane %v1153, %v1168
      %v1171 = vunpack.c.l.s4 1966171168
      %v1172 = vunpack.c.0.s8 %v1171
      %v1173 = vlaneseq
      %v1174 = vshrl.u32 %v1173, 7
      %v1175 = vsub.s32 %v1172, %v1174
      %v1176 = vrot.slane %v1154, %v1175
      %v1178 = vunpack.c.l.s4 1966171168
      %v1179 = vunpack.c.0.s8 %v1178
      %v1180 = vlaneseq
      %v1181 = vshrl.u32 %v1180, 7
      %v1182 = vsub.s32 %v1179, %v1181
      %v1183 = vrot.slane %v1155, %v1182
      %v1184 = vcombine.high %v1162, %v1162
      %v1185 = vcombine.high %v1169, %v1169
      %v1186 = vcombine.high %v1176, %v1176
      %v1187 = vcombine.high %v1183, %v1183
      %v1188 = vcombine.high %v950, %v950
      %v1190 = vunpack.c.l.s4 1966171168
      %v1191 = vunpack.c.0.s8 %v1190
      %v1192 = vlaneseq
      %v1193 = vshrl.u32 %v1192, 7
      %v1194 = vsub.s32 %v1191, %v1193
      %v1195 = vrot.slane %v950, %v1194
      %v1197 = vunpack.c.l.s4 1966171168
      %v1198 = vunpack.c.0.s8 %v1197
      %v1199 = vlaneseq
      %v1200 = vshrl.u32 %v1199, 7
      %v1201 = vsub.s32 %v1198, %v1200
      %v1202 = vrot.slane %v1188, %v1201
      %v1203 = vcombine.high %v1195, %v1195
      %v1204 = vcombine.high %v1202, %v1202
      %v1206 = vunpack.c.l.s4 1966171168
      %v1207 = vunpack.c.0.s8 %v1206
      %v1208 = vlaneseq
      %v1209 = vshrl.u32 %v1208, 7
      %v1210 = vsub.s32 %v1207, %v1209
      %v1211 = vrot.slane %v1195, %v1210
      %v1213 = vunpack.c.l.s4 1966171168
      %v1214 = vunpack.c.0.s8 %v1213
      %v1215 = vlaneseq
      %v1216 = vshrl.u32 %v1215, 7
      %v1217 = vsub.s32 %v1214, %v1216
      %v1218 = vrot.slane %v1202, %v1217
      %v1220 = vunpack.c.l.s4 1966171168
      %v1221 = vunpack.c.0.s8 %v1220
      %v1222 = vlaneseq
      %v1223 = vshrl.u32 %v1222, 7
      %v1224 = vsub.s32 %v1221, %v1223
      %v1225 = vrot.slane %v1203, %v1224
      %v1227 = vunpack.c.l.s4 1966171168
      %v1228 = vunpack.c.0.s8 %v1227
      %v1229 = vlaneseq
      %v1230 = vshrl.u32 %v1229, 7
      %v1231 = vsub.s32 %v1228, %v1230
      %v1232 = vrot.slane %v1204, %v1231
      %v1233 = vcombine.high %v1211, %v1211
      %v1234 = vcombine.high %v1218, %v1218
      %v1235 = vcombine.high %v1225, %v1225
      %v1236 = vcombine.high %v1232, %v1232
      %v1237 = vcombine.high %v951, %v951
      %v1239 = vunpack.c.l.s4 1966171168
      %v1240 = vunpack.c.0.s8 %v1239
      %v1241 = vlaneseq
      %v1242 = vshrl.u32 %v1241, 7
      %v1243 = vsub.s32 %v1240, %v1242
      %v1244 = vrot.slane %v951, %v1243
      %v1246 = vunpack.c.l.s4 1966171168
      %v1247 = vunpack.c.0.s8 %v1246
      %v1248 = vlaneseq
      %v1249 = vshrl.u32 %v1248, 7
      %v1250 = vsub.s32 %v1247, %v1249
      %v1251 = vrot.slane %v1237, %v1250
      %v1252 = vcombine.high %v1244, %v1244
      %v1253 = vcombine.high %v1251, %v1251
      %v1255 = vunpack.c.l.s4 1966171168
      %v1256 = vunpack.c.0.s8 %v1255
      %v1257 = vlaneseq
      %v1258 = vshrl.u32 %v1257, 7
      %v1259 = vsub.s32 %v1256, %v1258
      %v1260 = vrot.slane %v1244, %v1259
      %v1262 = vunpack.c.l.s4 1966171168
      %v1263 = vunpack.c.0.s8 %v1262
      %v1264 = vlaneseq
      %v1265 = vshrl.u32 %v1264, 7
      %v1266 = vsub.s32 %v1263, %v1265
      %v1267 = vrot.slane %v1251, %v1266
      %v1269 = vunpack.c.l.s4 1966171168
      %v1270 = vunpack.c.0.s8 %v1269
      %v1271 = vlaneseq
      %v1272 = vshrl.u32 %v1271, 7
      %v1273 = vsub.s32 %v1270, %v1272
      %v1274 = vrot.slane %v1252, %v1273
      %v1276 = vunpack.c.l.s4 1966171168
      %v1277 = vunpack.c.0.s8 %v1276
      %v1278 = vlaneseq
      %v1279 = vshrl.u32 %v1278, 7
      %v1280 = vsub.s32 %v1277, %v1279
      %v1281 = vrot.slane %v1253, %v1280
      %v1282 = vcombine.high %v1260, %v1260
      %v1283 = vcombine.high %v1267, %v1267
      %v1284 = vcombine.high %v1274, %v1274
      %v1285 = vcombine.high %v1281, %v1281
      %v1286 = vcombine.high %v952, %v952
      %v1288 = vunpack.c.l.s4 1966171168
      %v1289 = vunpack.c.0.s8 %v1288
      %v1290 = vlaneseq
      %v1291 = vshrl.u32 %v1290, 7
      %v1292 = vsub.s32 %v1289, %v1291
      %v1293 = vrot.slane %v952, %v1292
      %v1295 = vunpack.c.l.s4 1966171168
      %v1296 = vunpack.c.0.s8 %v1295
      %v1297 = vlaneseq
      %v1298 = vshrl.u32 %v1297, 7
      %v1299 = vsub.s32 %v1296, %v1298
      %v1300 = vrot.slane %v1286, %v1299
      %v1301 = vcombine.high %v1293, %v1293
      %v1302 = vcombine.high %v1300, %v1300
      %v1304 = vunpack.c.l.s4 1966171168
      %v1305 = vunpack.c.0.s8 %v1304
      %v1306 = vlaneseq
      %v1307 = vshrl.u32 %v1306, 7
      %v1308 = vsub.s32 %v1305, %v1307
      %v1309 = vrot.slane %v1293, %v1308
      %v1311 = vunpack.c.l.s4 1966171168
      %v1312 = vunpack.c.0.s8 %v1311
      %v1313 = vlaneseq
      %v1314 = vshrl.u32 %v1313, 7
      %v1315 = vsub.s32 %v1312, %v1314
      %v1316 = vrot.slane %v1300, %v1315
      %v1318 = vunpack.c.l.s4 1966171168
      %v1319 = vunpack.c.0.s8 %v1318
      %v1320 = vlaneseq
      %v1321 = vshrl.u32 %v1320, 7
      %v1322 = vsub.s32 %v1319, %v1321
      %v1323 = vrot.slane %v1301, %v1322
      %v1325 = vunpack.c.l.s4 1966171168
      %v1326 = vunpack.c.0.s8 %v1325
      %v1327 = vlaneseq
      %v1328 = vshrl.u32 %v1327, 7
      %v1329 = vsub.s32 %v1326, %v1328
      %v1330 = vrot.slane %v1302, %v1329
      %v1331 = vcombine.high %v1309, %v1309
      %v1332 = vcombine.high %v1316, %v1316
      %v1333 = vcombine.high %v1323, %v1323
      %v1334 = vcombine.high %v1330, %v1330
      %v1335 = vcombine.high %v953, %v953
      %v1337 = vunpack.c.l.s4 1966171168
      %v1338 = vunpack.c.0.s8 %v1337
      %v1339 = vlaneseq
      %v1340 = vshrl.u32 %v1339, 7
      %v1341 = vsub.s32 %v1338, %v1340
      %v1342 = vrot.slane %v953, %v1341
      %v1344 = vunpack.c.l.s4 1966171168
      %v1345 = vunpack.c.0.s8 %v1344
      %v1346 = vlaneseq
      %v1347 = vshrl.u32 %v1346, 7
      %v1348 = vsub.s32 %v1345, %v1347
      %v1349 = vrot.slane %v1335, %v1348
      %v1350 = vcombine.high %v1342, %v1342
      %v1351 = vcombine.high %v1349, %v1349
      %v1353 = vunpack.c.l.s4 1966171168
      %v1354 = vunpack.c.0.s8 %v1353
      %v1355 = vlaneseq
      %v1356 = vshrl.u32 %v1355, 7
      %v1357 = vsub.s32 %v1354, %v1356
      %v1358 = vrot.slane %v1342, %v1357
      %v1360 = vunpack.c.l.s4 1966171168
      %v1361 = vunpack.c.0.s8 %v1360
      %v1362 = vlaneseq
      %v1363 = vshrl.u32 %v1362, 7
      %v1364 = vsub.s32 %v1361, %v1363
      %v1365 = vrot.slane %v1349, %v1364
      %v1367 = vunpack.c.l.s4 1966171168
      %v1368 = vunpack.c.0.s8 %v1367
      %v1369 = vlaneseq
      %v1370 = vshrl.u32 %v1369, 7
      %v1371 = vsub.s32 %v1368, %v1370
      %v1372 = vrot.slane %v1350, %v1371
      %v1374 = vunpack.c.l.s4 1966171168
      %v1375 = vunpack.c.0.s8 %v1374
      %v1376 = vlaneseq
      %v1377 = vshrl.u32 %v1376, 7
      %v1378 = vsub.s32 %v1375, %v1377
      %v1379 = vrot.slane %v1351, %v1378
      %v1380 = vcombine.high %v1358, %v1358
      %v1381 = vcombine.high %v1365, %v1365
      %v1382 = vcombine.high %v1372, %v1372
      %v1383 = vcombine.high %v1379, %v1379
      %v1384 = vcombine.high %v954, %v954
      %v1386 = vunpack.c.l.s4 1966171168
      %v1387 = vunpack.c.0.s8 %v1386
      %v1388 = vlaneseq
      %v1389 = vshrl.u32 %v1388, 7
      %v1390 = vsub.s32 %v1387, %v1389
      %v1391 = vrot.slane %v954, %v1390
      %v1393 = vunpack.c.l.s4 1966171168
      %v1394 = vunpack.c.0.s8 %v1393
      %v1395 = vlaneseq
      %v1396 = vshrl.u32 %v1395, 7
      %v1397 = vsub.s32 %v1394, %v1396
      %v1398 = vrot.slane %v1384, %v1397
      %v1399 = vcombine.high %v1391, %v1391
      %v1400 = vcombine.high %v1398, %v1398
      %v1402 = vunpack.c.l.s4 1966171168
      %v1403 = vunpack.c.0.s8 %v1402
      %v1404 = vlaneseq
      %v1405 = vshrl.u32 %v1404, 7
      %v1406 = vsub.s32 %v1403, %v1405
      %v1407 = vrot.slane %v1391, %v1406
      %v1409 = vunpack.c.l.s4 1966171168
      %v1410 = vunpack.c.0.s8 %v1409
      %v1411 = vlaneseq
      %v1412 = vshrl.u32 %v1411, 7
      %v1413 = vsub.s32 %v1410, %v1412
      %v1414 = vrot.slane %v1398, %v1413
      %v1416 = vunpack.c.l.s4 1966171168
      %v1417 = vunpack.c.0.s8 %v1416
      %v1418 = vlaneseq
      %v1419 = vshrl.u32 %v1418, 7
      %v1420 = vsub.s32 %v1417, %v1419
      %v1421 = vrot.slane %v1399, %v1420
      %v1423 = vunpack.c.l.s4 1966171168
      %v1424 = vunpack.c.0.s8 %v1423
      %v1425 = vlaneseq
      %v1426 = vshrl.u32 %v1425, 7
      %v1427 = vsub.s32 %v1424, %v1426
      %v1428 = vrot.slane %v1400, %v1427
      %v1429 = vcombine.high %v1407, %v1407
      %v1430 = vcombine.high %v1414, %v1414
      %v1431 = vcombine.high %v1421, %v1421
      %v1432 = vcombine.high %v1428, %v1428
      %v1433 = vcombine.high %v955, %v955
      %v1435 = vunpack.c.l.s4 1966171168
      %v1436 = vunpack.c.0.s8 %v1435
      %v1437 = vlaneseq
      %v1438 = vshrl.u32 %v1437, 7
      %v1439 = vsub.s32 %v1436, %v1438
      %v1440 = vrot.slane %v955, %v1439
      %v1442 = vunpack.c.l.s4 1966171168
      %v1443 = vunpack.c.0.s8 %v1442
      %v1444 = vlaneseq
      %v1445 = vshrl.u32 %v1444, 7
      %v1446 = vsub.s32 %v1443, %v1445
      %v1447 = vrot.slane %v1433, %v1446
      %v1448 = vcombine.high %v1440, %v1440
      %v1449 = vcombine.high %v1447, %v1447
      %v1451 = vunpack.c.l.s4 1966171168
      %v1452 = vunpack.c.0.s8 %v1451
      %v1453 = vlaneseq
      %v1454 = vshrl.u32 %v1453, 7
      %v1455 = vsub.s32 %v1452, %v1454
      %v1456 = vrot.slane %v1440, %v1455
      %v1458 = vunpack.c.l.s4 1966171168
      %v1459 = vunpack.c.0.s8 %v1458
      %v1460 = vlaneseq
      %v1461 = vshrl.u32 %v1460, 7
      %v1462 = vsub.s32 %v1459, %v1461
      %v1463 = vrot.slane %v1447, %v1462
      %v1465 = vunpack.c.l.s4 1966171168
      %v1466 = vunpack.c.0.s8 %v1465
      %v1467 = vlaneseq
      %v1468 = vshrl.u32 %v1467, 7
      %v1469 = vsub.s32 %v1466, %v1468
      %v1470 = vrot.slane %v1448, %v1469
      %v1472 = vunpack.c.l.s4 1966171168
      %v1473 = vunpack.c.0.s8 %v1472
      %v1474 = vlaneseq
      %v1475 = vshrl.u32 %v1474, 7
      %v1476 = vsub.s32 %v1473, %v1475
      %v1477 = vrot.slane %v1449, %v1476
      %v1478 = vcombine.high %v1456, %v1456
      %v1479 = vcombine.high %v1463, %v1463
      %v1480 = vcombine.high %v1470, %v1470
      %v1481 = vcombine.high %v1477, %v1477
      %v1482 = vcombine.high %v956, %v956
      %v1484 = vunpack.c.l.s4 1966171168
      %v1485 = vunpack.c.0.s8 %v1484
      %v1486 = vlaneseq
      %v1487 = vshrl.u32 %v1486, 7
      %v1488 = vsub.s32 %v1485, %v1487
      %v1489 = vrot.slane %v956, %v1488
      %v1491 = vunpack.c.l.s4 1966171168
      %v1492 = vunpack.c.0.s8 %v1491
      %v1493 = vlaneseq
      %v1494 = vshrl.u32 %v1493, 7
      %v1495 = vsub.s32 %v1492, %v1494
      %v1496 = vrot.slane %v1482, %v1495
      %v1497 = vcombine.high %v1489, %v1489
      %v1498 = vcombine.high %v1496, %v1496
      %v1500 = vunpack.c.l.s4 1966171168
      %v1501 = vunpack.c.0.s8 %v1500
      %v1502 = vlaneseq
      %v1503 = vshrl.u32 %v1502, 7
      %v1504 = vsub.s32 %v1501, %v1503
      %v1505 = vrot.slane %v1489, %v1504
      %v1507 = vunpack.c.l.s4 1966171168
      %v1508 = vunpack.c.0.s8 %v1507
      %v1509 = vlaneseq
      %v1510 = vshrl.u32 %v1509, 7
      %v1511 = vsub.s32 %v1508, %v1510
      %v1512 = vrot.slane %v1496, %v1511
      %v1514 = vunpack.c.l.s4 1966171168
      %v1515 = vunpack.c.0.s8 %v1514
      %v1516 = vlaneseq
      %v1517 = vshrl.u32 %v1516, 7
      %v1518 = vsub.s32 %v1515, %v1517
      %v1519 = vrot.slane %v1497, %v1518
      %v1521 = vunpack.c.l.s4 1966171168
      %v1522 = vunpack.c.0.s8 %v1521
      %v1523 = vlaneseq
      %v1524 = vshrl.u32 %v1523, 7
      %v1525 = vsub.s32 %v1522, %v1524
      %v1526 = vrot.slane %v1498, %v1525
      %v1527 = vcombine.high %v1505, %v1505
      %v1528 = vcombine.high %v1512, %v1512
      %v1529 = vcombine.high %v1519, %v1519
      %v1530 = vcombine.high %v1526, %v1526
      %v1531 = vcombine.high %v957, %v957
      %v1533 = vunpack.c.l.s4 1966171168
      %v1534 = vunpack.c.0.s8 %v1533
      %v1535 = vlaneseq
      %v1536 = vshrl.u32 %v1535, 7
      %v1537 = vsub.s32 %v1534, %v1536
      %v1538 = vrot.slane %v957, %v1537
      %v1540 = vunpack.c.l.s4 1966171168
      %v1541 = vunpack.c.0.s8 %v1540
      %v1542 = vlaneseq
      %v1543 = vshrl.u32 %v1542, 7
      %v1544 = vsub.s32 %v1541, %v1543
      %v1545 = vrot.slane %v1531, %v1544
      %v1546 = vcombine.high %v1538, %v1538
      %v1547 = vcombine.high %v1545, %v1545
      %v1549 = vunpack.c.l.s4 1966171168
      %v1550 = vunpack.c.0.s8 %v1549
      %v1551 = vlaneseq
      %v1552 = vshrl.u32 %v1551, 7
      %v1553 = vsub.s32 %v1550, %v1552
      %v1554 = vrot.slane %v1538, %v1553
      %v1556 = vunpack.c.l.s4 1966171168
      %v1557 = vunpack.c.0.s8 %v1556
      %v1558 = vlaneseq
      %v1559 = vshrl.u32 %v1558, 7
      %v1560 = vsub.s32 %v1557, %v1559
      %v1561 = vrot.slane %v1545, %v1560
      %v1563 = vunpack.c.l.s4 1966171168
      %v1564 = vunpack.c.0.s8 %v1563
      %v1565 = vlaneseq
      %v1566 = vshrl.u32 %v1565, 7
      %v1567 = vsub.s32 %v1564, %v1566
      %v1568 = vrot.slane %v1546, %v1567
      %v1570 = vunpack.c.l.s4 1966171168
      %v1571 = vunpack.c.0.s8 %v1570
      %v1572 = vlaneseq
      %v1573 = vshrl.u32 %v1572, 7
      %v1574 = vsub.s32 %v1571, %v1573
      %v1575 = vrot.slane %v1547, %v1574
      %v1576 = vcombine.high %v1554, %v1554
      %v1577 = vcombine.high %v1561, %v1561
      %v1578 = vcombine.high %v1568, %v1568
      %v1579 = vcombine.high %v1575, %v1575
      %v1580 = vcombine.high %v958, %v958
      %v1582 = vunpack.c.l.s4 1966171168
      %v1583 = vunpack.c.0.s8 %v1582
      %v1584 = vlaneseq
      %v1585 = vshrl.u32 %v1584, 7
      %v1586 = vsub.s32 %v1583, %v1585
      %v1587 = vrot.slane %v958, %v1586
      %v1589 = vunpack.c.l.s4 1966171168
      %v1590 = vunpack.c.0.s8 %v1589
      %v1591 = vlaneseq
      %v1592 = vshrl.u32 %v1591, 7
      %v1593 = vsub.s32 %v1590, %v1592
      %v1594 = vrot.slane %v1580, %v1593
      %v1595 = vcombine.high %v1587, %v1587
      %v1596 = vcombine.high %v1594, %v1594
      %v1598 = vunpack.c.l.s4 1966171168
      %v1599 = vunpack.c.0.s8 %v1598
      %v1600 = vlaneseq
      %v1601 = vshrl.u32 %v1600, 7
      %v1602 = vsub.s32 %v1599, %v1601
      %v1603 = vrot.slane %v1587, %v1602
      %v1605 = vunpack.c.l.s4 1966171168
      %v1606 = vunpack.c.0.s8 %v1605
      %v1607 = vlaneseq
      %v1608 = vshrl.u32 %v1607, 7
      %v1609 = vsub.s32 %v1606, %v1608
      %v1610 = vrot.slane %v1594, %v1609
      %v1612 = vunpack.c.l.s4 1966171168
      %v1613 = vunpack.c.0.s8 %v1612
      %v1614 = vlaneseq
      %v1615 = vshrl.u32 %v1614, 7
      %v1616 = vsub.s32 %v1613, %v1615
      %v1617 = vrot.slane %v1595, %v1616
      %v1619 = vunpack.c.l.s4 1966171168
      %v1620 = vunpack.c.0.s8 %v1619
      %v1621 = vlaneseq
      %v1622 = vshrl.u32 %v1621, 7
      %v1623 = vsub.s32 %v1620, %v1622
      %v1624 = vrot.slane %v1596, %v1623
      %v1625 = vcombine.high %v1603, %v1603
      %v1626 = vcombine.high %v1610, %v1610
      %v1627 = vcombine.high %v1617, %v1617
      %v1628 = vcombine.high %v1624, %v1624
      %v1629 = vcombine.high %v959, %v959
      %v1631 = vunpack.c.l.s4 1966171168
      %v1632 = vunpack.c.0.s8 %v1631
      %v1633 = vlaneseq
      %v1634 = vshrl.u32 %v1633, 7
      %v1635 = vsub.s32 %v1632, %v1634
      %v1636 = vrot.slane %v959, %v1635
      %v1638 = vunpack.c.l.s4 1966171168
      %v1639 = vunpack.c.0.s8 %v1638
      %v1640 = vlaneseq
      %v1641 = vshrl.u32 %v1640, 7
      %v1642 = vsub.s32 %v1639, %v1641
      %v1643 = vrot.slane %v1629, %v1642
      %v1644 = vcombine.high %v1636, %v1636
      %v1645 = vcombine.high %v1643, %v1643
      %v1647 = vunpack.c.l.s4 1966171168
      %v1648 = vunpack.c.0.s8 %v1647
      %v1649 = vlaneseq
      %v1650 = vshrl.u32 %v1649, 7
      %v1651 = vsub.s32 %v1648, %v1650
      %v1652 = vrot.slane %v1636, %v1651
      %v1654 = vunpack.c.l.s4 1966171168
      %v1655 = vunpack.c.0.s8 %v1654
      %v1656 = vlaneseq
      %v1657 = vshrl.u32 %v1656, 7
      %v1658 = vsub.s32 %v1655, %v1657
      %v1659 = vrot.slane %v1643, %v1658
      %v1661 = vunpack.c.l.s4 1966171168
      %v1662 = vunpack.c.0.s8 %v1661
      %v1663 = vlaneseq
      %v1664 = vshrl.u32 %v1663, 7
      %v1665 = vsub.s32 %v1662, %v1664
      %v1666 = vrot.slane %v1644, %v1665
      %v1668 = vunpack.c.l.s4 1966171168
      %v1669 = vunpack.c.0.s8 %v1668
      %v1670 = vlaneseq
      %v1671 = vshrl.u32 %v1670, 7
      %v1672 = vsub.s32 %v1669, %v1671
      %v1673 = vrot.slane %v1645, %v1672
      %v1674 = vcombine.high %v1652, %v1652
      %v1675 = vcombine.high %v1659, %v1659
      %v1676 = vcombine.high %v1666, %v1666
      %v1677 = vcombine.high %v1673, %v1673
      %v1678 = vcombine.high %v960, %v960
      %v1680 = vunpack.c.l.s4 1966171168
      %v1681 = vunpack.c.0.s8 %v1680
      %v1682 = vlaneseq
      %v1683 = vshrl.u32 %v1682, 7
      %v1684 = vsub.s32 %v1681, %v1683
      %v1685 = vrot.slane %v960, %v1684
      %v1687 = vunpack.c.l.s4 1966171168
      %v1688 = vunpack.c.0.s8 %v1687
      %v1689 = vlaneseq
      %v1690 = vshrl.u32 %v1689, 7
      %v1691 = vsub.s32 %v1688, %v1690
      %v1692 = vrot.slane %v1678, %v1691
      %v1693 = vcombine.high %v1685, %v1685
      %v1694 = vcombine.high %v1692, %v1692
      %v1696 = vunpack.c.l.s4 1966171168
      %v1697 = vunpack.c.0.s8 %v1696
      %v1698 = vlaneseq
      %v1699 = vshrl.u32 %v1698, 7
      %v1700 = vsub.s32 %v1697, %v1699
      %v1701 = vrot.slane %v1685, %v1700
      %v1703 = vunpack.c.l.s4 1966171168
      %v1704 = vunpack.c.0.s8 %v1703
      %v1705 = vlaneseq
      %v1706 = vshrl.u32 %v1705, 7
      %v1707 = vsub.s32 %v1704, %v1706
      %v1708 = vrot.slane %v1692, %v1707
      %v1710 = vunpack.c.l.s4 1966171168
      %v1711 = vunpack.c.0.s8 %v1710
      %v1712 = vlaneseq
      %v1713 = vshrl.u32 %v1712, 7
      %v1714 = vsub.s32 %v1711, %v1713
      %v1715 = vrot.slane %v1693, %v1714
      %v1717 = vunpack.c.l.s4 1966171168
      %v1718 = vunpack.c.0.s8 %v1717
      %v1719 = vlaneseq
      %v1720 = vshrl.u32 %v1719, 7
      %v1721 = vsub.s32 %v1718, %v1720
      %v1722 = vrot.slane %v1694, %v1721
      %v1723 = vcombine.high %v1701, %v1701
      %v1724 = vcombine.high %v1708, %v1708
      %v1725 = vcombine.high %v1715, %v1715
      %v1726 = vcombine.high %v1722, %v1722
      %v1727 = vcombine.high %v961, %v961
      %v1729 = vunpack.c.l.s4 1966171168
      %v1730 = vunpack.c.0.s8 %v1729
      %v1731 = vlaneseq
      %v1732 = vshrl.u32 %v1731, 7
      %v1733 = vsub.s32 %v1730, %v1732
      %v1734 = vrot.slane %v961, %v1733
      %v1736 = vunpack.c.l.s4 1966171168
      %v1737 = vunpack.c.0.s8 %v1736
      %v1738 = vlaneseq
      %v1739 = vshrl.u32 %v1738, 7
      %v1740 = vsub.s32 %v1737, %v1739
      %v1741 = vrot.slane %v1727, %v1740
      %v1742 = vcombine.high %v1734, %v1734
      %v1743 = vcombine.high %v1741, %v1741
      %v1745 = vunpack.c.l.s4 1966171168
      %v1746 = vunpack.c.0.s8 %v1745
      %v1747 = vlaneseq
      %v1748 = vshrl.u32 %v1747, 7
      %v1749 = vsub.s32 %v1746, %v1748
      %v1750 = vrot.slane %v1734, %v1749
      %v1752 = vunpack.c.l.s4 1966171168
      %v1753 = vunpack.c.0.s8 %v1752
      %v1754 = vlaneseq
      %v1755 = vshrl.u32 %v1754, 7
      %v1756 = vsub.s32 %v1753, %v1755
      %v1757 = vrot.slane %v1741, %v1756
      %v1759 = vunpack.c.l.s4 1966171168
      %v1760 = vunpack.c.0.s8 %v1759
      %v1761 = vlaneseq
      %v1762 = vshrl.u32 %v1761, 7
      %v1763 = vsub.s32 %v1760, %v1762
      %v1764 = vrot.slane %v1742, %v1763
      %v1766 = vunpack.c.l.s4 1966171168
      %v1767 = vunpack.c.0.s8 %v1766
      %v1768 = vlaneseq
      %v1769 = vshrl.u32 %v1768, 7
      %v1770 = vsub.s32 %v1767, %v1769
      %v1771 = vrot.slane %v1743, %v1770
      %v1772 = vcombine.high %v1750, %v1750
      %v1773 = vcombine.high %v1757, %v1757
      %v1774 = vcombine.high %v1764, %v1764
      %v1775 = vcombine.high %v1771, %v1771
      %v1776 = vcombine.high %v962, %v962
      %v1778 = vunpack.c.l.s4 1966171168
      %v1779 = vunpack.c.0.s8 %v1778
      %v1780 = vlaneseq
      %v1781 = vshrl.u32 %v1780, 7
      %v1782 = vsub.s32 %v1779, %v1781
      %v1783 = vrot.slane %v962, %v1782
      %v1785 = vunpack.c.l.s4 1966171168
      %v1786 = vunpack.c.0.s8 %v1785
      %v1787 = vlaneseq
      %v1788 = vshrl.u32 %v1787, 7
      %v1789 = vsub.s32 %v1786, %v1788
      %v1790 = vrot.slane %v1776, %v1789
      %v1791 = vcombine.high %v1783, %v1783
      %v1792 = vcombine.high %v1790, %v1790
      %v1794 = vunpack.c.l.s4 1966171168
      %v1795 = vunpack.c.0.s8 %v1794
      %v1796 = vlaneseq
      %v1797 = vshrl.u32 %v1796, 7
      %v1798 = vsub.s32 %v1795, %v1797
      %v1799 = vrot.slane %v1783, %v1798
      %v1801 = vunpack.c.l.s4 1966171168
      %v1802 = vunpack.c.0.s8 %v1801
      %v1803 = vlaneseq
      %v1804 = vshrl.u32 %v1803, 7
      %v1805 = vsub.s32 %v1802, %v1804
      %v1806 = vrot.slane %v1790, %v1805
      %v1808 = vunpack.c.l.s4 1966171168
      %v1809 = vunpack.c.0.s8 %v1808
      %v1810 = vlaneseq
      %v1811 = vshrl.u32 %v1810, 7
      %v1812 = vsub.s32 %v1809, %v1811
      %v1813 = vrot.slane %v1791, %v1812
      %v1815 = vunpack.c.l.s4 1966171168
      %v1816 = vunpack.c.0.s8 %v1815
      %v1817 = vlaneseq
      %v1818 = vshrl.u32 %v1817, 7
      %v1819 = vsub.s32 %v1816, %v1818
      %v1820 = vrot.slane %v1792, %v1819
      %v1821 = vcombine.high %v1799, %v1799
      %v1822 = vcombine.high %v1806, %v1806
      %v1823 = vcombine.high %v1813, %v1813
      %v1824 = vcombine.high %v1820, %v1820
      %v1825 = vcombine.high %v963, %v963
      %v1827 = vunpack.c.l.s4 1966171168
      %v1828 = vunpack.c.0.s8 %v1827
      %v1829 = vlaneseq
      %v1830 = vshrl.u32 %v1829, 7
      %v1831 = vsub.s32 %v1828, %v1830
      %v1832 = vrot.slane %v963, %v1831
      %v1834 = vunpack.c.l.s4 1966171168
      %v1835 = vunpack.c.0.s8 %v1834
      %v1836 = vlaneseq
      %v1837 = vshrl.u32 %v1836, 7
      %v1838 = vsub.s32 %v1835, %v1837
      %v1839 = vrot.slane %v1825, %v1838
      %v1840 = vcombine.high %v1832, %v1832
      %v1841 = vcombine.high %v1839, %v1839
      %v1843 = vunpack.c.l.s4 1966171168
      %v1844 = vunpack.c.0.s8 %v1843
      %v1845 = vlaneseq
      %v1846 = vshrl.u32 %v1845, 7
      %v1847 = vsub.s32 %v1844, %v1846
      %v1848 = vrot.slane %v1832, %v1847
      %v1850 = vunpack.c.l.s4 1966171168
      %v1851 = vunpack.c.0.s8 %v1850
      %v1852 = vlaneseq
      %v1853 = vshrl.u32 %v1852, 7
      %v1854 = vsub.s32 %v1851, %v1853
      %v1855 = vrot.slane %v1839, %v1854
      %v1857 = vunpack.c.l.s4 1966171168
      %v1858 = vunpack.c.0.s8 %v1857
      %v1859 = vlaneseq
      %v1860 = vshrl.u32 %v1859, 7
      %v1861 = vsub.s32 %v1858, %v1860
      %v1862 = vrot.slane %v1840, %v1861
      %v1864 = vunpack.c.l.s4 1966171168
      %v1865 = vunpack.c.0.s8 %v1864
      %v1866 = vlaneseq
      %v1867 = vshrl.u32 %v1866, 7
      %v1868 = vsub.s32 %v1865, %v1867
      %v1869 = vrot.slane %v1841, %v1868
      %v1870 = vcombine.high %v1848, %v1848
      %v1871 = vcombine.high %v1855, %v1855
      %v1872 = vcombine.high %v1862, %v1862
      %v1873 = vcombine.high %v1869, %v1869
      %v1874 = vcombine.high %v964, %v964
      %v1876 = vunpack.c.l.s4 1966171168
      %v1877 = vunpack.c.0.s8 %v1876
      %v1878 = vlaneseq
      %v1879 = vshrl.u32 %v1878, 7
      %v1880 = vsub.s32 %v1877, %v1879
      %v1881 = vrot.slane %v964, %v1880
      %v1883 = vunpack.c.l.s4 1966171168
      %v1884 = vunpack.c.0.s8 %v1883
      %v1885 = vlaneseq
      %v1886 = vshrl.u32 %v1885, 7
      %v1887 = vsub.s32 %v1884, %v1886
      %v1888 = vrot.slane %v1874, %v1887
      %v1889 = vcombine.high %v1881, %v1881
      %v1890 = vcombine.high %v1888, %v1888
      %v1892 = vunpack.c.l.s4 1966171168
      %v1893 = vunpack.c.0.s8 %v1892
      %v1894 = vlaneseq
      %v1895 = vshrl.u32 %v1894, 7
      %v1896 = vsub.s32 %v1893, %v1895
      %v1897 = vrot.slane %v1881, %v1896
      %v1899 = vunpack.c.l.s4 1966171168
      %v1900 = vunpack.c.0.s8 %v1899
      %v1901 = vlaneseq
      %v1902 = vshrl.u32 %v1901, 7
      %v1903 = vsub.s32 %v1900, %v1902
      %v1904 = vrot.slane %v1888, %v1903
      %v1906 = vunpack.c.l.s4 1966171168
      %v1907 = vunpack.c.0.s8 %v1906
      %v1908 = vlaneseq
      %v1909 = vshrl.u32 %v1908, 7
      %v1910 = vsub.s32 %v1907, %v1909
      %v1911 = vrot.slane %v1889, %v1910
      %v1913 = vunpack.c.l.s4 1966171168
      %v1914 = vunpack.c.0.s8 %v1913
      %v1915 = vlaneseq
      %v1916 = vshrl.u32 %v1915, 7
      %v1917 = vsub.s32 %v1914, %v1916
      %v1918 = vrot.slane %v1890, %v1917
      %v1919 = vcombine.high %v1897, %v1897
      %v1920 = vcombine.high %v1904, %v1904
      %v1921 = vcombine.high %v1911, %v1911
      %v1922 = vcombine.high %v1918, %v1918
      %v1923 = vcombine.high %v965, %v965
      %v1925 = vunpack.c.l.s4 1966171168
      %v1926 = vunpack.c.0.s8 %v1925
      %v1927 = vlaneseq
      %v1928 = vshrl.u32 %v1927, 7
      %v1929 = vsub.s32 %v1926, %v1928
      %v1930 = vrot.slane %v965, %v1929
      %v1932 = vunpack.c.l.s4 1966171168
      %v1933 = vunpack.c.0.s8 %v1932
      %v1934 = vlaneseq
      %v1935 = vshrl.u32 %v1934, 7
      %v1936 = vsub.s32 %v1933, %v1935
      %v1937 = vrot.slane %v1923, %v1936
      %v1938 = vcombine.high %v1930, %v1930
      %v1939 = vcombine.high %v1937, %v1937
      %v1941 = vunpack.c.l.s4 1966171168
      %v1942 = vunpack.c.0.s8 %v1941
      %v1943 = vlaneseq
      %v1944 = vshrl.u32 %v1943, 7
      %v1945 = vsub.s32 %v1942, %v1944
      %v1946 = vrot.slane %v1930, %v1945
      %v1948 = vunpack.c.l.s4 1966171168
      %v1949 = vunpack.c.0.s8 %v1948
      %v1950 = vlaneseq
      %v1951 = vshrl.u32 %v1950, 7
      %v1952 = vsub.s32 %v1949, %v1951
      %v1953 = vrot.slane %v1937, %v1952
      %v1955 = vunpack.c.l.s4 1966171168
      %v1956 = vunpack.c.0.s8 %v1955
      %v1957 = vlaneseq
      %v1958 = vshrl.u32 %v1957, 7
      %v1959 = vsub.s32 %v1956, %v1958
      %v1960 = vrot.slane %v1938, %v1959
      %v1962 = vunpack.c.l.s4 1966171168
      %v1963 = vunpack.c.0.s8 %v1962
      %v1964 = vlaneseq
      %v1965 = vshrl.u32 %v1964, 7
      %v1966 = vsub.s32 %v1963, %v1965
      %v1967 = vrot.slane %v1939, %v1966
      %v1968 = vcombine.high %v1946, %v1946
      %v1969 = vcombine.high %v1953, %v1953
      %v1970 = vcombine.high %v1960, %v1960
      %v1971 = vcombine.high %v1967, %v1967
      %v1973 = vunpack.c.l.s4 1966171168
      %v1974 = vunpack.c.0.s8 %v1973
      %v1975 = vlaneseq
      %v1976 = vshrl.u32 %v1975, 7
      %v1977 = vsub.s32 %v1974, %v1976
      %v1978 = vrot.slane %v966, %v1977
      %v1979 = vcombine.high %v1978, %v1978
      %v1981 = vunpack.c.l.s4 1966171168
      %v1982 = vunpack.c.0.s8 %v1981
      %v1983 = vlaneseq
      %v1984 = vshrl.u32 %v1983, 7
      %v1985 = vsub.s32 %v1982, %v1984
      %v1986 = vrot.slane %v1978, %v1985
      %v1988 = vunpack.c.l.s4 1966171168
      %v1989 = vunpack.c.0.s8 %v1988
      %v1990 = vlaneseq
      %v1991 = vshrl.u32 %v1990, 7
      %v1992 = vsub.s32 %v1989, %v1991
      %v1993 = vrot.slane %v1979, %v1992
      %v1998 = vunpack.c.h.b16 %v966
      %v1999 = vunpack.c.l.b16 %v967
      %v2000 = vunpack.c.h.b16 %v967
      %v2001 = vunpack.c.l.b16 %v968
      %v2002 = vunpack.c.h.b16 %v968
      %v2003 = vunpack.c.l.b16 %v969
      %v2004 = vunpack.c.h.b16 %v969
      %v2005 = vunpack.c.l.b16 %v970
      %v2006 = vpack.c.b16 %v1998, %v1998
      %v2007 = vpack.c.b16 %v1999, %v1999
      %v2008 = vpack.c.b16 %v2000, %v2000
      %v2009 = vpack.c.b16 %v2001, %v2001
      %v2010 = vpack.c.b16 %v2002, %v2002
      %v2011 = vpack.c.b16 %v2003, %v2003
      %v2012 = vcombine.low %v1015, %v1029
      %v2013 = vcombine.low %v1037, %v1039
      %v2014 = vcombine.low %v1022, %v1036
      %v2015 = vcombine.low %v1038, %v1040
      %v2017 = vunpack.c.l.s4 1966171168
      %v2018 = vunpack.c.0.s8 %v2017
      %v2019 = vlaneseq
      %v2020 = vshrl.u32 %v2019, 7
      %v2021 = vsub.s32 %v2018, %v2020
      %v2022 = vrot.slane %v2012, %v2021
      %v2024 = vunpack.c.l.s4 1966171168
      %v2025 = vunpack.c.0.s8 %v2024
      %v2026 = vlaneseq
      %v2027 = vshrl.u32 %v2026, 7
      %v2028 = vsub.s32 %v2025, %v2027
      %v2029 = vrot.slane %v2013, %v2028
      %v2031 = vunpack.c.l.s4 1966171168
      %v2032 = vunpack.c.0.s8 %v2031
      %v2033 = vlaneseq
      %v2034 = vshrl.u32 %v2033, 7
      %v2035 = vsub.s32 %v2032, %v2034
      %v2036 = vrot.slane %v2014, %v2035
      %v2038 = vunpack.c.l.s4 1966171168
      %v2039 = vunpack.c.0.s8 %v2038
      %v2040 = vlaneseq
      %v2041 = vshrl.u32 %v2040, 7
      %v2042 = vsub.s32 %v2039, %v2041
      %v2043 = vrot.slane %v2015, %v2042
      %v2044 = vcombine.low %v2022, %v2029
      %v2045 = vcombine.low %v2036, %v2043
      %v2047 = vunpack.c.l.s4 1966171168
      %v2048 = vunpack.c.0.s8 %v2047
      %v2049 = vlaneseq
      %v2050 = vshrl.u32 %v2049, 7
      %v2051 = vsub.s32 %v2048, %v2050
      %v2052 = vrot.slane %v2044, %v2051
      %v2054 = vunpack.c.l.s4 1966171168
      %v2055 = vunpack.c.0.s8 %v2054
      %v2056 = vlaneseq
      %v2057 = vshrl.u32 %v2056, 7
      %v2058 = vsub.s32 %v2055, %v2057
      %v2059 = vrot.slane %v2045, %v2058
      %v2060 = vcombine.low %v2052, %v2059
      %v2061 = vcombine.low %v1078, %v1086
      %v2062 = vcombine.low %v1088, %v1071
      %v2063 = vcombine.low %v1085, %v1087
      %v2064 = vcombine.low %v1089, %v1113
      %v2066 = vunpack.c.l.s4 1966171168
      %v2067 = vunpack.c.0.s8 %v2066
      %v2068 = vlaneseq
      %v2069 = vshrl.u32 %v2068, 7
      %v2070 = vsub.s32 %v2067, %v2069
      %v2071 = vrot.slane %v2061, %v2070
      %v2073 = vunpack.c.l.s4 1966171168
      %v2074 = vunpack.c.0.s8 %v2073
      %v2075 = vlaneseq
      %v2076 = vshrl.u32 %v2075, 7
      %v2077 = vsub.s32 %v2074, %v2076
      %v2078 = vrot.slane %v2062, %v2077
      %v2080 = vunpack.c.l.s4 1966171168
      %v2081 = vunpack.c.0.s8 %v2080
      %v2082 = vlaneseq
      %v2083 = vshrl.u32 %v2082, 7
      %v2084 = vsub.s32 %v2081, %v2083
      %v2085 = vrot.slane %v2063, %v2084
      %v2087 = vunpack.c.l.s4 1966171168
      %v2088 = vunpack.c.0.s8 %v2087
      %v2089 = vlaneseq
      %v2090 = vshrl.u32 %v2089, 7
      %v2091 = vsub.s32 %v2088, %v2090
      %v2092 = vrot.slane %v2064, %v2091
      %v2093 = vcombine.low %v2071, %v2078
      %v2094 = vcombine.low %v2085, %v2092
      %v2096 = vunpack.c.l.s4 1966171168
      %v2097 = vunpack.c.0.s8 %v2096
      %v2098 = vlaneseq
      %v2099 = vshrl.u32 %v2098, 7
      %v2100 = vsub.s32 %v2097, %v2099
      %v2101 = vrot.slane %v2093, %v2100
      %v2103 = vunpack.c.l.s4 1966171168
      %v2104 = vunpack.c.0.s8 %v2103
      %v2105 = vlaneseq
      %v2106 = vshrl.u32 %v2105, 7
      %v2107 = vsub.s32 %v2104, %v2106
      %v2108 = vrot.slane %v2094, %v2107
      %v2109 = vcombine.low %v2101, %v2108
      %v2110 = vcombine.low %v1135, %v1137
      %v2111 = vcombine.low %v1120, %v1134
      %v2112 = vcombine.low %v1136, %v1138
      %v2113 = vcombine.low %v1162, %v1176
      %v2115 = vunpack.c.l.s4 1966171168
      %v2116 = vunpack.c.0.s8 %v2115
      %v2117 = vlaneseq
      %v2118 = vshrl.u32 %v2117, 7
      %v2119 = vsub.s32 %v2116, %v2118
      %v2120 = vrot.slane %v2110, %v2119
      %v2122 = vunpack.c.l.s4 1966171168
      %v2123 = vunpack.c.0.s8 %v2122
      %v2124 = vlaneseq
      %v2125 = vshrl.u32 %v2124, 7
      %v2126 = vsub.s32 %v2123, %v2125
      %v2127 = vrot.slane %v2111, %v2126
      %v2129 = vunpack.c.l.s4 1966171168
      %v2130 = vunpack.c.0.s8 %v2129
      %v2131 = vlaneseq
      %v2132 = vshrl.u32 %v2131, 7
      %v2133 = vsub.s32 %v2130, %v2132
      %v2134 = vrot.slane %v2112, %v2133
      %v2136 = vunpack.c.l.s4 1966171168
      %v2137 = vunpack.c.0.s8 %v2136
      %v2138 = vlaneseq
      %v2139 = vshrl.u32 %v2138, 7
      %v2140 = vsub.s32 %v2137, %v2139
      %v2141 = vrot.slane %v2113, %v2140
      %v2142 = vcombine.low %v2120, %v2127
      %v2143 = vcombine.low %v2134, %v2141
      %v2145 = vunpack.c.l.s4 1966171168
      %v2146 = vunpack.c.0.s8 %v2145
      %v2147 = vlaneseq
      %v2148 = vshrl.u32 %v2147, 7
      %v2149 = vsub.s32 %v2146, %v2148
      %v2150 = vrot.slane %v2142, %v2149
      %v2152 = vunpack.c.l.s4 1966171168
      %v2153 = vunpack.c.0.s8 %v2152
      %v2154 = vlaneseq
      %v2155 = vshrl.u32 %v2154, 7
      %v2156 = vsub.s32 %v2153, %v2155
      %v2157 = vrot.slane %v2143, %v2156
      %v2158 = vcombine.low %v2150, %v2157
      %v2159 = vcombine.low %v1186, %v1169
      %v2160 = vcombine.low %v1183, %v1185
      %v2161 = vcombine.low %v1187, %v1211
      %v2162 = vcombine.low %v1225, %v1233
      %v2164 = vunpack.c.l.s4 1966171168
      %v2165 = vunpack.c.0.s8 %v2164
      %v2166 = vlaneseq
      %v2167 = vshrl.u32 %v2166, 7
      %v2168 = vsub.s32 %v2165, %v2167
      %v2169 = vrot.slane %v2159, %v2168
      %v2171 = vunpack.c.l.s4 1966171168
      %v2172 = vunpack.c.0.s8 %v2171
      %v2173 = vlaneseq
      %v2174 = vshrl.u32 %v2173, 7
      %v2175 = vsub.s32 %v2172, %v2174
      %v2176 = vrot.slane %v2160, %v2175
      %v2178 = vunpack.c.l.s4 1966171168
      %v2179 = vunpack.c.0.s8 %v2178
      %v2180 = vlaneseq
      %v2181 = vshrl.u32 %v2180, 7
      %v2182 = vsub.s32 %v2179, %v2181
      %v2183 = vrot.slane %v2161, %v2182
      %v2185 = vunpack.c.l.s4 1966171168
      %v2186 = vunpack.c.0.s8 %v2185
      %v2187 = vlaneseq
      %v2188 = vshrl.u32 %v2187, 7
      %v2189 = vsub.s32 %v2186, %v2188
      %v2190 = vrot.slane %v2162, %v2189
      %v2191 = vcombine.low %v2169, %v2176
      %v2192 = vcombine.low %v2183, %v2190
      %v2194 = vunpack.c.l.s4 1966171168
      %v2195 = vunpack.c.0.s8 %v2194
      %v2196 = vlaneseq
      %v2197 = vshrl.u32 %v2196, 7
      %v2198 = vsub.s32 %v2195, %v2197
      %v2199 = vrot.slane %v2191, %v2198
      %v2201 = vunpack.c.l.s4 1966171168
      %v2202 = vunpack.c.0.s8 %v2201
      %v2203 = vlaneseq
      %v2204 = vshrl.u32 %v2203, 7
      %v2205 = vsub.s32 %v2202, %v2204
      %v2206 = vrot.slane %v2192, %v2205
      %v2207 = vcombine.low %v2199, %v2206
      %v2208 = vcombine.low %v1218, %v1232
      %v2209 = vcombine.low %v1234, %v1236
      %v2210 = vcombine.low %v1260, %v1274
      %v2211 = vcombine.low %v1282, %v1284
      %v2213 = vunpack.c.l.s4 1966171168
      %v2214 = vunpack.c.0.s8 %v2213
      %v2215 = vlaneseq
      %v2216 = vshrl.u32 %v2215, 7
      %v2217 = vsub.s32 %v2214, %v2216
      %v2218 = vrot.slane %v2208, %v2217
      %v2220 = vunpack.c.l.s4 1966171168
      %v2221 = vunpack.c.0.s8 %v2220
      %v2222 = vlaneseq
      %v2223 = vshrl.u32 %v2222, 7
      %v2224 = vsub.s32 %v2221, %v2223
      %v2225 = vrot.slane %v2209, %v2224
      %v2227 = vunpack.c.l.s4 1966171168
      %v2228 = vunpack.c.0.s8 %v2227
      %v2229 = vlaneseq
      %v2230 = vshrl.u32 %v2229, 7
      %v2231 = vsub.s32 %v2228, %v2230
      %v2232 = vrot.slane %v2210, %v2231
      %v2234 = vunpack.c.l.s4 1966171168
      %v2235 = vunpack.c.0.s8 %v2234
      %v2236 = vlaneseq
      %v2237 = vshrl.u32 %v2236, 7
      %v2238 = vsub.s32 %v2235, %v2237
      %v2239 = vrot.slane %v2211, %v2238
      %v2240 = vcombine.low %v2218, %v2225
      %v2241 = vcombine.low %v2232, %v2239
      %v2243 = vunpack.c.l.s4 1966171168
      %v2244 = vunpack.c.0.s8 %v2243
      %v2245 = vlaneseq
      %v2246 = vshrl.u32 %v2245, 7
      %v2247 = vsub.s32 %v2244, %v2246
      %v2248 = vrot.slane %v2240, %v2247
      %v2250 = vunpack.c.l.s4 1966171168
      %v2251 = vunpack.c.0.s8 %v2250
      %v2252 = vlaneseq
      %v2253 = vshrl.u32 %v2252, 7
      %v2254 = vsub.s32 %v2251, %v2253
      %v2255 = vrot.slane %v2241, %v2254
      %v2256 = vcombine.low %v2248, %v2255
      %v2257 = vcombine.low %v1281, %v1283
      %v2258 = vcombine.low %v1285, %v1309
      %v2259 = vcombine.low %v1323, %v1331
      %v2260 = vcombine.low %v1333, %v1316
      %v2262 = vunpack.c.l.s4 1966171168
      %v2263 = vunpack.c.0.s8 %v2262
      %v2264 = vlaneseq
      %v2265 = vshrl.u32 %v2264, 7
      %v2266 = vsub.s32 %v2263, %v2265
      %v2267 = vrot.slane %v2257, %v2266
      %v2269 = vunpack.c.l.s4 1966171168
      %v2270 = vunpack.c.0.s8 %v2269
      %v2271 = vlaneseq
      %v2272 = vshrl.u32 %v2271, 7
      %v2273 = vsub.s32 %v2270, %v2272
      %v2274 = vrot.slane %v2258, %v2273
      %v2276 = vunpack.c.l.s4 1966171168
      %v2277 = vunpack.c.0.s8 %v2276
      %v2278 = vlaneseq
      %v2279 = vshrl.u32 %v2278, 7
      %v2280 = vsub.s32 %v2277, %v2279
      %v2281 = vrot.slane %v2259, %v2280
      %v2283 = vunpack.c.l.s4 1966171168
      %v2284 = vunpack.c.0.s8 %v2283
      %v2285 = vlaneseq
      %v2286 = vshrl.u32 %v2285, 7
      %v2287 = vsub.s32 %v2284, %v2286
      %v2288 = vrot.slane %v2260, %v2287
      %v2289 = vcombine.low %v2267, %v2274
      %v2290 = vcombine.low %v2281, %v2288
      %v2292 = vunpack.c.l.s4 1966171168
      %v2293 = vunpack.c.0.s8 %v2292
      %v2294 = vlaneseq
      %v2295 = vshrl.u32 %v2294, 7
      %v2296 = vsub.s32 %v2293, %v2295
      %v2297 = vrot.slane %v2289, %v2296
      %v2299 = vunpack.c.l.s4 1966171168
      %v2300 = vunpack.c.0.s8 %v2299
      %v2301 = vlaneseq
      %v2302 = vshrl.u32 %v2301, 7
      %v2303 = vsub.s32 %v2300, %v2302
      %v2304 = vrot.slane %v2290, %v2303
      %v2305 = vcombine.low %v2297, %v2304
      %v2306 = vcombine.low %v1332, %v1334
      %v2307 = vcombine.low %v1358, %v1372
      %v2308 = vcombine.low %v1380, %v1382
      %v2309 = vcombine.low %v1365, %v1379
      %v2311 = vunpack.c.l.s4 1966171168
      %v2312 = vunpack.c.0.s8 %v2311
      %v2313 = vlaneseq
      %v2314 = vshrl.u32 %v2313, 7
      %v2315 = vsub.s32 %v2312, %v2314
      %v2316 = vrot.slane %v2306, %v2315
      %v2318 = vunpack.c.l.s4 1966171168
      %v2319 = vunpack.c.0.s8 %v2318
      %v2320 = vlaneseq
      %v2321 = vshrl.u32 %v2320, 7
      %v2322 = vsub.s32 %v2319, %v2321
      %v2323 = vrot.slane %v2307, %v2322
      %v2325 = vunpack.c.l.s4 1966171168
      %v2326 = vunpack.c.0.s8 %v2325
      %v2327 = vlaneseq
      %v2328 = vshrl.u32 %v2327, 7
      %v2329 = vsub.s32 %v2326, %v2328
      %v2330 = vrot.slane %v2308, %v2329
      %v2332 = vunpack.c.l.s4 1966171168
      %v2333 = vunpack.c.0.s8 %v2332
      %v2334 = vlaneseq
      %v2335 = vshrl.u32 %v2334, 7
      %v2336 = vsub.s32 %v2333, %v2335
      %v2337 = vrot.slane %v2309, %v2336
      %v2338 = vcombine.low %v2316, %v2323
      %v2339 = vcombine.low %v2330, %v2337
      %v2341 = vunpack.c.l.s4 1966171168
      %v2342 = vunpack.c.0.s8 %v2341
      %v2343 = vlaneseq
      %v2344 = vshrl.u32 %v2343, 7
      %v2345 = vsub.s32 %v2342, %v2344
      %v2346 = vrot.slane %v2338, %v2345
      %v2348 = vunpack.c.l.s4 1966171168
      %v2349 = vunpack.c.0.s8 %v2348
      %v2350 = vlaneseq
      %v2351 = vshrl.u32 %v2350, 7
      %v2352 = vsub.s32 %v2349, %v2351
      %v2353 = vrot.slane %v2339, %v2352
      %v2354 = vcombine.low %v2346, %v2353
      %v2355 = vcombine.low %v1383, %v1407
      %v2356 = vcombine.low %v1421, %v1429
      %v2357 = vcombine.low %v1431, %v1414
      %v2358 = vcombine.low %v1428, %v1430
      %v2360 = vunpack.c.l.s4 1966171168
      %v2361 = vunpack.c.0.s8 %v2360
      %v2362 = vlaneseq
      %v2363 = vshrl.u32 %v2362, 7
      %v2364 = vsub.s32 %v2361, %v2363
      %v2365 = vrot.slane %v2355, %v2364
      %v2367 = vunpack.c.l.s4 1966171168
      %v2368 = vunpack.c.0.s8 %v2367
      %v2369 = vlaneseq
      %v2370 = vshrl.u32 %v2369, 7
      %v2371 = vsub.s32 %v2368, %v2370
      %v2372 = vrot.slane %v2356, %v2371
      %v2374 = vunpack.c.l.s4 1966171168
      %v2375 = vunpack.c.0.s8 %v2374
      %v2376 = vlaneseq
      %v2377 = vshrl.u32 %v2376, 7
      %v2378 = vsub.s32 %v2375, %v2377
      %v2379 = vrot.slane %v2357, %v2378
      %v2381 = vunpack.c.l.s4 1966171168
      %v2382 = vunpack.c.0.s8 %v2381
      %v2383 = vlaneseq
      %v2384 = vshrl.u32 %v2383, 7
      %v2385 = vsub.s32 %v2382, %v2384
      %v2386 = vrot.slane %v2358, %v2385
      %v2387 = vcombine.low %v2365, %v2372
      %v2388 = vcombine.low %v2379, %v2386
      %v2390 = vunpack.c.l.s4 1966171168
      %v2391 = vunpack.c.0.s8 %v2390
      %v2392 = vlaneseq
      %v2393 = vshrl.u32 %v2392, 7
      %v2394 = vsub.s32 %v2391, %v2393
      %v2395 = vrot.slane %v2387, %v2394
      %v2397 = vunpack.c.l.s4 1966171168
      %v2398 = vunpack.c.0.s8 %v2397
      %v2399 = vlaneseq
      %v2400 = vshrl.u32 %v2399, 7
      %v2401 = vsub.s32 %v2398, %v2400
      %v2402 = vrot.slane %v2388, %v2401
      %v2403 = vcombine.low %v2395, %v2402
      %v2404 = vcombine.low %v1456, %v1470
      %v2405 = vcombine.low %v1478, %v1480
      %v2406 = vcombine.low %v1463, %v1477
      %v2407 = vcombine.low %v1479, %v1481
      %v2409 = vunpack.c.l.s4 1966171168
      %v2410 = vunpack.c.0.s8 %v2409
      %v2411 = vlaneseq
      %v2412 = vshrl.u32 %v2411, 7
      %v2413 = vsub.s32 %v2410, %v2412
      %v2414 = vrot.slane %v2404, %v2413
      %v2416 = vunpack.c.l.s4 1966171168
      %v2417 = vunpack.c.0.s8 %v2416
      %v2418 = vlaneseq
      %v2419 = vshrl.u32 %v2418, 7
      %v2420 = vsub.s32 %v2417, %v2419
      %v2421 = vrot.slane %v2405, %v2420
      %v2423 = vunpack.c.l.s4 1966171168
      %v2424 = vunpack.c.0.s8 %v2423
      %v2425 = vlaneseq
      %v2426 = vshrl.u32 %v2425, 7
      %v2427 = vsub.s32 %v2424, %v2426
      %v2428 = vrot.slane %v2406, %v2427
      %v2430 = vunpack.c.l.s4 1966171168
      %v2431 = vunpack.c.0.s8 %v2430
      %v2432 = vlaneseq
      %v2433 = vshrl.u32 %v2432, 7
      %v2434 = vsub.s32 %v2431, %v2433
      %v2435 = vrot.slane %v2407, %v2434
      %v2436 = vcombine.low %v2414, %v2421
      %v2437 = vcombine.low %v2428, %v2435
      %v2439 = vunpack.c.l.s4 1966171168
      %v2440 = vunpack.c.0.s8 %v2439
      %v2441 = vlaneseq
      %v2442 = vshrl.u32 %v2441, 7
      %v2443 = vsub.s32 %v2440, %v2442
      %v2444 = vrot.slane %v2436, %v2443
      %v2446 = vunpack.c.l.s4 1966171168
      %v2447 = vunpack.c.0.s8 %v2446
      %v2448 = vlaneseq
      %v2449 = vshrl.u32 %v2448, 7
      %v2450 = vsub.s32 %v2447, %v2449
      %v2451 = vrot.slane %v2437, %v2450
      %v2452 = vcombine.low %v2444, %v2451
      %v2453 = vcombine.low %v1519, %v1527
      %v2454 = vcombine.low %v1529, %v1512
      %v2455 = vcombine.low %v1526, %v1528
      %v2456 = vcombine.low %v1530, %v1554
      %v2458 = vunpack.c.l.s4 1966171168
      %v2459 = vunpack.c.0.s8 %v2458
      %v2460 = vlaneseq
      %v2461 = vshrl.u32 %v2460, 7
      %v2462 = vsub.s32 %v2459, %v2461
      %v2463 = vrot.slane %v2453, %v2462
      %v2465 = vunpack.c.l.s4 1966171168
      %v2466 = vunpack.c.0.s8 %v2465
      %v2467 = vlaneseq
      %v2468 = vshrl.u32 %v2467, 7
      %v2469 = vsub.s32 %v2466, %v2468
      %v2470 = vrot.slane %v2454, %v2469
      %v2472 = vunpack.c.l.s4 1966171168
      %v2473 = vunpack.c.0.s8 %v2472
      %v2474 = vlaneseq
      %v2475 = vshrl.u32 %v2474, 7
      %v2476 = vsub.s32 %v2473, %v2475
      %v2477 = vrot.slane %v2455, %v2476
      %v2479 = vunpack.c.l.s4 1966171168
      %v2480 = vunpack.c.0.s8 %v2479
      %v2481 = vlaneseq
      %v2482 = vshrl.u32 %v2481, 7
      %v2483 = vsub.s32 %v2480, %v2482
      %v2484 = vrot.slane %v2456, %v2483
      %v2485 = vcombine.low %v2463, %v2470
      %v2486 = vcombine.low %v2477, %v2484
      %v2488 = vunpack.c.l.s4 1966171168
      %v2489 = vunpack.c.0.s8 %v2488
      %v2490 = vlaneseq
      %v2491 = vshrl.u32 %v2490, 7
      %v2492 = vsub.s32 %v2489, %v2491
      %v2493 = vrot.slane %v2485, %v2492
      %v2495 = vunpack.c.l.s4 1966171168
      %v2496 = vunpack.c.0.s8 %v2495
      %v2497 = vlaneseq
      %v2498 = vshrl.u32 %v2497, 7
      %v2499 = vsub.s32 %v2496, %v2498
      %v2500 = vrot.slane %v2486, %v2499
      %v2501 = vcombine.low %v2493, %v2500
      %v2502 = vcombine.low %v1576, %v1578
      %v2503 = vcombine.low %v1561, %v1575
      %v2504 = vcombine.low %v1577, %v1579
      %v2505 = vcombine.low %v1603, %v1617
      %v2507 = vunpack.c.l.s4 1966171168
      %v2508 = vunpack.c.0.s8 %v2507
      %v2509 = vlaneseq
      %v2510 = vshrl.u32 %v2509, 7
      %v2511 = vsub.s32 %v2508, %v2510
      %v2512 = vrot.slane %v2502, %v2511
      %v2514 = vunpack.c.l.s4 1966171168
      %v2515 = vunpack.c.0.s8 %v2514
      %v2516 = vlaneseq
      %v2517 = vshrl.u32 %v2516, 7
      %v2518 = vsub.s32 %v2515, %v2517
      %v2519 = vrot.slane %v2503, %v2518
      %v2521 = vunpack.c.l.s4 1966171168
      %v2522 = vunpack.c.0.s8 %v2521
      %v2523 = vlaneseq
      %v2524 = vshrl.u32 %v2523, 7
      %v2525 = vsub.s32 %v2522, %v2524
      %v2526 = vrot.slane %v2504, %v2525
      %v2528 = vunpack.c.l.s4 1966171168
      %v2529 = vunpack.c.0.s8 %v2528
      %v2530 = vlaneseq
      %v2531 = vshrl.u32 %v2530, 7
      %v2532 = vsub.s32 %v2529, %v2531
      %v2533 = vrot.slane %v2505, %v2532
      %v2534 = vcombine.low %v2512, %v2519
      %v2535 = vcombine.low %v2526, %v2533
      %v2537 = vunpack.c.l.s4 1966171168
      %v2538 = vunpack.c.0.s8 %v2537
      %v2539 = vlaneseq
      %v2540 = vshrl.u32 %v2539, 7
      %v2541 = vsub.s32 %v2538, %v2540
      %v2542 = vrot.slane %v2534, %v2541
      %v2544 = vunpack.c.l.s4 1966171168
      %v2545 = vunpack.c.0.s8 %v2544
      %v2546 = vlaneseq
      %v2547 = vshrl.u32 %v2546, 7
      %v2548 = vsub.s32 %v2545, %v2547
      %v2549 = vrot.slane %v2535, %v2548
      %v2550 = vcombine.low %v2542, %v2549
      %v2551 = vcombine.low %v1627, %v1610
      %v2552 = vcombine.low %v1624, %v1626
      %v2553 = vcombine.low %v1628, %v1652
      %v2554 = vcombine.low %v1666, %v1674
      %v2556 = vunpack.c.l.s4 1966171168
      %v2557 = vunpack.c.0.s8 %v2556
      %v2558 = vlaneseq
      %v2559 = vshrl.u32 %v2558, 7
      %v2560 = vsub.s32 %v2557, %v2559
      %v2561 = vrot.slane %v2551, %v2560
      %v2563 = vunpack.c.l.s4 1966171168
      %v2564 = vunpack.c.0.s8 %v2563
      %v2565 = vlaneseq
      %v2566 = vshrl.u32 %v2565, 7
      %v2567 = vsub.s32 %v2564, %v2566
      %v2568 = vrot.slane %v2552, %v2567
      %v2570 = vunpack.c.l.s4 1966171168
      %v2571 = vunpack.c.0.s8 %v2570
      %v2572 = vlaneseq
      %v2573 = vshrl.u32 %v2572, 7
      %v2574 = vsub.s32 %v2571, %v2573
      %v2575 = vrot.slane %v2553, %v2574
      %v2577 = vunpack.c.l.s4 1966171168
      %v2578 = vunpack.c.0.s8 %v2577
      %v2579 = vlaneseq
      %v2580 = vshrl.u32 %v2579, 7
      %v2581 = vsub.s32 %v2578, %v2580
      %v2582 = vrot.slane %v2554, %v2581
      %v2583 = vcombine.low %v2561, %v2568
      %v2584 = vcombine.low %v2575, %v2582
      %v2586 = vunpack.c.l.s4 1966171168
      %v2587 = vunpack.c.0.s8 %v2586
      %v2588 = vlaneseq
      %v2589 = vshrl.u32 %v2588, 7
      %v2590 = vsub.s32 %v2587, %v2589
      %v2591 = vrot.slane %v2583, %v2590
      %v2593 = vunpack.c.l.s4 1966171168
      %v2594 = vunpack.c.0.s8 %v2593
      %v2595 = vlaneseq
      %v2596 = vshrl.u32 %v2595, 7
      %v2597 = vsub.s32 %v2594, %v2596
      %v2598 = vrot.slane %v2584, %v2597
      %v2599 = vcombine.low %v2591, %v2598
      %v2600 = vcombine.low %v1659, %v1673
      %v2601 = vcombine.low %v1675, %v1677
      %v2602 = vcombine.low %v1701, %v1715
      %v2603 = vcombine.low %v1723, %v1725
      %v2605 = vunpack.c.l.s4 1966171168
      %v2606 = vunpack.c.0.s8 %v2605
      %v2607 = vlaneseq
      %v2608 = vshrl.u32 %v2607, 7
      %v2609 = vsub.s32 %v2606, %v2608
      %v2610 = vrot.slane %v2600, %v2609
      %v2612 = vunpack.c.l.s4 1966171168
      %v2613 = vunpack.c.0.s8 %v2612
      %v2614 = vlaneseq
      %v2615 = vshrl.u32 %v2614, 7
      %v2616 = vsub.s32 %v2613, %v2615
      %v2617 = vrot.slane %v2601, %v2616
      %v2619 = vunpack.c.l.s4 1966171168
      %v2620 = vunpack.c.0.s8 %v2619
      %v2621 = vlaneseq
      %v2622 = vshrl.u32 %v2621, 7
      %v2623 = vsub.s32 %v2620, %v2622
      %v2624 = vrot.slane %v2602, %v2623
      %v2626 = vunpack.c.l.s4 1966171168
      %v2627 = vunpack.c.0.s8 %v2626
      %v2628 = vlaneseq
      %v2629 = vshrl.u32 %v2628, 7
      %v2630 = vsub.s32 %v2627, %v2629
      %v2631 = vrot.slane %v2603, %v2630
      %v2632 = vcombine.low %v2610, %v2617
      %v2633 = vcombine.low %v2624, %v2631
      %v2635 = vunpack.c.l.s4 1966171168
      %v2636 = vunpack.c.0.s8 %v2635
      %v2637 = vlaneseq
      %v2638 = vshrl.u32 %v2637, 7
      %v2639 = vsub.s32 %v2636, %v2638
      %v2640 = vrot.slane %v2632, %v2639
      %v2642 = vunpack.c.l.s4 1966171168
      %v2643 = vunpack.c.0.s8 %v2642
      %v2644 = vlaneseq
      %v2645 = vshrl.u32 %v2644, 7
      %v2646 = vsub.s32 %v2643, %v2645
      %v2647 = vrot.slane %v2633, %v2646
      %v2648 = vcombine.low %v2640, %v2647
      %v2649 = vcombine.low %v1722, %v1724
      %v2650 = vcombine.low %v1726, %v1750
      %v2651 = vcombine.low %v1764, %v1772
      %v2652 = vcombine.low %v1774, %v1757
      %v2654 = vunpack.c.l.s4 1966171168
      %v2655 = vunpack.c.0.s8 %v2654
      %v2656 = vlaneseq
      %v2657 = vshrl.u32 %v2656, 7
      %v2658 = vsub.s32 %v2655, %v2657
      %v2659 = vrot.slane %v2649, %v2658
      %v2661 = vunpack.c.l.s4 1966171168
      %v2662 = vunpack.c.0.s8 %v2661
      %v2663 = vlaneseq
      %v2664 = vshrl.u32 %v2663, 7
      %v2665 = vsub.s32 %v2662, %v2664
      %v2666 = vrot.slane %v2650, %v2665
      %v2668 = vunpack.c.l.s4 1966171168
      %v2669 = vunpack.c.0.s8 %v2668
      %v2670 = vlaneseq
      %v2671 = vshrl.u32 %v2670, 7
      %v2672 = vsub.s32 %v2669, %v2671
      %v2673 = vrot.slane %v2651, %v2672
      %v2675 = vunpack.c.l.s4 1966171168
      %v2676 = vunpack.c.0.s8 %v2675
      %v2677 = vlaneseq
      %v2678 = vshrl.u32 %v2677, 7
      %v2679 = vsub.s32 %v2676, %v2678
      %v2680 = vrot.slane %v2652, %v2679
      %v2681 = vcombine.low %v2659, %v2666
      %v2682 = vcombine.low %v2673, %v2680
      %v2684 = vunpack.c.l.s4 1966171168
      %v2685 = vunpack.c.0.s8 %v2684
      %v2686 = vlaneseq
      %v2687 = vshrl.u32 %v2686, 7
      %v2688 = vsub.s32 %v2685, %v2687
      %v2689 = vrot.slane %v2681, %v2688
      %v2691 = vunpack.c.l.s4 1966171168
      %v2692 = vunpack.c.0.s8 %v2691
      %v2693 = vlaneseq
      %v2694 = vshrl.u32 %v2693, 7
      %v2695 = vsub.s32 %v2692, %v2694
      %v2696 = vrot.slane %v2682, %v2695
      %v2697 = vcombine.low %v2689, %v2696
      %v2698 = vcombine.low %v1773, %v1775
      %v2699 = vcombine.low %v1799, %v1813
      %v2700 = vcombine.low %v1821, %v1823
      %v2701 = vcombine.low %v1806, %v1820
      %v2703 = vunpack.c.l.s4 1966171168
      %v2704 = vunpack.c.0.s8 %v2703
      %v2705 = vlaneseq
      %v2706 = vshrl.u32 %v2705, 7
      %v2707 = vsub.s32 %v2704, %v2706
      %v2708 = vrot.slane %v2698, %v2707
      %v2710 = vunpack.c.l.s4 1966171168
      %v2711 = vunpack.c.0.s8 %v2710
      %v2712 = vlaneseq
      %v2713 = vshrl.u32 %v2712, 7
      %v2714 = vsub.s32 %v2711, %v2713
      %v2715 = vrot.slane %v2699, %v2714
      %v2717 = vunpack.c.l.s4 1966171168
      %v2718 = vunpack.c.0.s8 %v2717
      %v2719 = vlaneseq
      %v2720 = vshrl.u32 %v2719, 7
      %v2721 = vsub.s32 %v2718, %v2720
      %v2722 = vrot.slane %v2700, %v2721
      %v2724 = vunpack.c.l.s4 1966171168
      %v2725 = vunpack.c.0.s8 %v2724
      %v2726 = vlaneseq
      %v2727 = vshrl.u32 %v2726, 7
      %v2728 = vsub.s32 %v2725, %v2727
      %v2729 = vrot.slane %v2701, %v2728
      %v2730 = vcombine.low %v2708, %v2715
      %v2731 = vcombine.low %v2722, %v2729
      %v2733 = vunpack.c.l.s4 1966171168
      %v2734 = vunpack.c.0.s8 %v2733
      %v2735 = vlaneseq
      %v2736 = vshrl.u32 %v2735, 7
      %v2737 = vsub.s32 %v2734, %v2736
      %v2738 = vrot.slane %v2730, %v2737
      %v2740 = vunpack.c.l.s4 1966171168
      %v2741 = vunpack.c.0.s8 %v2740
      %v2742 = vlaneseq
      %v2743 = vshrl.u32 %v2742, 7
      %v2744 = vsub.s32 %v2741, %v2743
      %v2745 = vrot.slane %v2731, %v2744
      %v2746 = vcombine.low %v2738, %v2745
      %v2747 = vcombine.low %v1824, %v1848
      %v2748 = vcombine.low %v1862, %v1870
      %v2749 = vcombine.low %v1872, %v1855
      %v2750 = vcombine.low %v1869, %v1871
      %v2752 = vunpack.c.l.s4 1966171168
      %v2753 = vunpack.c.0.s8 %v2752
      %v2754 = vlaneseq
      %v2755 = vshrl.u32 %v2754, 7
      %v2756 = vsub.s32 %v2753, %v2755
      %v2757 = vrot.slane %v2747, %v2756
      %v2759 = vunpack.c.l.s4 1966171168
      %v2760 = vunpack.c.0.s8 %v2759
      %v2761 = vlaneseq
      %v2762 = vshrl.u32 %v2761, 7
      %v2763 = vsub.s32 %v2760, %v2762
      %v2764 = vrot.slane %v2748, %v2763
      %v2766 = vunpack.c.l.s4 1966171168
      %v2767 = vunpack.c.0.s8 %v2766
      %v2768 = vlaneseq
      %v2769 = vshrl.u32 %v2768, 7
      %v2770 = vsub.s32 %v2767, %v2769
      %v2771 = vrot.slane %v2749, %v2770
      %v2773 = vunpack.c.l.s4 1966171168
      %v2774 = vunpack.c.0.s8 %v2773
      %v2775 = vlaneseq
      %v2776 = vshrl.u32 %v2775, 7
      %v2777 = vsub.s32 %v2774, %v2776
      %v2778 = vrot.slane %v2750, %v2777
      %v2779 = vcombine.low %v2757, %v2764
      %v2780 = vcombine.low %v2771, %v2778
      %v2782 = vunpack.c.l.s4 1966171168
      %v2783 = vunpack.c.0.s8 %v2782
      %v2784 = vlaneseq
      %v2785 = vshrl.u32 %v2784, 7
      %v2786 = vsub.s32 %v2783, %v2785
      %v2787 = vrot.slane %v2779, %v2786
      %v2789 = vunpack.c.l.s4 1966171168
      %v2790 = vunpack.c.0.s8 %v2789
      %v2791 = vlaneseq
      %v2792 = vshrl.u32 %v2791, 7
      %v2793 = vsub.s32 %v2790, %v2792
      %v2794 = vrot.slane %v2780, %v2793
      %v2795 = vcombine.low %v2787, %v2794
      %v2797 = vunpack.c.l.s4 1966171168
      %v2798 = vunpack.c.0.s8 %v2797
      %v2799 = vlaneseq
      %v2800 = vshrl.u32 %v2799, 7
      %v2801 = vsub.s32 %v2798, %v2800
      %v2802 = vrot.slane %v1064, %v2801
      %v2804 = vunpack.c.l.s4 1966171168
      %v2805 = vunpack.c.0.s8 %v2804
      %v2806 = vlaneseq
      %v2807 = vshrl.u32 %v2806, 7
      %v2808 = vsub.s32 %v2805, %v2807
      %v2809 = vrot.slane %v2802, %v2808
      %v2811 = vunpack.c.l.s4 1966171168
      %v2812 = vunpack.c.0.s8 %v2811
      %v2813 = vlaneseq
      %v2814 = vshrl.u32 %v2813, 7
      %v2815 = vsub.s32 %v2812, %v2814
      %v2816 = vrot.slane %v1127, %v2815
      %v2818 = vunpack.c.l.s4 1966171168
      %v2819 = vunpack.c.0.s8 %v2818
      %v2820 = vlaneseq
      %v2821 = vshrl.u32 %v2820, 7
      %v2822 = vsub.s32 %v2819, %v2821
      %v2823 = vrot.slane %v2816, %v2822
      %v2825 = vunpack.c.l.s4 1966171168
      %v2826 = vunpack.c.0.s8 %v2825
      %v2827 = vlaneseq
      %v2828 = vshrl.u32 %v2827, 7
      %v2829 = vsub.s32 %v2826, %v2828
      %v2830 = vrot.slane %v1184, %v2829
      %v2832 = vunpack.c.l.s4 1966171168
      %v2833 = vunpack.c.0.s8 %v2832
      %v2834 = vlaneseq
      %v2835 = vshrl.u32 %v2834, 7
      %v2836 = vsub.s32 %v2833, %v2835
      %v2837 = vrot.slane %v2830, %v2836
      %v2839 = vunpack.c.l.s4 1966171168
      %v2840 = vunpack.c.0.s8 %v2839
      %v2841 = vlaneseq
      %v2842 = vshrl.u32 %v2841, 7
      %v2843 = vsub.s32 %v2840, %v2842
      %v2844 = vrot.slane %v1235, %v2843
      %v2846 = vunpack.c.l.s4 1966171168
      %v2847 = vunpack.c.0.s8 %v2846
      %v2848 = vlaneseq
      %v2849 = vshrl.u32 %v2848, 7
      %v2850 = vsub.s32 %v2847, %v2849
      %v2851 = vrot.slane %v2844, %v2850
      %v2853 = vunpack.c.l.s4 1966171168
      %v2854 = vunpack.c.0.s8 %v2853
      %v2855 = vlaneseq
      %v2856 = vshrl.u32 %v2855, 7
      %v2857 = vsub.s32 %v2854, %v2856
      %v2858 = vrot.slane %v1267, %v2857
      %v2860 = vunpack.c.l.s4 1966171168
      %v2861 = vunpack.c.0.s8 %v2860
      %v2862 = vlaneseq
      %v2863 = vshrl.u32 %v2862, 7
      %v2864 = vsub.s32 %v2861, %v2863
      %v2865 = vrot.slane %v2858, %v2864
      %v2867 = vunpack.c.l.s4 1966171168
      %v2868 = vunpack.c.0.s8 %v2867
      %v2869 = vlaneseq
      %v2870 = vshrl.u32 %v2869, 7
      %v2871 = vsub.s32 %v2868, %v2870
      %v2872 = vrot.slane %v1330, %v2871
      %v2874 = vunpack.c.l.s4 1966171168
      %v2875 = vunpack.c.0.s8 %v2874
      %v2876 = vlaneseq
      %v2877 = vshrl.u32 %v2876, 7
      %v2878 = vsub.s32 %v2875, %v2877
      %v2879 = vrot.slane %v2872, %v2878
      %v2881 = vunpack.c.l.s4 1966171168
      %v2882 = vunpack.c.0.s8 %v2881
      %v2883 = vlaneseq
      %v2884 = vshrl.u32 %v2883, 7
      %v2885 = vsub.s32 %v2882, %v2884
      %v2886 = vrot.slane %v1381, %v2885
      %v2888 = vunpack.c.l.s4 1966171168
      %v2889 = vunpack.c.0.s8 %v2888
      %v2890 = vlaneseq
      %v2891 = vshrl.u32 %v2890, 7
      %v2892 = vsub.s32 %v2889, %v2891
      %v2893 = vrot.slane %v2886, %v2892
      %v2895 = vunpack.c.l.s4 1966171168
      %v2896 = vunpack.c.0.s8 %v2895
      %v2897 = vlaneseq
      %v2898 = vshrl.u32 %v2897, 7
      %v2899 = vsub.s32 %v2896, %v2898
      %v2900 = vrot.slane %v1432, %v2899
      %v2902 = vunpack.c.l.s4 1966171168
      %v2903 = vunpack.c.0.s8 %v2902
      %v2904 = vlaneseq
      %v2905 = vshrl.u32 %v2904, 7
      %v2906 = vsub.s32 %v2903, %v2905
      %v2907 = vrot.slane %v2900, %v2906
      %v2909 = vunpack.c.l.s4 1966171168
      %v2910 = vunpack.c.0.s8 %v2909
      %v2911 = vlaneseq
      %v2912 = vshrl.u32 %v2911, 7
      %v2913 = vsub.s32 %v2910, %v2912
      %v2914 = vrot.slane %v1505, %v2913
      %v2916 = vunpack.c.l.s4 1966171168
      %v2917 = vunpack.c.0.s8 %v2916
      %v2918 = vlaneseq
      %v2919 = vshrl.u32 %v2918, 7
      %v2920 = vsub.s32 %v2917, %v2919
      %v2921 = vrot.slane %v2914, %v2920
      %v2923 = vunpack.c.l.s4 1966171168
      %v2924 = vunpack.c.0.s8 %v2923
      %v2925 = vlaneseq
      %v2926 = vshrl.u32 %v2925, 7
      %v2927 = vsub.s32 %v2924, %v2926
      %v2928 = vrot.slane %v1568, %v2927
      %v2930 = vunpack.c.l.s4 1966171168
      %v2931 = vunpack.c.0.s8 %v2930
      %v2932 = vlaneseq
      %v2933 = vshrl.u32 %v2932, 7
      %v2934 = vsub.s32 %v2931, %v2933
      %v2935 = vrot.slane %v2928, %v2934
      %v2937 = vunpack.c.l.s4 1966171168
      %v2938 = vunpack.c.0.s8 %v2937
      %v2939 = vlaneseq
      %v2940 = vshrl.u32 %v2939, 7
      %v2941 = vsub.s32 %v2938, %v2940
      %v2942 = vrot.slane %v1625, %v2941
      %v2944 = vunpack.c.l.s4 1966171168
      %v2945 = vunpack.c.0.s8 %v2944
      %v2946 = vlaneseq
      %v2947 = vshrl.u32 %v2946, 7
      %v2948 = vsub.s32 %v2945, %v2947
      %v2949 = vrot.slane %v2942, %v2948
      %v2951 = vunpack.c.l.s4 1966171168
      %v2952 = vunpack.c.0.s8 %v2951
      %v2953 = vlaneseq
      %v2954 = vshrl.u32 %v2953, 7
      %v2955 = vsub.s32 %v2952, %v2954
      %v2956 = vrot.slane %v1676, %v2955
      %v2958 = vunpack.c.l.s4 1966171168
      %v2959 = vunpack.c.0.s8 %v2958
      %v2960 = vlaneseq
      %v2961 = vshrl.u32 %v2960, 7
      %v2962 = vsub.s32 %v2959, %v2961
      %v2963 = vrot.slane %v2956, %v2962
      %v2965 = vunpack.c.l.s4 1966171168
      %v2966 = vunpack.c.0.s8 %v2965
      %v2967 = vlaneseq
      %v2968 = vshrl.u32 %v2967, 7
      %v2969 = vsub.s32 %v2966, %v2968
      %v2970 = vrot.slane %v1708, %v2969
      %v2972 = vunpack.c.l.s4 1966171168
      %v2973 = vunpack.c.0.s8 %v2972
      %v2974 = vlaneseq
      %v2975 = vshrl.u32 %v2974, 7
      %v2976 = vsub.s32 %v2973, %v2975
      %v2977 = vrot.slane %v2970, %v2976
      %v2979 = vunpack.c.l.s4 1966171168
      %v2980 = vunpack.c.0.s8 %v2979
      %v2981 = vlaneseq
      %v2982 = vshrl.u32 %v2981, 7
      %v2983 = vsub.s32 %v2980, %v2982
      %v2984 = vrot.slane %v1771, %v2983
      %v2986 = vunpack.c.l.s4 1966171168
      %v2987 = vunpack.c.0.s8 %v2986
      %v2988 = vlaneseq
      %v2989 = vshrl.u32 %v2988, 7
      %v2990 = vsub.s32 %v2987, %v2989
      %v2991 = vrot.slane %v2984, %v2990
      %v2993 = vunpack.c.l.s4 1966171168
      %v2994 = vunpack.c.0.s8 %v2993
      %v2995 = vlaneseq
      %v2996 = vshrl.u32 %v2995, 7
      %v2997 = vsub.s32 %v2994, %v2996
      %v2998 = vrot.slane %v1822, %v2997
      %v3000 = vunpack.c.l.s4 1966171168
      %v3001 = vunpack.c.0.s8 %v3000
      %v3002 = vlaneseq
      %v3003 = vshrl.u32 %v3002, 7
      %v3004 = vsub.s32 %v3001, %v3003
      %v3005 = vrot.slane %v2998, %v3004
      %v3007 = vunpack.c.l.s4 1966171168
      %v3008 = vunpack.c.0.s8 %v3007
      %v3009 = vlaneseq
      %v3010 = vshrl.u32 %v3009, 7
      %v3011 = vsub.s32 %v3008, %v3010
      %v3012 = vrot.slane %v1873, %v3011
      %v3014 = vunpack.c.l.s4 1966171168
      %v3015 = vunpack.c.0.s8 %v3014
      %v3016 = vlaneseq
      %v3017 = vshrl.u32 %v3016, 7
      %v3018 = vsub.s32 %v3015, %v3017
      %v3019 = vrot.slane %v3012, %v3018
      %vm3020 = vsmask.f32 7424
      %v3022 = vshrl.u32 %v2060, 16
      %v3024 = vshll.u32 %v2060, 16
      %v3026 = vrot.slane %v3024, 1
      %v3027 = vor.u32 %v3022, %v3026
      %v3029 = vshll.u32 %v2809, 16
      %v3031 = vrot.slane %v3029, 1
      %v3032 = vsel %vm3020, %v3027, %v3031
      %v3034 = vshrl.u32 %v2109, 16
      %v3036 = vshll.u32 %v2109, 16
      %v3038 = vrot.slane %v3036, 1
      %v3039 = vor.u32 %v3034, %v3038
      %v3041 = vshll.u32 %v2823, 16
      %v3043 = vrot.slane %v3041, 1
      %v3044 = vsel %vm3020, %v3039, %v3043
      %v3046 = vshrl.u32 %v2158, 16
      %v3048 = vshll.u32 %v2158, 16
      %v3050 = vrot.slane %v3048, 1
      %v3051 = vor.u32 %v3046, %v3050
      %v3053 = vshll.u32 %v2837, 16
      %v3055 = vrot.slane %v3053, 1
      %v3056 = vsel %vm3020, %v3051, %v3055
      %v3058 = vshrl.u32 %v2207, 16
      %v3060 = vshll.u32 %v2207, 16
      %v3062 = vrot.slane %v3060, 1
      %v3063 = vor.u32 %v3058, %v3062
      %v3065 = vshll.u32 %v2851, 16
      %v3067 = vrot.slane %v3065, 1
      %v3068 = vsel %vm3020, %v3063, %v3067
      %v3070 = vshrl.u32 %v2256, 16
      %v3072 = vshll.u32 %v2256, 16
      %v3074 = vrot.slane %v3072, 1
      %v3075 = vor.u32 %v3070, %v3074
      %v3077 = vshll.u32 %v2865, 16
      %v3079 = vrot.slane %v3077, 1
      %v3080 = vsel %vm3020, %v3075, %v3079
      %v3082 = vshrl.u32 %v2305, 16
      %v3084 = vshll.u32 %v2305, 16
      %v3086 = vrot.slane %v3084, 1
      %v3087 = vor.u32 %v3082, %v3086
      %v3089 = vshll.u32 %v2879, 16
      %v3091 = vrot.slane %v3089, 1
      %v3092 = vsel %vm3020, %v3087, %v3091
      %v3094 = vshrl.u32 %v2354, 16
      %v3096 = vshll.u32 %v2354, 16
      %v3098 = vrot.slane %v3096, 1
      %v3099 = vor.u32 %v3094, %v3098
      %v3101 = vshll.u32 %v2893, 16
      %v3103 = vrot.slane %v3101, 1
      %v3104 = vsel %vm3020, %v3099, %v3103
      %v3106 = vshrl.u32 %v2403, 16
      %v3108 = vshll.u32 %v2403, 16
      %v3110 = vrot.slane %v3108, 1
      %v3111 = vor.u32 %v3106, %v3110
      %v3113 = vshll.u32 %v2907, 16
      %v3115 = vrot.slane %v3113, 1
      %v3116 = vsel %vm3020, %v3111, %v3115
      %v3118 = vshrl.u32 %v2452, 16
      %v3120 = vshll.u32 %v2452, 16
      %v3122 = vrot.slane %v3120, 1
      %v3123 = vor.u32 %v3118, %v3122
      %v3125 = vshll.u32 %v2921, 16
      %v3127 = vrot.slane %v3125, 1
      %v3128 = vsel %vm3020, %v3123, %v3127
      %v3130 = vshrl.u32 %v2501, 16
      %v3132 = vshll.u32 %v2501, 16
      %v3134 = vrot.slane %v3132, 1
      %v3135 = vor.u32 %v3130, %v3134
      %v3137 = vshll.u32 %v2935, 16
      %v3139 = vrot.slane %v3137, 1
      %v3140 = vsel %vm3020, %v3135, %v3139
      %v3142 = vshrl.u32 %v2550, 16
      %v3144 = vshll.u32 %v2550, 16
      %v3146 = vrot.slane %v3144, 1
      %v3147 = vor.u32 %v3142, %v3146
      %v3149 = vshll.u32 %v2949, 16
      %v3151 = vrot.slane %v3149, 1
      %v3152 = vsel %vm3020, %v3147, %v3151
      %v3154 = vshrl.u32 %v2599, 16
      %v3156 = vshll.u32 %v2599, 16
      %v3158 = vrot.slane %v3156, 1
      %v3159 = vor.u32 %v3154, %v3158
      %v3161 = vshll.u32 %v2963, 16
      %v3163 = vrot.slane %v3161, 1
      %v3164 = vsel %vm3020, %v3159, %v3163
      %v3166 = vshrl.u32 %v2648, 16
      %v3168 = vshll.u32 %v2648, 16
      %v3170 = vrot.slane %v3168, 1
      %v3171 = vor.u32 %v3166, %v3170
      %v3173 = vshll.u32 %v2977, 16
      %v3175 = vrot.slane %v3173, 1
      %v3176 = vsel %vm3020, %v3171, %v3175
      %v3178 = vshrl.u32 %v2697, 16
      %v3180 = vshll.u32 %v2697, 16
      %v3182 = vrot.slane %v3180, 1
      %v3183 = vor.u32 %v3178, %v3182
      %v3185 = vshll.u32 %v2991, 16
      %v3187 = vrot.slane %v3185, 1
      %v3188 = vsel %vm3020, %v3183, %v3187
      %v3190 = vshrl.u32 %v2746, 16
      %v3192 = vshll.u32 %v2746, 16
      %v3194 = vrot.slane %v3192, 1
      %v3195 = vor.u32 %v3190, %v3194
      %v3197 = vshll.u32 %v3005, 16
      %v3199 = vrot.slane %v3197, 1
      %v3200 = vsel %vm3020, %v3195, %v3199
      %v3202 = vshrl.u32 %v2795, 16
      %v3204 = vshll.u32 %v2795, 16
      %v3206 = vrot.slane %v3204, 1
      %v3207 = vor.u32 %v3202, %v3206
      %v3209 = vshll.u32 %v3019, 16
      %v3211 = vrot.slane %v3209, 1
      %v3212 = vsel %vm3020, %v3207, %v3211
      %3213 = vrot.lane.b32.xlu0 %v3032, 32
      %v3214 = vpop.permute.xlu0 %3213
      %3215 = vrot.lane.b32.xlu0 %v3044, 32
      %v3216 = vpop.permute.xlu0 %3215
      %3217 = vrot.lane.b32.xlu0 %v3056, 32
      %v3218 = vpop.permute.xlu0 %3217
      %3219 = vrot.lane.b32.xlu0 %v3068, 32
      %v3220 = vpop.permute.xlu0 %3219
      %3221 = vrot.lane.b32.xlu0 %v3080, 32
      %v3222 = vpop.permute.xlu0 %3221
      %3223 = vrot.lane.b32.xlu0 %v3092, 32
      %v3224 = vpop.permute.xlu0 %3223
      %3225 = vrot.lane.b32.xlu0 %v3104, 32
      %v3226 = vpop.permute.xlu0 %3225
      %3227 = vrot.lane.b32.xlu0 %v3116, 32
      %v3228 = vpop.permute.xlu0 %3227
      %3229 = vrot.lane.b32.xlu0 %v3128, 32
      %v3230 = vpop.permute.xlu0 %3229
      %3231 = vrot.lane.b32.xlu0 %v3140, 32
      %v3232 = vpop.permute.xlu0 %3231
      %3233 = vrot.lane.b32.xlu0 %v3152, 32
      %v3234 = vpop.permute.xlu0 %3233
      %3235 = vrot.lane.b32.xlu0 %v3164, 32
      %v3236 = vpop.permute.xlu0 %3235
      %3237 = vrot.lane.b32.xlu0 %v3176, 32
      %v3238 = vpop.permute.xlu0 %3237
      %3239 = vrot.lane.b32.xlu0 %v3188, 32
      %v3240 = vpop.permute.xlu0 %3239
      %3241 = vrot.lane.b32.xlu0 %v3200, 32
      %v3242 = vpop.permute.xlu0 %3241
      %3243 = vrot.lane.b32.xlu0 %v3212, 32
      %v3244 = vpop.permute.xlu0 %3243
      %v3245 = vcombine.low %v1029, %v1037
      %v3246 = vcombine.low %v1039, %v1022
      %v3247 = vcombine.low %v1036, %v1038
      %v3248 = vcombine.low %v1040, %v1064
      %v3250 = vunpack.c.l.s4 1966171168
      %v3251 = vunpack.c.0.s8 %v3250
      %v3252 = vlaneseq
      %v3253 = vshrl.u32 %v3252, 7
      %v3254 = vsub.s32 %v3251, %v3253
      %v3255 = vrot.slane %v3245, %v3254
      %v3257 = vunpack.c.l.s4 1966171168
      %v3258 = vunpack.c.0.s8 %v3257
      %v3259 = vlaneseq
      %v3260 = vshrl.u32 %v3259, 7
      %v3261 = vsub.s32 %v3258, %v3260
      %v3262 = vrot.slane %v3246, %v3261
      %v3264 = vunpack.c.l.s4 1966171168
      %v3265 = vunpack.c.0.s8 %v3264
      %v3266 = vlaneseq
      %v3267 = vshrl.u32 %v3266, 7
      %v3268 = vsub.s32 %v3265, %v3267
      %v3269 = vrot.slane %v3247, %v3268
      %v3271 = vunpack.c.l.s4 1966171168
      %v3272 = vunpack.c.0.s8 %v3271
      %v3273 = vlaneseq
      %v3274 = vshrl.u32 %v3273, 7
      %v3275 = vsub.s32 %v3272, %v3274
      %v3276 = vrot.slane %v3248, %v3275
      %v3277 = vcombine.low %v3255, %v3262
      %v3278 = vcombine.low %v3269, %v3276
      %v3280 = vunpack.c.l.s4 1966171168
      %v3281 = vunpack.c.0.s8 %v3280
      %v3282 = vlaneseq
      %v3283 = vshrl.u32 %v3282, 7
      %v3284 = vsub.s32 %v3281, %v3283
      %v3285 = vrot.slane %v3277, %v3284
      %v3287 = vunpack.c.l.s4 1966171168
      %v3288 = vunpack.c.0.s8 %v3287
      %v3289 = vlaneseq
      %v3290 = vshrl.u32 %v3289, 7
      %v3291 = vsub.s32 %v3288, %v3290
      %v3292 = vrot.slane %v3278, %v3291
      %v3293 = vcombine.low %v3285, %v3292
      %v3294 = vcombine.low %v1086, %v1088
      %v3295 = vcombine.low %v1071, %v1085
      %v3296 = vcombine.low %v1087, %v1089
      %v3297 = vcombine.low %v1113, %v1127
      %v3299 = vunpack.c.l.s4 1966171168
      %v3300 = vunpack.c.0.s8 %v3299
      %v3301 = vlaneseq
      %v3302 = vshrl.u32 %v3301, 7
      %v3303 = vsub.s32 %v3300, %v3302
      %v3304 = vrot.slane %v3294, %v3303
      %v3306 = vunpack.c.l.s4 1966171168
      %v3307 = vunpack.c.0.s8 %v3306
      %v3308 = vlaneseq
      %v3309 = vshrl.u32 %v3308, 7
      %v3310 = vsub.s32 %v3307, %v3309
      %v3311 = vrot.slane %v3295, %v3310
      %v3313 = vunpack.c.l.s4 1966171168
      %v3314 = vunpack.c.0.s8 %v3313
      %v3315 = vlaneseq
      %v3316 = vshrl.u32 %v3315, 7
      %v3317 = vsub.s32 %v3314, %v3316
      %v3318 = vrot.slane %v3296, %v3317
      %v3320 = vunpack.c.l.s4 1966171168
      %v3321 = vunpack.c.0.s8 %v3320
      %v3322 = vlaneseq
      %v3323 = vshrl.u32 %v3322, 7
      %v3324 = vsub.s32 %v3321, %v3323
      %v3325 = vrot.slane %v3297, %v3324
      %v3326 = vcombine.low %v3304, %v3311
      %v3327 = vcombine.low %v3318, %v3325
      %v3329 = vunpack.c.l.s4 1966171168
      %v3330 = vunpack.c.0.s8 %v3329
      %v3331 = vlaneseq
      %v3332 = vshrl.u32 %v3331, 7
      %v3333 = vsub.s32 %v3330, %v3332
      %v3334 = vrot.slane %v3326, %v3333
      %v3336 = vunpack.c.l.s4 1966171168
      %v3337 = vunpack.c.0.s8 %v3336
      %v3338 = vlaneseq
      %v3339 = vshrl.u32 %v3338, 7
      %v3340 = vsub.s32 %v3337, %v3339
      %v3341 = vrot.slane %v3327, %v3340
      %v3342 = vcombine.low %v3334, %v3341
      %v3343 = vcombine.low %v1137, %v1120
      %v3344 = vcombine.low %v1134, %v1136
      %v3345 = vcombine.low %v1138, %v1162
      %v3346 = vcombine.low %v1176, %v1184
      %v3348 = vunpack.c.l.s4 1966171168
      %v3349 = vunpack.c.0.s8 %v3348
      %v3350 = vlaneseq
      %v3351 = vshrl.u32 %v3350, 7
      %v3352 = vsub.s32 %v3349, %v3351
      %v3353 = vrot.slane %v3343, %v3352
      %v3355 = vunpack.c.l.s4 1966171168
      %v3356 = vunpack.c.0.s8 %v3355
      %v3357 = vlaneseq
      %v3358 = vshrl.u32 %v3357, 7
      %v3359 = vsub.s32 %v3356, %v3358
      %v3360 = vrot.slane %v3344, %v3359
      %v3362 = vunpack.c.l.s4 1966171168
      %v3363 = vunpack.c.0.s8 %v3362
      %v3364 = vlaneseq
      %v3365 = vshrl.u32 %v3364, 7
      %v3366 = vsub.s32 %v3363, %v3365
      %v3367 = vrot.slane %v3345, %v3366
      %v3369 = vunpack.c.l.s4 1966171168
      %v3370 = vunpack.c.0.s8 %v3369
      %v3371 = vlaneseq
      %v3372 = vshrl.u32 %v3371, 7
      %v3373 = vsub.s32 %v3370, %v3372
      %v3374 = vrot.slane %v3346, %v3373
      %v3375 = vcombine.low %v3353, %v3360
      %v3376 = vcombine.low %v3367, %v3374
      %v3378 = vunpack.c.l.s4 1966171168
      %v3379 = vunpack.c.0.s8 %v3378
      %v3380 = vlaneseq
      %v3381 = vshrl.u32 %v3380, 7
      %v3382 = vsub.s32 %v3379, %v3381
      %v3383 = vrot.slane %v3375, %v3382
      %v3385 = vunpack.c.l.s4 1966171168
      %v3386 = vunpack.c.0.s8 %v3385
      %v3387 = vlaneseq
      %v3388 = vshrl.u32 %v3387, 7
      %v3389 = vsub.s32 %v3386, %v3388
      %v3390 = vrot.slane %v3376, %v3389
      %v3391 = vcombine.low %v3383, %v3390
      %v3392 = vcombine.low %v1169, %v1183
      %v3393 = vcombine.low %v1185, %v1187
      %v3394 = vcombine.low %v1211, %v1225
      %v3395 = vcombine.low %v1233, %v1235
      %v3397 = vunpack.c.l.s4 1966171168
      %v3398 = vunpack.c.0.s8 %v3397
      %v3399 = vlaneseq
      %v3400 = vshrl.u32 %v3399, 7
      %v3401 = vsub.s32 %v3398, %v3400
      %v3402 = vrot.slane %v3392, %v3401
      %v3404 = vunpack.c.l.s4 1966171168
      %v3405 = vunpack.c.0.s8 %v3404
      %v3406 = vlaneseq
      %v3407 = vshrl.u32 %v3406, 7
      %v3408 = vsub.s32 %v3405, %v3407
      %v3409 = vrot.slane %v3393, %v3408
      %v3411 = vunpack.c.l.s4 1966171168
      %v3412 = vunpack.c.0.s8 %v3411
      %v3413 = vlaneseq
      %v3414 = vshrl.u32 %v3413, 7
      %v3415 = vsub.s32 %v3412, %v3414
      %v3416 = vrot.slane %v3394, %v3415
      %v3418 = vunpack.c.l.s4 1966171168
      %v3419 = vunpack.c.0.s8 %v3418
      %v3420 = vlaneseq
      %v3421 = vshrl.u32 %v3420, 7
      %v3422 = vsub.s32 %v3419, %v3421
      %v3423 = vrot.slane %v3395, %v3422
      %v3424 = vcombine.low %v3402, %v3409
      %v3425 = vcombine.low %v3416, %v3423
      %v3427 = vunpack.c.l.s4 1966171168
      %v3428 = vunpack.c.0.s8 %v3427
      %v3429 = vlaneseq
      %v3430 = vshrl.u32 %v3429, 7
      %v3431 = vsub.s32 %v3428, %v3430
      %v3432 = vrot.slane %v3424, %v3431
      %v3434 = vunpack.c.l.s4 1966171168
      %v3435 = vunpack.c.0.s8 %v3434
      %v3436 = vlaneseq
      %v3437 = vshrl.u32 %v3436, 7
      %v3438 = vsub.s32 %v3435, %v3437
      %v3439 = vrot.slane %v3425, %v3438
      %v3440 = vcombine.low %v3432, %v3439
      %v3441 = vcombine.low %v1232, %v1234
      %v3442 = vcombine.low %v1236, %v1260
      %v3443 = vcombine.low %v1274, %v1282
      %v3444 = vcombine.low %v1284, %v1267
      %v3446 = vunpack.c.l.s4 1966171168
      %v3447 = vunpack.c.0.s8 %v3446
      %v3448 = vlaneseq
      %v3449 = vshrl.u32 %v3448, 7
      %v3450 = vsub.s32 %v3447, %v3449
      %v3451 = vrot.slane %v3441, %v3450
      %v3453 = vunpack.c.l.s4 1966171168
      %v3454 = vunpack.c.0.s8 %v3453
      %v3455 = vlaneseq
      %v3456 = vshrl.u32 %v3455, 7
      %v3457 = vsub.s32 %v3454, %v3456
      %v3458 = vrot.slane %v3442, %v3457
      %v3460 = vunpack.c.l.s4 1966171168
      %v3461 = vunpack.c.0.s8 %v3460
      %v3462 = vlaneseq
      %v3463 = vshrl.u32 %v3462, 7
      %v3464 = vsub.s32 %v3461, %v3463
      %v3465 = vrot.slane %v3443, %v3464
      %v3467 = vunpack.c.l.s4 1966171168
      %v3468 = vunpack.c.0.s8 %v3467
      %v3469 = vlaneseq
      %v3470 = vshrl.u32 %v3469, 7
      %v3471 = vsub.s32 %v3468, %v3470
      %v3472 = vrot.slane %v3444, %v3471
      %v3473 = vcombine.low %v3451, %v3458
      %v3474 = vcombine.low %v3465, %v3472
      %v3476 = vunpack.c.l.s4 1966171168
      %v3477 = vunpack.c.0.s8 %v3476
      %v3478 = vlaneseq
      %v3479 = vshrl.u32 %v3478, 7
      %v3480 = vsub.s32 %v3477, %v3479
      %v3481 = vrot.slane %v3473, %v3480
      %v3483 = vunpack.c.l.s4 1966171168
      %v3484 = vunpack.c.0.s8 %v3483
      %v3485 = vlaneseq
      %v3486 = vshrl.u32 %v3485, 7
      %v3487 = vsub.s32 %v3484, %v3486
      %v3488 = vrot.slane %v3474, %v3487
      %v3489 = vcombine.low %v3481, %v3488
      %v3490 = vcombine.low %v1283, %v1285
      %v3491 = vcombine.low %v1309, %v1323
      %v3492 = vcombine.low %v1331, %v1333
      %v3493 = vcombine.low %v1316, %v1330
      %v3495 = vunpack.c.l.s4 1966171168
      %v3496 = vunpack.c.0.s8 %v3495
      %v3497 = vlaneseq
      %v3498 = vshrl.u32 %v3497, 7
      %v3499 = vsub.s32 %v3496, %v3498
      %v3500 = vrot.slane %v3490, %v3499
      %v3502 = vunpack.c.l.s4 1966171168
      %v3503 = vunpack.c.0.s8 %v3502
      %v3504 = vlaneseq
      %v3505 = vshrl.u32 %v3504, 7
      %v3506 = vsub.s32 %v3503, %v3505
      %v3507 = vrot.slane %v3491, %v3506
      %v3509 = vunpack.c.l.s4 1966171168
      %v3510 = vunpack.c.0.s8 %v3509
      %v3511 = vlaneseq
      %v3512 = vshrl.u32 %v3511, 7
      %v3513 = vsub.s32 %v3510, %v3512
      %v3514 = vrot.slane %v3492, %v3513
      %v3516 = vunpack.c.l.s4 1966171168
      %v3517 = vunpack.c.0.s8 %v3516
      %v3518 = vlaneseq
      %v3519 = vshrl.u32 %v3518, 7
      %v3520 = vsub.s32 %v3517, %v3519
      %v3521 = vrot.slane %v3493, %v3520
      %v3522 = vcombine.low %v3500, %v3507
      %v3523 = vcombine.low %v3514, %v3521
      %v3525 = vunpack.c.l.s4 1966171168
      %v3526 = vunpack.c.0.s8 %v3525
      %v3527 = vlaneseq
      %v3528 = vshrl.u32 %v3527, 7
      %v3529 = vsub.s32 %v3526, %v3528
      %v3530 = vrot.slane %v3522, %v3529
      %v3532 = vunpack.c.l.s4 1966171168
      %v3533 = vunpack.c.0.s8 %v3532
      %v3534 = vlaneseq
      %v3535 = vshrl.u32 %v3534, 7
      %v3536 = vsub.s32 %v3533, %v3535
      %v3537 = vrot.slane %v3523, %v3536
      %v3538 = vcombine.low %v3530, %v3537
      %v3539 = vcombine.low %v1334, %v1358
      %v3540 = vcombine.low %v1372, %v1380
      %v3541 = vcombine.low %v1382, %v1365
      %v3542 = vcombine.low %v1379, %v1381
      %v3544 = vunpack.c.l.s4 1966171168
      %v3545 = vunpack.c.0.s8 %v3544
      %v3546 = vlaneseq
      %v3547 = vshrl.u32 %v3546, 7
      %v3548 = vsub.s32 %v3545, %v3547
      %v3549 = vrot.slane %v3539, %v3548
      %v3551 = vunpack.c.l.s4 1966171168
      %v3552 = vunpack.c.0.s8 %v3551
      %v3553 = vlaneseq
      %v3554 = vshrl.u32 %v3553, 7
      %v3555 = vsub.s32 %v3552, %v3554
      %v3556 = vrot.slane %v3540, %v3555
      %v3558 = vunpack.c.l.s4 1966171168
      %v3559 = vunpack.c.0.s8 %v3558
      %v3560 = vlaneseq
      %v3561 = vshrl.u32 %v3560, 7
      %v3562 = vsub.s32 %v3559, %v3561
      %v3563 = vrot.slane %v3541, %v3562
      %v3565 = vunpack.c.l.s4 1966171168
      %v3566 = vunpack.c.0.s8 %v3565
      %v3567 = vlaneseq
      %v3568 = vshrl.u32 %v3567, 7
      %v3569 = vsub.s32 %v3566, %v3568
      %v3570 = vrot.slane %v3542, %v3569
      %v3571 = vcombine.low %v3549, %v3556
      %v3572 = vcombine.low %v3563, %v3570
      %v3574 = vunpack.c.l.s4 1966171168
      %v3575 = vunpack.c.0.s8 %v3574
      %v3576 = vlaneseq
      %v3577 = vshrl.u32 %v3576, 7
      %v3578 = vsub.s32 %v3575, %v3577
      %v3579 = vrot.slane %v3571, %v3578
      %v3581 = vunpack.c.l.s4 1966171168
      %v3582 = vunpack.c.0.s8 %v3581
      %v3583 = vlaneseq
      %v3584 = vshrl.u32 %v3583, 7
      %v3585 = vsub.s32 %v3582, %v3584
      %v3586 = vrot.slane %v3572, %v3585
      %v3587 = vcombine.low %v3579, %v3586
      %v3588 = vcombine.low %v1407, %v1421
      %v3589 = vcombine.low %v1429, %v1431
      %v3590 = vcombine.low %v1414, %v1428
      %v3591 = vcombine.low %v1430, %v1432
      %v3593 = vunpack.c.l.s4 1966171168
      %v3594 = vunpack.c.0.s8 %v3593
      %v3595 = vlaneseq
      %v3596 = vshrl.u32 %v3595, 7
      %v3597 = vsub.s32 %v3594, %v3596
      %v3598 = vrot.slane %v3588, %v3597
      %v3600 = vunpack.c.l.s4 1966171168
      %v3601 = vunpack.c.0.s8 %v3600
      %v3602 = vlaneseq
      %v3603 = vshrl.u32 %v3602, 7
      %v3604 = vsub.s32 %v3601, %v3603
      %v3605 = vrot.slane %v3589, %v3604
      %v3607 = vunpack.c.l.s4 1966171168
      %v3608 = vunpack.c.0.s8 %v3607
      %v3609 = vlaneseq
      %v3610 = vshrl.u32 %v3609, 7
      %v3611 = vsub.s32 %v3608, %v3610
      %v3612 = vrot.slane %v3590, %v3611
      %v3614 = vunpack.c.l.s4 1966171168
      %v3615 = vunpack.c.0.s8 %v3614
      %v3616 = vlaneseq
      %v3617 = vshrl.u32 %v3616, 7
      %v3618 = vsub.s32 %v3615, %v3617
      %v3619 = vrot.slane %v3591, %v3618
      %v3620 = vcombine.low %v3598, %v3605
      %v3621 = vcombine.low %v3612, %v3619
      %v3623 = vunpack.c.l.s4 1966171168
      %v3624 = vunpack.c.0.s8 %v3623
      %v3625 = vlaneseq
      %v3626 = vshrl.u32 %v3625, 7
      %v3627 = vsub.s32 %v3624, %v3626
      %v3628 = vrot.slane %v3620, %v3627
      %v3630 = vunpack.c.l.s4 1966171168
      %v3631 = vunpack.c.0.s8 %v3630
      %v3632 = vlaneseq
      %v3633 = vshrl.u32 %v3632, 7
      %v3634 = vsub.s32 %v3631, %v3633
      %v3635 = vrot.slane %v3621, %v3634
      %v3636 = vcombine.low %v3628, %v3635
      %v3637 = vcombine.low %v1470, %v1478
      %v3638 = vcombine.low %v1480, %v1463
      %v3639 = vcombine.low %v1477, %v1479
      %v3640 = vcombine.low %v1481, %v1505
      %v3642 = vunpack.c.l.s4 1966171168
      %v3643 = vunpack.c.0.s8 %v3642
      %v3644 = vlaneseq
      %v3645 = vshrl.u32 %v3644, 7
      %v3646 = vsub.s32 %v3643, %v3645
      %v3647 = vrot.slane %v3637, %v3646
      %v3649 = vunpack.c.l.s4 1966171168
      %v3650 = vunpack.c.0.s8 %v3649
      %v3651 = vlaneseq
      %v3652 = vshrl.u32 %v3651, 7
      %v3653 = vsub.s32 %v3650, %v3652
      %v3654 = vrot.slane %v3638, %v3653
      %v3656 = vunpack.c.l.s4 1966171168
      %v3657 = vunpack.c.0.s8 %v3656
      %v3658 = vlaneseq
      %v3659 = vshrl.u32 %v3658, 7
      %v3660 = vsub.s32 %v3657, %v3659
      %v3661 = vrot.slane %v3639, %v3660
      %v3663 = vunpack.c.l.s4 1966171168
      %v3664 = vunpack.c.0.s8 %v3663
      %v3665 = vlaneseq
      %v3666 = vshrl.u32 %v3665, 7
      %v3667 = vsub.s32 %v3664, %v3666
      %v3668 = vrot.slane %v3640, %v3667
      %v3669 = vcombine.low %v3647, %v3654
      %v3670 = vcombine.low %v3661, %v3668
      %v3672 = vunpack.c.l.s4 1966171168
      %v3673 = vunpack.c.0.s8 %v3672
      %v3674 = vlaneseq
      %v3675 = vshrl.u32 %v3674, 7
      %v3676 = vsub.s32 %v3673, %v3675
      %v3677 = vrot.slane %v3669, %v3676
      %v3679 = vunpack.c.l.s4 1966171168
      %v3680 = vunpack.c.0.s8 %v3679
      %v3681 = vlaneseq
      %v3682 = vshrl.u32 %v3681, 7
      %v3683 = vsub.s32 %v3680, %v3682
      %v3684 = vrot.slane %v3670, %v3683
      %v3685 = vcombine.low %v3677, %v3684
      %v3686 = vcombine.low %v1527, %v1529
      %v3687 = vcombine.low %v1512, %v1526
      %v3688 = vcombine.low %v1528, %v1530
      %v3689 = vcombine.low %v1554, %v1568
      %v3691 = vunpack.c.l.s4 1966171168
      %v3692 = vunpack.c.0.s8 %v3691
      %v3693 = vlaneseq
      %v3694 = vshrl.u32 %v3693, 7
      %v3695 = vsub.s32 %v3692, %v3694
      %v3696 = vrot.slane %v3686, %v3695
      %v3698 = vunpack.c.l.s4 1966171168
      %v3699 = vunpack.c.0.s8 %v3698
      %v3700 = vlaneseq
      %v3701 = vshrl.u32 %v3700, 7
      %v3702 = vsub.s32 %v3699, %v3701
      %v3703 = vrot.slane %v3687, %v3702
      %v3705 = vunpack.c.l.s4 1966171168
      %v3706 = vunpack.c.0.s8 %v3705
      %v3707 = vlaneseq
      %v3708 = vshrl.u32 %v3707, 7
      %v3709 = vsub.s32 %v3706, %v3708
      %v3710 = vrot.slane %v3688, %v3709
      %v3712 = vunpack.c.l.s4 1966171168
      %v3713 = vunpack.c.0.s8 %v3712
      %v3714 = vlaneseq
      %v3715 = vshrl.u32 %v3714, 7
      %v3716 = vsub.s32 %v3713, %v3715
      %v3717 = vrot.slane %v3689, %v3716
      %v3718 = vcombine.low %v3696, %v3703
      %v3719 = vcombine.low %v3710, %v3717
      %v3721 = vunpack.c.l.s4 1966171168
      %v3722 = vunpack.c.0.s8 %v3721
      %v3723 = vlaneseq
      %v3724 = vshrl.u32 %v3723, 7
      %v3725 = vsub.s32 %v3722, %v3724
      %v3726 = vrot.slane %v3718, %v3725
      %v3728 = vunpack.c.l.s4 1966171168
      %v3729 = vunpack.c.0.s8 %v3728
      %v3730 = vlaneseq
      %v3731 = vshrl.u32 %v3730, 7
      %v3732 = vsub.s32 %v3729, %v3731
      %v3733 = vrot.slane %v3719, %v3732
      %v3734 = vcombine.low %v3726, %v3733
      %v3735 = vcombine.low %v1578, %v1561
      %v3736 = vcombine.low %v1575, %v1577
      %v3737 = vcombine.low %v1579, %v1603
      %v3738 = vcombine.low %v1617, %v1625
      %v3740 = vunpack.c.l.s4 1966171168
      %v3741 = vunpack.c.0.s8 %v3740
      %v3742 = vlaneseq
      %v3743 = vshrl.u32 %v3742, 7
      %v3744 = vsub.s32 %v3741, %v3743
      %v3745 = vrot.slane %v3735, %v3744
      %v3747 = vunpack.c.l.s4 1966171168
      %v3748 = vunpack.c.0.s8 %v3747
      %v3749 = vlaneseq
      %v3750 = vshrl.u32 %v3749, 7
      %v3751 = vsub.s32 %v3748, %v3750
      %v3752 = vrot.slane %v3736, %v3751
      %v3754 = vunpack.c.l.s4 1966171168
      %v3755 = vunpack.c.0.s8 %v3754
      %v3756 = vlaneseq
      %v3757 = vshrl.u32 %v3756, 7
      %v3758 = vsub.s32 %v3755, %v3757
      %v3759 = vrot.slane %v3737, %v3758
      %v3761 = vunpack.c.l.s4 1966171168
      %v3762 = vunpack.c.0.s8 %v3761
      %v3763 = vlaneseq
      %v3764 = vshrl.u32 %v3763, 7
      %v3765 = vsub.s32 %v3762, %v3764
      %v3766 = vrot.slane %v3738, %v3765
      %v3767 = vcombine.low %v3745, %v3752
      %v3768 = vcombine.low %v3759, %v3766
      %v3770 = vunpack.c.l.s4 1966171168
      %v3771 = vunpack.c.0.s8 %v3770
      %v3772 = vlaneseq
      %v3773 = vshrl.u32 %v3772, 7
      %v3774 = vsub.s32 %v3771, %v3773
      %v3775 = vrot.slane %v3767, %v3774
      %v3777 = vunpack.c.l.s4 1966171168
      %v3778 = vunpack.c.0.s8 %v3777
      %v3779 = vlaneseq
      %v3780 = vshrl.u32 %v3779, 7
      %v3781 = vsub.s32 %v3778, %v3780
      %v3782 = vrot.slane %v3768, %v3781
      %v3783 = vcombine.low %v3775, %v3782
      %v3784 = vcombine.low %v1610, %v1624
      %v3785 = vcombine.low %v1626, %v1628
      %v3786 = vcombine.low %v1652, %v1666
      %v3787 = vcombine.low %v1674, %v1676
      %v3789 = vunpack.c.l.s4 1966171168
      %v3790 = vunpack.c.0.s8 %v3789
      %v3791 = vlaneseq
      %v3792 = vshrl.u32 %v3791, 7
      %v3793 = vsub.s32 %v3790, %v3792
      %v3794 = vrot.slane %v3784, %v3793
      %v3796 = vunpack.c.l.s4 1966171168
      %v3797 = vunpack.c.0.s8 %v3796
      %v3798 = vlaneseq
      %v3799 = vshrl.u32 %v3798, 7
      %v3800 = vsub.s32 %v3797, %v3799
      %v3801 = vrot.slane %v3785, %v3800
      %v3803 = vunpack.c.l.s4 1966171168
      %v3804 = vunpack.c.0.s8 %v3803
      %v3805 = vlaneseq
      %v3806 = vshrl.u32 %v3805, 7
      %v3807 = vsub.s32 %v3804, %v3806
      %v3808 = vrot.slane %v3786, %v3807
      %v3810 = vunpack.c.l.s4 1966171168
      %v3811 = vunpack.c.0.s8 %v3810
      %v3812 = vlaneseq
      %v3813 = vshrl.u32 %v3812, 7
      %v3814 = vsub.s32 %v3811, %v3813
      %v3815 = vrot.slane %v3787, %v3814
      %v3816 = vcombine.low %v3794, %v3801
      %v3817 = vcombine.low %v3808, %v3815
      %v3819 = vunpack.c.l.s4 1966171168
      %v3820 = vunpack.c.0.s8 %v3819
      %v3821 = vlaneseq
      %v3822 = vshrl.u32 %v3821, 7
      %v3823 = vsub.s32 %v3820, %v3822
      %v3824 = vrot.slane %v3816, %v3823
      %v3826 = vunpack.c.l.s4 1966171168
      %v3827 = vunpack.c.0.s8 %v3826
      %v3828 = vlaneseq
      %v3829 = vshrl.u32 %v3828, 7
      %v3830 = vsub.s32 %v3827, %v3829
      %v3831 = vrot.slane %v3817, %v3830
      %v3832 = vcombine.low %v3824, %v3831
      %v3833 = vcombine.low %v1673, %v1675
      %v3834 = vcombine.low %v1677, %v1701
      %v3835 = vcombine.low %v1715, %v1723
      %v3836 = vcombine.low %v1725, %v1708
      %v3838 = vunpack.c.l.s4 1966171168
      %v3839 = vunpack.c.0.s8 %v3838
      %v3840 = vlaneseq
      %v3841 = vshrl.u32 %v3840, 7
      %v3842 = vsub.s32 %v3839, %v3841
      %v3843 = vrot.slane %v3833, %v3842
      %v3845 = vunpack.c.l.s4 1966171168
      %v3846 = vunpack.c.0.s8 %v3845
      %v3847 = vlaneseq
      %v3848 = vshrl.u32 %v3847, 7
      %v3849 = vsub.s32 %v3846, %v3848
      %v3850 = vrot.slane %v3834, %v3849
      %v3852 = vunpack.c.l.s4 1966171168
      %v3853 = vunpack.c.0.s8 %v3852
      %v3854 = vlaneseq
      %v3855 = vshrl.u32 %v3854, 7
      %v3856 = vsub.s32 %v3853, %v3855
      %v3857 = vrot.slane %v3835, %v3856
      %v3859 = vunpack.c.l.s4 1966171168
      %v3860 = vunpack.c.0.s8 %v3859
      %v3861 = vlaneseq
      %v3862 = vshrl.u32 %v3861, 7
      %v3863 = vsub.s32 %v3860, %v3862
      %v3864 = vrot.slane %v3836, %v3863
      %v3865 = vcombine.low %v3843, %v3850
      %v3866 = vcombine.low %v3857, %v3864
      %v3868 = vunpack.c.l.s4 1966171168
      %v3869 = vunpack.c.0.s8 %v3868
      %v3870 = vlaneseq
      %v3871 = vshrl.u32 %v3870, 7
      %v3872 = vsub.s32 %v3869, %v3871
      %v3873 = vrot.slane %v3865, %v3872
      %v3875 = vunpack.c.l.s4 1966171168
      %v3876 = vunpack.c.0.s8 %v3875
      %v3877 = vlaneseq
      %v3878 = vshrl.u32 %v3877, 7
      %v3879 = vsub.s32 %v3876, %v3878
      %v3880 = vrot.slane %v3866, %v3879
      %v3881 = vcombine.low %v3873, %v3880
      %v3882 = vcombine.low %v1724, %v1726
      %v3883 = vcombine.low %v1750, %v1764
      %v3884 = vcombine.low %v1772, %v1774
      %v3885 = vcombine.low %v1757, %v1771
      %v3887 = vunpack.c.l.s4 1966171168
      %v3888 = vunpack.c.0.s8 %v3887
      %v3889 = vlaneseq
      %v3890 = vshrl.u32 %v3889, 7
      %v3891 = vsub.s32 %v3888, %v3890
      %v3892 = vrot.slane %v3882, %v3891
      %v3894 = vunpack.c.l.s4 1966171168
      %v3895 = vunpack.c.0.s8 %v3894
      %v3896 = vlaneseq
      %v3897 = vshrl.u32 %v3896, 7
      %v3898 = vsub.s32 %v3895, %v3897
      %v3899 = vrot.slane %v3883, %v3898
      %v3901 = vunpack.c.l.s4 1966171168
      %v3902 = vunpack.c.0.s8 %v3901
      %v3903 = vlaneseq
      %v3904 = vshrl.u32 %v3903, 7
      %v3905 = vsub.s32 %v3902, %v3904
      %v3906 = vrot.slane %v3884, %v3905
      %v3908 = vunpack.c.l.s4 1966171168
      %v3909 = vunpack.c.0.s8 %v3908
      %v3910 = vlaneseq
      %v3911 = vshrl.u32 %v3910, 7
      %v3912 = vsub.s32 %v3909, %v3911
      %v3913 = vrot.slane %v3885, %v3912
      %v3914 = vcombine.low %v3892, %v3899
      %v3915 = vcombine.low %v3906, %v3913
      %v3917 = vunpack.c.l.s4 1966171168
      %v3918 = vunpack.c.0.s8 %v3917
      %v3919 = vlaneseq
      %v3920 = vshrl.u32 %v3919, 7
      %v3921 = vsub.s32 %v3918, %v3920
      %v3922 = vrot.slane %v3914, %v3921
      %v3924 = vunpack.c.l.s4 1966171168
      %v3925 = vunpack.c.0.s8 %v3924
      %v3926 = vlaneseq
      %v3927 = vshrl.u32 %v3926, 7
      %v3928 = vsub.s32 %v3925, %v3927
      %v3929 = vrot.slane %v3915, %v3928
      %v3930 = vcombine.low %v3922, %v3929
      %v3931 = vcombine.low %v1775, %v1799
      %v3932 = vcombine.low %v1813, %v1821
      %v3933 = vcombine.low %v1823, %v1806
      %v3934 = vcombine.low %v1820, %v1822
      %v3936 = vunpack.c.l.s4 1966171168
      %v3937 = vunpack.c.0.s8 %v3936
      %v3938 = vlaneseq
      %v3939 = vshrl.u32 %v3938, 7
      %v3940 = vsub.s32 %v3937, %v3939
      %v3941 = vrot.slane %v3931, %v3940
      %v3943 = vunpack.c.l.s4 1966171168
      %v3944 = vunpack.c.0.s8 %v3943
      %v3945 = vlaneseq
      %v3946 = vshrl.u32 %v3945, 7
      %v3947 = vsub.s32 %v3944, %v3946
      %v3948 = vrot.slane %v3932, %v3947
      %v3950 = vunpack.c.l.s4 1966171168
      %v3951 = vunpack.c.0.s8 %v3950
      %v3952 = vlaneseq
      %v3953 = vshrl.u32 %v3952, 7
      %v3954 = vsub.s32 %v3951, %v3953
      %v3955 = vrot.slane %v3933, %v3954
      %v3957 = vunpack.c.l.s4 1966171168
      %v3958 = vunpack.c.0.s8 %v3957
      %v3959 = vlaneseq
      %v3960 = vshrl.u32 %v3959, 7
      %v3961 = vsub.s32 %v3958, %v3960
      %v3962 = vrot.slane %v3934, %v3961
      %v3963 = vcombine.low %v3941, %v3948
      %v3964 = vcombine.low %v3955, %v3962
      %v3966 = vunpack.c.l.s4 1966171168
      %v3967 = vunpack.c.0.s8 %v3966
      %v3968 = vlaneseq
      %v3969 = vshrl.u32 %v3968, 7
      %v3970 = vsub.s32 %v3967, %v3969
      %v3971 = vrot.slane %v3963, %v3970
      %v3973 = vunpack.c.l.s4 1966171168
      %v3974 = vunpack.c.0.s8 %v3973
      %v3975 = vlaneseq
      %v3976 = vshrl.u32 %v3975, 7
      %v3977 = vsub.s32 %v3974, %v3976
      %v3978 = vrot.slane %v3964, %v3977
      %v3979 = vcombine.low %v3971, %v3978
      %v3980 = vcombine.low %v1848, %v1862
      %v3981 = vcombine.low %v1870, %v1872
      %v3982 = vcombine.low %v1855, %v1869
      %v3983 = vcombine.low %v1871, %v1873
      %v3985 = vunpack.c.l.s4 1966171168
      %v3986 = vunpack.c.0.s8 %v3985
      %v3987 = vlaneseq
      %v3988 = vshrl.u32 %v3987, 7
      %v3989 = vsub.s32 %v3986, %v3988
      %v3990 = vrot.slane %v3980, %v3989
      %v3992 = vunpack.c.l.s4 1966171168
      %v3993 = vunpack.c.0.s8 %v3992
      %v3994 = vlaneseq
      %v3995 = vshrl.u32 %v3994, 7
      %v3996 = vsub.s32 %v3993, %v3995
      %v3997 = vrot.slane %v3981, %v3996
      %v3999 = vunpack.c.l.s4 1966171168
      %v4000 = vunpack.c.0.s8 %v3999
      %v4001 = vlaneseq
      %v4002 = vshrl.u32 %v4001, 7
      %v4003 = vsub.s32 %v4000, %v4002
      %v4004 = vrot.slane %v3982, %v4003
      %v4006 = vunpack.c.l.s4 1966171168
      %v4007 = vunpack.c.0.s8 %v4006
      %v4008 = vlaneseq
      %v4009 = vshrl.u32 %v4008, 7
      %v4010 = vsub.s32 %v4007, %v4009
      %v4011 = vrot.slane %v3983, %v4010
      %v4012 = vcombine.low %v3990, %v3997
      %v4013 = vcombine.low %v4004, %v4011
      %v4015 = vunpack.c.l.s4 1966171168
      %v4016 = vunpack.c.0.s8 %v4015
      %v4017 = vlaneseq
      %v4018 = vshrl.u32 %v4017, 7
      %v4019 = vsub.s32 %v4016, %v4018
      %v4020 = vrot.slane %v4012, %v4019
      %v4022 = vunpack.c.l.s4 1966171168
      %v4023 = vunpack.c.0.s8 %v4022
      %v4024 = vlaneseq
      %v4025 = vshrl.u32 %v4024, 7
      %v4026 = vsub.s32 %v4023, %v4025
      %v4027 = vrot.slane %v4013, %v4026
      %v4028 = vcombine.low %v4020, %v4027
      %4029 = vrot.lane.b32.xlu0 %v3293, 64
      %v4030 = vpop.permute.xlu0 %4029
      %4031 = vrot.lane.b32.xlu0 %v3342, 64
      %v4032 = vpop.permute.xlu0 %4031
      %4033 = vrot.lane.b32.xlu0 %v3391, 64
      %v4034 = vpop.permute.xlu0 %4033
      %4035 = vrot.lane.b32.xlu0 %v3440, 64
      %v4036 = vpop.permute.xlu0 %4035
      %4037 = vrot.lane.b32.xlu0 %v3489, 64
      %v4038 = vpop.permute.xlu0 %4037
      %4039 = vrot.lane.b32.xlu0 %v3538, 64
      %v4040 = vpop.permute.xlu0 %4039
      %4041 = vrot.lane.b32.xlu0 %v3587, 64
      %v4042 = vpop.permute.xlu0 %4041
      %4043 = vrot.lane.b32.xlu0 %v3636, 64
      %v4044 = vpop.permute.xlu0 %4043
      %4045 = vrot.lane.b32.xlu0 %v3685, 64
      %v4046 = vpop.permute.xlu0 %4045
      %4047 = vrot.lane.b32.xlu0 %v3734, 64
      %v4048 = vpop.permute.xlu0 %4047
      %4049 = vrot.lane.b32.xlu0 %v3783, 64
      %v4050 = vpop.permute.xlu0 %4049
      %4051 = vrot.lane.b32.xlu0 %v3832, 64
      %v4052 = vpop.permute.xlu0 %4051
      %4053 = vrot.lane.b32.xlu0 %v3881, 64
      %v4054 = vpop.permute.xlu0 %4053
      %4055 = vrot.lane.b32.xlu0 %v3930, 64
      %v4056 = vpop.permute.xlu0 %4055
      %4057 = vrot.lane.b32.xlu0 %v3979, 64
      %v4058 = vpop.permute.xlu0 %4057
      %4059 = vrot.lane.b32.xlu0 %v4028, 64
      %v4060 = vpop.permute.xlu0 %4059
      %v4061 = vcombine.low %v1897, %v1911
      %v4062 = vcombine.low %v1919, %v1921
      %v4063 = vcombine.low %v1904, %v1918
      %v4064 = vcombine.low %v1920, %v1922
      %v4066 = vunpack.c.l.s4 1966171168
      %v4067 = vunpack.c.0.s8 %v4066
      %v4068 = vlaneseq
      %v4069 = vshrl.u32 %v4068, 7
      %v4070 = vsub.s32 %v4067, %v4069
      %v4071 = vrot.slane %v4061, %v4070
      %v4073 = vunpack.c.l.s4 1966171168
      %v4074 = vunpack.c.0.s8 %v4073
      %v4075 = vlaneseq
      %v4076 = vshrl.u32 %v4075, 7
      %v4077 = vsub.s32 %v4074, %v4076
      %v4078 = vrot.slane %v4062, %v4077
      %v4080 = vunpack.c.l.s4 1966171168
      %v4081 = vunpack.c.0.s8 %v4080
      %v4082 = vlaneseq
      %v4083 = vshrl.u32 %v4082, 7
      %v4084 = vsub.s32 %v4081, %v4083
      %v4085 = vrot.slane %v4063, %v4084
      %v4087 = vunpack.c.l.s4 1966171168
      %v4088 = vunpack.c.0.s8 %v4087
      %v4089 = vlaneseq
      %v4090 = vshrl.u32 %v4089, 7
      %v4091 = vsub.s32 %v4088, %v4090
      %v4092 = vrot.slane %v4064, %v4091
      %v4093 = vcombine.low %v4071, %v4078
      %v4094 = vcombine.low %v4085, %v4092
      %v4096 = vunpack.c.l.s4 1966171168
      %v4097 = vunpack.c.0.s8 %v4096
      %v4098 = vlaneseq
      %v4099 = vshrl.u32 %v4098, 7
      %v4100 = vsub.s32 %v4097, %v4099
      %v4101 = vrot.slane %v4093, %v4100
      %v4103 = vunpack.c.l.s4 1966171168
      %v4104 = vunpack.c.0.s8 %v4103
      %v4105 = vlaneseq
      %v4106 = vshrl.u32 %v4105, 7
      %v4107 = vsub.s32 %v4104, %v4106
      %v4108 = vrot.slane %v4094, %v4107
      %v4109 = vcombine.low %v4101, %v4108
      %4110 = vrot.lane.b32.xlu0 %v2109, 96
      %v4111 = vpop.permute.xlu0 %4110
      %4112 = vrot.lane.b32.xlu0 %v2158, 96
      %v4113 = vpop.permute.xlu0 %4112
      %4114 = vrot.lane.b32.xlu0 %v2207, 96
      %v4115 = vpop.permute.xlu0 %4114
      %4116 = vrot.lane.b32.xlu0 %v2256, 96
      %v4117 = vpop.permute.xlu0 %4116
      %4118 = vrot.lane.b32.xlu0 %v2305, 96
      %v4119 = vpop.permute.xlu0 %4118
      %4120 = vrot.lane.b32.xlu0 %v2354, 96
      %v4121 = vpop.permute.xlu0 %4120
      %4122 = vrot.lane.b32.xlu0 %v2403, 96
      %v4123 = vpop.permute.xlu0 %4122
      %4124 = vrot.lane.b32.xlu0 %v2452, 96
      %v4125 = vpop.permute.xlu0 %4124
      %4126 = vrot.lane.b32.xlu0 %v2501, 96
      %v4127 = vpop.permute.xlu0 %4126
      %4128 = vrot.lane.b32.xlu0 %v2550, 96
      %v4129 = vpop.permute.xlu0 %4128
      %4130 = vrot.lane.b32.xlu0 %v2599, 96
      %v4131 = vpop.permute.xlu0 %4130
      %4132 = vrot.lane.b32.xlu0 %v2648, 96
      %v4133 = vpop.permute.xlu0 %4132
      %4134 = vrot.lane.b32.xlu0 %v2697, 96
      %v4135 = vpop.permute.xlu0 %4134
      %4136 = vrot.lane.b32.xlu0 %v2746, 96
      %v4137 = vpop.permute.xlu0 %4136
      %4138 = vrot.lane.b32.xlu0 %v2795, 96
      %v4139 = vpop.permute.xlu0 %4138
      %4140 = vrot.lane.b32.xlu0 %v4109, 96
      %v4141 = vpop.permute.xlu0 %4140
      %v4143 = vunpack.c.l.s4 1966171168
      %v4144 = vunpack.c.0.s8 %v4143
      %v4145 = vlaneseq
      %v4146 = vshrl.u32 %v4145, 7
      %v4147 = vsub.s32 %v4144, %v4146
      %v4148 = vrot.slane %v1946, %v4147
      %v4150 = vunpack.c.l.s4 1966171168
      %v4151 = vunpack.c.0.s8 %v4150
      %v4152 = vlaneseq
      %v4153 = vshrl.u32 %v4152, 7
      %v4154 = vsub.s32 %v4151, %v4153
      %v4155 = vrot.slane %v4148, %v4154
      %v4157 = vshrl.u32 %v4109, 16
      %v4159 = vshll.u32 %v4109, 16
      %v4161 = vrot.slane %v4159, 1
      %v4162 = vor.u32 %v4157, %v4161
      %v4164 = vshll.u32 %v4155, 16
      %v4166 = vrot.slane %v4164, 1
      %v4167 = vsel %vm3020, %v4162, %v4166
      %v4168 = vcombine.low %v1911, %v1919
      %v4169 = vcombine.low %v1921, %v1904
      %v4170 = vcombine.low %v1918, %v1920
      %v4171 = vcombine.low %v1922, %v1946
      %v4173 = vunpack.c.l.s4 1966171168
      %v4174 = vunpack.c.0.s8 %v4173
      %v4175 = vlaneseq
      %v4176 = vshrl.u32 %v4175, 7
      %v4177 = vsub.s32 %v4174, %v4176
      %v4178 = vrot.slane %v4168, %v4177
      %v4180 = vunpack.c.l.s4 1966171168
      %v4181 = vunpack.c.0.s8 %v4180
      %v4182 = vlaneseq
      %v4183 = vshrl.u32 %v4182, 7
      %v4184 = vsub.s32 %v4181, %v4183
      %v4185 = vrot.slane %v4169, %v4184
      %v4187 = vunpack.c.l.s4 1966171168
      %v4188 = vunpack.c.0.s8 %v4187
      %v4189 = vlaneseq
      %v4190 = vshrl.u32 %v4189, 7
      %v4191 = vsub.s32 %v4188, %v4190
      %v4192 = vrot.slane %v4170, %v4191
      %v4194 = vunpack.c.l.s4 1966171168
      %v4195 = vunpack.c.0.s8 %v4194
      %v4196 = vlaneseq
      %v4197 = vshrl.u32 %v4196, 7
      %v4198 = vsub.s32 %v4195, %v4197
      %v4199 = vrot.slane %v4171, %v4198
      %v4200 = vcombine.low %v4178, %v4185
      %v4201 = vcombine.low %v4192, %v4199
      %v4203 = vunpack.c.l.s4 1966171168
      %v4204 = vunpack.c.0.s8 %v4203
      %v4205 = vlaneseq
      %v4206 = vshrl.u32 %v4205, 7
      %v4207 = vsub.s32 %v4204, %v4206
      %v4208 = vrot.slane %v4200, %v4207
      %v4210 = vunpack.c.l.s4 1966171168
      %v4211 = vunpack.c.0.s8 %v4210
      %v4212 = vlaneseq
      %v4213 = vshrl.u32 %v4212, 7
      %v4214 = vsub.s32 %v4211, %v4213
      %v4215 = vrot.slane %v4201, %v4214
      %v4216 = vcombine.low %v4208, %v4215
      %4217 = vrot.lane.b32.xlu0 %v3342, 32
      %v4218 = vpop.permute.xlu0 %4217
      %4219 = vrot.lane.b32.xlu0 %v3391, 32
      %v4220 = vpop.permute.xlu0 %4219
      %4221 = vrot.lane.b32.xlu0 %v3440, 32
      %v4222 = vpop.permute.xlu0 %4221
      %4223 = vrot.lane.b32.xlu0 %v3489, 32
      %v4224 = vpop.permute.xlu0 %4223
      %4225 = vrot.lane.b32.xlu0 %v3538, 32
      %v4226 = vpop.permute.xlu0 %4225
      %4227 = vrot.lane.b32.xlu0 %v3587, 32
      %v4228 = vpop.permute.xlu0 %4227
      %4229 = vrot.lane.b32.xlu0 %v3636, 32
      %v4230 = vpop.permute.xlu0 %4229
      %4231 = vrot.lane.b32.xlu0 %v3685, 32
      %v4232 = vpop.permute.xlu0 %4231
      %4233 = vrot.lane.b32.xlu0 %v3734, 32
      %v4234 = vpop.permute.xlu0 %4233
      %4235 = vrot.lane.b32.xlu0 %v3783, 32
      %v4236 = vpop.permute.xlu0 %4235
      %4237 = vrot.lane.b32.xlu0 %v3832, 32
      %v4238 = vpop.permute.xlu0 %4237
      %4239 = vrot.lane.b32.xlu0 %v3881, 32
      %v4240 = vpop.permute.xlu0 %4239
      %4241 = vrot.lane.b32.xlu0 %v3930, 32
      %v4242 = vpop.permute.xlu0 %4241
      %4243 = vrot.lane.b32.xlu0 %v3979, 32
      %v4244 = vpop.permute.xlu0 %4243
      %4245 = vrot.lane.b32.xlu0 %v4028, 32
      %v4246 = vpop.permute.xlu0 %4245
      %4247 = vrot.lane.b32.xlu0 %v4216, 32
      %v4248 = vpop.permute.xlu0 %4247
      %v4249 = vcombine.low %v1960, %v1968
      %v4250 = vcombine.low %v1970, %v1953
      %v4251 = vcombine.low %v1967, %v1969
      %v4252 = vcombine.low %v1971, %v1986
      %v4254 = vunpack.c.l.s4 1966171168
      %v4255 = vunpack.c.0.s8 %v4254
      %v4256 = vlaneseq
      %v4257 = vshrl.u32 %v4256, 7
      %v4258 = vsub.s32 %v4255, %v4257
      %v4259 = vrot.slane %v4249, %v4258
      %v4261 = vunpack.c.l.s4 1966171168
      %v4262 = vunpack.c.0.s8 %v4261
      %v4263 = vlaneseq
      %v4264 = vshrl.u32 %v4263, 7
      %v4265 = vsub.s32 %v4262, %v4264
      %v4266 = vrot.slane %v4250, %v4265
      %v4268 = vunpack.c.l.s4 1966171168
      %v4269 = vunpack.c.0.s8 %v4268
      %v4270 = vlaneseq
      %v4271 = vshrl.u32 %v4270, 7
      %v4272 = vsub.s32 %v4269, %v4271
      %v4273 = vrot.slane %v4251, %v4272
      %v4275 = vunpack.c.l.s4 1966171168
      %v4276 = vunpack.c.0.s8 %v4275
      %v4277 = vlaneseq
      %v4278 = vshrl.u32 %v4277, 7
      %v4279 = vsub.s32 %v4276, %v4278
      %v4280 = vrot.slane %v4252, %v4279
      %v4281 = vcombine.low %v4259, %v4266
      %v4282 = vcombine.low %v4273, %v4280
      %v4284 = vunpack.c.l.s4 1966171168
      %v4285 = vunpack.c.0.s8 %v4284
      %v4286 = vlaneseq
      %v4287 = vshrl.u32 %v4286, 7
      %v4288 = vsub.s32 %v4285, %v4287
      %v4289 = vrot.slane %v4281, %v4288
      %v4291 = vunpack.c.l.s4 1966171168
      %v4292 = vunpack.c.0.s8 %v4291
      %v4293 = vlaneseq
      %v4294 = vshrl.u32 %v4293, 7
      %v4295 = vsub.s32 %v4292, %v4294
      %v4296 = vrot.slane %v4282, %v4295
      %v4297 = vcombine.low %v4289, %v4296
      %4298 = vrot.lane.b32.xlu0 %v2158, 64
      %v4299 = vpop.permute.xlu0 %4298
      %4300 = vrot.lane.b32.xlu0 %v2207, 64
      %v4301 = vpop.permute.xlu0 %4300
      %4302 = vrot.lane.b32.xlu0 %v2256, 64
      %v4303 = vpop.permute.xlu0 %4302
      %4304 = vrot.lane.b32.xlu0 %v2305, 64
      %v4305 = vpop.permute.xlu0 %4304
      %4306 = vrot.lane.b32.xlu0 %v2354, 64
      %v4307 = vpop.permute.xlu0 %4306
      %4308 = vrot.lane.b32.xlu0 %v2403, 64
      %v4309 = vpop.permute.xlu0 %4308
      %4310 = vrot.lane.b32.xlu0 %v2452, 64
      %v4311 = vpop.permute.xlu0 %4310
      %4312 = vrot.lane.b32.xlu0 %v2501, 64
      %v4313 = vpop.permute.xlu0 %4312
      %4314 = vrot.lane.b32.xlu0 %v2550, 64
      %v4315 = vpop.permute.xlu0 %4314
      %4316 = vrot.lane.b32.xlu0 %v2599, 64
      %v4317 = vpop.permute.xlu0 %4316
      %4318 = vrot.lane.b32.xlu0 %v2648, 64
      %v4319 = vpop.permute.xlu0 %4318
      %4320 = vrot.lane.b32.xlu0 %v2697, 64
      %v4321 = vpop.permute.xlu0 %4320
      %4322 = vrot.lane.b32.xlu0 %v2746, 64
      %v4323 = vpop.permute.xlu0 %4322
      %4324 = vrot.lane.b32.xlu0 %v2795, 64
      %v4325 = vpop.permute.xlu0 %4324
      %4326 = vrot.lane.b32.xlu0 %v4109, 64
      %v4327 = vpop.permute.xlu0 %4326
      %4328 = vrot.lane.b32.xlu0 %v4297, 64
      %v4329 = vpop.permute.xlu0 %4328
      %v4331 = vunpack.c.l.s4 1966171168
      %v4332 = vunpack.c.0.s8 %v4331
      %v4333 = vlaneseq
      %v4334 = vshrl.u32 %v4333, 7
      %v4335 = vsub.s32 %v4332, %v4334
      %v4336 = vrot.slane %v1993, %v4335
      %v4338 = vunpack.c.l.s4 1966171168
      %v4339 = vunpack.c.0.s8 %v4338
      %v4340 = vlaneseq
      %v4341 = vshrl.u32 %v4340, 7
      %v4342 = vsub.s32 %v4339, %v4341
      %v4343 = vrot.slane %v4336, %v4342
      %v4345 = vshrl.u32 %v4297, 16
      %v4347 = vshll.u32 %v4297, 16
      %v4349 = vrot.slane %v4347, 1
      %v4350 = vor.u32 %v4345, %v4349
      %v4352 = vshll.u32 %v4343, 16
      %v4354 = vrot.slane %v4352, 1
      %v4355 = vsel %vm3020, %v4350, %v4354
      %4356 = vrot.lane.b32.xlu0 %v3056, 96
      %v4357 = vpop.permute.xlu0 %4356
      %4358 = vrot.lane.b32.xlu0 %v3068, 96
      %v4359 = vpop.permute.xlu0 %4358
      %4360 = vrot.lane.b32.xlu0 %v3080, 96
      %v4361 = vpop.permute.xlu0 %4360
      %4362 = vrot.lane.b32.xlu0 %v3092, 96
      %v4363 = vpop.permute.xlu0 %4362
      %4364 = vrot.lane.b32.xlu0 %v3104, 96
      %v4365 = vpop.permute.xlu0 %4364
      %4366 = vrot.lane.b32.xlu0 %v3116, 96
      %v4367 = vpop.permute.xlu0 %4366
      %4368 = vrot.lane.b32.xlu0 %v3128, 96
      %v4369 = vpop.permute.xlu0 %4368
      %4370 = vrot.lane.b32.xlu0 %v3140, 96
      %v4371 = vpop.permute.xlu0 %4370
      %4372 = vrot.lane.b32.xlu0 %v3152, 96
      %v4373 = vpop.permute.xlu0 %4372
      %4374 = vrot.lane.b32.xlu0 %v3164, 96
      %v4375 = vpop.permute.xlu0 %4374
      %4376 = vrot.lane.b32.xlu0 %v3176, 96
      %v4377 = vpop.permute.xlu0 %4376
      %4378 = vrot.lane.b32.xlu0 %v3188, 96
      %v4379 = vpop.permute.xlu0 %4378
      %4380 = vrot.lane.b32.xlu0 %v3200, 96
      %v4381 = vpop.permute.xlu0 %4380
      %4382 = vrot.lane.b32.xlu0 %v3212, 96
      %v4383 = vpop.permute.xlu0 %4382
      %4384 = vrot.lane.b32.xlu0 %v4167, 96
      %v4385 = vpop.permute.xlu0 %4384
      %4386 = vrot.lane.b32.xlu0 %v4355, 96
      %v4387 = vpop.permute.xlu0 %4386
      %v4388 = vcombine.low %v1968, %v1970
      %v4389 = vcombine.low %v1953, %v1967
      %v4390 = vcombine.low %v1969, %v1971
      %v4391 = vcombine.low %v1986, %v1993
      %v4393 = vunpack.c.l.s4 1966171168
      %v4394 = vunpack.c.0.s8 %v4393
      %v4395 = vlaneseq
      %v4396 = vshrl.u32 %v4395, 7
      %v4397 = vsub.s32 %v4394, %v4396
      %v4398 = vrot.slane %v4388, %v4397
      %v4400 = vunpack.c.l.s4 1966171168
      %v4401 = vunpack.c.0.s8 %v4400
      %v4402 = vlaneseq
      %v4403 = vshrl.u32 %v4402, 7
      %v4404 = vsub.s32 %v4401, %v4403
      %v4405 = vrot.slane %v4389, %v4404
      %v4407 = vunpack.c.l.s4 1966171168
      %v4408 = vunpack.c.0.s8 %v4407
      %v4409 = vlaneseq
      %v4410 = vshrl.u32 %v4409, 7
      %v4411 = vsub.s32 %v4408, %v4410
      %v4412 = vrot.slane %v4390, %v4411
      %v4414 = vunpack.c.l.s4 1966171168
      %v4415 = vunpack.c.0.s8 %v4414
      %v4416 = vlaneseq
      %v4417 = vshrl.u32 %v4416, 7
      %v4418 = vsub.s32 %v4415, %v4417
      %v4419 = vrot.slane %v4391, %v4418
      %v4420 = vcombine.low %v4398, %v4405
      %v4421 = vcombine.low %v4412, %v4419
      %v4423 = vunpack.c.l.s4 1966171168
      %v4424 = vunpack.c.0.s8 %v4423
      %v4425 = vlaneseq
      %v4426 = vshrl.u32 %v4425, 7
      %v4427 = vsub.s32 %v4424, %v4426
      %v4428 = vrot.slane %v4420, %v4427
      %v4430 = vunpack.c.l.s4 1966171168
      %v4431 = vunpack.c.0.s8 %v4430
      %v4432 = vlaneseq
      %v4433 = vshrl.u32 %v4432, 7
      %v4434 = vsub.s32 %v4431, %v4433
      %v4435 = vrot.slane %v4421, %v4434
      %v4436 = vcombine.low %v4428, %v4435
      %vm4437 = vcmask 261120
      %v4439 = vsel %vm4437, %v2060, %v3214
      %v4441 = vsel %vm4437, %v2109, %v3216
      %v4443 = vsel %vm4437, %v2158, %v3218
      %v4445 = vsel %vm4437, %v2207, %v3220
      %v4447 = vsel %vm4437, %v2256, %v3222
      %v4449 = vsel %vm4437, %v2305, %v3224
      %v4451 = vsel %vm4437, %v2354, %v3226
      %v4453 = vsel %vm4437, %v2403, %v3228
      %v4455 = vsel %vm4437, %v2452, %v3230
      %v4457 = vsel %vm4437, %v2501, %v3232
      %v4459 = vsel %vm4437, %v2550, %v3234
      %v4461 = vsel %vm4437, %v2599, %v3236
      %v4463 = vsel %vm4437, %v2648, %v3238
      %v4465 = vsel %vm4437, %v2697, %v3240
      %v4467 = vsel %vm4437, %v2746, %v3242
      %v4469 = vsel %vm4437, %v2795, %v3244
      %vm4470 = vcmask 523264
      %v4472 = vsel %vm4470, %v4439, %v4030
      %v4474 = vsel %vm4470, %v4441, %v4032
      %v4476 = vsel %vm4470, %v4443, %v4034
      %v4478 = vsel %vm4470, %v4445, %v4036
      %v4480 = vsel %vm4470, %v4447, %v4038
      %v4482 = vsel %vm4470, %v4449, %v4040
      %v4484 = vsel %vm4470, %v4451, %v4042
      %v4486 = vsel %vm4470, %v4453, %v4044
      %v4488 = vsel %vm4470, %v4455, %v4046
      %v4490 = vsel %vm4470, %v4457, %v4048
      %v4492 = vsel %vm4470, %v4459, %v4050
      %v4494 = vsel %vm4470, %v4461, %v4052
      %v4496 = vsel %vm4470, %v4463, %v4054
      %v4498 = vsel %vm4470, %v4465, %v4056
      %v4500 = vsel %vm4470, %v4467, %v4058
      %v4502 = vsel %vm4470, %v4469, %v4060
      %vm4503 = vcmask 785408
      %v4505 = vsel %vm4503, %v4472, %v4111
      %v4508 = vsel %vm4503, %v4474, %v4113
      %v4511 = vsel %vm4503, %v4476, %v4115
      %v4514 = vsel %vm4503, %v4478, %v4117
      %v4517 = vsel %vm4503, %v4480, %v4119
      %v4520 = vsel %vm4503, %v4482, %v4121
      %v4523 = vsel %vm4503, %v4484, %v4123
      %v4526 = vsel %vm4503, %v4486, %v4125
      %v4529 = vsel %vm4503, %v4488, %v4127
      %v4532 = vsel %vm4503, %v4490, %v4129
      %v4535 = vsel %vm4503, %v4492, %v4131
      %v4538 = vsel %vm4503, %v4494, %v4133
      %v4541 = vsel %vm4503, %v4496, %v4135
      %v4544 = vsel %vm4503, %v4498, %v4137
      %v4547 = vsel %vm4503, %v4500, %v4139
      %v4550 = vsel %vm4503, %v4502, %v4141
      %v4554 = vsel %vm4437, %v3044, %v4218
      %v4557 = vsel %vm4437, %v3056, %v4220
      %v4560 = vsel %vm4437, %v3068, %v4222
      %v4563 = vsel %vm4437, %v3080, %v4224
      %v4566 = vsel %vm4437, %v3092, %v4226
      %v4569 = vsel %vm4437, %v3104, %v4228
      %v4572 = vsel %vm4437, %v3116, %v4230
      %v4575 = vsel %vm4437, %v3128, %v4232
      %v4578 = vsel %vm4437, %v3140, %v4234
      %v4581 = vsel %vm4437, %v3152, %v4236
      %v4584 = vsel %vm4437, %v3164, %v4238
      %v4587 = vsel %vm4437, %v3176, %v4240
      %v4590 = vsel %vm4437, %v3188, %v4242
      %v4593 = vsel %vm4437, %v3200, %v4244
      %v4596 = vsel %vm4437, %v3212, %v4246
      %v4599 = vsel %vm4437, %v4167, %v4248
      %v4601 = vsel %vm4470, %v4554, %v4299
      %v4603 = vsel %vm4470, %v4557, %v4301
      %v4605 = vsel %vm4470, %v4560, %v4303
      %v4607 = vsel %vm4470, %v4563, %v4305
      %v4609 = vsel %vm4470, %v4566, %v4307
      %v4611 = vsel %vm4470, %v4569, %v4309
      %v4613 = vsel %vm4470, %v4572, %v4311
      %v4615 = vsel %vm4470, %v4575, %v4313
      %v4617 = vsel %vm4470, %v4578, %v4315
      %v4619 = vsel %vm4470, %v4581, %v4317
      %v4621 = vsel %vm4470, %v4584, %v4319
      %v4623 = vsel %vm4470, %v4587, %v4321
      %v4625 = vsel %vm4470, %v4590, %v4323
      %v4627 = vsel %vm4470, %v4593, %v4325
      %v4629 = vsel %vm4470, %v4596, %v4327
      %v4631 = vsel %vm4470, %v4599, %v4329
      %v4633 = vsel %vm4503, %v4601, %v4357
      %v4636 = vsel %vm4503, %v4603, %v4359
      %v4639 = vsel %vm4503, %v4605, %v4361
      %v4642 = vsel %vm4503, %v4607, %v4363
      %v4645 = vsel %vm4503, %v4609, %v4365
      %v4648 = vsel %vm4503, %v4611, %v4367
      %v4651 = vsel %vm4503, %v4613, %v4369
      %v4654 = vsel %vm4503, %v4615, %v4371
      %v4657 = vsel %vm4503, %v4617, %v4373
      %v4660 = vsel %vm4503, %v4619, %v4375
      %v4663 = vsel %vm4503, %v4621, %v4377
      %v4666 = vsel %vm4503, %v4623, %v4379
      %v4669 = vsel %vm4503, %v4625, %v4381
      %v4672 = vsel %vm4503, %v4627, %v4383
      %v4675 = vsel %vm4503, %v4629, %v4385
      %v4678 = vsel %vm4503, %v4631, %v4387
      %v4680 = vld [vmem:[%s5] sm:$0xf]
      %v4681 = vld [vmem:[%s5 + $0x4] sm:$0xf]
      %v4682 = vld [vmem:[%s5 + $0x8] sm:$0xf]
      %v4683 = vld [vmem:[%s5 + $0xc] sm:$0xf]
      %v4684 = vld [vmem:[%s5 + $0x10] sm:$0xf]
      %v4685 = vld [vmem:[%s5 + $0x14] sm:$0xf]
      %v4686 = vld [vmem:[%s5 + $0x18] sm:$0xf]
      %v4687 = vld [vmem:[%s5 + $0x1c] sm:$0xf]
      %v4688 = vld [vmem:[%s5 + $0x20] sm:$0xf]
      %v4689 = vld [vmem:[%s5 + $0x24] sm:$0xf]
      %v4690 = vld [vmem:[%s5 + $0x28] sm:$0xf]
      %v4691 = vld [vmem:[%s5 + $0x2c] sm:$0xf]
      %v4692 = vld [vmem:[%s5 + $0x30] sm:$0xf]
      %v4693 = vld [vmem:[%s5 + $0x34] sm:$0xf]
      %v4694 = vld [vmem:[%s5 + $0x38] sm:$0xf]
      %v4695 = vld [vmem:[%s5 + $0x3c] sm:$0xf]
      %v4696 = vld [vmem:[%s5 + $0x40] sm:$0xf]
      %v4697 = vld [vmem:[%s5 + $0x44] sm:$0xf]
      %v4698 = vld [vmem:[%s5 + $0x48] sm:$0xf]
      %v4699 = vld [vmem:[%s5 + $0x4c] sm:$0xf]
      %v4700 = vld [vmem:[%s5 + $0x50] sm:$0xf]
      %v4701 = vld [vmem:[%s5 + $0x54] sm:$0xf]
      %v4702 = vld [vmem:[%s5 + $0x58] sm:$0xf]
      %v4703 = vld [vmem:[%s5 + $0x5c] sm:$0xf]
      %v4704 = vld [vmem:[%s5 + $0x60] sm:$0xf]
      %v4705 = vld [vmem:[%s5 + $0x64] sm:$0xf]
      %v4706 = vld [vmem:[%s5 + $0x68] sm:$0xf]
      %v4707 = vld [vmem:[%s5 + $0x6c] sm:$0xf]
      %v4708 = vld [vmem:[%s5 + $0x70] sm:$0xf]
      %v4709 = vld [vmem:[%s5 + $0x74] sm:$0xf]
      %v4710 = vld [vmem:[%s5 + $0x78] sm:$0xf]
      %v4711 = vld [vmem:[%s5 + $0x7c] sm:$0xf]
      %v4712 = vld [vmem:[%s5 + $0x80] sm:$0xf]
      %v4713 = vld [vmem:[%s5 + $0x84] sm:$0xf]
      %v4714 = vld [vmem:[%s5 + $0x88] sm:$0xf]
      %v4715 = vld [vmem:[%s5 + $0x8c] sm:$0xf]
      %v4716 = vld [vmem:[%s6] sm:$0x1]
      %v4718 = vlaneseq
      %v4719 = vshrl.u32 %v4718, 7
      %v4720 = vsub.s32 0, %v4719
      %v4721 = vrot.slane %v4716, %v4720
      %v4759 = vunpack.c.l.b16 %v4680
      %v4760 = vunpack.c.l.b16 %v4681
      %v4761 = vunpack.c.l.b16 %v4682
      %v4762 = vunpack.c.l.b16 %v4683
      %v4763 = vunpack.c.l.b16 %v4684
      %v4764 = vunpack.c.l.b16 %v4685
      %v4765 = vunpack.c.l.b16 %v4686
      %v4766 = vunpack.c.l.b16 %v4687
      %v4767 = vunpack.c.l.b16 %v4688
      %v4768 = vunpack.c.l.b16 %v4689
      %v4769 = vunpack.c.l.b16 %v4690
      %v4770 = vunpack.c.l.b16 %v4691
      %v4771 = vunpack.c.l.b16 %v4692
      %v4772 = vunpack.c.l.b16 %v4693
      %v4773 = vunpack.c.l.b16 %v4694
      %v4774 = vunpack.c.l.b16 %v4695
      %v4775 = vunpack.c.l.b16 %v4696
      %v4776 = vunpack.c.l.b16 %v4697
      %v4777 = vunpack.c.l.b16 %v4698
      %v4778 = vunpack.c.l.b16 %v4699
      %v4779 = vunpack.c.l.b16 %v4700
      %v4780 = vunpack.c.l.b16 %v4701
      %v4781 = vunpack.c.l.b16 %v4702
      %v4782 = vunpack.c.l.b16 %v4703
      %v4783 = vunpack.c.l.b16 %v4704
      %v4784 = vunpack.c.l.b16 %v4705
      %v4785 = vunpack.c.l.b16 %v4706
      %v4786 = vunpack.c.l.b16 %v4707
      %v4787 = vunpack.c.l.b16 %v4708
      %v4788 = vunpack.c.l.b16 %v4709
      %v4789 = vunpack.c.l.b16 %v4710
      %v4790 = vunpack.c.l.b16 %v4711
      %v4791 = vunpack.c.l.b16 %v4712
      %v4792 = vunpack.c.l.b16 %v4713
      %v4793 = vunpack.c.l.b16 %v4714
      %v4794 = vunpack.c.l.b16 %v4715
      %v4795 = vpack.c.b16 %v4760, %v4759
      %v4796 = vpack.c.b16 %v4762, %v4761
      %v4797 = vpack.c.b16 %v4764, %v4763
      %v4798 = vpack.c.b16 %v4766, %v4765
      %v4799 = vpack.c.b16 %v4768, %v4767
      %v4800 = vpack.c.b16 %v4770, %v4769
      %v4801 = vpack.c.b16 %v4772, %v4771
      %v4802 = vpack.c.b16 %v4774, %v4773
      %v4803 = vpack.c.b16 %v4776, %v4775
      %v4804 = vpack.c.b16 %v4778, %v4777
      %v4805 = vpack.c.b16 %v4780, %v4779
      %v4806 = vpack.c.b16 %v4782, %v4781
      %v4807 = vpack.c.b16 %v4784, %v4783
      %v4808 = vpack.c.b16 %v4786, %v4785
      %v4809 = vpack.c.b16 %v4788, %v4787
      %v4810 = vpack.c.b16 %v4790, %v4789
      %v4811 = vpack.c.b16 %v4792, %v4791
      %v4812 = vpack.c.b16 %v4794, %v4793
      %v4832 = vsel %vm4437, %v3391, 0
      %v4835 = vsel %vm4437, %v3440, 0
      %v4838 = vsel %vm4437, %v3489, 0
      %v4841 = vsel %vm4437, %v3538, 0
      %v4844 = vsel %vm4437, %v3587, 0
      %v4847 = vsel %vm4437, %v3636, 0
      %v4850 = vsel %vm4437, %v3685, 0
      %v4853 = vsel %vm4437, %v3734, 0
      %v4856 = vsel %vm4437, %v3783, 0
      %v4859 = vsel %vm4437, %v3832, 0
      %v4862 = vsel %vm4437, %v3881, 0
      %v4865 = vsel %vm4437, %v3930, 0
      %v4868 = vsel %vm4437, %v3979, 0
      %v4871 = vsel %vm4437, %v4028, 0
      %v4874 = vsel %vm4437, %v4216, 0
      %v4877 = vsel %vm4437, %v4436, 0
      %4879 = vmatprep.subr.bf16.mxu0 0
      %4880 = vmatpush1.bf16.msra.mxu0 %v4795
      %4881 = vmatprep.subr.bf16.mxu0 0
      %4882 = vmatpush1.bf16.msra.mxu0 %v4796
      %4883 = vmatprep.subr.bf16.mxu0 0
      %4884 = vmatpush1.bf16.msra.mxu0 %v4797
      %4885 = vmatprep.subr.bf16.mxu0 0
      %4886 = vmatpush1.bf16.msra.mxu0 %v4798
      %4887 = vmatprep.subr.bf16.mxu0 0
      %4888 = vmatpush1.bf16.msra.mxu0 %v4799
      %4889 = vmatprep.subr.bf16.mxu0 0
      %4890 = vmatpush1.bf16.msra.mxu0 %v4800
      %4891 = vmatprep.subr.bf16.mxu0 0
      %4892 = vmatpush1.bf16.msra.mxu0 %v4801
      %4893 = vmatprep.subr.bf16.mxu0 0
      %4894 = vmatpush1.bf16.msra.mxu0 %v4802
      %4895 = vmatprep.subr.bf16.mxu0 0
      %4896 = vmatpush1.bf16.msra.mxu0 %v4803
      %4897 = vmatprep.subr.bf16.mxu0 0
      %4898 = vmatpush1.bf16.msra.mxu0 %v4804
      %4899 = vmatprep.subr.bf16.mxu0 0
      %4900 = vmatpush1.bf16.msra.mxu0 %v4805
      %4901 = vmatprep.subr.bf16.mxu0 0
      %4902 = vmatpush1.bf16.msra.mxu0 %v4806
      %4903 = vmatprep.subr.bf16.mxu0 0
      %4904 = vmatpush1.bf16.msra.mxu0 %v4807
      %4905 = vmatprep.subr.bf16.mxu0 0
      %4906 = vmatpush1.bf16.msra.mxu0 %v4808
      %4907 = vmatprep.subr.bf16.mxu0 0
      %4908 = vmatpush1.bf16.msra.mxu0 %v4809
      %4909 = vmatprep.subr.bf16.mxu0 0
      %4910 = vmatpush1.bf16.msra.mxu0 %v4810
      %4911 = vmatprep.mubr.bf16.mxu0 %v4633
      %4912 = vmatmul.mubr.bf16.gmra.mrb[0].mxu0 %v4505
      %v4913 = vpop.f32.mrb[0].mxu0
      %v4914 = vadd.f32 %v4721, %v4913
      %v4915 = vpop.f32.mrb[0].mxu0
      %v4916 = vpop.f32.mrb[0].mxu0
      %v4917 = vadd.f32 %v4721, %v4916
      %v4918 = vpop.f32.mrb[0].mxu0
      %4919 = vmatprep.mubr.bf16.mxu0 %v4636
      %4920 = vmatmul.mubr.bf16.gmra.mrb[0].mxu0 %v4508
      %v4921 = vpop.f32.mrb[0].mxu0
      %v4922 = vadd.f32 %v4721, %v4921
      %v4923 = vpop.f32.mrb[0].mxu0
      %v4924 = vpop.f32.mrb[0].mxu0
      %v4925 = vadd.f32 %v4721, %v4924
      %v4926 = vpop.f32.mrb[0].mxu0
      %4927 = vmatprep.mubr.bf16.mxu0 %v4639
      %4928 = vmatmul.mubr.bf16.gmra.mrb[0].mxu0 %v4511
      %v4929 = vpop.f32.mrb[0].mxu0
      %v4930 = vadd.f32 %v4721, %v4929
      %v4931 = vpop.f32.mrb[0].mxu0
      %v4932 = vpop.f32.mrb[0].mxu0
      %v4933 = vadd.f32 %v4721, %v4932
      %v4934 = vpop.f32.mrb[0].mxu0
      %4935 = vmatprep.mubr.bf16.mxu0 %v4642
      %4936 = vmatmul.mubr.bf16.gmra.mrb[0].mxu0 %v4514
      %v4937 = vpop.f32.mrb[0].mxu0
      %v4938 = vadd.f32 %v4721, %v4937
      %v4939 = vpop.f32.mrb[0].mxu0
      %v4940 = vpop.f32.mrb[0].mxu0
      %v4941 = vadd.f32 %v4721, %v4940
      %v4942 = vpop.f32.mrb[0].mxu0
      %4943 = vmatprep.mubr.bf16.mxu0 %v4645
      %4944 = vmatmul.mubr.bf16.gmra.mrb[0].mxu0 %v4517
      %v4945 = vpop.f32.mrb[0].mxu0
      %v4946 = vadd.f32 %v4721, %v4945
      %v4947 = vpop.f32.mrb[0].mxu0
      %v4948 = vpop.f32.mrb[0].mxu0
      %v4949 = vadd.f32 %v4721, %v4948
      %v4950 = vpop.f32.mrb[0].mxu0
      %4951 = vmatprep.mubr.bf16.mxu0 %v4648
      %4952 = vmatmul.mubr.bf16.gmra.mrb[0].mxu0 %v4520
      %v4953 = vpop.f32.mrb[0].mxu0
      %v4954 = vadd.f32 %v4721, %v4953
      %v4955 = vpop.f32.mrb[0].mxu0
      %v4956 = vpop.f32.mrb[0].mxu0
      %v4957 = vadd.f32 %v4721, %v4956
      %v4958 = vpop.f32.mrb[0].mxu0
      %4959 = vmatprep.mubr.bf16.mxu0 %v4651
      %4960 = vmatmul.mubr.bf16.gmra.mrb[0].mxu0 %v4523
      %v4961 = vpop.f32.mrb[0].mxu0
      %v4962 = vadd.f32 %v4721, %v4961
      %v4963 = vpop.f32.mrb[0].mxu0
      %v4964 = vpop.f32.mrb[0].mxu0
      %v4965 = vadd.f32 %v4721, %v4964
      %v4966 = vpop.f32.mrb[0].mxu0
      %4967 = vmatprep.mubr.bf16.mxu0 %v4654
      %4968 = vmatmul.mubr.bf16.gmra.mrb[0].mxu0 %v4526
      %v4969 = vpop.f32.mrb[0].mxu0
      %v4970 = vadd.f32 %v4721, %v4969
      %v4971 = vpop.f32.mrb[0].mxu0
      %v4972 = vpop.f32.mrb[0].mxu0
      %v4973 = vadd.f32 %v4721, %v4972
      %v4974 = vpop.f32.mrb[0].mxu0
      %4975 = vmatprep.mubr.bf16.mxu0 %v4657
      %4976 = vmatmul.mubr.bf16.gmra.mrb[0].mxu0 %v4529
      %v4977 = vpop.f32.mrb[0].mxu0
      %v4978 = vadd.f32 %v4721, %v4977
      %v4979 = vpop.f32.mrb[0].mxu0
      %v4980 = vpop.f32.mrb[0].mxu0
      %v4981 = vadd.f32 %v4721, %v4980
      %v4982 = vpop.f32.mrb[0].mxu0
      %4983 = vmatprep.mubr.bf16.mxu0 %v4660
      %4984 = vmatmul.mubr.bf16.gmra.mrb[0].mxu0 %v4532
      %v4985 = vpop.f32.mrb[0].mxu0
      %v4986 = vadd.f32 %v4721, %v4985
      %v4987 = vpop.f32.mrb[0].mxu0
      %v4988 = vpop.f32.mrb[0].mxu0
      %v4989 = vadd.f32 %v4721, %v4988
      %v4990 = vpop.f32.mrb[0].mxu0
      %4991 = vmatprep.mubr.bf16.mxu0 %v4663
      %4992 = vmatmul.mubr.bf16.gmra.mrb[0].mxu0 %v4535
      %v4993 = vpop.f32.mrb[0].mxu0
      %v4994 = vadd.f32 %v4721, %v4993
      %v4995 = vpop.f32.mrb[0].mxu0
      %v4996 = vpop.f32.mrb[0].mxu0
      %v4997 = vadd.f32 %v4721, %v4996
      %v4998 = vpop.f32.mrb[0].mxu0
      %4999 = vmatprep.mubr.bf16.mxu0 %v4666
      %5000 = vmatmul.mubr.bf16.gmra.mrb[0].mxu0 %v4538
      %v5001 = vpop.f32.mrb[0].mxu0
      %v5002 = vadd.f32 %v4721, %v5001
      %v5003 = vpop.f32.mrb[0].mxu0
      %v5004 = vpop.f32.mrb[0].mxu0
      %v5005 = vadd.f32 %v4721, %v5004
      %v5006 = vpop.f32.mrb[0].mxu0
      %5007 = vmatprep.mubr.bf16.mxu0 %v4669
      %5008 = vmatmul.mubr.bf16.gmra.mrb[0].mxu0 %v4541
      %v5009 = vpop.f32.mrb[0].mxu0
      %v5010 = vadd.f32 %v4721, %v5009
      %v5011 = vpop.f32.mrb[0].mxu0
      %v5012 = vpop.f32.mrb[0].mxu0
      %v5013 = vadd.f32 %v4721, %v5012
      %v5014 = vpop.f32.mrb[0].mxu0
      %5015 = vmatprep.mubr.bf16.mxu0 %v4672
      %5016 = vmatmul.mubr.bf16.gmra.mrb[0].mxu0 %v4544
      %v5017 = vpop.f32.mrb[0].mxu0
      %v5018 = vadd.f32 %v4721, %v5017
      %v5019 = vpop.f32.mrb[0].mxu0
      %v5020 = vpop.f32.mrb[0].mxu0
      %v5021 = vadd.f32 %v4721, %v5020
      %v5022 = vpop.f32.mrb[0].mxu0
      %5023 = vmatprep.mubr.bf16.mxu0 %v4675
      %5024 = vmatmul.mubr.bf16.gmra.mrb[0].mxu0 %v4547
      %v5025 = vpop.f32.mrb[0].mxu0
      %v5026 = vadd.f32 %v4721, %v5025
      %v5027 = vpop.f32.mrb[0].mxu0
      %v5028 = vpop.f32.mrb[0].mxu0
      %v5029 = vadd.f32 %v4721, %v5028
      %v5030 = vpop.f32.mrb[0].mxu0
      %5031 = vmatprep.mubr.bf16.mxu0 %v4678
      %5032 = vmatmul.mubr.bf16.gmra.mrb[0].mxu0 %v4550
      %v5033 = vpop.f32.mrb[0].mxu0
      %v5034 = vadd.f32 %v4721, %v5033
      %v5035 = vpop.f32.mrb[0].mxu0
      %v5036 = vpop.f32.mrb[0].mxu0
      %v5037 = vadd.f32 %v4721, %v5036
      %v5038 = vpop.f32.mrb[0].mxu0
      %5039 = vdwg.mxu0
      %5040 = vmatprep.subr.bf16.mxu0 0
      %5041 = vmatpush1.bf16.msra.mxu0 %v4811
      %5042 = vmatprep.subr.bf16.mxu0 0
      %5043 = vmatpush1.bf16.msra.mxu0 %v4812
      %5044 = vmatprep.subr.bf16.mxu0 0
      %5045 = vmatpush1.bf16.msra.mxu0 0
      %5046 = vmatprep.subr.bf16.mxu0 0
      %5047 = vmatpush1.bf16.msra.mxu0 0
      %5048 = vmatprep.subr.bf16.mxu0 0
      %5049 = vmatpush1.bf16.msra.mxu0 0
      %5050 = vmatprep.subr.bf16.mxu0 0
      %5051 = vmatpush1.bf16.msra.mxu0 0
      %5052 = vmatprep.subr.bf16.mxu0 0
      %5053 = vmatpush1.bf16.msra.mxu0 0
      %5054 = vmatprep.subr.bf16.mxu0 0
      %5055 = vmatpush1.bf16.msra.mxu0 0
      %5056 = vmatprep.subr.bf16.mxu0 0
      %5057 = vmatpush1.bf16.msra.mxu0 0
      %5058 = vmatprep.subr.bf16.mxu0 0
      %5059 = vmatpush1.bf16.msra.mxu0 0
      %5060 = vmatprep.subr.bf16.mxu0 0
      %5061 = vmatpush1.bf16.msra.mxu0 0
      %5062 = vmatprep.subr.bf16.mxu0 0
      %5063 = vmatpush1.bf16.msra.mxu0 0
      %5064 = vmatprep.subr.bf16.mxu0 0
      %5065 = vmatpush1.bf16.msra.mxu0 0
      %5066 = vmatprep.subr.bf16.mxu0 0
      %5067 = vmatpush1.bf16.msra.mxu0 0
      %5068 = vmatprep.subr.bf16.mxu0 0
      %5069 = vmatpush1.bf16.msra.mxu0 0
      %5070 = vmatprep.subr.bf16.mxu0 0
      %5071 = vmatpush1.bf16.msra.mxu0 0
      %5072 = vmatprep.mubr.bf16.mxu0 0
      %5073 = vmatmul.mubr.bf16.gmra.mrb[0].mxu0 %v4832
      %v5074 = vpop.f32.mrb[0].mxu0
      %v5075 = vadd.f32 %v4914, %v5074
      %v5076 = vpop.f32.mrb[0].mxu0
      %v5077 = vpop.f32.mrb[0].mxu0
      %v5078 = vadd.f32 %v4917, %v5077
      %v5079 = vpop.f32.mrb[0].mxu0
      %5080 = vmatprep.mubr.bf16.mxu0 0
      %5081 = vmatmul.mubr.bf16.gmra.mrb[0].mxu0 %v4835
      %v5082 = vpop.f32.mrb[0].mxu0
      %v5083 = vadd.f32 %v4922, %v5082
      %v5084 = vpop.f32.mrb[0].mxu0
      %v5085 = vpop.f32.mrb[0].mxu0
      %v5086 = vadd.f32 %v4925, %v5085
      %v5087 = vpop.f32.mrb[0].mxu0
      %5088 = vmatprep.mubr.bf16.mxu0 0
      %5089 = vmatmul.mubr.bf16.gmra.mrb[0].mxu0 %v4838
      %v5090 = vpop.f32.mrb[0].mxu0
      %v5091 = vadd.f32 %v4930, %v5090
      %v5092 = vpop.f32.mrb[0].mxu0
      %v5093 = vpop.f32.mrb[0].mxu0
      %v5094 = vadd.f32 %v4933, %v5093
      %v5095 = vpop.f32.mrb[0].mxu0
      %5096 = vmatprep.mubr.bf16.mxu0 0
      %5097 = vmatmul.mubr.bf16.gmra.mrb[0].mxu0 %v4841
      %v5098 = vpop.f32.mrb[0].mxu0
      %v5099 = vadd.f32 %v4938, %v5098
      %v5100 = vpop.f32.mrb[0].mxu0
      %v5101 = vpop.f32.mrb[0].mxu0
      %v5102 = vadd.f32 %v4941, %v5101
      %v5103 = vpop.f32.mrb[0].mxu0
      %5104 = vmatprep.mubr.bf16.mxu0 0
      %5105 = vmatmul.mubr.bf16.gmra.mrb[0].mxu0 %v4844
      %v5106 = vpop.f32.mrb[0].mxu0
      %v5107 = vadd.f32 %v4946, %v5106
      %v5108 = vpop.f32.mrb[0].mxu0
      %v5109 = vpop.f32.mrb[0].mxu0
      %v5110 = vadd.f32 %v4949, %v5109
      %v5111 = vpop.f32.mrb[0].mxu0
      %5112 = vmatprep.mubr.bf16.mxu0 0
      %5113 = vmatmul.mubr.bf16.gmra.mrb[0].mxu0 %v4847
      %v5114 = vpop.f32.mrb[0].mxu0
      %v5115 = vadd.f32 %v4954, %v5114
      %v5116 = vpop.f32.mrb[0].mxu0
      %v5117 = vpop.f32.mrb[0].mxu0
      %v5118 = vadd.f32 %v4957, %v5117
      %v5119 = vpop.f32.mrb[0].mxu0
      %5120 = vmatprep.mubr.bf16.mxu0 0
      %5121 = vmatmul.mubr.bf16.gmra.mrb[0].mxu0 %v4850
      %v5122 = vpop.f32.mrb[0].mxu0
      %v5123 = vadd.f32 %v4962, %v5122
      %v5124 = vpop.f32.mrb[0].mxu0
      %v5125 = vpop.f32.mrb[0].mxu0
      %v5126 = vadd.f32 %v4965, %v5125
      %v5127 = vpop.f32.mrb[0].mxu0
      %5128 = vmatprep.mubr.bf16.mxu0 0
      %5129 = vmatmul.mubr.bf16.gmra.mrb[0].mxu0 %v4853
      %v5130 = vpop.f32.mrb[0].mxu0
      %v5131 = vadd.f32 %v4970, %v5130
      %v5132 = vpop.f32.mrb[0].mxu0
      %v5133 = vpop.f32.mrb[0].mxu0
      %v5134 = vadd.f32 %v4973, %v5133
      %v5135 = vpop.f32.mrb[0].mxu0
      %5136 = vmatprep.mubr.bf16.mxu0 0
      %5137 = vmatmul.mubr.bf16.gmra.mrb[0].mxu0 %v4856
      %v5138 = vpop.f32.mrb[0].mxu0
      %v5139 = vadd.f32 %v4978, %v5138
      %v5140 = vpop.f32.mrb[0].mxu0
      %v5141 = vpop.f32.mrb[0].mxu0
      %v5142 = vadd.f32 %v4981, %v5141
      %v5143 = vpop.f32.mrb[0].mxu0
      %5144 = vmatprep.mubr.bf16.mxu0 0
      %5145 = vmatmul.mubr.bf16.gmra.mrb[0].mxu0 %v4859
      %v5146 = vpop.f32.mrb[0].mxu0
      %v5147 = vadd.f32 %v4986, %v5146
      %v5148 = vpop.f32.mrb[0].mxu0
      %v5149 = vpop.f32.mrb[0].mxu0
      %v5150 = vadd.f32 %v4989, %v5149
      %v5151 = vpop.f32.mrb[0].mxu0
      %5152 = vmatprep.mubr.bf16.mxu0 0
      %5153 = vmatmul.mubr.bf16.gmra.mrb[0].mxu0 %v4862
      %v5154 = vpop.f32.mrb[0].mxu0
      %v5155 = vadd.f32 %v4994, %v5154
      %v5156 = vpop.f32.mrb[0].mxu0
      %v5157 = vpop.f32.mrb[0].mxu0
      %v5158 = vadd.f32 %v4997, %v5157
      %v5159 = vpop.f32.mrb[0].mxu0
      %5160 = vmatprep.mubr.bf16.mxu0 0
      %5161 = vmatmul.mubr.bf16.gmra.mrb[0].mxu0 %v4865
      %v5162 = vpop.f32.mrb[0].mxu0
      %v5163 = vadd.f32 %v5002, %v5162
      %v5164 = vpop.f32.mrb[0].mxu0
      %v5165 = vpop.f32.mrb[0].mxu0
      %v5166 = vadd.f32 %v5005, %v5165
      %v5167 = vpop.f32.mrb[0].mxu0
      %5168 = vmatprep.mubr.bf16.mxu0 0
      %5169 = vmatmul.mubr.bf16.gmra.mrb[0].mxu0 %v4868
      %v5170 = vpop.f32.mrb[0].mxu0
      %v5171 = vadd.f32 %v5010, %v5170
      %v5172 = vpop.f32.mrb[0].mxu0
      %v5173 = vpop.f32.mrb[0].mxu0
      %v5174 = vadd.f32 %v5013, %v5173
      %v5175 = vpop.f32.mrb[0].mxu0
      %5176 = vmatprep.mubr.bf16.mxu0 0
      %5177 = vmatmul.mubr.bf16.gmra.mrb[0].mxu0 %v4871
      %v5178 = vpop.f32.mrb[0].mxu0
      %v5179 = vadd.f32 %v5018, %v5178
      %v5180 = vpop.f32.mrb[0].mxu0
      %v5181 = vpop.f32.mrb[0].mxu0
      %v5182 = vadd.f32 %v5021, %v5181
      %v5183 = vpop.f32.mrb[0].mxu0
      %5184 = vmatprep.mubr.bf16.mxu0 0
      %5185 = vmatmul.mubr.bf16.gmra.mrb[0].mxu0 %v4874
      %v5186 = vpop.f32.mrb[0].mxu0
      %v5187 = vadd.f32 %v5026, %v5186
      %v5188 = vpop.f32.mrb[0].mxu0
      %v5189 = vpop.f32.mrb[0].mxu0
      %v5190 = vadd.f32 %v5029, %v5189
      %v5191 = vpop.f32.mrb[0].mxu0
      %5192 = vmatprep.mubr.bf16.mxu0 0
      %5193 = vmatmul.mubr.bf16.gmra.mrb[0].mxu0 %v4877
      %v5194 = vpop.f32.mrb[0].mxu0
      %v5195 = vadd.f32 %v5034, %v5194
      %v5196 = vpop.f32.mrb[0].mxu0
      %v5197 = vpop.f32.mrb[0].mxu0
      %v5198 = vadd.f32 %v5037, %v5197
      %v5199 = vpop.f32.mrb[0].mxu0
      %5200 = vdwg.mxu0
      %v5201 = vmax.f32 %v5075, 0.0
      %v5202 = vmax.f32 %v5078, 0.0
      %v5203 = vmax.f32 %v5083, 0.0
      %v5204 = vmax.f32 %v5086, 0.0
      %v5205 = vmax.f32 %v5091, 0.0
      %v5206 = vmax.f32 %v5094, 0.0
      %v5207 = vmax.f32 %v5099, 0.0
      %v5208 = vmax.f32 %v5102, 0.0
      %v5209 = vmax.f32 %v5107, 0.0
      %v5210 = vmax.f32 %v5110, 0.0
      %v5211 = vmax.f32 %v5115, 0.0
      %v5212 = vmax.f32 %v5118, 0.0
      %v5213 = vmax.f32 %v5123, 0.0
      %v5214 = vmax.f32 %v5126, 0.0
      %v5215 = vmax.f32 %v5131, 0.0
      %v5216 = vmax.f32 %v5134, 0.0
      %v5217 = vmax.f32 %v5139, 0.0
      %v5218 = vmax.f32 %v5142, 0.0
      %v5219 = vmax.f32 %v5147, 0.0
      %v5220 = vmax.f32 %v5150, 0.0
      %v5221 = vmax.f32 %v5155, 0.0
      %v5222 = vmax.f32 %v5158, 0.0
      %v5223 = vmax.f32 %v5163, 0.0
      %v5224 = vmax.f32 %v5166, 0.0
      %v5225 = vmax.f32 %v5171, 0.0
      %v5226 = vmax.f32 %v5174, 0.0
      %v5227 = vmax.f32 %v5179, 0.0
      %v5228 = vmax.f32 %v5182, 0.0
      %v5229 = vmax.f32 %v5187, 0.0
      %v5230 = vmax.f32 %v5190, 0.0
      %v5231 = vmax.f32 %v5195, 0.0
      %v5232 = vmax.f32 %v5198, 0.0
      %v5234 = vshrl.u32 %v2006, 16
      %v5236 = vshll.u32 %v2006, 16
      %v5238 = vrot.slane %v5236, 1
      %v5239 = vor.u32 %v5234, %v5238
      %v5241 = vshrl.u32 %v2007, 16
      %v5243 = vshll.u32 %v2007, 16
      %v5245 = vrot.slane %v5243, 1
      %v5246 = vor.u32 %v5241, %v5245
      %v5248 = vshrl.u32 %v2008, 16
      %v5250 = vshll.u32 %v2008, 16
      %v5252 = vrot.slane %v5250, 1
      %v5253 = vor.u32 %v5248, %v5252
      %v5255 = vshrl.u32 %v2009, 16
      %v5257 = vshll.u32 %v2009, 16
      %v5259 = vrot.slane %v5257, 1
      %v5260 = vor.u32 %v5255, %v5259
      %v5262 = vshrl.u32 %v2010, 16
      %v5264 = vshll.u32 %v2010, 16
      %v5266 = vrot.slane %v5264, 1
      %v5267 = vor.u32 %v5262, %v5266
      %v5269 = vshrl.u32 %v2011, 16
      %v5271 = vshll.u32 %v2011, 16
      %v5273 = vrot.slane %v5271, 1
      %v5274 = vor.u32 %v5269, %v5273
      %5275 = vrot.lane.b32.xlu0 %v5239, 32
      %v5276 = vpop.permute.xlu0 %5275
      %5277 = vrot.lane.b32.xlu0 %v5246, 32
      %v5278 = vpop.permute.xlu0 %5277
      %5279 = vrot.lane.b32.xlu0 %v5253, 32
      %v5280 = vpop.permute.xlu0 %5279
      %5281 = vrot.lane.b32.xlu0 %v5260, 32
      %v5282 = vpop.permute.xlu0 %5281
      %5283 = vrot.lane.b32.xlu0 %v5267, 32
      %v5284 = vpop.permute.xlu0 %5283
      %5285 = vrot.lane.b32.xlu0 %v5274, 32
      %v5286 = vpop.permute.xlu0 %5285
      %v5287 = vrot.slane %v2006, 1
      %v5288 = vrot.slane %v2007, 1
      %v5289 = vrot.slane %v2008, 1
      %v5290 = vrot.slane %v2009, 1
      %v5291 = vrot.slane %v2010, 1
      %v5292 = vrot.slane %v2011, 1
      %5293 = vrot.lane.b32.xlu0 %v5287, 64
      %v5294 = vpop.permute.xlu0 %5293
      %5295 = vrot.lane.b32.xlu0 %v5288, 64
      %v5296 = vpop.permute.xlu0 %5295
      %5297 = vrot.lane.b32.xlu0 %v5289, 64
      %v5298 = vpop.permute.xlu0 %5297
      %5299 = vrot.lane.b32.xlu0 %v5290, 64
      %v5300 = vpop.permute.xlu0 %5299
      %5301 = vrot.lane.b32.xlu0 %v5291, 64
      %v5302 = vpop.permute.xlu0 %5301
      %5303 = vrot.lane.b32.xlu0 %v5292, 64
      %v5304 = vpop.permute.xlu0 %5303
      %v5305 = vpack.c.b16 %v2004, %v2004
      %5306 = vrot.lane.b32.xlu0 %v2007, 96
      %v5307 = vpop.permute.xlu0 %5306
      %5308 = vrot.lane.b32.xlu0 %v2008, 96
      %v5309 = vpop.permute.xlu0 %5308
      %5310 = vrot.lane.b32.xlu0 %v2009, 96
      %v5311 = vpop.permute.xlu0 %5310
      %5312 = vrot.lane.b32.xlu0 %v2010, 96
      %v5313 = vpop.permute.xlu0 %5312
      %5314 = vrot.lane.b32.xlu0 %v2011, 96
      %v5315 = vpop.permute.xlu0 %5314
      %5316 = vrot.lane.b32.xlu0 %v5305, 96
      %v5317 = vpop.permute.xlu0 %5316
      %v5319 = vshrl.u32 %v5305, 16
      %v5321 = vshll.u32 %v5305, 16
      %v5323 = vrot.slane %v5321, 1
      %v5324 = vor.u32 %v5319, %v5323
      %v5325 = vrot.slane %v5305, 1
      %5326 = vrot.lane.b32.xlu0 %v5288, 32
      %v5327 = vpop.permute.xlu0 %5326
      %5328 = vrot.lane.b32.xlu0 %v5289, 32
      %v5329 = vpop.permute.xlu0 %5328
      %5330 = vrot.lane.b32.xlu0 %v5290, 32
      %v5331 = vpop.permute.xlu0 %5330
      %5332 = vrot.lane.b32.xlu0 %v5291, 32
      %v5333 = vpop.permute.xlu0 %5332
      %5334 = vrot.lane.b32.xlu0 %v5292, 32
      %v5335 = vpop.permute.xlu0 %5334
      %5336 = vrot.lane.b32.xlu0 %v5325, 32
      %v5337 = vpop.permute.xlu0 %5336
      %v5338 = vpack.c.b16 %v2005, %v2005
      %5339 = vrot.lane.b32.xlu0 %v2008, 64
      %v5340 = vpop.permute.xlu0 %5339
      %5341 = vrot.lane.b32.xlu0 %v2009, 64
      %v5342 = vpop.permute.xlu0 %5341
      %5343 = vrot.lane.b32.xlu0 %v2010, 64
      %v5344 = vpop.permute.xlu0 %5343
      %5345 = vrot.lane.b32.xlu0 %v2011, 64
      %v5346 = vpop.permute.xlu0 %5345
      %5347 = vrot.lane.b32.xlu0 %v5305, 64
      %v5348 = vpop.permute.xlu0 %5347
      %5349 = vrot.lane.b32.xlu0 %v5338, 64
      %v5350 = vpop.permute.xlu0 %5349
      %v5352 = vshrl.u32 %v5338, 16
      %v5354 = vshll.u32 %v5338, 16
      %v5356 = vrot.slane %v5354, 1
      %v5357 = vor.u32 %v5352, %v5356
      %5358 = vrot.lane.b32.xlu0 %v5253, 96
      %v5359 = vpop.permute.xlu0 %5358
      %5360 = vrot.lane.b32.xlu0 %v5260, 96
      %v5361 = vpop.permute.xlu0 %5360
      %5362 = vrot.lane.b32.xlu0 %v5267, 96
      %v5363 = vpop.permute.xlu0 %5362
      %5364 = vrot.lane.b32.xlu0 %v5274, 96
      %v5365 = vpop.permute.xlu0 %5364
      %5366 = vrot.lane.b32.xlu0 %v5324, 96
      %v5367 = vpop.permute.xlu0 %5366
      %5368 = vrot.lane.b32.xlu0 %v5357, 96
      %v5369 = vpop.permute.xlu0 %5368
      %v5370 = vrot.slane %v5338, 1
      %v5372 = vsel %vm4437, %v2006, %v5276
      %v5374 = vsel %vm4437, %v2007, %v5278
      %v5376 = vsel %vm4437, %v2008, %v5280
      %v5378 = vsel %vm4437, %v2009, %v5282
      %v5380 = vsel %vm4437, %v2010, %v5284
      %v5382 = vsel %vm4437, %v2011, %v5286
      %v5384 = vsel %vm4470, %v5372, %v5294
      %v5386 = vsel %vm4470, %v5374, %v5296
      %v5388 = vsel %vm4470, %v5376, %v5298
      %v5390 = vsel %vm4470, %v5378, %v5300
      %v5392 = vsel %vm4470, %v5380, %v5302
      %v5394 = vsel %vm4470, %v5382, %v5304
      %v5396 = vsel %vm4503, %v5384, %v5307
      %v5398 = vsel %vm4503, %v5386, %v5309
      %v5400 = vsel %vm4503, %v5388, %v5311
      %v5402 = vsel %vm4503, %v5390, %v5313
      %v5404 = vsel %vm4503, %v5392, %v5315
      %v5406 = vsel %vm4503, %v5394, %v5317
      %v5409 = vsel %vm4437, %v5246, %v5327
      %v5412 = vsel %vm4437, %v5253, %v5329
      %v5415 = vsel %vm4437, %v5260, %v5331
      %v5418 = vsel %vm4437, %v5267, %v5333
      %v5421 = vsel %vm4437, %v5274, %v5335
      %v5424 = vsel %vm4437, %v5324, %v5337
      %v5426 = vsel %vm4470, %v5409, %v5340
      %v5428 = vsel %vm4470, %v5412, %v5342
      %v5430 = vsel %vm4470, %v5415, %v5344
      %v5432 = vsel %vm4470, %v5418, %v5346
      %v5434 = vsel %vm4470, %v5421, %v5348
      %v5436 = vsel %vm4470, %v5424, %v5350
      %v5438 = vsel %vm4503, %v5426, %v5359
      %v5440 = vsel %vm4503, %v5428, %v5361
      %v5442 = vsel %vm4503, %v5430, %v5363
      %v5444 = vsel %vm4503, %v5432, %v5365
      %v5446 = vsel %vm4503, %v5434, %v5367
      %v5448 = vsel %vm4503, %v5436, %v5369
      %v5461 = vcombine.low %v5396, %v5438
      %v5463 = vunpack.c.l.s4 1966171168
      %v5464 = vunpack.c.0.s8 %v5463
      %v5465 = vlaneseq
      %v5466 = vshrl.u32 %v5465, 7
      %v5467 = vsub.s32 %v5464, %v5466
      %v5468 = vrot.slane %v5461, %v5467
      %v5470 = vunpack.c.l.s4 1966171168
      %v5471 = vunpack.c.0.s8 %v5470
      %v5472 = vlaneseq
      %v5473 = vshrl.u32 %v5472, 7
      %v5474 = vsub.s32 %v5471, %v5473
      %v5475 = vrot.slane %v5289, %v5474
      %v5476 = vcombine.low %v5468, %v5475
      %v5477 = vcombine.high %v5468, %v5475
      %v5479 = vunpack.c.l.s4 1966171168
      %v5480 = vunpack.c.0.s8 %v5479
      %v5481 = vlaneseq
      %v5482 = vshrl.u32 %v5481, 7
      %v5483 = vsub.s32 %v5480, %v5482
      %v5484 = vrot.slane %v5476, %v5483
      %v5486 = vunpack.c.l.s4 1966171168
      %v5487 = vunpack.c.0.s8 %v5486
      %v5488 = vlaneseq
      %v5489 = vshrl.u32 %v5488, 7
      %v5490 = vsub.s32 %v5487, %v5489
      %v5491 = vrot.slane %v5477, %v5490
      %v5492 = vcombine.high %v5484, %v5484
      %v5493 = vcombine.low %v5398, %v5440
      %v5495 = vunpack.c.l.s4 1966171168
      %v5496 = vunpack.c.0.s8 %v5495
      %v5497 = vlaneseq
      %v5498 = vshrl.u32 %v5497, 7
      %v5499 = vsub.s32 %v5496, %v5498
      %v5500 = vrot.slane %v5493, %v5499
      %v5502 = vunpack.c.l.s4 1966171168
      %v5503 = vunpack.c.0.s8 %v5502
      %v5504 = vlaneseq
      %v5505 = vshrl.u32 %v5504, 7
      %v5506 = vsub.s32 %v5503, %v5505
      %v5507 = vrot.slane %v5290, %v5506
      %v5508 = vcombine.low %v5500, %v5507
      %v5509 = vcombine.high %v5500, %v5507
      %v5511 = vunpack.c.l.s4 1966171168
      %v5512 = vunpack.c.0.s8 %v5511
      %v5513 = vlaneseq
      %v5514 = vshrl.u32 %v5513, 7
      %v5515 = vsub.s32 %v5512, %v5514
      %v5516 = vrot.slane %v5508, %v5515
      %v5518 = vunpack.c.l.s4 1966171168
      %v5519 = vunpack.c.0.s8 %v5518
      %v5520 = vlaneseq
      %v5521 = vshrl.u32 %v5520, 7
      %v5522 = vsub.s32 %v5519, %v5521
      %v5523 = vrot.slane %v5509, %v5522
      %v5524 = vcombine.high %v5516, %v5516
      %v5525 = vcombine.low %v5400, %v5442
      %v5527 = vunpack.c.l.s4 1966171168
      %v5528 = vunpack.c.0.s8 %v5527
      %v5529 = vlaneseq
      %v5530 = vshrl.u32 %v5529, 7
      %v5531 = vsub.s32 %v5528, %v5530
      %v5532 = vrot.slane %v5525, %v5531
      %v5534 = vunpack.c.l.s4 1966171168
      %v5535 = vunpack.c.0.s8 %v5534
      %v5536 = vlaneseq
      %v5537 = vshrl.u32 %v5536, 7
      %v5538 = vsub.s32 %v5535, %v5537
      %v5539 = vrot.slane %v5291, %v5538
      %v5540 = vcombine.low %v5532, %v5539
      %v5541 = vcombine.high %v5532, %v5539
      %v5543 = vunpack.c.l.s4 1966171168
      %v5544 = vunpack.c.0.s8 %v5543
      %v5545 = vlaneseq
      %v5546 = vshrl.u32 %v5545, 7
      %v5547 = vsub.s32 %v5544, %v5546
      %v5548 = vrot.slane %v5540, %v5547
      %v5550 = vunpack.c.l.s4 1966171168
      %v5551 = vunpack.c.0.s8 %v5550
      %v5552 = vlaneseq
      %v5553 = vshrl.u32 %v5552, 7
      %v5554 = vsub.s32 %v5551, %v5553
      %v5555 = vrot.slane %v5541, %v5554
      %v5556 = vcombine.high %v5548, %v5548
      %v5557 = vcombine.low %v5402, %v5444
      %v5559 = vunpack.c.l.s4 1966171168
      %v5560 = vunpack.c.0.s8 %v5559
      %v5561 = vlaneseq
      %v5562 = vshrl.u32 %v5561, 7
      %v5563 = vsub.s32 %v5560, %v5562
      %v5564 = vrot.slane %v5557, %v5563
      %v5566 = vunpack.c.l.s4 1966171168
      %v5567 = vunpack.c.0.s8 %v5566
      %v5568 = vlaneseq
      %v5569 = vshrl.u32 %v5568, 7
      %v5570 = vsub.s32 %v5567, %v5569
      %v5571 = vrot.slane %v5292, %v5570
      %v5572 = vcombine.low %v5564, %v5571
      %v5573 = vcombine.high %v5564, %v5571
      %v5575 = vunpack.c.l.s4 1966171168
      %v5576 = vunpack.c.0.s8 %v5575
      %v5577 = vlaneseq
      %v5578 = vshrl.u32 %v5577, 7
      %v5579 = vsub.s32 %v5576, %v5578
      %v5580 = vrot.slane %v5572, %v5579
      %v5582 = vunpack.c.l.s4 1966171168
      %v5583 = vunpack.c.0.s8 %v5582
      %v5584 = vlaneseq
      %v5585 = vshrl.u32 %v5584, 7
      %v5586 = vsub.s32 %v5583, %v5585
      %v5587 = vrot.slane %v5573, %v5586
      %v5588 = vcombine.high %v5580, %v5580
      %v5589 = vcombine.low %v5404, %v5446
      %v5591 = vunpack.c.l.s4 1966171168
      %v5592 = vunpack.c.0.s8 %v5591
      %v5593 = vlaneseq
      %v5594 = vshrl.u32 %v5593, 7
      %v5595 = vsub.s32 %v5592, %v5594
      %v5596 = vrot.slane %v5589, %v5595
      %v5598 = vunpack.c.l.s4 1966171168
      %v5599 = vunpack.c.0.s8 %v5598
      %v5600 = vlaneseq
      %v5601 = vshrl.u32 %v5600, 7
      %v5602 = vsub.s32 %v5599, %v5601
      %v5603 = vrot.slane %v5325, %v5602
      %v5604 = vcombine.low %v5596, %v5603
      %v5605 = vcombine.high %v5596, %v5603
      %v5607 = vunpack.c.l.s4 1966171168
      %v5608 = vunpack.c.0.s8 %v5607
      %v5609 = vlaneseq
      %v5610 = vshrl.u32 %v5609, 7
      %v5611 = vsub.s32 %v5608, %v5610
      %v5612 = vrot.slane %v5604, %v5611
      %v5614 = vunpack.c.l.s4 1966171168
      %v5615 = vunpack.c.0.s8 %v5614
      %v5616 = vlaneseq
      %v5617 = vshrl.u32 %v5616, 7
      %v5618 = vsub.s32 %v5615, %v5617
      %v5619 = vrot.slane %v5605, %v5618
      %v5620 = vcombine.high %v5612, %v5612
      %v5621 = vcombine.low %v5406, %v5448
      %v5623 = vunpack.c.l.s4 1966171168
      %v5624 = vunpack.c.0.s8 %v5623
      %v5625 = vlaneseq
      %v5626 = vshrl.u32 %v5625, 7
      %v5627 = vsub.s32 %v5624, %v5626
      %v5628 = vrot.slane %v5621, %v5627
      %v5630 = vunpack.c.l.s4 1966171168
      %v5631 = vunpack.c.0.s8 %v5630
      %v5632 = vlaneseq
      %v5633 = vshrl.u32 %v5632, 7
      %v5634 = vsub.s32 %v5631, %v5633
      %v5635 = vrot.slane %v5370, %v5634
      %v5636 = vcombine.low %v5628, %v5635
      %v5637 = vcombine.high %v5628, %v5635
      %v5639 = vunpack.c.l.s4 1966171168
      %v5640 = vunpack.c.0.s8 %v5639
      %v5641 = vlaneseq
      %v5642 = vshrl.u32 %v5641, 7
      %v5643 = vsub.s32 %v5640, %v5642
      %v5644 = vrot.slane %v5636, %v5643
      %v5646 = vunpack.c.l.s4 1966171168
      %v5647 = vunpack.c.0.s8 %v5646
      %v5648 = vlaneseq
      %v5649 = vshrl.u32 %v5648, 7
      %v5650 = vsub.s32 %v5647, %v5649
      %v5651 = vrot.slane %v5637, %v5650
      %v5652 = vcombine.high %v5644, %v5644
      %v5653 = vld [vmem:[%s3] sm:$0xf]
      %v5654 = vld [vmem:[%s3 + $0x4] sm:$0xf]
      %v5655 = vld [vmem:[%s3 + $0x8] sm:$0xf]
      %v5656 = vld [vmem:[%s3 + $0xc] sm:$0xf]
      %v5657 = vld [vmem:[%s3 + $0x10] sm:$0xf]
      %v5658 = vld [vmem:[%s3 + $0x14] sm:$0xf]
      %v5659 = vld [vmem:[%s3 + $0x18] sm:$0xf]
      %v5660 = vld [vmem:[%s3 + $0x1c] sm:$0xf]
      %v5661 = vld [vmem:[%s3 + $0x20] sm:$0xf]
      %v5662 = vld [vmem:[%s3 + $0x24] sm:$0xf]
      %v5663 = vld [vmem:[%s3 + $0x28] sm:$0xf]
      %v5664 = vld [vmem:[%s3 + $0x2c] sm:$0xf]
      %v5665 = vld [vmem:[%s3 + $0x30] sm:$0xf]
      %v5666 = vld [vmem:[%s3 + $0x34] sm:$0xf]
      %v5667 = vld [vmem:[%s3 + $0x38] sm:$0xf]
      %v5668 = vld [vmem:[%s3 + $0x3c] sm:$0xf]
      %v5669 = vld [vmem:[%s3 + $0x40] sm:$0xf]
      %v5670 = vld [vmem:[%s3 + $0x44] sm:$0xf]
      %v5671 = vld [vmem:[%s3 + $0x48] sm:$0xf]
      %v5672 = vld [vmem:[%s3 + $0x4c] sm:$0xf]
      %v5673 = vld [vmem:[%s3 + $0x50] sm:$0xf]
      %v5674 = vld [vmem:[%s3 + $0x54] sm:$0xf]
      %v5675 = vld [vmem:[%s3 + $0x58] sm:$0xf]
      %v5676 = vld [vmem:[%s3 + $0x5c] sm:$0xf]
      %v5677 = vld [vmem:[%s3 + $0x60] sm:$0xf]
      %v5678 = vld [vmem:[%s3 + $0x64] sm:$0xf]
      %v5679 = vld [vmem:[%s3 + $0x68] sm:$0xf]
      %v5680 = vld [vmem:[%s3 + $0x6c] sm:$0xf]
      %v5681 = vld [vmem:[%s3 + $0x70] sm:$0xf]
      %v5682 = vld [vmem:[%s3 + $0x74] sm:$0xf]
      %v5683 = vld [vmem:[%s3 + $0x78] sm:$0xf]
      %v5684 = vld [vmem:[%s3 + $0x7c] sm:$0xf]
      %v5685 = vld [vmem:[%s3 + $0x80] sm:$0xf]
      %v5686 = vld [vmem:[%s3 + $0x84] sm:$0xf]
      %v5687 = vld [vmem:[%s3 + $0x88] sm:$0xf]
      %v5688 = vld [vmem:[%s3 + $0x8c] sm:$0xf]
      %v5689 = vld [vmem:[%s4] sm:$0x1]
      %v5691 = vlaneseq
      %v5692 = vshrl.u32 %v5691, 7
      %v5693 = vsub.s32 0, %v5692
      %v5694 = vrot.slane %v5689, %v5693
      %v5696 = vcombine.low %v5484, %v5491
      %v5697 = vcombine.low %v5492, %v5516
      %v5698 = vcombine.low %v5523, %v5524
      %v5699 = vcombine.low %v5548, %v5555
      %v5701 = vunpack.c.l.s4 1966171168
      %v5702 = vunpack.c.0.s8 %v5701
      %v5703 = vlaneseq
      %v5704 = vshrl.u32 %v5703, 7
      %v5705 = vsub.s32 %v5702, %v5704
      %v5706 = vrot.slane %v5696, %v5705
      %v5708 = vunpack.c.l.s4 1966171168
      %v5709 = vunpack.c.0.s8 %v5708
      %v5710 = vlaneseq
      %v5711 = vshrl.u32 %v5710, 7
      %v5712 = vsub.s32 %v5709, %v5711
      %v5713 = vrot.slane %v5697, %v5712
      %v5715 = vunpack.c.l.s4 1966171168
      %v5716 = vunpack.c.0.s8 %v5715
      %v5717 = vlaneseq
      %v5718 = vshrl.u32 %v5717, 7
      %v5719 = vsub.s32 %v5716, %v5718
      %v5720 = vrot.slane %v5698, %v5719
      %v5722 = vunpack.c.l.s4 1966171168
      %v5723 = vunpack.c.0.s8 %v5722
      %v5724 = vlaneseq
      %v5725 = vshrl.u32 %v5724, 7
      %v5726 = vsub.s32 %v5723, %v5725
      %v5727 = vrot.slane %v5699, %v5726
      %v5728 = vcombine.low %v5706, %v5713
      %v5729 = vcombine.high %v5706, %v5713
      %v5730 = vcombine.low %v5720, %v5727
      %v5731 = vcombine.high %v5720, %v5727
      %v5733 = vunpack.c.l.s4 1966171168
      %v5734 = vunpack.c.0.s8 %v5733
      %v5735 = vlaneseq
      %v5736 = vshrl.u32 %v5735, 7
      %v5737 = vsub.s32 %v5734, %v5736
      %v5738 = vrot.slane %v5728, %v5737
      %v5740 = vunpack.c.l.s4 1966171168
      %v5741 = vunpack.c.0.s8 %v5740
      %v5742 = vlaneseq
      %v5743 = vshrl.u32 %v5742, 7
      %v5744 = vsub.s32 %v5741, %v5743
      %v5745 = vrot.slane %v5729, %v5744
      %v5747 = vunpack.c.l.s4 1966171168
      %v5748 = vunpack.c.0.s8 %v5747
      %v5749 = vlaneseq
      %v5750 = vshrl.u32 %v5749, 7
      %v5751 = vsub.s32 %v5748, %v5750
      %v5752 = vrot.slane %v5730, %v5751
      %v5754 = vunpack.c.l.s4 1966171168
      %v5755 = vunpack.c.0.s8 %v5754
      %v5756 = vlaneseq
      %v5757 = vshrl.u32 %v5756, 7
      %v5758 = vsub.s32 %v5755, %v5757
      %v5759 = vrot.slane %v5731, %v5758
      %v5760 = vcombine.low %v5738, %v5752
      %v5761 = vcombine.high %v5738, %v5752
      %v5762 = vcombine.low %v5745, %v5759
      %v5763 = vcombine.low %v5556, %v5580
      %v5764 = vcombine.low %v5587, %v5588
      %v5765 = vcombine.low %v5612, %v5619
      %v5766 = vcombine.low %v5620, %v5644
      %v5768 = vunpack.c.l.s4 1966171168
      %v5769 = vunpack.c.0.s8 %v5768
      %v5770 = vlaneseq
      %v5771 = vshrl.u32 %v5770, 7
      %v5772 = vsub.s32 %v5769, %v5771
      %v5773 = vrot.slane %v5763, %v5772
      %v5775 = vunpack.c.l.s4 1966171168
      %v5776 = vunpack.c.0.s8 %v5775
      %v5777 = vlaneseq
      %v5778 = vshrl.u32 %v5777, 7
      %v5779 = vsub.s32 %v5776, %v5778
      %v5780 = vrot.slane %v5764, %v5779
      %v5782 = vunpack.c.l.s4 1966171168
      %v5783 = vunpack.c.0.s8 %v5782
      %v5784 = vlaneseq
      %v5785 = vshrl.u32 %v5784, 7
      %v5786 = vsub.s32 %v5783, %v5785
      %v5787 = vrot.slane %v5765, %v5786
      %v5789 = vunpack.c.l.s4 1966171168
      %v5790 = vunpack.c.0.s8 %v5789
      %v5791 = vlaneseq
      %v5792 = vshrl.u32 %v5791, 7
      %v5793 = vsub.s32 %v5790, %v5792
      %v5794 = vrot.slane %v5766, %v5793
      %v5795 = vcombine.low %v5773, %v5780
      %v5796 = vcombine.high %v5773, %v5780
      %v5797 = vcombine.low %v5787, %v5794
      %v5798 = vcombine.high %v5787, %v5794
      %v5800 = vunpack.c.l.s4 1966171168
      %v5801 = vunpack.c.0.s8 %v5800
      %v5802 = vlaneseq
      %v5803 = vshrl.u32 %v5802, 7
      %v5804 = vsub.s32 %v5801, %v5803
      %v5805 = vrot.slane %v5795, %v5804
      %v5807 = vunpack.c.l.s4 1966171168
      %v5808 = vunpack.c.0.s8 %v5807
      %v5809 = vlaneseq
      %v5810 = vshrl.u32 %v5809, 7
      %v5811 = vsub.s32 %v5808, %v5810
      %v5812 = vrot.slane %v5796, %v5811
      %v5814 = vunpack.c.l.s4 1966171168
      %v5815 = vunpack.c.0.s8 %v5814
      %v5816 = vlaneseq
      %v5817 = vshrl.u32 %v5816, 7
      %v5818 = vsub.s32 %v5815, %v5817
      %v5819 = vrot.slane %v5797, %v5818
      %v5821 = vunpack.c.l.s4 1966171168
      %v5822 = vunpack.c.0.s8 %v5821
      %v5823 = vlaneseq
      %v5824 = vshrl.u32 %v5823, 7
      %v5825 = vsub.s32 %v5822, %v5824
      %v5826 = vrot.slane %v5798, %v5825
      %v5827 = vcombine.low %v5805, %v5819
      %v5828 = vcombine.high %v5805, %v5819
      %v5829 = vcombine.low %v5812, %v5826
      %v5830 = vcombine.low %v5651, %v5652
      %v5832 = vunpack.c.l.s4 1966171168
      %v5833 = vunpack.c.0.s8 %v5832
      %v5834 = vlaneseq
      %v5835 = vshrl.u32 %v5834, 7
      %v5836 = vsub.s32 %v5833, %v5835
      %v5837 = vrot.slane %v5830, %v5836
      %v5838 = vcombine.high %v5837, %v5837
      %v5840 = vunpack.c.l.s4 1966171168
      %v5841 = vunpack.c.0.s8 %v5840
      %v5842 = vlaneseq
      %v5843 = vshrl.u32 %v5842, 7
      %v5844 = vsub.s32 %v5841, %v5843
      %v5845 = vrot.slane %v5837, %v5844
      %v5847 = vunpack.c.l.s4 1966171168
      %v5848 = vunpack.c.0.s8 %v5847
      %v5849 = vlaneseq
      %v5850 = vshrl.u32 %v5849, 7
      %v5851 = vsub.s32 %v5848, %v5850
      %v5852 = vrot.slane %v5838, %v5851
      %v5853 = vcombine.high %v5845, %v5845
      %v5896 = vunpack.c.l.b16 %v5653
      %v5897 = vunpack.c.l.b16 %v5654
      %v5898 = vunpack.c.l.b16 %v5655
      %v5899 = vunpack.c.l.b16 %v5656
      %v5900 = vunpack.c.l.b16 %v5657
      %v5901 = vunpack.c.l.b16 %v5658
      %v5902 = vunpack.c.l.b16 %v5659
      %v5903 = vunpack.c.l.b16 %v5660
      %v5904 = vunpack.c.l.b16 %v5661
      %v5905 = vunpack.c.l.b16 %v5662
      %v5906 = vunpack.c.l.b16 %v5663
      %v5907 = vunpack.c.l.b16 %v5664
      %v5908 = vunpack.c.l.b16 %v5665
      %v5909 = vunpack.c.l.b16 %v5666
      %v5910 = vunpack.c.l.b16 %v5667
      %v5911 = vunpack.c.l.b16 %v5668
      %v5912 = vunpack.c.l.b16 %v5669
      %v5913 = vunpack.c.l.b16 %v5670
      %v5914 = vunpack.c.l.b16 %v5671
      %v5915 = vunpack.c.l.b16 %v5672
      %v5916 = vunpack.c.l.b16 %v5673
      %v5917 = vunpack.c.l.b16 %v5674
      %v5918 = vunpack.c.l.b16 %v5675
      %v5919 = vunpack.c.l.b16 %v5676
      %v5920 = vunpack.c.l.b16 %v5677
      %v5921 = vunpack.c.l.b16 %v5678
      %v5922 = vunpack.c.l.b16 %v5679
      %v5923 = vunpack.c.l.b16 %v5680
      %v5924 = vunpack.c.l.b16 %v5681
      %v5925 = vunpack.c.l.b16 %v5682
      %v5926 = vunpack.c.l.b16 %v5683
      %v5927 = vunpack.c.l.b16 %v5684
      %v5928 = vunpack.c.l.b16 %v5685
      %v5929 = vunpack.c.l.b16 %v5686
      %v5930 = vunpack.c.l.b16 %v5687
      %v5931 = vunpack.c.l.b16 %v5688
      %v5932 = vpack.c.b16 %v5897, %v5896
      %v5933 = vpack.c.b16 %v5899, %v5898
      %v5934 = vpack.c.b16 %v5901, %v5900
      %v5935 = vpack.c.b16 %v5903, %v5902
      %v5936 = vpack.c.b16 %v5905, %v5904
      %v5937 = vpack.c.b16 %v5907, %v5906
      %v5938 = vpack.c.b16 %v5909, %v5908
      %v5939 = vpack.c.b16 %v5911, %v5910
      %v5940 = vpack.c.b16 %v5913, %v5912
      %v5941 = vpack.c.b16 %v5915, %v5914
      %v5942 = vpack.c.b16 %v5917, %v5916
      %v5943 = vpack.c.b16 %v5919, %v5918
      %v5944 = vpack.c.b16 %v5921, %v5920
      %v5945 = vpack.c.b16 %v5923, %v5922
      %v5946 = vpack.c.b16 %v5925, %v5924
      %v5947 = vpack.c.b16 %v5927, %v5926
      %v5948 = vpack.c.b16 %v5929, %v5928
      %v5949 = vpack.c.b16 %v5931, %v5930
      %v5969 = vsel %vm4437, %v5761, 0
      %v5972 = vsel %vm4437, %v5828, 0
      %v5975 = vsel %vm4437, %v5853, 0
      %5977 = vmatprep.subr.bf16.mxu0 0
      %5978 = vmatpush1.bf16.msra.mxu0 %v5932
      %5979 = vmatprep.subr.bf16.mxu0 0
      %5980 = vmatpush1.bf16.msra.mxu0 %v5933
      %5981 = vmatprep.subr.bf16.mxu0 0
      %5982 = vmatpush1.bf16.msra.mxu0 %v5934
      %5983 = vmatprep.subr.bf16.mxu0 0
      %5984 = vmatpush1.bf16.msra.mxu0 %v5935
      %5985 = vmatprep.subr.bf16.mxu0 0
      %5986 = vmatpush1.bf16.msra.mxu0 %v5936
      %5987 = vmatprep.subr.bf16.mxu0 0
      %5988 = vmatpush1.bf16.msra.mxu0 %v5937
      %5989 = vmatprep.subr.bf16.mxu0 0
      %5990 = vmatpush1.bf16.msra.mxu0 %v5938
      %5991 = vmatprep.subr.bf16.mxu0 0
      %5992 = vmatpush1.bf16.msra.mxu0 %v5939
      %5993 = vmatprep.subr.bf16.mxu0 0
      %5994 = vmatpush1.bf16.msra.mxu0 %v5940
      %5995 = vmatprep.subr.bf16.mxu0 0
      %5996 = vmatpush1.bf16.msra.mxu0 %v5941
      %5997 = vmatprep.subr.bf16.mxu0 0
      %5998 = vmatpush1.bf16.msra.mxu0 %v5942
      %5999 = vmatprep.subr.bf16.mxu0 0
      %6000 = vmatpush1.bf16.msra.mxu0 %v5943
      %6001 = vmatprep.subr.bf16.mxu0 0
      %6002 = vmatpush1.bf16.msra.mxu0 %v5944
      %6003 = vmatprep.subr.bf16.mxu0 0
      %6004 = vmatpush1.bf16.msra.mxu0 %v5945
      %6005 = vmatprep.subr.bf16.mxu0 0
      %6006 = vmatpush1.bf16.msra.mxu0 %v5946
      %6007 = vmatprep.subr.bf16.mxu0 0
      %6008 = vmatpush1.bf16.msra.mxu0 %v5947
      %6009 = vmatprep.mubr.bf16.mxu0 %v5762
      %6010 = vmatmul.mubr.bf16.gmra.mrb[0].mxu0 %v5760
      %v6011 = vpop.f32.mrb[0].mxu0
      %v6012 = vadd.f32 %v5694, %v6011
      %v6013 = vpop.f32.mrb[0].mxu0
      %v6014 = vpop.f32.mrb[0].mxu0
      %v6015 = vadd.f32 %v5694, %v6014
      %v6016 = vpop.f32.mrb[0].mxu0
      %6017 = vmatprep.mubr.bf16.mxu0 %v5829
      %6018 = vmatmul.mubr.bf16.gmra.mrb[0].mxu0 %v5827
      %v6019 = vpop.f32.mrb[0].mxu0
      %v6020 = vadd.f32 %v5694, %v6019
      %v6021 = vpop.f32.mrb[0].mxu0
      %v6022 = vpop.f32.mrb[0].mxu0
      %v6023 = vadd.f32 %v5694, %v6022
      %v6024 = vpop.f32.mrb[0].mxu0
      %6025 = vmatprep.mubr.bf16.mxu0 %v5852
      %6026 = vmatmul.mubr.bf16.gmra.mrb[0].mxu0 %v5845
      %v6027 = vpop.f32.mrb[0].mxu0
      %v6028 = vadd.f32 %v5694, %v6027
      %v6029 = vpop.f32.mrb[0].mxu0
      %v6030 = vpop.f32.mrb[0].mxu0
      %v6031 = vpop.f32.mrb[0].mxu0
      %6032 = vdwg.mxu0
      %6033 = vmatprep.subr.bf16.mxu0 0
      %6034 = vmatpush1.bf16.msra.mxu0 %v5948
      %6035 = vmatprep.subr.bf16.mxu0 0
      %6036 = vmatpush1.bf16.msra.mxu0 %v5949
      %6037 = vmatprep.subr.bf16.mxu0 0
      %6038 = vmatpush1.bf16.msra.mxu0 0
      %6039 = vmatprep.subr.bf16.mxu0 0
      %6040 = vmatpush1.bf16.msra.mxu0 0
      %6041 = vmatprep.subr.bf16.mxu0 0
      %6042 = vmatpush1.bf16.msra.mxu0 0
      %6043 = vmatprep.subr.bf16.mxu0 0
      %6044 = vmatpush1.bf16.msra.mxu0 0
      %6045 = vmatprep.subr.bf16.mxu0 0
      %6046 = vmatpush1.bf16.msra.mxu0 0
      %6047 = vmatprep.subr.bf16.mxu0 0
      %6048 = vmatpush1.bf16.msra.mxu0 0
      %6049 = vmatprep.subr.bf16.mxu0 0
      %6050 = vmatpush1.bf16.msra.mxu0 0
      %6051 = vmatprep.subr.bf16.mxu0 0
      %6052 = vmatpush1.bf16.msra.mxu0 0
      %6053 = vmatprep.subr.bf16.mxu0 0
      %6054 = vmatpush1.bf16.msra.mxu0 0
      %6055 = vmatprep.subr.bf16.mxu0 0
      %6056 = vmatpush1.bf16.msra.mxu0 0
      %6057 = vmatprep.subr.bf16.mxu0 0
      %6058 = vmatpush1.bf16.msra.mxu0 0
      %6059 = vmatprep.subr.bf16.mxu0 0
      %6060 = vmatpush1.bf16.msra.mxu0 0
      %6061 = vmatprep.subr.bf16.mxu0 0
      %6062 = vmatpush1.bf16.msra.mxu0 0
      %6063 = vmatprep.subr.bf16.mxu0 0
      %6064 = vmatpush1.bf16.msra.mxu0 0
      %6065 = vmatprep.mubr.bf16.mxu0 0
      %6066 = vmatmul.mubr.bf16.gmra.mrb[0].mxu0 %v5969
      %v6067 = vpop.f32.mrb[0].mxu0
      %v6068 = vadd.f32 %v6012, %v6067
      %v6069 = vpop.f32.mrb[0].mxu0
      %v6070 = vpop.f32.mrb[0].mxu0
      %v6071 = vadd.f32 %v6015, %v6070
      %v6072 = vpop.f32.mrb[0].mxu0
      %6073 = vmatprep.mubr.bf16.mxu0 0
      %6074 = vmatmul.mubr.bf16.gmra.mrb[0].mxu0 %v5972
      %v6075 = vpop.f32.mrb[0].mxu0
      %v6076 = vadd.f32 %v6020, %v6075
      %v6077 = vpop.f32.mrb[0].mxu0
      %v6078 = vpop.f32.mrb[0].mxu0
      %v6079 = vadd.f32 %v6023, %v6078
      %v6080 = vpop.f32.mrb[0].mxu0
      %6081 = vmatprep.mubr.bf16.mxu0 0
      %6082 = vmatmul.mubr.bf16.gmra.mrb[0].mxu0 %v5975
      %v6083 = vpop.f32.mrb[0].mxu0
      %v6084 = vadd.f32 %v6028, %v6083
      %v6085 = vpop.f32.mrb[0].mxu0
      %v6086 = vpop.f32.mrb[0].mxu0
      %v6087 = vpop.f32.mrb[0].mxu0
      %6088 = vdwg.mxu0
      %v6089 = vmax.f32 %v6068, 0.0
      %v6090 = vmax.f32 %v6071, 0.0
      %v6091 = vmax.f32 %v6076, 0.0
      %v6092 = vmax.f32 %v6079, 0.0
      %v6093 = vmax.f32 %v6084, 0.0
      %v6094 = vlaneseq
      %v6095 = vshrl.u32 %v6094, 7
      %v6096 = vsub.s32 0, %v6095
      %v6097 = vrot.slane %v6089, %v6096
      %v6098 = vmul.f32 %v5201, %v6097
      %v6099 = vmul.f32 %v5202, %v6097
      %v6100 = vmul.f32 %v5203, %v6097
      %v6101 = vmul.f32 %v5204, %v6097
      %v6102 = vmul.f32 %v5205, %v6097
      %v6103 = vmul.f32 %v5206, %v6097
      %v6104 = vmul.f32 %v5207, %v6097
      %v6105 = vmul.f32 %v5208, %v6097
      %v6106 = vmul.f32 %v5209, %v6097
      %v6107 = vmul.f32 %v5210, %v6097
      %v6108 = vmul.f32 %v5211, %v6097
      %v6109 = vmul.f32 %v5212, %v6097
      %v6110 = vmul.f32 %v5213, %v6097
      %v6111 = vmul.f32 %v5214, %v6097
      %v6112 = vmul.f32 %v5215, %v6097
      %v6113 = vmul.f32 %v5216, %v6097
      %v6114 = vmul.f32 %v5217, %v6097
      %v6115 = vmul.f32 %v5218, %v6097
      %v6116 = vmul.f32 %v5219, %v6097
      %v6117 = vmul.f32 %v5220, %v6097
      %v6118 = vmul.f32 %v5221, %v6097
      %v6119 = vmul.f32 %v5222, %v6097
      %v6120 = vadd.f32 %v6098, 0.0
      %v6121 = vadd.f32 %v6099, 0.0
      %v6122 = vadd.f32 %v6100, 0.0
      %v6123 = vadd.f32 %v6101, 0.0
      %v6124 = vadd.f32 %v6102, 0.0
      %v6125 = vadd.f32 %v6103, 0.0
      %v6126 = vadd.f32 %v6104, 0.0
      %v6127 = vadd.f32 %v6105, 0.0
      %v6128 = vadd.f32 %v6106, 0.0
      %v6129 = vadd.f32 %v6107, 0.0
      %v6130 = vadd.f32 %v6108, 0.0
      %v6131 = vadd.f32 %v6109, 0.0
      %v6132 = vadd.f32 %v6110, 0.0
      %v6133 = vadd.f32 %v6111, 0.0
      %v6134 = vadd.f32 %v6112, 0.0
      %v6135 = vadd.f32 %v6113, 0.0
      %v6136 = vadd.f32 %v6114, 0.0
      %v6137 = vadd.f32 %v6115, 0.0
      %v6138 = vadd.f32 %v6116, 0.0
      %v6139 = vadd.f32 %v6117, 0.0
      %v6140 = vadd.f32 %v6118, 0.0
      %v6141 = vadd.f32 %v6119, 0.0
      %v6142 = vlaneseq
      %v6143 = vshrl.u32 %v6142, 7
      %v6144 = vsub.s32 6, %v6143
      %v6145 = vrot.slane %v6089, %v6144
      %v6146 = vmul.f32 %v5203, %v6145
      %v6147 = vmul.f32 %v5204, %v6145
      %v6148 = vmul.f32 %v5205, %v6145
      %v6149 = vmul.f32 %v5206, %v6145
      %v6150 = vmul.f32 %v5207, %v6145
      %v6151 = vmul.f32 %v5208, %v6145
      %v6152 = vmul.f32 %v5209, %v6145
      %v6153 = vmul.f32 %v5210, %v6145
      %v6154 = vmul.f32 %v5211, %v6145
      %v6155 = vmul.f32 %v5212, %v6145
      %v6156 = vmul.f32 %v5213, %v6145
      %v6157 = vmul.f32 %v5214, %v6145
      %v6158 = vmul.f32 %v5215, %v6145
      %v6159 = vmul.f32 %v5216, %v6145
      %v6160 = vmul.f32 %v5217, %v6145
      %v6161 = vmul.f32 %v5218, %v6145
      %v6162 = vmul.f32 %v5219, %v6145
      %v6163 = vmul.f32 %v5220, %v6145
      %v6164 = vmul.f32 %v5221, %v6145
      %v6165 = vmul.f32 %v5222, %v6145
      %v6166 = vmul.f32 %v5223, %v6145
      %v6167 = vmul.f32 %v5224, %v6145
      %v6168 = vadd.f32 %v6120, %v6146
      %v6169 = vadd.f32 %v6121, %v6147
      %v6170 = vadd.f32 %v6122, %v6148
      %v6171 = vadd.f32 %v6123, %v6149
      %v6172 = vadd.f32 %v6124, %v6150
      %v6173 = vadd.f32 %v6125, %v6151
      %v6174 = vadd.f32 %v6126, %v6152
      %v6175 = vadd.f32 %v6127, %v6153
      %v6176 = vadd.f32 %v6128, %v6154
      %v6177 = vadd.f32 %v6129, %v6155
      %v6178 = vadd.f32 %v6130, %v6156
      %v6179 = vadd.f32 %v6131, %v6157
      %v6180 = vadd.f32 %v6132, %v6158
      %v6181 = vadd.f32 %v6133, %v6159
      %v6182 = vadd.f32 %v6134, %v6160
      %v6183 = vadd.f32 %v6135, %v6161
      %v6184 = vadd.f32 %v6136, %v6162
      %v6185 = vadd.f32 %v6137, %v6163
      %v6186 = vadd.f32 %v6138, %v6164
      %v6187 = vadd.f32 %v6139, %v6165
      %v6188 = vadd.f32 %v6140, %v6166
      %v6189 = vadd.f32 %v6141, %v6167
      %v6190 = vlaneseq
      %v6191 = vshrl.u32 %v6190, 7
      %v6192 = vsub.s32 4, %v6191
      %v6193 = vrot.slane %v6090, %v6192
      %v6194 = vmul.f32 %v5205, %v6193
      %v6195 = vmul.f32 %v5206, %v6193
      %v6196 = vmul.f32 %v5207, %v6193
      %v6197 = vmul.f32 %v5208, %v6193
      %v6198 = vmul.f32 %v5209, %v6193
      %v6199 = vmul.f32 %v5210, %v6193
      %v6200 = vmul.f32 %v5211, %v6193
      %v6201 = vmul.f32 %v5212, %v6193
      %v6202 = vmul.f32 %v5213, %v6193
      %v6203 = vmul.f32 %v5214, %v6193
      %v6204 = vmul.f32 %v5215, %v6193
      %v6205 = vmul.f32 %v5216, %v6193
      %v6206 = vmul.f32 %v5217, %v6193
      %v6207 = vmul.f32 %v5218, %v6193
      %v6208 = vmul.f32 %v5219, %v6193
      %v6209 = vmul.f32 %v5220, %v6193
      %v6210 = vmul.f32 %v5221, %v6193
      %v6211 = vmul.f32 %v5222, %v6193
      %v6212 = vmul.f32 %v5223, %v6193
      %v6213 = vmul.f32 %v5224, %v6193
      %v6214 = vmul.f32 %v5225, %v6193
      %v6215 = vmul.f32 %v5226, %v6193
      %v6216 = vadd.f32 %v6168, %v6194
      %v6217 = vadd.f32 %v6169, %v6195
      %v6218 = vadd.f32 %v6170, %v6196
      %v6219 = vadd.f32 %v6171, %v6197
      %v6220 = vadd.f32 %v6172, %v6198
      %v6221 = vadd.f32 %v6173, %v6199
      %v6222 = vadd.f32 %v6174, %v6200
      %v6223 = vadd.f32 %v6175, %v6201
      %v6224 = vadd.f32 %v6176, %v6202
      %v6225 = vadd.f32 %v6177, %v6203
      %v6226 = vadd.f32 %v6178, %v6204
      %v6227 = vadd.f32 %v6179, %v6205
      %v6228 = vadd.f32 %v6180, %v6206
      %v6229 = vadd.f32 %v6181, %v6207
      %v6230 = vadd.f32 %v6182, %v6208
      %v6231 = vadd.f32 %v6183, %v6209
      %v6232 = vadd.f32 %v6184, %v6210
      %v6233 = vadd.f32 %v6185, %v6211
      %v6234 = vadd.f32 %v6186, %v6212
      %v6235 = vadd.f32 %v6187, %v6213
      %v6236 = vadd.f32 %v6188, %v6214
      %v6237 = vadd.f32 %v6189, %v6215
      %v6238 = vlaneseq
      %v6239 = vshrl.u32 %v6238, 7
      %v6240 = vsub.s32 2, %v6239
      %v6241 = vrot.slane %v6091, %v6240
      %v6242 = vmul.f32 %v5207, %v6241
      %v6243 = vmul.f32 %v5208, %v6241
      %v6244 = vmul.f32 %v5209, %v6241
      %v6245 = vmul.f32 %v5210, %v6241
      %v6246 = vmul.f32 %v5211, %v6241
      %v6247 = vmul.f32 %v5212, %v6241
      %v6248 = vmul.f32 %v5213, %v6241
      %v6249 = vmul.f32 %v5214, %v6241
      %v6250 = vmul.f32 %v5215, %v6241
      %v6251 = vmul.f32 %v5216, %v6241
      %v6252 = vmul.f32 %v5217, %v6241
      %v6253 = vmul.f32 %v5218, %v6241
      %v6254 = vmul.f32 %v5219, %v6241
      %v6255 = vmul.f32 %v5220, %v6241
      %v6256 = vmul.f32 %v5221, %v6241
      %v6257 = vmul.f32 %v5222, %v6241
      %v6258 = vmul.f32 %v5223, %v6241
      %v6259 = vmul.f32 %v5224, %v6241
      %v6260 = vmul.f32 %v5225, %v6241
      %v6261 = vmul.f32 %v5226, %v6241
      %v6262 = vmul.f32 %v5227, %v6241
      %v6263 = vmul.f32 %v5228, %v6241
      %v6264 = vadd.f32 %v6216, %v6242
      %v6265 = vadd.f32 %v6217, %v6243
      %v6266 = vadd.f32 %v6218, %v6244
      %v6267 = vadd.f32 %v6219, %v6245
      %v6268 = vadd.f32 %v6220, %v6246
      %v6269 = vadd.f32 %v6221, %v6247
      %v6270 = vadd.f32 %v6222, %v6248
      %v6271 = vadd.f32 %v6223, %v6249
      %v6272 = vadd.f32 %v6224, %v6250
      %v6273 = vadd.f32 %v6225, %v6251
      %v6274 = vadd.f32 %v6226, %v6252
      %v6275 = vadd.f32 %v6227, %v6253
      %v6276 = vadd.f32 %v6228, %v6254
      %v6277 = vadd.f32 %v6229, %v6255
      %v6278 = vadd.f32 %v6230, %v6256
      %v6279 = vadd.f32 %v6231, %v6257
      %v6280 = vadd.f32 %v6232, %v6258
      %v6281 = vadd.f32 %v6233, %v6259
      %v6282 = vadd.f32 %v6234, %v6260
      %v6283 = vadd.f32 %v6235, %v6261
      %v6284 = vadd.f32 %v6236, %v6262
      %v6285 = vadd.f32 %v6237, %v6263
      %v6286 = vlaneseq
      %v6287 = vshrl.u32 %v6286, 7
      %v6288 = vsub.s32 0, %v6287
      %v6289 = vrot.slane %v6092, %v6288
      %v6290 = vmul.f32 %v5209, %v6289
      %v6291 = vmul.f32 %v5210, %v6289
      %v6292 = vmul.f32 %v5211, %v6289
      %v6293 = vmul.f32 %v5212, %v6289
      %v6294 = vmul.f32 %v5213, %v6289
      %v6295 = vmul.f32 %v5214, %v6289
      %v6296 = vmul.f32 %v5215, %v6289
      %v6297 = vmul.f32 %v5216, %v6289
      %v6298 = vmul.f32 %v5217, %v6289
      %v6299 = vmul.f32 %v5218, %v6289
      %v6300 = vmul.f32 %v5219, %v6289
      %v6301 = vmul.f32 %v5220, %v6289
      %v6302 = vmul.f32 %v5221, %v6289
      %v6303 = vmul.f32 %v5222, %v6289
      %v6304 = vmul.f32 %v5223, %v6289
      %v6305 = vmul.f32 %v5224, %v6289
      %v6306 = vmul.f32 %v5225, %v6289
      %v6307 = vmul.f32 %v5226, %v6289
      %v6308 = vmul.f32 %v5227, %v6289
      %v6309 = vmul.f32 %v5228, %v6289
      %v6310 = vmul.f32 %v5229, %v6289
      %v6311 = vmul.f32 %v5230, %v6289
      %v6312 = vadd.f32 %v6264, %v6290
      %v6313 = vadd.f32 %v6265, %v6291
      %v6314 = vadd.f32 %v6266, %v6292
      %v6315 = vadd.f32 %v6267, %v6293
      %v6316 = vadd.f32 %v6268, %v6294
      %v6317 = vadd.f32 %v6269, %v6295
      %v6318 = vadd.f32 %v6270, %v6296
      %v6319 = vadd.f32 %v6271, %v6297
      %v6320 = vadd.f32 %v6272, %v6298
      %v6321 = vadd.f32 %v6273, %v6299
      %v6322 = vadd.f32 %v6274, %v6300
      %v6323 = vadd.f32 %v6275, %v6301
      %v6324 = vadd.f32 %v6276, %v6302
      %v6325 = vadd.f32 %v6277, %v6303
      %v6326 = vadd.f32 %v6278, %v6304
      %v6327 = vadd.f32 %v6279, %v6305
      %v6328 = vadd.f32 %v6280, %v6306
      %v6329 = vadd.f32 %v6281, %v6307
      %v6330 = vadd.f32 %v6282, %v6308
      %v6331 = vadd.f32 %v6283, %v6309
      %v6332 = vadd.f32 %v6284, %v6310
      %v6333 = vadd.f32 %v6285, %v6311
      %v6334 = vlaneseq
      %v6335 = vshrl.u32 %v6334, 7
      %v6336 = vsub.s32 6, %v6335
      %v6337 = vrot.slane %v6092, %v6336
      %v6338 = vmul.f32 %v5211, %v6337
      %v6339 = vmul.f32 %v5212, %v6337
      %v6340 = vmul.f32 %v5213, %v6337
      %v6341 = vmul.f32 %v5214, %v6337
      %v6342 = vmul.f32 %v5215, %v6337
      %v6343 = vmul.f32 %v5216, %v6337
      %v6344 = vmul.f32 %v5217, %v6337
      %v6345 = vmul.f32 %v5218, %v6337
      %v6346 = vmul.f32 %v5219, %v6337
      %v6347 = vmul.f32 %v5220, %v6337
      %v6348 = vmul.f32 %v5221, %v6337
      %v6349 = vmul.f32 %v5222, %v6337
      %v6350 = vmul.f32 %v5223, %v6337
      %v6351 = vmul.f32 %v5224, %v6337
      %v6352 = vmul.f32 %v5225, %v6337
      %v6353 = vmul.f32 %v5226, %v6337
      %v6354 = vmul.f32 %v5227, %v6337
      %v6355 = vmul.f32 %v5228, %v6337
      %v6356 = vmul.f32 %v5229, %v6337
      %v6357 = vmul.f32 %v5230, %v6337
      %v6358 = vmul.f32 %v5231, %v6337
      %v6359 = vmul.f32 %v5232, %v6337
      %v6360 = vadd.f32 %v6312, %v6338
      %v6361 = vadd.f32 %v6313, %v6339
      %v6362 = vadd.f32 %v6314, %v6340
      %v6363 = vadd.f32 %v6315, %v6341
      %v6364 = vadd.f32 %v6316, %v6342
      %v6365 = vadd.f32 %v6317, %v6343
      %v6366 = vadd.f32 %v6318, %v6344
      %v6367 = vadd.f32 %v6319, %v6345
      %v6368 = vadd.f32 %v6320, %v6346
      %v6369 = vadd.f32 %v6321, %v6347
      %v6370 = vadd.f32 %v6322, %v6348
      %v6371 = vadd.f32 %v6323, %v6349
      %v6372 = vadd.f32 %v6324, %v6350
      %v6373 = vadd.f32 %v6325, %v6351
      %v6374 = vadd.f32 %v6326, %v6352
      %v6375 = vadd.f32 %v6327, %v6353
      %v6376 = vadd.f32 %v6328, %v6354
      %v6377 = vadd.f32 %v6329, %v6355
      %v6378 = vadd.f32 %v6330, %v6356
      %v6379 = vadd.f32 %v6331, %v6357
      %v6380 = vadd.f32 %v6332, %v6358
      %v6381 = vadd.f32 %v6333, %v6359
      %v6382 = vlaneseq
      %v6383 = vshrl.u32 %v6382, 7
      %v6384 = vsub.s32 1, %v6383
      %v6385 = vrot.slane %v6089, %v6384
      %v6386 = vmul.f32 %v5201, %v6385
      %v6387 = vmul.f32 %v5202, %v6385
      %v6388 = vmul.f32 %v5203, %v6385
      %v6389 = vmul.f32 %v5204, %v6385
      %v6390 = vmul.f32 %v5205, %v6385
      %v6391 = vmul.f32 %v5206, %v6385
      %v6392 = vmul.f32 %v5207, %v6385
      %v6393 = vmul.f32 %v5208, %v6385
      %v6394 = vmul.f32 %v5209, %v6385
      %v6395 = vmul.f32 %v5210, %v6385
      %v6396 = vmul.f32 %v5211, %v6385
      %v6397 = vmul.f32 %v5212, %v6385
      %v6398 = vmul.f32 %v5213, %v6385
      %v6399 = vmul.f32 %v5214, %v6385
      %v6400 = vmul.f32 %v5215, %v6385
      %v6401 = vmul.f32 %v5216, %v6385
      %v6402 = vmul.f32 %v5217, %v6385
      %v6403 = vmul.f32 %v5218, %v6385
      %v6404 = vmul.f32 %v5219, %v6385
      %v6405 = vmul.f32 %v5220, %v6385
      %v6406 = vmul.f32 %v5221, %v6385
      %v6407 = vmul.f32 %v5222, %v6385
      %vm6430 = vcmask 1046528
      %v6431 = vrot.slane %v6386, 1
      %v6432 = vrot.slane %v6387, 1
      %v6433 = vsel %vm6430, %v6431, %v6432
      %v6434 = vrot.slane %v6388, 1
      %v6435 = vrot.slane %v6389, 1
      %v6436 = vsel %vm6430, %v6434, %v6435
      %v6437 = vrot.slane %v6390, 1
      %v6438 = vrot.slane %v6391, 1
      %v6439 = vsel %vm6430, %v6437, %v6438
      %v6440 = vrot.slane %v6392, 1
      %v6441 = vrot.slane %v6393, 1
      %v6442 = vsel %vm6430, %v6440, %v6441
      %v6443 = vrot.slane %v6394, 1
      %v6444 = vrot.slane %v6395, 1
      %v6445 = vsel %vm6430, %v6443, %v6444
      %v6446 = vrot.slane %v6396, 1
      %v6447 = vrot.slane %v6397, 1
      %v6448 = vsel %vm6430, %v6446, %v6447
      %v6449 = vrot.slane %v6398, 1
      %v6450 = vrot.slane %v6399, 1
      %v6451 = vsel %vm6430, %v6449, %v6450
      %v6452 = vrot.slane %v6400, 1
      %v6453 = vrot.slane %v6401, 1
      %v6454 = vsel %vm6430, %v6452, %v6453
      %v6455 = vrot.slane %v6402, 1
      %v6456 = vrot.slane %v6403, 1
      %v6457 = vsel %vm6430, %v6455, %v6456
      %v6458 = vrot.slane %v6404, 1
      %v6459 = vrot.slane %v6405, 1
      %v6460 = vsel %vm6430, %v6458, %v6459
      %v6461 = vrot.slane %v6406, 1
      %v6462 = vrot.slane %v6407, 1
      %v6463 = vsel %vm6430, %v6461, %v6462
      %v6486 = vadd.f32 %v6360, %v6433
      %v6487 = vadd.f32 %v6361, %v6432
      %v6488 = vadd.f32 %v6362, %v6436
      %v6489 = vadd.f32 %v6363, %v6435
      %v6490 = vadd.f32 %v6364, %v6439
      %v6491 = vadd.f32 %v6365, %v6438
      %v6492 = vadd.f32 %v6366, %v6442
      %v6493 = vadd.f32 %v6367, %v6441
      %v6494 = vadd.f32 %v6368, %v6445
      %v6495 = vadd.f32 %v6369, %v6444
      %v6496 = vadd.f32 %v6370, %v6448
      %v6497 = vadd.f32 %v6371, %v6447
      %v6498 = vadd.f32 %v6372, %v6451
      %v6499 = vadd.f32 %v6373, %v6450
      %v6500 = vadd.f32 %v6374, %v6454
      %v6501 = vadd.f32 %v6375, %v6453
      %v6502 = vadd.f32 %v6376, %v6457
      %v6503 = vadd.f32 %v6377, %v6456
      %v6504 = vadd.f32 %v6378, %v6460
      %v6505 = vadd.f32 %v6379, %v6459
      %v6506 = vadd.f32 %v6380, %v6463
      %v6507 = vadd.f32 %v6381, %v6462
      %v6508 = vlaneseq
      %v6509 = vshrl.u32 %v6508, 7
      %v6510 = vsub.s32 7, %v6509
      %v6511 = vrot.slane %v6089, %v6510
      %v6512 = vmul.f32 %v5203, %v6511
      %v6513 = vmul.f32 %v5204, %v6511
      %v6514 = vmul.f32 %v5205, %v6511
      %v6515 = vmul.f32 %v5206, %v6511
      %v6516 = vmul.f32 %v5207, %v6511
      %v6517 = vmul.f32 %v5208, %v6511
      %v6518 = vmul.f32 %v5209, %v6511
      %v6519 = vmul.f32 %v5210, %v6511
      %v6520 = vmul.f32 %v5211, %v6511
      %v6521 = vmul.f32 %v5212, %v6511
      %v6522 = vmul.f32 %v5213, %v6511
      %v6523 = vmul.f32 %v5214, %v6511
      %v6524 = vmul.f32 %v5215, %v6511
      %v6525 = vmul.f32 %v5216, %v6511
      %v6526 = vmul.f32 %v5217, %v6511
      %v6527 = vmul.f32 %v5218, %v6511
      %v6528 = vmul.f32 %v5219, %v6511
      %v6529 = vmul.f32 %v5220, %v6511
      %v6530 = vmul.f32 %v5221, %v6511
      %v6531 = vmul.f32 %v5222, %v6511
      %v6532 = vmul.f32 %v5223, %v6511
      %v6533 = vmul.f32 %v5224, %v6511
      %v6556 = vrot.slane %v6512, 1
      %v6557 = vrot.slane %v6513, 1
      %v6558 = vsel %vm6430, %v6556, %v6557
      %v6559 = vrot.slane %v6514, 1
      %v6560 = vrot.slane %v6515, 1
      %v6561 = vsel %vm6430, %v6559, %v6560
      %v6562 = vrot.slane %v6516, 1
      %v6563 = vrot.slane %v6517, 1
      %v6564 = vsel %vm6430, %v6562, %v6563
      %v6565 = vrot.slane %v6518, 1
      %v6566 = vrot.slane %v6519, 1
      %v6567 = vsel %vm6430, %v6565, %v6566
      %v6568 = vrot.slane %v6520, 1
      %v6569 = vrot.slane %v6521, 1
      %v6570 = vsel %vm6430, %v6568, %v6569
      %v6571 = vrot.slane %v6522, 1
      %v6572 = vrot.slane %v6523, 1
      %v6573 = vsel %vm6430, %v6571, %v6572
      %v6574 = vrot.slane %v6524, 1
      %v6575 = vrot.slane %v6525, 1
      %v6576 = vsel %vm6430, %v6574, %v6575
      %v6577 = vrot.slane %v6526, 1
      %v6578 = vrot.slane %v6527, 1
      %v6579 = vsel %vm6430, %v6577, %v6578
      %v6580 = vrot.slane %v6528, 1
      %v6581 = vrot.slane %v6529, 1
      %v6582 = vsel %vm6430, %v6580, %v6581
      %v6583 = vrot.slane %v6530, 1
      %v6584 = vrot.slane %v6531, 1
      %v6585 = vsel %vm6430, %v6583, %v6584
      %v6586 = vrot.slane %v6532, 1
      %v6587 = vrot.slane %v6533, 1
      %v6588 = vsel %vm6430, %v6586, %v6587
      %v6611 = vadd.f32 %v6486, %v6558
      %v6612 = vadd.f32 %v6487, %v6557
      %v6613 = vadd.f32 %v6488, %v6561
      %v6614 = vadd.f32 %v6489, %v6560
      %v6615 = vadd.f32 %v6490, %v6564
      %v6616 = vadd.f32 %v6491, %v6563
      %v6617 = vadd.f32 %v6492, %v6567
      %v6618 = vadd.f32 %v6493, %v6566
      %v6619 = vadd.f32 %v6494, %v6570
      %v6620 = vadd.f32 %v6495, %v6569
      %v6621 = vadd.f32 %v6496, %v6573
      %v6622 = vadd.f32 %v6497, %v6572
      %v6623 = vadd.f32 %v6498, %v6576
      %v6624 = vadd.f32 %v6499, %v6575
      %v6625 = vadd.f32 %v6500, %v6579
      %v6626 = vadd.f32 %v6501, %v6578
      %v6627 = vadd.f32 %v6502, %v6582
      %v6628 = vadd.f32 %v6503, %v6581
      %v6629 = vadd.f32 %v6504, %v6585
      %v6630 = vadd.f32 %v6505, %v6584
      %v6631 = vadd.f32 %v6506, %v6588
      %v6632 = vadd.f32 %v6507, %v6587
      %v6633 = vlaneseq
      %v6634 = vshrl.u32 %v6633, 7
      %v6635 = vsub.s32 5, %v6634
      %v6636 = vrot.slane %v6090, %v6635
      %v6637 = vmul.f32 %v5205, %v6636
      %v6638 = vmul.f32 %v5206, %v6636
      %v6639 = vmul.f32 %v5207, %v6636
      %v6640 = vmul.f32 %v5208, %v6636
      %v6641 = vmul.f32 %v5209, %v6636
      %v6642 = vmul.f32 %v5210, %v6636
      %v6643 = vmul.f32 %v5211, %v6636
      %v6644 = vmul.f32 %v5212, %v6636
      %v6645 = vmul.f32 %v5213, %v6636
      %v6646 = vmul.f32 %v5214, %v6636
      %v6647 = vmul.f32 %v5215, %v6636
      %v6648 = vmul.f32 %v5216, %v6636
      %v6649 = vmul.f32 %v5217, %v6636
      %v6650 = vmul.f32 %v5218, %v6636
      %v6651 = vmul.f32 %v5219, %v6636
      %v6652 = vmul.f32 %v5220, %v6636
      %v6653 = vmul.f32 %v5221, %v6636
      %v6654 = vmul.f32 %v5222, %v6636
      %v6655 = vmul.f32 %v5223, %v6636
      %v6656 = vmul.f32 %v5224, %v6636
      %v6657 = vmul.f32 %v5225, %v6636
      %v6658 = vmul.f32 %v5226, %v6636
      %v6681 = vrot.slane %v6637, 1
      %v6682 = vrot.slane %v6638, 1
      %v6683 = vsel %vm6430, %v6681, %v6682
      %v6684 = vrot.slane %v6639, 1
      %v6685 = vrot.slane %v6640, 1
      %v6686 = vsel %vm6430, %v6684, %v6685
      %v6687 = vrot.slane %v6641, 1
      %v6688 = vrot.slane %v6642, 1
      %v6689 = vsel %vm6430, %v6687, %v6688
      %v6690 = vrot.slane %v6643, 1
      %v6691 = vrot.slane %v6644, 1
      %v6692 = vsel %vm6430, %v6690, %v6691
      %v6693 = vrot.slane %v6645, 1
      %v6694 = vrot.slane %v6646, 1
      %v6695 = vsel %vm6430, %v6693, %v6694
      %v6696 = vrot.slane %v6647, 1
      %v6697 = vrot.slane %v6648, 1
      %v6698 = vsel %vm6430, %v6696, %v6697
      %v6699 = vrot.slane %v6649, 1
      %v6700 = vrot.slane %v6650, 1
      %v6701 = vsel %vm6430, %v6699, %v6700
      %v6702 = vrot.slane %v6651, 1
      %v6703 = vrot.slane %v6652, 1
      %v6704 = vsel %vm6430, %v6702, %v6703
      %v6705 = vrot.slane %v6653, 1
      %v6706 = vrot.slane %v6654, 1
      %v6707 = vsel %vm6430, %v6705, %v6706
      %v6708 = vrot.slane %v6655, 1
      %v6709 = vrot.slane %v6656, 1
      %v6710 = vsel %vm6430, %v6708, %v6709
      %v6711 = vrot.slane %v6657, 1
      %v6712 = vrot.slane %v6658, 1
      %v6713 = vsel %vm6430, %v6711, %v6712
      %v6736 = vadd.f32 %v6611, %v6683
      %v6737 = vadd.f32 %v6612, %v6682
      %v6738 = vadd.f32 %v6613, %v6686
      %v6739 = vadd.f32 %v6614, %v6685
      %v6740 = vadd.f32 %v6615, %v6689
      %v6741 = vadd.f32 %v6616, %v6688
      %v6742 = vadd.f32 %v6617, %v6692
      %v6743 = vadd.f32 %v6618, %v6691
      %v6744 = vadd.f32 %v6619, %v6695
      %v6745 = vadd.f32 %v6620, %v6694
      %v6746 = vadd.f32 %v6621, %v6698
      %v6747 = vadd.f32 %v6622, %v6697
      %v6748 = vadd.f32 %v6623, %v6701
      %v6749 = vadd.f32 %v6624, %v6700
      %v6750 = vadd.f32 %v6625, %v6704
      %v6751 = vadd.f32 %v6626, %v6703
      %v6752 = vadd.f32 %v6627, %v6707
      %v6753 = vadd.f32 %v6628, %v6706
      %v6754 = vadd.f32 %v6629, %v6710
      %v6755 = vadd.f32 %v6630, %v6709
      %v6756 = vadd.f32 %v6631, %v6713
      %v6757 = vadd.f32 %v6632, %v6712
      %v6758 = vlaneseq
      %v6759 = vshrl.u32 %v6758, 7
      %v6760 = vsub.s32 3, %v6759
      %v6761 = vrot.slane %v6091, %v6760
      %v6762 = vmul.f32 %v5207, %v6761
      %v6763 = vmul.f32 %v5208, %v6761
      %v6764 = vmul.f32 %v5209, %v6761
      %v6765 = vmul.f32 %v5210, %v6761
      %v6766 = vmul.f32 %v5211, %v6761
      %v6767 = vmul.f32 %v5212, %v6761
      %v6768 = vmul.f32 %v5213, %v6761
      %v6769 = vmul.f32 %v5214, %v6761
      %v6770 = vmul.f32 %v5215, %v6761
      %v6771 = vmul.f32 %v5216, %v6761
      %v6772 = vmul.f32 %v5217, %v6761
      %v6773 = vmul.f32 %v5218, %v6761
      %v6774 = vmul.f32 %v5219, %v6761
      %v6775 = vmul.f32 %v5220, %v6761
      %v6776 = vmul.f32 %v5221, %v6761
      %v6777 = vmul.f32 %v5222, %v6761
      %v6778 = vmul.f32 %v5223, %v6761
      %v6779 = vmul.f32 %v5224, %v6761
      %v6780 = vmul.f32 %v5225, %v6761
      %v6781 = vmul.f32 %v5226, %v6761
      %v6782 = vmul.f32 %v5227, %v6761
      %v6783 = vmul.f32 %v5228, %v6761
      %v6806 = vrot.slane %v6762, 1
      %v6807 = vrot.slane %v6763, 1
      %v6808 = vsel %vm6430, %v6806, %v6807
      %v6809 = vrot.slane %v6764, 1
      %v6810 = vrot.slane %v6765, 1
      %v6811 = vsel %vm6430, %v6809, %v6810
      %v6812 = vrot.slane %v6766, 1
      %v6813 = vrot.slane %v6767, 1
      %v6814 = vsel %vm6430, %v6812, %v6813
      %v6815 = vrot.slane %v6768, 1
      %v6816 = vrot.slane %v6769, 1
      %v6817 = vsel %vm6430, %v6815, %v6816
      %v6818 = vrot.slane %v6770, 1
      %v6819 = vrot.slane %v6771, 1
      %v6820 = vsel %vm6430, %v6818, %v6819
      %v6821 = vrot.slane %v6772, 1
      %v6822 = vrot.slane %v6773, 1
      %v6823 = vsel %vm6430, %v6821, %v6822
      %v6824 = vrot.slane %v6774, 1
      %v6825 = vrot.slane %v6775, 1
      %v6826 = vsel %vm6430, %v6824, %v6825
      %v6827 = vrot.slane %v6776, 1
      %v6828 = vrot.slane %v6777, 1
      %v6829 = vsel %vm6430, %v6827, %v6828
      %v6830 = vrot.slane %v6778, 1
      %v6831 = vrot.slane %v6779, 1
      %v6832 = vsel %vm6430, %v6830, %v6831
      %v6833 = vrot.slane %v6780, 1
      %v6834 = vrot.slane %v6781, 1
      %v6835 = vsel %vm6430, %v6833, %v6834
      %v6836 = vrot.slane %v6782, 1
      %v6837 = vrot.slane %v6783, 1
      %v6838 = vsel %vm6430, %v6836, %v6837
      %v6861 = vadd.f32 %v6736, %v6808
      %v6862 = vadd.f32 %v6737, %v6807
      %v6863 = vadd.f32 %v6738, %v6811
      %v6864 = vadd.f32 %v6739, %v6810
      %v6865 = vadd.f32 %v6740, %v6814
      %v6866 = vadd.f32 %v6741, %v6813
      %v6867 = vadd.f32 %v6742, %v6817
      %v6868 = vadd.f32 %v6743, %v6816
      %v6869 = vadd.f32 %v6744, %v6820
      %v6870 = vadd.f32 %v6745, %v6819
      %v6871 = vadd.f32 %v6746, %v6823
      %v6872 = vadd.f32 %v6747, %v6822
      %v6873 = vadd.f32 %v6748, %v6826
      %v6874 = vadd.f32 %v6749, %v6825
      %v6875 = vadd.f32 %v6750, %v6829
      %v6876 = vadd.f32 %v6751, %v6828
      %v6877 = vadd.f32 %v6752, %v6832
      %v6878 = vadd.f32 %v6753, %v6831
      %v6879 = vadd.f32 %v6754, %v6835
      %v6880 = vadd.f32 %v6755, %v6834
      %v6881 = vadd.f32 %v6756, %v6838
      %v6882 = vadd.f32 %v6757, %v6837
      %v6883 = vlaneseq
      %v6884 = vshrl.u32 %v6883, 7
      %v6885 = vsub.s32 1, %v6884
      %v6886 = vrot.slane %v6092, %v6885
      %v6887 = vmul.f32 %v5209, %v6886
      %v6888 = vmul.f32 %v5210, %v6886
      %v6889 = vmul.f32 %v5211, %v6886
      %v6890 = vmul.f32 %v5212, %v6886
      %v6891 = vmul.f32 %v5213, %v6886
      %v6892 = vmul.f32 %v5214, %v6886
      %v6893 = vmul.f32 %v5215, %v6886
      %v6894 = vmul.f32 %v5216, %v6886
      %v6895 = vmul.f32 %v5217, %v6886
      %v6896 = vmul.f32 %v5218, %v6886
      %v6897 = vmul.f32 %v5219, %v6886
      %v6898 = vmul.f32 %v5220, %v6886
      %v6899 = vmul.f32 %v5221, %v6886
      %v6900 = vmul.f32 %v5222, %v6886
      %v6901 = vmul.f32 %v5223, %v6886
      %v6902 = vmul.f32 %v5224, %v6886
      %v6903 = vmul.f32 %v5225, %v6886
      %v6904 = vmul.f32 %v5226, %v6886
      %v6905 = vmul.f32 %v5227, %v6886
      %v6906 = vmul.f32 %v5228, %v6886
      %v6907 = vmul.f32 %v5229, %v6886
      %v6908 = vmul.f32 %v5230, %v6886
      %v6931 = vrot.slane %v6887, 1
      %v6932 = vrot.slane %v6888, 1
      %v6933 = vsel %vm6430, %v6931, %v6932
      %v6934 = vrot.slane %v6889, 1
      %v6935 = vrot.slane %v6890, 1
      %v6936 = vsel %vm6430, %v6934, %v6935
      %v6937 = vrot.slane %v6891, 1
      %v6938 = vrot.slane %v6892, 1
      %v6939 = vsel %vm6430, %v6937, %v6938
      %v6940 = vrot.slane %v6893, 1
      %v6941 = vrot.slane %v6894, 1
      %v6942 = vsel %vm6430, %v6940, %v6941
      %v6943 = vrot.slane %v6895, 1
      %v6944 = vrot.slane %v6896, 1
      %v6945 = vsel %vm6430, %v6943, %v6944
      %v6946 = vrot.slane %v6897, 1
      %v6947 = vrot.slane %v6898, 1
      %v6948 = vsel %vm6430, %v6946, %v6947
      %v6949 = vrot.slane %v6899, 1
      %v6950 = vrot.slane %v6900, 1
      %v6951 = vsel %vm6430, %v6949, %v6950
      %v6952 = vrot.slane %v6901, 1
      %v6953 = vrot.slane %v6902, 1
      %v6954 = vsel %vm6430, %v6952, %v6953
      %v6955 = vrot.slane %v6903, 1
      %v6956 = vrot.slane %v6904, 1
      %v6957 = vsel %vm6430, %v6955, %v6956
      %v6958 = vrot.slane %v6905, 1
      %v6959 = vrot.slane %v6906, 1
      %v6960 = vsel %vm6430, %v6958, %v6959
      %v6961 = vrot.slane %v6907, 1
      %v6962 = vrot.slane %v6908, 1
      %v6963 = vsel %vm6430, %v6961, %v6962
      %v6986 = vadd.f32 %v6861, %v6933
      %v6987 = vadd.f32 %v6862, %v6932
      %v6988 = vadd.f32 %v6863, %v6936
      %v6989 = vadd.f32 %v6864, %v6935
      %v6990 = vadd.f32 %v6865, %v6939
      %v6991 = vadd.f32 %v6866, %v6938
      %v6992 = vadd.f32 %v6867, %v6942
      %v6993 = vadd.f32 %v6868, %v6941
      %v6994 = vadd.f32 %v6869, %v6945
      %v6995 = vadd.f32 %v6870, %v6944
      %v6996 = vadd.f32 %v6871, %v6948
      %v6997 = vadd.f32 %v6872, %v6947
      %v6998 = vadd.f32 %v6873, %v6951
      %v6999 = vadd.f32 %v6874, %v6950
      %v7000 = vadd.f32 %v6875, %v6954
      %v7001 = vadd.f32 %v6876, %v6953
      %v7002 = vadd.f32 %v6877, %v6957
      %v7003 = vadd.f32 %v6878, %v6956
      %v7004 = vadd.f32 %v6879, %v6960
      %v7005 = vadd.f32 %v6880, %v6959
      %v7006 = vadd.f32 %v6881, %v6963
      %v7007 = vadd.f32 %v6882, %v6962
      %v7008 = vlaneseq
      %v7009 = vshrl.u32 %v7008, 7
      %v7010 = vsub.s32 7, %v7009
      %v7011 = vrot.slane %v6092, %v7010
      %v7012 = vmul.f32 %v5211, %v7011
      %v7013 = vmul.f32 %v5212, %v7011
      %v7014 = vmul.f32 %v5213, %v7011
      %v7015 = vmul.f32 %v5214, %v7011
      %v7016 = vmul.f32 %v5215, %v7011
      %v7017 = vmul.f32 %v5216, %v7011
      %v7018 = vmul.f32 %v5217, %v7011
      %v7019 = vmul.f32 %v5218, %v7011
      %v7020 = vmul.f32 %v5219, %v7011
      %v7021 = vmul.f32 %v5220, %v7011
      %v7022 = vmul.f32 %v5221, %v7011
      %v7023 = vmul.f32 %v5222, %v7011
      %v7024 = vmul.f32 %v5223, %v7011
      %v7025 = vmul.f32 %v5224, %v7011
      %v7026 = vmul.f32 %v5225, %v7011
      %v7027 = vmul.f32 %v5226, %v7011
      %v7028 = vmul.f32 %v5227, %v7011
      %v7029 = vmul.f32 %v5228, %v7011
      %v7030 = vmul.f32 %v5229, %v7011
      %v7031 = vmul.f32 %v5230, %v7011
      %v7032 = vmul.f32 %v5231, %v7011
      %v7033 = vmul.f32 %v5232, %v7011
      %v7056 = vrot.slane %v7012, 1
      %v7057 = vrot.slane %v7013, 1
      %v7058 = vsel %vm6430, %v7056, %v7057
      %v7059 = vrot.slane %v7014, 1
      %v7060 = vrot.slane %v7015, 1
      %v7061 = vsel %vm6430, %v7059, %v7060
      %v7062 = vrot.slane %v7016, 1
      %v7063 = vrot.slane %v7017, 1
      %v7064 = vsel %vm6430, %v7062, %v7063
      %v7065 = vrot.slane %v7018, 1
      %v7066 = vrot.slane %v7019, 1
      %v7067 = vsel %vm6430, %v7065, %v7066
      %v7068 = vrot.slane %v7020, 1
      %v7069 = vrot.slane %v7021, 1
      %v7070 = vsel %vm6430, %v7068, %v7069
      %v7071 = vrot.slane %v7022, 1
      %v7072 = vrot.slane %v7023, 1
      %v7073 = vsel %vm6430, %v7071, %v7072
      %v7074 = vrot.slane %v7024, 1
      %v7075 = vrot.slane %v7025, 1
      %v7076 = vsel %vm6430, %v7074, %v7075
      %v7077 = vrot.slane %v7026, 1
      %v7078 = vrot.slane %v7027, 1
      %v7079 = vsel %vm6430, %v7077, %v7078
      %v7080 = vrot.slane %v7028, 1
      %v7081 = vrot.slane %v7029, 1
      %v7082 = vsel %vm6430, %v7080, %v7081
      %v7083 = vrot.slane %v7030, 1
      %v7084 = vrot.slane %v7031, 1
      %v7085 = vsel %vm6430, %v7083, %v7084
      %v7086 = vrot.slane %v7032, 1
      %v7087 = vrot.slane %v7033, 1
      %v7088 = vsel %vm6430, %v7086, %v7087
      %v7111 = vadd.f32 %v6986, %v7058
      %v7112 = vadd.f32 %v6987, %v7057
      %v7113 = vadd.f32 %v6988, %v7061
      %v7114 = vadd.f32 %v6989, %v7060
      %v7115 = vadd.f32 %v6990, %v7064
      %v7116 = vadd.f32 %v6991, %v7063
      %v7117 = vadd.f32 %v6992, %v7067
      %v7118 = vadd.f32 %v6993, %v7066
      %v7119 = vadd.f32 %v6994, %v7070
      %v7120 = vadd.f32 %v6995, %v7069
      %v7121 = vadd.f32 %v6996, %v7073
      %v7122 = vadd.f32 %v6997, %v7072
      %v7123 = vadd.f32 %v6998, %v7076
      %v7124 = vadd.f32 %v6999, %v7075
      %v7125 = vadd.f32 %v7000, %v7079
      %v7126 = vadd.f32 %v7001, %v7078
      %v7127 = vadd.f32 %v7002, %v7082
      %v7128 = vadd.f32 %v7003, %v7081
      %v7129 = vadd.f32 %v7004, %v7085
      %v7130 = vadd.f32 %v7005, %v7084
      %v7131 = vadd.f32 %v7006, %v7088
      %v7132 = vadd.f32 %v7007, %v7087
      %v7133 = vlaneseq
      %v7134 = vshrl.u32 %v7133, 7
      %v7135 = vsub.s32 2, %v7134
      %v7136 = vrot.slane %v6089, %v7135
      %v7137 = vmul.f32 %v5201, %v7136
      %v7138 = vmul.f32 %v5202, %v7136
      %v7139 = vmul.f32 %v5203, %v7136
      %v7140 = vmul.f32 %v5204, %v7136
      %v7141 = vmul.f32 %v5205, %v7136
      %v7142 = vmul.f32 %v5206, %v7136
      %v7143 = vmul.f32 %v5207, %v7136
      %v7144 = vmul.f32 %v5208, %v7136
      %v7145 = vmul.f32 %v5209, %v7136
      %v7146 = vmul.f32 %v5210, %v7136
      %v7147 = vmul.f32 %v5211, %v7136
      %v7148 = vmul.f32 %v5212, %v7136
      %v7149 = vmul.f32 %v5213, %v7136
      %v7150 = vmul.f32 %v5214, %v7136
      %v7151 = vmul.f32 %v5215, %v7136
      %v7152 = vmul.f32 %v5216, %v7136
      %v7153 = vmul.f32 %v5217, %v7136
      %v7154 = vmul.f32 %v5218, %v7136
      %v7155 = vmul.f32 %v5219, %v7136
      %v7156 = vmul.f32 %v5220, %v7136
      %v7157 = vmul.f32 %v5221, %v7136
      %v7158 = vmul.f32 %v5222, %v7136
      %v7181 = vrot.slane %v7137, 2
      %v7182 = vrot.slane %v7138, 2
      %v7183 = vsel %vm659, %v7181, %v7182
      %v7184 = vrot.slane %v7139, 2
      %v7185 = vrot.slane %v7140, 2
      %v7186 = vsel %vm659, %v7184, %v7185
      %v7187 = vrot.slane %v7141, 2
      %v7188 = vrot.slane %v7142, 2
      %v7189 = vsel %vm659, %v7187, %v7188
      %v7190 = vrot.slane %v7143, 2
      %v7191 = vrot.slane %v7144, 2
      %v7192 = vsel %vm659, %v7190, %v7191
      %v7193 = vrot.slane %v7145, 2
      %v7194 = vrot.slane %v7146, 2
      %v7195 = vsel %vm659, %v7193, %v7194
      %v7196 = vrot.slane %v7147, 2
      %v7197 = vrot.slane %v7148, 2
      %v7198 = vsel %vm659, %v7196, %v7197
      %v7199 = vrot.slane %v7149, 2
      %v7200 = vrot.slane %v7150, 2
      %v7201 = vsel %vm659, %v7199, %v7200
      %v7202 = vrot.slane %v7151, 2
      %v7203 = vrot.slane %v7152, 2
      %v7204 = vsel %vm659, %v7202, %v7203
      %v7205 = vrot.slane %v7153, 2
      %v7206 = vrot.slane %v7154, 2
      %v7207 = vsel %vm659, %v7205, %v7206
      %v7208 = vrot.slane %v7155, 2
      %v7209 = vrot.slane %v7156, 2
      %v7210 = vsel %vm659, %v7208, %v7209
      %v7211 = vrot.slane %v7157, 2
      %v7212 = vrot.slane %v7158, 2
      %v7213 = vsel %vm659, %v7211, %v7212
      %v7236 = vadd.f32 %v7111, %v7183
      %v7237 = vadd.f32 %v7112, %v7182
      %v7238 = vadd.f32 %v7113, %v7186
      %v7239 = vadd.f32 %v7114, %v7185
      %v7240 = vadd.f32 %v7115, %v7189
      %v7241 = vadd.f32 %v7116, %v7188
      %v7242 = vadd.f32 %v7117, %v7192
      %v7243 = vadd.f32 %v7118, %v7191
      %v7244 = vadd.f32 %v7119, %v7195
      %v7245 = vadd.f32 %v7120, %v7194
      %v7246 = vadd.f32 %v7121, %v7198
      %v7247 = vadd.f32 %v7122, %v7197
      %v7248 = vadd.f32 %v7123, %v7201
      %v7249 = vadd.f32 %v7124, %v7200
      %v7250 = vadd.f32 %v7125, %v7204
      %v7251 = vadd.f32 %v7126, %v7203
      %v7252 = vadd.f32 %v7127, %v7207
      %v7253 = vadd.f32 %v7128, %v7206
      %v7254 = vadd.f32 %v7129, %v7210
      %v7255 = vadd.f32 %v7130, %v7209
      %v7256 = vadd.f32 %v7131, %v7213
      %v7257 = vadd.f32 %v7132, %v7212
      %v7258 = vlaneseq
      %v7259 = vshrl.u32 %v7258, 7
      %v7260 = vsub.s32 0, %v7259
      %v7261 = vrot.slane %v6090, %v7260
      %v7262 = vmul.f32 %v5203, %v7261
      %v7263 = vmul.f32 %v5204, %v7261
      %v7264 = vmul.f32 %v5205, %v7261
      %v7265 = vmul.f32 %v5206, %v7261
      %v7266 = vmul.f32 %v5207, %v7261
      %v7267 = vmul.f32 %v5208, %v7261
      %v7268 = vmul.f32 %v5209, %v7261
      %v7269 = vmul.f32 %v5210, %v7261
      %v7270 = vmul.f32 %v5211, %v7261
      %v7271 = vmul.f32 %v5212, %v7261
      %v7272 = vmul.f32 %v5213, %v7261
      %v7273 = vmul.f32 %v5214, %v7261
      %v7274 = vmul.f32 %v5215, %v7261
      %v7275 = vmul.f32 %v5216, %v7261
      %v7276 = vmul.f32 %v5217, %v7261
      %v7277 = vmul.f32 %v5218, %v7261
      %v7278 = vmul.f32 %v5219, %v7261
      %v7279 = vmul.f32 %v5220, %v7261
      %v7280 = vmul.f32 %v5221, %v7261
      %v7281 = vmul.f32 %v5222, %v7261
      %v7282 = vmul.f32 %v5223, %v7261
      %v7283 = vmul.f32 %v5224, %v7261
      %v7306 = vrot.slane %v7262, 2
      %v7307 = vrot.slane %v7263, 2
      %v7308 = vsel %vm659, %v7306, %v7307
      %v7309 = vrot.slane %v7264, 2
      %v7310 = vrot.slane %v7265, 2
      %v7311 = vsel %vm659, %v7309, %v7310
      %v7312 = vrot.slane %v7266, 2
      %v7313 = vrot.slane %v7267, 2
      %v7314 = vsel %vm659, %v7312, %v7313
      %v7315 = vrot.slane %v7268, 2
      %v7316 = vrot.slane %v7269, 2
      %v7317 = vsel %vm659, %v7315, %v7316
      %v7318 = vrot.slane %v7270, 2
      %v7319 = vrot.slane %v7271, 2
      %v7320 = vsel %vm659, %v7318, %v7319
      %v7321 = vrot.slane %v7272, 2
      %v7322 = vrot.slane %v7273, 2
      %v7323 = vsel %vm659, %v7321, %v7322
      %v7324 = vrot.slane %v7274, 2
      %v7325 = vrot.slane %v7275, 2
      %v7326 = vsel %vm659, %v7324, %v7325
      %v7327 = vrot.slane %v7276, 2
      %v7328 = vrot.slane %v7277, 2
      %v7329 = vsel %vm659, %v7327, %v7328
      %v7330 = vrot.slane %v7278, 2
      %v7331 = vrot.slane %v7279, 2
      %v7332 = vsel %vm659, %v7330, %v7331
      %v7333 = vrot.slane %v7280, 2
      %v7334 = vrot.slane %v7281, 2
      %v7335 = vsel %vm659, %v7333, %v7334
      %v7336 = vrot.slane %v7282, 2
      %v7337 = vrot.slane %v7283, 2
      %v7338 = vsel %vm659, %v7336, %v7337
      %v7361 = vadd.f32 %v7236, %v7308
      %v7362 = vadd.f32 %v7237, %v7307
      %v7363 = vadd.f32 %v7238, %v7311
      %v7364 = vadd.f32 %v7239, %v7310
      %v7365 = vadd.f32 %v7240, %v7314
      %v7366 = vadd.f32 %v7241, %v7313
      %v7367 = vadd.f32 %v7242, %v7317
      %v7368 = vadd.f32 %v7243, %v7316
      %v7369 = vadd.f32 %v7244, %v7320
      %v7370 = vadd.f32 %v7245, %v7319
      %v7371 = vadd.f32 %v7246, %v7323
      %v7372 = vadd.f32 %v7247, %v7322
      %v7373 = vadd.f32 %v7248, %v7326
      %v7374 = vadd.f32 %v7249, %v7325
      %v7375 = vadd.f32 %v7250, %v7329
      %v7376 = vadd.f32 %v7251, %v7328
      %v7377 = vadd.f32 %v7252, %v7332
      %v7378 = vadd.f32 %v7253, %v7331
      %v7379 = vadd.f32 %v7254, %v7335
      %v7380 = vadd.f32 %v7255, %v7334
      %v7381 = vadd.f32 %v7256, %v7338
      %v7382 = vadd.f32 %v7257, %v7337
      %v7383 = vlaneseq
      %v7384 = vshrl.u32 %v7383, 7
      %v7385 = vsub.s32 6, %v7384
      %v7386 = vrot.slane %v6090, %v7385
      %v7387 = vmul.f32 %v5205, %v7386
      %v7388 = vmul.f32 %v5206, %v7386
      %v7389 = vmul.f32 %v5207, %v7386
      %v7390 = vmul.f32 %v5208, %v7386
      %v7391 = vmul.f32 %v5209, %v7386
      %v7392 = vmul.f32 %v5210, %v7386
      %v7393 = vmul.f32 %v5211, %v7386
      %v7394 = vmul.f32 %v5212, %v7386
      %v7395 = vmul.f32 %v5213, %v7386
      %v7396 = vmul.f32 %v5214, %v7386
      %v7397 = vmul.f32 %v5215, %v7386
      %v7398 = vmul.f32 %v5216, %v7386
      %v7399 = vmul.f32 %v5217, %v7386
      %v7400 = vmul.f32 %v5218, %v7386
      %v7401 = vmul.f32 %v5219, %v7386
      %v7402 = vmul.f32 %v5220, %v7386
      %v7403 = vmul.f32 %v5221, %v7386
      %v7404 = vmul.f32 %v5222, %v7386
      %v7405 = vmul.f32 %v5223, %v7386
      %v7406 = vmul.f32 %v5224, %v7386
      %v7407 = vmul.f32 %v5225, %v7386
      %v7408 = vmul.f32 %v5226, %v7386
      %v7431 = vrot.slane %v7387, 2
      %v7432 = vrot.slane %v7388, 2
      %v7433 = vsel %vm659, %v7431, %v7432
      %v7434 = vrot.slane %v7389, 2
      %v7435 = vrot.slane %v7390, 2
      %v7436 = vsel %vm659, %v7434, %v7435
      %v7437 = vrot.slane %v7391, 2
      %v7438 = vrot.slane %v7392, 2
      %v7439 = vsel %vm659, %v7437, %v7438
      %v7440 = vrot.slane %v7393, 2
      %v7441 = vrot.slane %v7394, 2
      %v7442 = vsel %vm659, %v7440, %v7441
      %v7443 = vrot.slane %v7395, 2
      %v7444 = vrot.slane %v7396, 2
      %v7445 = vsel %vm659, %v7443, %v7444
      %v7446 = vrot.slane %v7397, 2
      %v7447 = vrot.slane %v7398, 2
      %v7448 = vsel %vm659, %v7446, %v7447
      %v7449 = vrot.slane %v7399, 2
      %v7450 = vrot.slane %v7400, 2
      %v7451 = vsel %vm659, %v7449, %v7450
      %v7452 = vrot.slane %v7401, 2
      %v7453 = vrot.slane %v7402, 2
      %v7454 = vsel %vm659, %v7452, %v7453
      %v7455 = vrot.slane %v7403, 2
      %v7456 = vrot.slane %v7404, 2
      %v7457 = vsel %vm659, %v7455, %v7456
      %v7458 = vrot.slane %v7405, 2
      %v7459 = vrot.slane %v7406, 2
      %v7460 = vsel %vm659, %v7458, %v7459
      %v7461 = vrot.slane %v7407, 2
      %v7462 = vrot.slane %v7408, 2
      %v7463 = vsel %vm659, %v7461, %v7462
      %v7486 = vadd.f32 %v7361, %v7433
      %v7487 = vadd.f32 %v7362, %v7432
      %v7488 = vadd.f32 %v7363, %v7436
      %v7489 = vadd.f32 %v7364, %v7435
      %v7490 = vadd.f32 %v7365, %v7439
      %v7491 = vadd.f32 %v7366, %v7438
      %v7492 = vadd.f32 %v7367, %v7442
      %v7493 = vadd.f32 %v7368, %v7441
      %v7494 = vadd.f32 %v7369, %v7445
      %v7495 = vadd.f32 %v7370, %v7444
      %v7496 = vadd.f32 %v7371, %v7448
      %v7497 = vadd.f32 %v7372, %v7447
      %v7498 = vadd.f32 %v7373, %v7451
      %v7499 = vadd.f32 %v7374, %v7450
      %v7500 = vadd.f32 %v7375, %v7454
      %v7501 = vadd.f32 %v7376, %v7453
      %v7502 = vadd.f32 %v7377, %v7457
      %v7503 = vadd.f32 %v7378, %v7456
      %v7504 = vadd.f32 %v7379, %v7460
      %v7505 = vadd.f32 %v7380, %v7459
      %v7506 = vadd.f32 %v7381, %v7463
      %v7507 = vadd.f32 %v7382, %v7462
      %v7508 = vlaneseq
      %v7509 = vshrl.u32 %v7508, 7
      %v7510 = vsub.s32 4, %v7509
      %v7511 = vrot.slane %v6091, %v7510
      %v7512 = vmul.f32 %v5207, %v7511
      %v7513 = vmul.f32 %v5208, %v7511
      %v7514 = vmul.f32 %v5209, %v7511
      %v7515 = vmul.f32 %v5210, %v7511
      %v7516 = vmul.f32 %v5211, %v7511
      %v7517 = vmul.f32 %v5212, %v7511
      %v7518 = vmul.f32 %v5213, %v7511
      %v7519 = vmul.f32 %v5214, %v7511
      %v7520 = vmul.f32 %v5215, %v7511
      %v7521 = vmul.f32 %v5216, %v7511
      %v7522 = vmul.f32 %v5217, %v7511
      %v7523 = vmul.f32 %v5218, %v7511
      %v7524 = vmul.f32 %v5219, %v7511
      %v7525 = vmul.f32 %v5220, %v7511
      %v7526 = vmul.f32 %v5221, %v7511
      %v7527 = vmul.f32 %v5222, %v7511
      %v7528 = vmul.f32 %v5223, %v7511
      %v7529 = vmul.f32 %v5224, %v7511
      %v7530 = vmul.f32 %v5225, %v7511
      %v7531 = vmul.f32 %v5226, %v7511
      %v7532 = vmul.f32 %v5227, %v7511
      %v7533 = vmul.f32 %v5228, %v7511
      %v7556 = vrot.slane %v7512, 2
      %v7557 = vrot.slane %v7513, 2
      %v7558 = vsel %vm659, %v7556, %v7557
      %v7559 = vrot.slane %v7514, 2
      %v7560 = vrot.slane %v7515, 2
      %v7561 = vsel %vm659, %v7559, %v7560
      %v7562 = vrot.slane %v7516, 2
      %v7563 = vrot.slane %v7517, 2
      %v7564 = vsel %vm659, %v7562, %v7563
      %v7565 = vrot.slane %v7518, 2
      %v7566 = vrot.slane %v7519, 2
      %v7567 = vsel %vm659, %v7565, %v7566
      %v7568 = vrot.slane %v7520, 2
      %v7569 = vrot.slane %v7521, 2
      %v7570 = vsel %vm659, %v7568, %v7569
      %v7571 = vrot.slane %v7522, 2
      %v7572 = vrot.slane %v7523, 2
      %v7573 = vsel %vm659, %v7571, %v7572
      %v7574 = vrot.slane %v7524, 2
      %v7575 = vrot.slane %v7525, 2
      %v7576 = vsel %vm659, %v7574, %v7575
      %v7577 = vrot.slane %v7526, 2
      %v7578 = vrot.slane %v7527, 2
      %v7579 = vsel %vm659, %v7577, %v7578
      %v7580 = vrot.slane %v7528, 2
      %v7581 = vrot.slane %v7529, 2
      %v7582 = vsel %vm659, %v7580, %v7581
      %v7583 = vrot.slane %v7530, 2
      %v7584 = vrot.slane %v7531, 2
      %v7585 = vsel %vm659, %v7583, %v7584
      %v7586 = vrot.slane %v7532, 2
      %v7587 = vrot.slane %v7533, 2
      %v7588 = vsel %vm659, %v7586, %v7587
      %v7611 = vadd.f32 %v7486, %v7558
      %v7612 = vadd.f32 %v7487, %v7557
      %v7613 = vadd.f32 %v7488, %v7561
      %v7614 = vadd.f32 %v7489, %v7560
      %v7615 = vadd.f32 %v7490, %v7564
      %v7616 = vadd.f32 %v7491, %v7563
      %v7617 = vadd.f32 %v7492, %v7567
      %v7618 = vadd.f32 %v7493, %v7566
      %v7619 = vadd.f32 %v7494, %v7570
      %v7620 = vadd.f32 %v7495, %v7569
      %v7621 = vadd.f32 %v7496, %v7573
      %v7622 = vadd.f32 %v7497, %v7572
      %v7623 = vadd.f32 %v7498, %v7576
      %v7624 = vadd.f32 %v7499, %v7575
      %v7625 = vadd.f32 %v7500, %v7579
      %v7626 = vadd.f32 %v7501, %v7578
      %v7627 = vadd.f32 %v7502, %v7582
      %v7628 = vadd.f32 %v7503, %v7581
      %v7629 = vadd.f32 %v7504, %v7585
      %v7630 = vadd.f32 %v7505, %v7584
      %v7631 = vadd.f32 %v7506, %v7588
      %v7632 = vadd.f32 %v7507, %v7587
      %v7633 = vlaneseq
      %v7634 = vshrl.u32 %v7633, 7
      %v7635 = vsub.s32 2, %v7634
      %v7636 = vrot.slane %v6092, %v7635
      %v7637 = vmul.f32 %v5209, %v7636
      %v7638 = vmul.f32 %v5210, %v7636
      %v7639 = vmul.f32 %v5211, %v7636
      %v7640 = vmul.f32 %v5212, %v7636
      %v7641 = vmul.f32 %v5213, %v7636
      %v7642 = vmul.f32 %v5214, %v7636
      %v7643 = vmul.f32 %v5215, %v7636
      %v7644 = vmul.f32 %v5216, %v7636
      %v7645 = vmul.f32 %v5217, %v7636
      %v7646 = vmul.f32 %v5218, %v7636
      %v7647 = vmul.f32 %v5219, %v7636
      %v7648 = vmul.f32 %v5220, %v7636
      %v7649 = vmul.f32 %v5221, %v7636
      %v7650 = vmul.f32 %v5222, %v7636
      %v7651 = vmul.f32 %v5223, %v7636
      %v7652 = vmul.f32 %v5224, %v7636
      %v7653 = vmul.f32 %v5225, %v7636
      %v7654 = vmul.f32 %v5226, %v7636
      %v7655 = vmul.f32 %v5227, %v7636
      %v7656 = vmul.f32 %v5228, %v7636
      %v7657 = vmul.f32 %v5229, %v7636
      %v7658 = vmul.f32 %v5230, %v7636
      %v7681 = vrot.slane %v7637, 2
      %v7682 = vrot.slane %v7638, 2
      %v7683 = vsel %vm659, %v7681, %v7682
      %v7684 = vrot.slane %v7639, 2
      %v7685 = vrot.slane %v7640, 2
      %v7686 = vsel %vm659, %v7684, %v7685
      %v7687 = vrot.slane %v7641, 2
      %v7688 = vrot.slane %v7642, 2
      %v7689 = vsel %vm659, %v7687, %v7688
      %v7690 = vrot.slane %v7643, 2
      %v7691 = vrot.slane %v7644, 2
      %v7692 = vsel %vm659, %v7690, %v7691
      %v7693 = vrot.slane %v7645, 2
      %v7694 = vrot.slane %v7646, 2
      %v7695 = vsel %vm659, %v7693, %v7694
      %v7696 = vrot.slane %v7647, 2
      %v7697 = vrot.slane %v7648, 2
      %v7698 = vsel %vm659, %v7696, %v7697
      %v7699 = vrot.slane %v7649, 2
      %v7700 = vrot.slane %v7650, 2
      %v7701 = vsel %vm659, %v7699, %v7700
      %v7702 = vrot.slane %v7651, 2
      %v7703 = vrot.slane %v7652, 2
      %v7704 = vsel %vm659, %v7702, %v7703
      %v7705 = vrot.slane %v7653, 2
      %v7706 = vrot.slane %v7654, 2
      %v7707 = vsel %vm659, %v7705, %v7706
      %v7708 = vrot.slane %v7655, 2
      %v7709 = vrot.slane %v7656, 2
      %v7710 = vsel %vm659, %v7708, %v7709
      %v7711 = vrot.slane %v7657, 2
      %v7712 = vrot.slane %v7658, 2
      %v7713 = vsel %vm659, %v7711, %v7712
      %v7736 = vadd.f32 %v7611, %v7683
      %v7737 = vadd.f32 %v7612, %v7682
      %v7738 = vadd.f32 %v7613, %v7686
      %v7739 = vadd.f32 %v7614, %v7685
      %v7740 = vadd.f32 %v7615, %v7689
      %v7741 = vadd.f32 %v7616, %v7688
      %v7742 = vadd.f32 %v7617, %v7692
      %v7743 = vadd.f32 %v7618, %v7691
      %v7744 = vadd.f32 %v7619, %v7695
      %v7745 = vadd.f32 %v7620, %v7694
      %v7746 = vadd.f32 %v7621, %v7698
      %v7747 = vadd.f32 %v7622, %v7697
      %v7748 = vadd.f32 %v7623, %v7701
      %v7749 = vadd.f32 %v7624, %v7700
      %v7750 = vadd.f32 %v7625, %v7704
      %v7751 = vadd.f32 %v7626, %v7703
      %v7752 = vadd.f32 %v7627, %v7707
      %v7753 = vadd.f32 %v7628, %v7706
      %v7754 = vadd.f32 %v7629, %v7710
      %v7755 = vadd.f32 %v7630, %v7709
      %v7756 = vadd.f32 %v7631, %v7713
      %v7757 = vadd.f32 %v7632, %v7712
      %v7758 = vlaneseq
      %v7759 = vshrl.u32 %v7758, 7
      %v7760 = vsub.s32 0, %v7759
      %v7761 = vrot.slane %v6093, %v7760
      %v7762 = vmul.f32 %v5211, %v7761
      %v7763 = vmul.f32 %v5212, %v7761
      %v7764 = vmul.f32 %v5213, %v7761
      %v7765 = vmul.f32 %v5214, %v7761
      %v7766 = vmul.f32 %v5215, %v7761
      %v7767 = vmul.f32 %v5216, %v7761
      %v7768 = vmul.f32 %v5217, %v7761
      %v7769 = vmul.f32 %v5218, %v7761
      %v7770 = vmul.f32 %v5219, %v7761
      %v7771 = vmul.f32 %v5220, %v7761
      %v7772 = vmul.f32 %v5221, %v7761
      %v7773 = vmul.f32 %v5222, %v7761
      %v7774 = vmul.f32 %v5223, %v7761
      %v7775 = vmul.f32 %v5224, %v7761
      %v7776 = vmul.f32 %v5225, %v7761
      %v7777 = vmul.f32 %v5226, %v7761
      %v7778 = vmul.f32 %v5227, %v7761
      %v7779 = vmul.f32 %v5228, %v7761
      %v7780 = vmul.f32 %v5229, %v7761
      %v7781 = vmul.f32 %v5230, %v7761
      %v7782 = vmul.f32 %v5231, %v7761
      %v7783 = vmul.f32 %v5232, %v7761
      %v7806 = vrot.slane %v7762, 2
      %v7807 = vrot.slane %v7763, 2
      %v7808 = vsel %vm659, %v7806, %v7807
      %v7809 = vrot.slane %v7764, 2
      %v7810 = vrot.slane %v7765, 2
      %v7811 = vsel %vm659, %v7809, %v7810
      %v7812 = vrot.slane %v7766, 2
      %v7813 = vrot.slane %v7767, 2
      %v7814 = vsel %vm659, %v7812, %v7813
      %v7815 = vrot.slane %v7768, 2
      %v7816 = vrot.slane %v7769, 2
      %v7817 = vsel %vm659, %v7815, %v7816
      %v7818 = vrot.slane %v7770, 2
      %v7819 = vrot.slane %v7771, 2
      %v7820 = vsel %vm659, %v7818, %v7819
      %v7821 = vrot.slane %v7772, 2
      %v7822 = vrot.slane %v7773, 2
      %v7823 = vsel %vm659, %v7821, %v7822
      %v7824 = vrot.slane %v7774, 2
      %v7825 = vrot.slane %v7775, 2
      %v7826 = vsel %vm659, %v7824, %v7825
      %v7827 = vrot.slane %v7776, 2
      %v7828 = vrot.slane %v7777, 2
      %v7829 = vsel %vm659, %v7827, %v7828
      %v7830 = vrot.slane %v7778, 2
      %v7831 = vrot.slane %v7779, 2
      %v7832 = vsel %vm659, %v7830, %v7831
      %v7833 = vrot.slane %v7780, 2
      %v7834 = vrot.slane %v7781, 2
      %v7835 = vsel %vm659, %v7833, %v7834
      %v7836 = vrot.slane %v7782, 2
      %v7837 = vrot.slane %v7783, 2
      %v7838 = vsel %vm659, %v7836, %v7837
      %v7861 = vadd.f32 %v7736, %v7808
      %v7862 = vadd.f32 %v7737, %v7807
      %v7863 = vadd.f32 %v7738, %v7811
      %v7864 = vadd.f32 %v7739, %v7810
      %v7865 = vadd.f32 %v7740, %v7814
      %v7866 = vadd.f32 %v7741, %v7813
      %v7867 = vadd.f32 %v7742, %v7817
      %v7868 = vadd.f32 %v7743, %v7816
      %v7869 = vadd.f32 %v7744, %v7820
      %v7870 = vadd.f32 %v7745, %v7819
      %v7871 = vadd.f32 %v7746, %v7823
      %v7872 = vadd.f32 %v7747, %v7822
      %v7873 = vadd.f32 %v7748, %v7826
      %v7874 = vadd.f32 %v7749, %v7825
      %v7875 = vadd.f32 %v7750, %v7829
      %v7876 = vadd.f32 %v7751, %v7828
      %v7877 = vadd.f32 %v7752, %v7832
      %v7878 = vadd.f32 %v7753, %v7831
      %v7879 = vadd.f32 %v7754, %v7835
      %v7880 = vadd.f32 %v7755, %v7834
      %v7881 = vadd.f32 %v7756, %v7838
      %v7882 = vadd.f32 %v7757, %v7837
      %v7883 = vlaneseq
      %v7884 = vshrl.u32 %v7883, 7
      %v7885 = vsub.s32 3, %v7884
      %v7886 = vrot.slane %v6089, %v7885
      %v7887 = vmul.f32 %v5201, %v7886
      %v7888 = vmul.f32 %v5202, %v7886
      %v7889 = vmul.f32 %v5203, %v7886
      %v7890 = vmul.f32 %v5204, %v7886
      %v7891 = vmul.f32 %v5205, %v7886
      %v7892 = vmul.f32 %v5206, %v7886
      %v7893 = vmul.f32 %v5207, %v7886
      %v7894 = vmul.f32 %v5208, %v7886
      %v7895 = vmul.f32 %v5209, %v7886
      %v7896 = vmul.f32 %v5210, %v7886
      %v7897 = vmul.f32 %v5211, %v7886
      %v7898 = vmul.f32 %v5212, %v7886
      %v7899 = vmul.f32 %v5213, %v7886
      %v7900 = vmul.f32 %v5214, %v7886
      %v7901 = vmul.f32 %v5215, %v7886
      %v7902 = vmul.f32 %v5216, %v7886
      %v7903 = vmul.f32 %v5217, %v7886
      %v7904 = vmul.f32 %v5218, %v7886
      %v7905 = vmul.f32 %v5219, %v7886
      %v7906 = vmul.f32 %v5220, %v7886
      %v7907 = vmul.f32 %v5221, %v7886
      %v7908 = vmul.f32 %v5222, %v7886
      %v7931 = vrot.slane %v7887, 3
      %v7932 = vrot.slane %v7888, 3
      %v7933 = vsel %vm658, %v7931, %v7932
      %v7934 = vrot.slane %v7889, 3
      %v7935 = vrot.slane %v7890, 3
      %v7936 = vsel %vm658, %v7934, %v7935
      %v7937 = vrot.slane %v7891, 3
      %v7938 = vrot.slane %v7892, 3
      %v7939 = vsel %vm658, %v7937, %v7938
      %v7940 = vrot.slane %v7893, 3
      %v7941 = vrot.slane %v7894, 3
      %v7942 = vsel %vm658, %v7940, %v7941
      %v7943 = vrot.slane %v7895, 3
      %v7944 = vrot.slane %v7896, 3
      %v7945 = vsel %vm658, %v7943, %v7944
      %v7946 = vrot.slane %v7897, 3
      %v7947 = vrot.slane %v7898, 3
      %v7948 = vsel %vm658, %v7946, %v7947
      %v7949 = vrot.slane %v7899, 3
      %v7950 = vrot.slane %v7900, 3
      %v7951 = vsel %vm658, %v7949, %v7950
      %v7952 = vrot.slane %v7901, 3
      %v7953 = vrot.slane %v7902, 3
      %v7954 = vsel %vm658, %v7952, %v7953
      %v7955 = vrot.slane %v7903, 3
      %v7956 = vrot.slane %v7904, 3
      %v7957 = vsel %vm658, %v7955, %v7956
      %v7958 = vrot.slane %v7905, 3
      %v7959 = vrot.slane %v7906, 3
      %v7960 = vsel %vm658, %v7958, %v7959
      %v7961 = vrot.slane %v7907, 3
      %v7962 = vrot.slane %v7908, 3
      %v7963 = vsel %vm658, %v7961, %v7962
      %v7986 = vadd.f32 %v7861, %v7933
      %v7987 = vadd.f32 %v7862, %v7932
      %v7988 = vadd.f32 %v7863, %v7936
      %v7989 = vadd.f32 %v7864, %v7935
      %v7990 = vadd.f32 %v7865, %v7939
      %v7991 = vadd.f32 %v7866, %v7938
      %v7992 = vadd.f32 %v7867, %v7942
      %v7993 = vadd.f32 %v7868, %v7941
      %v7994 = vadd.f32 %v7869, %v7945
      %v7995 = vadd.f32 %v7870, %v7944
      %v7996 = vadd.f32 %v7871, %v7948
      %v7997 = vadd.f32 %v7872, %v7947
      %v7998 = vadd.f32 %v7873, %v7951
      %v7999 = vadd.f32 %v7874, %v7950
      %v8000 = vadd.f32 %v7875, %v7954
      %v8001 = vadd.f32 %v7876, %v7953
      %v8002 = vadd.f32 %v7877, %v7957
      %v8003 = vadd.f32 %v7878, %v7956
      %v8004 = vadd.f32 %v7879, %v7960
      %v8005 = vadd.f32 %v7880, %v7959
      %v8006 = vadd.f32 %v7881, %v7963
      %v8007 = vadd.f32 %v7882, %v7962
      %v8008 = vlaneseq
      %v8009 = vshrl.u32 %v8008, 7
      %v8010 = vsub.s32 1, %v8009
      %v8011 = vrot.slane %v6090, %v8010
      %v8012 = vmul.f32 %v5203, %v8011
      %v8013 = vmul.f32 %v5204, %v8011
      %v8014 = vmul.f32 %v5205, %v8011
      %v8015 = vmul.f32 %v5206, %v8011
      %v8016 = vmul.f32 %v5207, %v8011
      %v8017 = vmul.f32 %v5208, %v8011
      %v8018 = vmul.f32 %v5209, %v8011
      %v8019 = vmul.f32 %v5210, %v8011
      %v8020 = vmul.f32 %v5211, %v8011
      %v8021 = vmul.f32 %v5212, %v8011
      %v8022 = vmul.f32 %v5213, %v8011
      %v8023 = vmul.f32 %v5214, %v8011
      %v8024 = vmul.f32 %v5215, %v8011
      %v8025 = vmul.f32 %v5216, %v8011
      %v8026 = vmul.f32 %v5217, %v8011
      %v8027 = vmul.f32 %v5218, %v8011
      %v8028 = vmul.f32 %v5219, %v8011
      %v8029 = vmul.f32 %v5220, %v8011
      %v8030 = vmul.f32 %v5221, %v8011
      %v8031 = vmul.f32 %v5222, %v8011
      %v8032 = vmul.f32 %v5223, %v8011
      %v8033 = vmul.f32 %v5224, %v8011
      %v8056 = vrot.slane %v8012, 3
      %v8057 = vrot.slane %v8013, 3
      %v8058 = vsel %vm658, %v8056, %v8057
      %v8059 = vrot.slane %v8014, 3
      %v8060 = vrot.slane %v8015, 3
      %v8061 = vsel %vm658, %v8059, %v8060
      %v8062 = vrot.slane %v8016, 3
      %v8063 = vrot.slane %v8017, 3
      %v8064 = vsel %vm658, %v8062, %v8063
      %v8065 = vrot.slane %v8018, 3
      %v8066 = vrot.slane %v8019, 3
      %v8067 = vsel %vm658, %v8065, %v8066
      %v8068 = vrot.slane %v8020, 3
      %v8069 = vrot.slane %v8021, 3
      %v8070 = vsel %vm658, %v8068, %v8069
      %v8071 = vrot.slane %v8022, 3
      %v8072 = vrot.slane %v8023, 3
      %v8073 = vsel %vm658, %v8071, %v8072
      %v8074 = vrot.slane %v8024, 3
      %v8075 = vrot.slane %v8025, 3
      %v8076 = vsel %vm658, %v8074, %v8075
      %v8077 = vrot.slane %v8026, 3
      %v8078 = vrot.slane %v8027, 3
      %v8079 = vsel %vm658, %v8077, %v8078
      %v8080 = vrot.slane %v8028, 3
      %v8081 = vrot.slane %v8029, 3
      %v8082 = vsel %vm658, %v8080, %v8081
      %v8083 = vrot.slane %v8030, 3
      %v8084 = vrot.slane %v8031, 3
      %v8085 = vsel %vm658, %v8083, %v8084
      %v8086 = vrot.slane %v8032, 3
      %v8087 = vrot.slane %v8033, 3
      %v8088 = vsel %vm658, %v8086, %v8087
      %v8111 = vadd.f32 %v7986, %v8058
      %v8112 = vadd.f32 %v7987, %v8057
      %v8113 = vadd.f32 %v7988, %v8061
      %v8114 = vadd.f32 %v7989, %v8060
      %v8115 = vadd.f32 %v7990, %v8064
      %v8116 = vadd.f32 %v7991, %v8063
      %v8117 = vadd.f32 %v7992, %v8067
      %v8118 = vadd.f32 %v7993, %v8066
      %v8119 = vadd.f32 %v7994, %v8070
      %v8120 = vadd.f32 %v7995, %v8069
      %v8121 = vadd.f32 %v7996, %v8073
      %v8122 = vadd.f32 %v7997, %v8072
      %v8123 = vadd.f32 %v7998, %v8076
      %v8124 = vadd.f32 %v7999, %v8075
      %v8125 = vadd.f32 %v8000, %v8079
      %v8126 = vadd.f32 %v8001, %v8078
      %v8127 = vadd.f32 %v8002, %v8082
      %v8128 = vadd.f32 %v8003, %v8081
      %v8129 = vadd.f32 %v8004, %v8085
      %v8130 = vadd.f32 %v8005, %v8084
      %v8131 = vadd.f32 %v8006, %v8088
      %v8132 = vadd.f32 %v8007, %v8087
      %v8133 = vlaneseq
      %v8134 = vshrl.u32 %v8133, 7
      %v8135 = vsub.s32 7, %v8134
      %v8136 = vrot.slane %v6090, %v8135
      %v8137 = vmul.f32 %v5205, %v8136
      %v8138 = vmul.f32 %v5206, %v8136
      %v8139 = vmul.f32 %v5207, %v8136
      %v8140 = vmul.f32 %v5208, %v8136
      %v8141 = vmul.f32 %v5209, %v8136
      %v8142 = vmul.f32 %v5210, %v8136
      %v8143 = vmul.f32 %v5211, %v8136
      %v8144 = vmul.f32 %v5212, %v8136
      %v8145 = vmul.f32 %v5213, %v8136
      %v8146 = vmul.f32 %v5214, %v8136
      %v8147 = vmul.f32 %v5215, %v8136
      %v8148 = vmul.f32 %v5216, %v8136
      %v8149 = vmul.f32 %v5217, %v8136
      %v8150 = vmul.f32 %v5218, %v8136
      %v8151 = vmul.f32 %v5219, %v8136
      %v8152 = vmul.f32 %v5220, %v8136
      %v8153 = vmul.f32 %v5221, %v8136
      %v8154 = vmul.f32 %v5222, %v8136
      %v8155 = vmul.f32 %v5223, %v8136
      %v8156 = vmul.f32 %v5224, %v8136
      %v8157 = vmul.f32 %v5225, %v8136
      %v8158 = vmul.f32 %v5226, %v8136
      %v8181 = vrot.slane %v8137, 3
      %v8182 = vrot.slane %v8138, 3
      %v8183 = vsel %vm658, %v8181, %v8182
      %v8184 = vrot.slane %v8139, 3
      %v8185 = vrot.slane %v8140, 3
      %v8186 = vsel %vm658, %v8184, %v8185
      %v8187 = vrot.slane %v8141, 3
      %v8188 = vrot.slane %v8142, 3
      %v8189 = vsel %vm658, %v8187, %v8188
      %v8190 = vrot.slane %v8143, 3
      %v8191 = vrot.slane %v8144, 3
      %v8192 = vsel %vm658, %v8190, %v8191
      %v8193 = vrot.slane %v8145, 3
      %v8194 = vrot.slane %v8146, 3
      %v8195 = vsel %vm658, %v8193, %v8194
      %v8196 = vrot.slane %v8147, 3
      %v8197 = vrot.slane %v8148, 3
      %v8198 = vsel %vm658, %v8196, %v8197
      %v8199 = vrot.slane %v8149, 3
      %v8200 = vrot.slane %v8150, 3
      %v8201 = vsel %vm658, %v8199, %v8200
      %v8202 = vrot.slane %v8151, 3
      %v8203 = vrot.slane %v8152, 3
      %v8204 = vsel %vm658, %v8202, %v8203
      %v8205 = vrot.slane %v8153, 3
      %v8206 = vrot.slane %v8154, 3
      %v8207 = vsel %vm658, %v8205, %v8206
      %v8208 = vrot.slane %v8155, 3
      %v8209 = vrot.slane %v8156, 3
      %v8210 = vsel %vm658, %v8208, %v8209
      %v8211 = vrot.slane %v8157, 3
      %v8212 = vrot.slane %v8158, 3
      %v8213 = vsel %vm658, %v8211, %v8212
      %v8236 = vadd.f32 %v8111, %v8183
      %v8237 = vadd.f32 %v8112, %v8182
      %v8238 = vadd.f32 %v8113, %v8186
      %v8239 = vadd.f32 %v8114, %v8185
      %v8240 = vadd.f32 %v8115, %v8189
      %v8241 = vadd.f32 %v8116, %v8188
      %v8242 = vadd.f32 %v8117, %v8192
      %v8243 = vadd.f32 %v8118, %v8191
      %v8244 = vadd.f32 %v8119, %v8195
      %v8245 = vadd.f32 %v8120, %v8194
      %v8246 = vadd.f32 %v8121, %v8198
      %v8247 = vadd.f32 %v8122, %v8197
      %v8248 = vadd.f32 %v8123, %v8201
      %v8249 = vadd.f32 %v8124, %v8200
      %v8250 = vadd.f32 %v8125, %v8204
      %v8251 = vadd.f32 %v8126, %v8203
      %v8252 = vadd.f32 %v8127, %v8207
      %v8253 = vadd.f32 %v8128, %v8206
      %v8254 = vadd.f32 %v8129, %v8210
      %v8255 = vadd.f32 %v8130, %v8209
      %v8256 = vadd.f32 %v8131, %v8213
      %v8257 = vadd.f32 %v8132, %v8212
      %v8258 = vlaneseq
      %v8259 = vshrl.u32 %v8258, 7
      %v8260 = vsub.s32 5, %v8259
      %v8261 = vrot.slane %v6091, %v8260
      %v8262 = vmul.f32 %v5207, %v8261
      %v8263 = vmul.f32 %v5208, %v8261
      %v8264 = vmul.f32 %v5209, %v8261
      %v8265 = vmul.f32 %v5210, %v8261
      %v8266 = vmul.f32 %v5211, %v8261
      %v8267 = vmul.f32 %v5212, %v8261
      %v8268 = vmul.f32 %v5213, %v8261
      %v8269 = vmul.f32 %v5214, %v8261
      %v8270 = vmul.f32 %v5215, %v8261
      %v8271 = vmul.f32 %v5216, %v8261
      %v8272 = vmul.f32 %v5217, %v8261
      %v8273 = vmul.f32 %v5218, %v8261
      %v8274 = vmul.f32 %v5219, %v8261
      %v8275 = vmul.f32 %v5220, %v8261
      %v8276 = vmul.f32 %v5221, %v8261
      %v8277 = vmul.f32 %v5222, %v8261
      %v8278 = vmul.f32 %v5223, %v8261
      %v8279 = vmul.f32 %v5224, %v8261
      %v8280 = vmul.f32 %v5225, %v8261
      %v8281 = vmul.f32 %v5226, %v8261
      %v8282 = vmul.f32 %v5227, %v8261
      %v8283 = vmul.f32 %v5228, %v8261
      %v8306 = vrot.slane %v8262, 3
      %v8307 = vrot.slane %v8263, 3
      %v8308 = vsel %vm658, %v8306, %v8307
      %v8309 = vrot.slane %v8264, 3
      %v8310 = vrot.slane %v8265, 3
      %v8311 = vsel %vm658, %v8309, %v8310
      %v8312 = vrot.slane %v8266, 3
      %v8313 = vrot.slane %v8267, 3
      %v8314 = vsel %vm658, %v8312, %v8313
      %v8315 = vrot.slane %v8268, 3
      %v8316 = vrot.slane %v8269, 3
      %v8317 = vsel %vm658, %v8315, %v8316
      %v8318 = vrot.slane %v8270, 3
      %v8319 = vrot.slane %v8271, 3
      %v8320 = vsel %vm658, %v8318, %v8319
      %v8321 = vrot.slane %v8272, 3
      %v8322 = vrot.slane %v8273, 3
      %v8323 = vsel %vm658, %v8321, %v8322
      %v8324 = vrot.slane %v8274, 3
      %v8325 = vrot.slane %v8275, 3
      %v8326 = vsel %vm658, %v8324, %v8325
      %v8327 = vrot.slane %v8276, 3
      %v8328 = vrot.slane %v8277, 3
      %v8329 = vsel %vm658, %v8327, %v8328
      %v8330 = vrot.slane %v8278, 3
      %v8331 = vrot.slane %v8279, 3
      %v8332 = vsel %vm658, %v8330, %v8331
      %v8333 = vrot.slane %v8280, 3
      %v8334 = vrot.slane %v8281, 3
      %v8335 = vsel %vm658, %v8333, %v8334
      %v8336 = vrot.slane %v8282, 3
      %v8337 = vrot.slane %v8283, 3
      %v8338 = vsel %vm658, %v8336, %v8337
      %v8361 = vadd.f32 %v8236, %v8308
      %v8362 = vadd.f32 %v8237, %v8307
      %v8363 = vadd.f32 %v8238, %v8311
      %v8364 = vadd.f32 %v8239, %v8310
      %v8365 = vadd.f32 %v8240, %v8314
      %v8366 = vadd.f32 %v8241, %v8313
      %v8367 = vadd.f32 %v8242, %v8317
      %v8368 = vadd.f32 %v8243, %v8316
      %v8369 = vadd.f32 %v8244, %v8320
      %v8370 = vadd.f32 %v8245, %v8319
      %v8371 = vadd.f32 %v8246, %v8323
      %v8372 = vadd.f32 %v8247, %v8322
      %v8373 = vadd.f32 %v8248, %v8326
      %v8374 = vadd.f32 %v8249, %v8325
      %v8375 = vadd.f32 %v8250, %v8329
      %v8376 = vadd.f32 %v8251, %v8328
      %v8377 = vadd.f32 %v8252, %v8332
      %v8378 = vadd.f32 %v8253, %v8331
      %v8379 = vadd.f32 %v8254, %v8335
      %v8380 = vadd.f32 %v8255, %v8334
      %v8381 = vadd.f32 %v8256, %v8338
      %v8382 = vadd.f32 %v8257, %v8337
      %v8383 = vlaneseq
      %v8384 = vshrl.u32 %v8383, 7
      %v8385 = vsub.s32 3, %v8384
      %v8386 = vrot.slane %v6092, %v8385
      %v8387 = vmul.f32 %v5209, %v8386
      %v8388 = vmul.f32 %v5210, %v8386
      %v8389 = vmul.f32 %v5211, %v8386
      %v8390 = vmul.f32 %v5212, %v8386
      %v8391 = vmul.f32 %v5213, %v8386
      %v8392 = vmul.f32 %v5214, %v8386
      %v8393 = vmul.f32 %v5215, %v8386
      %v8394 = vmul.f32 %v5216, %v8386
      %v8395 = vmul.f32 %v5217, %v8386
      %v8396 = vmul.f32 %v5218, %v8386
      %v8397 = vmul.f32 %v5219, %v8386
      %v8398 = vmul.f32 %v5220, %v8386
      %v8399 = vmul.f32 %v5221, %v8386
      %v8400 = vmul.f32 %v5222, %v8386
      %v8401 = vmul.f32 %v5223, %v8386
      %v8402 = vmul.f32 %v5224, %v8386
      %v8403 = vmul.f32 %v5225, %v8386
      %v8404 = vmul.f32 %v5226, %v8386
      %v8405 = vmul.f32 %v5227, %v8386
      %v8406 = vmul.f32 %v5228, %v8386
      %v8407 = vmul.f32 %v5229, %v8386
      %v8408 = vmul.f32 %v5230, %v8386
      %v8431 = vrot.slane %v8387, 3
      %v8432 = vrot.slane %v8388, 3
      %v8433 = vsel %vm658, %v8431, %v8432
      %v8434 = vrot.slane %v8389, 3
      %v8435 = vrot.slane %v8390, 3
      %v8436 = vsel %vm658, %v8434, %v8435
      %v8437 = vrot.slane %v8391, 3
      %v8438 = vrot.slane %v8392, 3
      %v8439 = vsel %vm658, %v8437, %v8438
      %v8440 = vrot.slane %v8393, 3
      %v8441 = vrot.slane %v8394, 3
      %v8442 = vsel %vm658, %v8440, %v8441
      %v8443 = vrot.slane %v8395, 3
      %v8444 = vrot.slane %v8396, 3
      %v8445 = vsel %vm658, %v8443, %v8444
      %v8446 = vrot.slane %v8397, 3
      %v8447 = vrot.slane %v8398, 3
      %v8448 = vsel %vm658, %v8446, %v8447
      %v8449 = vrot.slane %v8399, 3
      %v8450 = vrot.slane %v8400, 3
      %v8451 = vsel %vm658, %v8449, %v8450
      %v8452 = vrot.slane %v8401, 3
      %v8453 = vrot.slane %v8402, 3
      %v8454 = vsel %vm658, %v8452, %v8453
      %v8455 = vrot.slane %v8403, 3
      %v8456 = vrot.slane %v8404, 3
      %v8457 = vsel %vm658, %v8455, %v8456
      %v8458 = vrot.slane %v8405, 3
      %v8459 = vrot.slane %v8406, 3
      %v8460 = vsel %vm658, %v8458, %v8459
      %v8461 = vrot.slane %v8407, 3
      %v8462 = vrot.slane %v8408, 3
      %v8463 = vsel %vm658, %v8461, %v8462
      %v8486 = vadd.f32 %v8361, %v8433
      %v8487 = vadd.f32 %v8362, %v8432
      %v8488 = vadd.f32 %v8363, %v8436
      %v8489 = vadd.f32 %v8364, %v8435
      %v8490 = vadd.f32 %v8365, %v8439
      %v8491 = vadd.f32 %v8366, %v8438
      %v8492 = vadd.f32 %v8367, %v8442
      %v8493 = vadd.f32 %v8368, %v8441
      %v8494 = vadd.f32 %v8369, %v8445
      %v8495 = vadd.f32 %v8370, %v8444
      %v8496 = vadd.f32 %v8371, %v8448
      %v8497 = vadd.f32 %v8372, %v8447
      %v8498 = vadd.f32 %v8373, %v8451
      %v8499 = vadd.f32 %v8374, %v8450
      %v8500 = vadd.f32 %v8375, %v8454
      %v8501 = vadd.f32 %v8376, %v8453
      %v8502 = vadd.f32 %v8377, %v8457
      %v8503 = vadd.f32 %v8378, %v8456
      %v8504 = vadd.f32 %v8379, %v8460
      %v8505 = vadd.f32 %v8380, %v8459
      %v8506 = vadd.f32 %v8381, %v8463
      %v8507 = vadd.f32 %v8382, %v8462
      %v8508 = vlaneseq
      %v8509 = vshrl.u32 %v8508, 7
      %v8510 = vsub.s32 1, %v8509
      %v8511 = vrot.slane %v6093, %v8510
      %v8512 = vmul.f32 %v5211, %v8511
      %v8513 = vmul.f32 %v5212, %v8511
      %v8514 = vmul.f32 %v5213, %v8511
      %v8515 = vmul.f32 %v5214, %v8511
      %v8516 = vmul.f32 %v5215, %v8511
      %v8517 = vmul.f32 %v5216, %v8511
      %v8518 = vmul.f32 %v5217, %v8511
      %v8519 = vmul.f32 %v5218, %v8511
      %v8520 = vmul.f32 %v5219, %v8511
      %v8521 = vmul.f32 %v5220, %v8511
      %v8522 = vmul.f32 %v5221, %v8511
      %v8523 = vmul.f32 %v5222, %v8511
      %v8524 = vmul.f32 %v5223, %v8511
      %v8525 = vmul.f32 %v5224, %v8511
      %v8526 = vmul.f32 %v5225, %v8511
      %v8527 = vmul.f32 %v5226, %v8511
      %v8528 = vmul.f32 %v5227, %v8511
      %v8529 = vmul.f32 %v5228, %v8511
      %v8530 = vmul.f32 %v5229, %v8511
      %v8531 = vmul.f32 %v5230, %v8511
      %v8532 = vmul.f32 %v5231, %v8511
      %v8533 = vmul.f32 %v5232, %v8511
      %v8556 = vrot.slane %v8512, 3
      %v8557 = vrot.slane %v8513, 3
      %v8558 = vsel %vm658, %v8556, %v8557
      %v8559 = vrot.slane %v8514, 3
      %v8560 = vrot.slane %v8515, 3
      %v8561 = vsel %vm658, %v8559, %v8560
      %v8562 = vrot.slane %v8516, 3
      %v8563 = vrot.slane %v8517, 3
      %v8564 = vsel %vm658, %v8562, %v8563
      %v8565 = vrot.slane %v8518, 3
      %v8566 = vrot.slane %v8519, 3
      %v8567 = vsel %vm658, %v8565, %v8566
      %v8568 = vrot.slane %v8520, 3
      %v8569 = vrot.slane %v8521, 3
      %v8570 = vsel %vm658, %v8568, %v8569
      %v8571 = vrot.slane %v8522, 3
      %v8572 = vrot.slane %v8523, 3
      %v8573 = vsel %vm658, %v8571, %v8572
      %v8574 = vrot.slane %v8524, 3
      %v8575 = vrot.slane %v8525, 3
      %v8576 = vsel %vm658, %v8574, %v8575
      %v8577 = vrot.slane %v8526, 3
      %v8578 = vrot.slane %v8527, 3
      %v8579 = vsel %vm658, %v8577, %v8578
      %v8580 = vrot.slane %v8528, 3
      %v8581 = vrot.slane %v8529, 3
      %v8582 = vsel %vm658, %v8580, %v8581
      %v8583 = vrot.slane %v8530, 3
      %v8584 = vrot.slane %v8531, 3
      %v8585 = vsel %vm658, %v8583, %v8584
      %v8586 = vrot.slane %v8532, 3
      %v8587 = vrot.slane %v8533, 3
      %v8588 = vsel %vm658, %v8586, %v8587
      %v8611 = vadd.f32 %v8486, %v8558
      %v8612 = vadd.f32 %v8487, %v8557
      %v8613 = vadd.f32 %v8488, %v8561
      %v8614 = vadd.f32 %v8489, %v8560
      %v8615 = vadd.f32 %v8490, %v8564
      %v8616 = vadd.f32 %v8491, %v8563
      %v8617 = vadd.f32 %v8492, %v8567
      %v8618 = vadd.f32 %v8493, %v8566
      %v8619 = vadd.f32 %v8494, %v8570
      %v8620 = vadd.f32 %v8495, %v8569
      %v8621 = vadd.f32 %v8496, %v8573
      %v8622 = vadd.f32 %v8497, %v8572
      %v8623 = vadd.f32 %v8498, %v8576
      %v8624 = vadd.f32 %v8499, %v8575
      %v8625 = vadd.f32 %v8500, %v8579
      %v8626 = vadd.f32 %v8501, %v8578
      %v8627 = vadd.f32 %v8502, %v8582
      %v8628 = vadd.f32 %v8503, %v8581
      %v8629 = vadd.f32 %v8504, %v8585
      %v8630 = vadd.f32 %v8505, %v8584
      %v8631 = vadd.f32 %v8506, %v8588
      %v8632 = vadd.f32 %v8507, %v8587
      %v8633 = vlaneseq
      %v8634 = vshrl.u32 %v8633, 7
      %v8635 = vsub.s32 4, %v8634
      %v8636 = vrot.slane %v6089, %v8635
      %v8637 = vmul.f32 %v5201, %v8636
      %v8638 = vmul.f32 %v5202, %v8636
      %v8639 = vmul.f32 %v5203, %v8636
      %v8640 = vmul.f32 %v5204, %v8636
      %v8641 = vmul.f32 %v5205, %v8636
      %v8642 = vmul.f32 %v5206, %v8636
      %v8643 = vmul.f32 %v5207, %v8636
      %v8644 = vmul.f32 %v5208, %v8636
      %v8645 = vmul.f32 %v5209, %v8636
      %v8646 = vmul.f32 %v5210, %v8636
      %v8647 = vmul.f32 %v5211, %v8636
      %v8648 = vmul.f32 %v5212, %v8636
      %v8649 = vmul.f32 %v5213, %v8636
      %v8650 = vmul.f32 %v5214, %v8636
      %v8651 = vmul.f32 %v5215, %v8636
      %v8652 = vmul.f32 %v5216, %v8636
      %v8653 = vmul.f32 %v5217, %v8636
      %v8654 = vmul.f32 %v5218, %v8636
      %v8655 = vmul.f32 %v5219, %v8636
      %v8656 = vmul.f32 %v5220, %v8636
      %v8657 = vmul.f32 %v5221, %v8636
      %v8658 = vmul.f32 %v5222, %v8636
      %vm8681 = vcmask 1043456
      %v8682 = vrot.slane %v8637, 4
      %v8683 = vrot.slane %v8638, 4
      %v8684 = vsel %vm8681, %v8682, %v8683
      %v8685 = vrot.slane %v8639, 4
      %v8686 = vrot.slane %v8640, 4
      %v8687 = vsel %vm8681, %v8685, %v8686
      %v8688 = vrot.slane %v8641, 4
      %v8689 = vrot.slane %v8642, 4
      %v8690 = vsel %vm8681, %v8688, %v8689
      %v8691 = vrot.slane %v8643, 4
      %v8692 = vrot.slane %v8644, 4
      %v8693 = vsel %vm8681, %v8691, %v8692
      %v8694 = vrot.slane %v8645, 4
      %v8695 = vrot.slane %v8646, 4
      %v8696 = vsel %vm8681, %v8694, %v8695
      %v8697 = vrot.slane %v8647, 4
      %v8698 = vrot.slane %v8648, 4
      %v8699 = vsel %vm8681, %v8697, %v8698
      %v8700 = vrot.slane %v8649, 4
      %v8701 = vrot.slane %v8650, 4
      %v8702 = vsel %vm8681, %v8700, %v8701
      %v8703 = vrot.slane %v8651, 4
      %v8704 = vrot.slane %v8652, 4
      %v8705 = vsel %vm8681, %v8703, %v8704
      %v8706 = vrot.slane %v8653, 4
      %v8707 = vrot.slane %v8654, 4
      %v8708 = vsel %vm8681, %v8706, %v8707
      %v8709 = vrot.slane %v8655, 4
      %v8710 = vrot.slane %v8656, 4
      %v8711 = vsel %vm8681, %v8709, %v8710
      %v8712 = vrot.slane %v8657, 4
      %v8713 = vrot.slane %v8658, 4
      %v8714 = vsel %vm8681, %v8712, %v8713
      %v8737 = vadd.f32 %v8611, %v8684
      %v8738 = vadd.f32 %v8612, %v8683
      %v8739 = vadd.f32 %v8613, %v8687
      %v8740 = vadd.f32 %v8614, %v8686
      %v8741 = vadd.f32 %v8615, %v8690
      %v8742 = vadd.f32 %v8616, %v8689
      %v8743 = vadd.f32 %v8617, %v8693
      %v8744 = vadd.f32 %v8618, %v8692
      %v8745 = vadd.f32 %v8619, %v8696
      %v8746 = vadd.f32 %v8620, %v8695
      %v8747 = vadd.f32 %v8621, %v8699
      %v8748 = vadd.f32 %v8622, %v8698
      %v8749 = vadd.f32 %v8623, %v8702
      %v8750 = vadd.f32 %v8624, %v8701
      %v8751 = vadd.f32 %v8625, %v8705
      %v8752 = vadd.f32 %v8626, %v8704
      %v8753 = vadd.f32 %v8627, %v8708
      %v8754 = vadd.f32 %v8628, %v8707
      %v8755 = vadd.f32 %v8629, %v8711
      %v8756 = vadd.f32 %v8630, %v8710
      %v8757 = vadd.f32 %v8631, %v8714
      %v8758 = vadd.f32 %v8632, %v8713
      %v8759 = vlaneseq
      %v8760 = vshrl.u32 %v8759, 7
      %v8761 = vsub.s32 2, %v8760
      %v8762 = vrot.slane %v6090, %v8761
      %v8763 = vmul.f32 %v5203, %v8762
      %v8764 = vmul.f32 %v5204, %v8762
      %v8765 = vmul.f32 %v5205, %v8762
      %v8766 = vmul.f32 %v5206, %v8762
      %v8767 = vmul.f32 %v5207, %v8762
      %v8768 = vmul.f32 %v5208, %v8762
      %v8769 = vmul.f32 %v5209, %v8762
      %v8770 = vmul.f32 %v5210, %v8762
      %v8771 = vmul.f32 %v5211, %v8762
      %v8772 = vmul.f32 %v5212, %v8762
      %v8773 = vmul.f32 %v5213, %v8762
      %v8774 = vmul.f32 %v5214, %v8762
      %v8775 = vmul.f32 %v5215, %v8762
      %v8776 = vmul.f32 %v5216, %v8762
      %v8777 = vmul.f32 %v5217, %v8762
      %v8778 = vmul.f32 %v5218, %v8762
      %v8779 = vmul.f32 %v5219, %v8762
      %v8780 = vmul.f32 %v5220, %v8762
      %v8781 = vmul.f32 %v5221, %v8762
      %v8782 = vmul.f32 %v5222, %v8762
      %v8783 = vmul.f32 %v5223, %v8762
      %v8784 = vmul.f32 %v5224, %v8762
      %v8807 = vrot.slane %v8763, 4
      %v8808 = vrot.slane %v8764, 4
      %v8809 = vsel %vm8681, %v8807, %v8808
      %v8810 = vrot.slane %v8765, 4
      %v8811 = vrot.slane %v8766, 4
      %v8812 = vsel %vm8681, %v8810, %v8811
      %v8813 = vrot.slane %v8767, 4
      %v8814 = vrot.slane %v8768, 4
      %v8815 = vsel %vm8681, %v8813, %v8814
      %v8816 = vrot.slane %v8769, 4
      %v8817 = vrot.slane %v8770, 4
      %v8818 = vsel %vm8681, %v8816, %v8817
      %v8819 = vrot.slane %v8771, 4
      %v8820 = vrot.slane %v8772, 4
      %v8821 = vsel %vm8681, %v8819, %v8820
      %v8822 = vrot.slane %v8773, 4
      %v8823 = vrot.slane %v8774, 4
      %v8824 = vsel %vm8681, %v8822, %v8823
      %v8825 = vrot.slane %v8775, 4
      %v8826 = vrot.slane %v8776, 4
      %v8827 = vsel %vm8681, %v8825, %v8826
      %v8828 = vrot.slane %v8777, 4
      %v8829 = vrot.slane %v8778, 4
      %v8830 = vsel %vm8681, %v8828, %v8829
      %v8831 = vrot.slane %v8779, 4
      %v8832 = vrot.slane %v8780, 4
      %v8833 = vsel %vm8681, %v8831, %v8832
      %v8834 = vrot.slane %v8781, 4
      %v8835 = vrot.slane %v8782, 4
      %v8836 = vsel %vm8681, %v8834, %v8835
      %v8837 = vrot.slane %v8783, 4
      %v8838 = vrot.slane %v8784, 4
      %v8839 = vsel %vm8681, %v8837, %v8838
      %v8862 = vadd.f32 %v8737, %v8809
      %v8863 = vadd.f32 %v8738, %v8808
      %v8864 = vadd.f32 %v8739, %v8812
      %v8865 = vadd.f32 %v8740, %v8811
      %v8866 = vadd.f32 %v8741, %v8815
      %v8867 = vadd.f32 %v8742, %v8814
      %v8868 = vadd.f32 %v8743, %v8818
      %v8869 = vadd.f32 %v8744, %v8817
      %v8870 = vadd.f32 %v8745, %v8821
      %v8871 = vadd.f32 %v8746, %v8820
      %v8872 = vadd.f32 %v8747, %v8824
      %v8873 = vadd.f32 %v8748, %v8823
      %v8874 = vadd.f32 %v8749, %v8827
      %v8875 = vadd.f32 %v8750, %v8826
      %v8876 = vadd.f32 %v8751, %v8830
      %v8877 = vadd.f32 %v8752, %v8829
      %v8878 = vadd.f32 %v8753, %v8833
      %v8879 = vadd.f32 %v8754, %v8832
      %v8880 = vadd.f32 %v8755, %v8836
      %v8881 = vadd.f32 %v8756, %v8835
      %v8882 = vadd.f32 %v8757, %v8839
      %v8883 = vadd.f32 %v8758, %v8838
      %v8884 = vlaneseq
      %v8885 = vshrl.u32 %v8884, 7
      %v8886 = vsub.s32 0, %v8885
      %v8887 = vrot.slane %v6091, %v8886
      %v8888 = vmul.f32 %v5205, %v8887
      %v8889 = vmul.f32 %v5206, %v8887
      %v8890 = vmul.f32 %v5207, %v8887
      %v8891 = vmul.f32 %v5208, %v8887
      %v8892 = vmul.f32 %v5209, %v8887
      %v8893 = vmul.f32 %v5210, %v8887
      %v8894 = vmul.f32 %v5211, %v8887
      %v8895 = vmul.f32 %v5212, %v8887
      %v8896 = vmul.f32 %v5213, %v8887
      %v8897 = vmul.f32 %v5214, %v8887
      %v8898 = vmul.f32 %v5215, %v8887
      %v8899 = vmul.f32 %v5216, %v8887
      %v8900 = vmul.f32 %v5217, %v8887
      %v8901 = vmul.f32 %v5218, %v8887
      %v8902 = vmul.f32 %v5219, %v8887
      %v8903 = vmul.f32 %v5220, %v8887
      %v8904 = vmul.f32 %v5221, %v8887
      %v8905 = vmul.f32 %v5222, %v8887
      %v8906 = vmul.f32 %v5223, %v8887
      %v8907 = vmul.f32 %v5224, %v8887
      %v8908 = vmul.f32 %v5225, %v8887
      %v8909 = vmul.f32 %v5226, %v8887
      %v8932 = vrot.slane %v8888, 4
      %v8933 = vrot.slane %v8889, 4
      %v8934 = vsel %vm8681, %v8932, %v8933
      %v8935 = vrot.slane %v8890, 4
      %v8936 = vrot.slane %v8891, 4
      %v8937 = vsel %vm8681, %v8935, %v8936
      %v8938 = vrot.slane %v8892, 4
      %v8939 = vrot.slane %v8893, 4
      %v8940 = vsel %vm8681, %v8938, %v8939
      %v8941 = vrot.slane %v8894, 4
      %v8942 = vrot.slane %v8895, 4
      %v8943 = vsel %vm8681, %v8941, %v8942
      %v8944 = vrot.slane %v8896, 4
      %v8945 = vrot.slane %v8897, 4
      %v8946 = vsel %vm8681, %v8944, %v8945
      %v8947 = vrot.slane %v8898, 4
      %v8948 = vrot.slane %v8899, 4
      %v8949 = vsel %vm8681, %v8947, %v8948
      %v8950 = vrot.slane %v8900, 4
      %v8951 = vrot.slane %v8901, 4
      %v8952 = vsel %vm8681, %v8950, %v8951
      %v8953 = vrot.slane %v8902, 4
      %v8954 = vrot.slane %v8903, 4
      %v8955 = vsel %vm8681, %v8953, %v8954
      %v8956 = vrot.slane %v8904, 4
      %v8957 = vrot.slane %v8905, 4
      %v8958 = vsel %vm8681, %v8956, %v8957
      %v8959 = vrot.slane %v8906, 4
      %v8960 = vrot.slane %v8907, 4
      %v8961 = vsel %vm8681, %v8959, %v8960
      %v8962 = vrot.slane %v8908, 4
      %v8963 = vrot.slane %v8909, 4
      %v8964 = vsel %vm8681, %v8962, %v8963
      %v8987 = vadd.f32 %v8862, %v8934
      %v8988 = vadd.f32 %v8863, %v8933
      %v8989 = vadd.f32 %v8864, %v8937
      %v8990 = vadd.f32 %v8865, %v8936
      %v8991 = vadd.f32 %v8866, %v8940
      %v8992 = vadd.f32 %v8867, %v8939
      %v8993 = vadd.f32 %v8868, %v8943
      %v8994 = vadd.f32 %v8869, %v8942
      %v8995 = vadd.f32 %v8870, %v8946
      %v8996 = vadd.f32 %v8871, %v8945
      %v8997 = vadd.f32 %v8872, %v8949
      %v8998 = vadd.f32 %v8873, %v8948
      %v8999 = vadd.f32 %v8874, %v8952
      %v9000 = vadd.f32 %v8875, %v8951
      %v9001 = vadd.f32 %v8876, %v8955
      %v9002 = vadd.f32 %v8877, %v8954
      %v9003 = vadd.f32 %v8878, %v8958
      %v9004 = vadd.f32 %v8879, %v8957
      %v9005 = vadd.f32 %v8880, %v8961
      %v9006 = vadd.f32 %v8881, %v8960
      %v9007 = vadd.f32 %v8882, %v8964
      %v9008 = vadd.f32 %v8883, %v8963
      %v9009 = vlaneseq
      %v9010 = vshrl.u32 %v9009, 7
      %v9011 = vsub.s32 6, %v9010
      %v9012 = vrot.slane %v6091, %v9011
      %v9013 = vmul.f32 %v5207, %v9012
      %v9014 = vmul.f32 %v5208, %v9012
      %v9015 = vmul.f32 %v5209, %v9012
      %v9016 = vmul.f32 %v5210, %v9012
      %v9017 = vmul.f32 %v5211, %v9012
      %v9018 = vmul.f32 %v5212, %v9012
      %v9019 = vmul.f32 %v5213, %v9012
      %v9020 = vmul.f32 %v5214, %v9012
      %v9021 = vmul.f32 %v5215, %v9012
      %v9022 = vmul.f32 %v5216, %v9012
      %v9023 = vmul.f32 %v5217, %v9012
      %v9024 = vmul.f32 %v5218, %v9012
      %v9025 = vmul.f32 %v5219, %v9012
      %v9026 = vmul.f32 %v5220, %v9012
      %v9027 = vmul.f32 %v5221, %v9012
      %v9028 = vmul.f32 %v5222, %v9012
      %v9029 = vmul.f32 %v5223, %v9012
      %v9030 = vmul.f32 %v5224, %v9012
      %v9031 = vmul.f32 %v5225, %v9012
      %v9032 = vmul.f32 %v5226, %v9012
      %v9033 = vmul.f32 %v5227, %v9012
      %v9034 = vmul.f32 %v5228, %v9012
      %v9057 = vrot.slane %v9013, 4
      %v9058 = vrot.slane %v9014, 4
      %v9059 = vsel %vm8681, %v9057, %v9058
      %v9060 = vrot.slane %v9015, 4
      %v9061 = vrot.slane %v9016, 4
      %v9062 = vsel %vm8681, %v9060, %v9061
      %v9063 = vrot.slane %v9017, 4
      %v9064 = vrot.slane %v9018, 4
      %v9065 = vsel %vm8681, %v9063, %v9064
      %v9066 = vrot.slane %v9019, 4
      %v9067 = vrot.slane %v9020, 4
      %v9068 = vsel %vm8681, %v9066, %v9067
      %v9069 = vrot.slane %v9021, 4
      %v9070 = vrot.slane %v9022, 4
      %v9071 = vsel %vm8681, %v9069, %v9070
      %v9072 = vrot.slane %v9023, 4
      %v9073 = vrot.slane %v9024, 4
      %v9074 = vsel %vm8681, %v9072, %v9073
      %v9075 = vrot.slane %v9025, 4
      %v9076 = vrot.slane %v9026, 4
      %v9077 = vsel %vm8681, %v9075, %v9076
      %v9078 = vrot.slane %v9027, 4
      %v9079 = vrot.slane %v9028, 4
      %v9080 = vsel %vm8681, %v9078, %v9079
      %v9081 = vrot.slane %v9029, 4
      %v9082 = vrot.slane %v9030, 4
      %v9083 = vsel %vm8681, %v9081, %v9082
      %v9084 = vrot.slane %v9031, 4
      %v9085 = vrot.slane %v9032, 4
      %v9086 = vsel %vm8681, %v9084, %v9085
      %v9087 = vrot.slane %v9033, 4
      %v9088 = vrot.slane %v9034, 4
      %v9089 = vsel %vm8681, %v9087, %v9088
      %v9112 = vadd.f32 %v8987, %v9059
      %v9113 = vadd.f32 %v8988, %v9058
      %v9114 = vadd.f32 %v8989, %v9062
      %v9115 = vadd.f32 %v8990, %v9061
      %v9116 = vadd.f32 %v8991, %v9065
      %v9117 = vadd.f32 %v8992, %v9064
      %v9118 = vadd.f32 %v8993, %v9068
      %v9119 = vadd.f32 %v8994, %v9067
      %v9120 = vadd.f32 %v8995, %v9071
      %v9121 = vadd.f32 %v8996, %v9070
      %v9122 = vadd.f32 %v8997, %v9074
      %v9123 = vadd.f32 %v8998, %v9073
      %v9124 = vadd.f32 %v8999, %v9077
      %v9125 = vadd.f32 %v9000, %v9076
      %v9126 = vadd.f32 %v9001, %v9080
      %v9127 = vadd.f32 %v9002, %v9079
      %v9128 = vadd.f32 %v9003, %v9083
      %v9129 = vadd.f32 %v9004, %v9082
      %v9130 = vadd.f32 %v9005, %v9086
      %v9131 = vadd.f32 %v9006, %v9085
      %v9132 = vadd.f32 %v9007, %v9089
      %v9133 = vadd.f32 %v9008, %v9088
      %v9134 = vlaneseq
      %v9135 = vshrl.u32 %v9134, 7
      %v9136 = vsub.s32 4, %v9135
      %v9137 = vrot.slane %v6092, %v9136
      %v9138 = vmul.f32 %v5209, %v9137
      %v9139 = vmul.f32 %v5210, %v9137
      %v9140 = vmul.f32 %v5211, %v9137
      %v9141 = vmul.f32 %v5212, %v9137
      %v9142 = vmul.f32 %v5213, %v9137
      %v9143 = vmul.f32 %v5214, %v9137
      %v9144 = vmul.f32 %v5215, %v9137
      %v9145 = vmul.f32 %v5216, %v9137
      %v9146 = vmul.f32 %v5217, %v9137
      %v9147 = vmul.f32 %v5218, %v9137
      %v9148 = vmul.f32 %v5219, %v9137
      %v9149 = vmul.f32 %v5220, %v9137
      %v9150 = vmul.f32 %v5221, %v9137
      %v9151 = vmul.f32 %v5222, %v9137
      %v9152 = vmul.f32 %v5223, %v9137
      %v9153 = vmul.f32 %v5224, %v9137
      %v9154 = vmul.f32 %v5225, %v9137
      %v9155 = vmul.f32 %v5226, %v9137
      %v9156 = vmul.f32 %v5227, %v9137
      %v9157 = vmul.f32 %v5228, %v9137
      %v9158 = vmul.f32 %v5229, %v9137
      %v9159 = vmul.f32 %v5230, %v9137
      %v9182 = vrot.slane %v9138, 4
      %v9183 = vrot.slane %v9139, 4
      %v9184 = vsel %vm8681, %v9182, %v9183
      %v9185 = vrot.slane %v9140, 4
      %v9186 = vrot.slane %v9141, 4
      %v9187 = vsel %vm8681, %v9185, %v9186
      %v9188 = vrot.slane %v9142, 4
      %v9189 = vrot.slane %v9143, 4
      %v9190 = vsel %vm8681, %v9188, %v9189
      %v9191 = vrot.slane %v9144, 4
      %v9192 = vrot.slane %v9145, 4
      %v9193 = vsel %vm8681, %v9191, %v9192
      %v9194 = vrot.slane %v9146, 4
      %v9195 = vrot.slane %v9147, 4
      %v9196 = vsel %vm8681, %v9194, %v9195
      %v9197 = vrot.slane %v9148, 4
      %v9198 = vrot.slane %v9149, 4
      %v9199 = vsel %vm8681, %v9197, %v9198
      %v9200 = vrot.slane %v9150, 4
      %v9201 = vrot.slane %v9151, 4
      %v9202 = vsel %vm8681, %v9200, %v9201
      %v9203 = vrot.slane %v9152, 4
      %v9204 = vrot.slane %v9153, 4
      %v9205 = vsel %vm8681, %v9203, %v9204
      %v9206 = vrot.slane %v9154, 4
      %v9207 = vrot.slane %v9155, 4
      %v9208 = vsel %vm8681, %v9206, %v9207
      %v9209 = vrot.slane %v9156, 4
      %v9210 = vrot.slane %v9157, 4
      %v9211 = vsel %vm8681, %v9209, %v9210
      %v9212 = vrot.slane %v9158, 4
      %v9213 = vrot.slane %v9159, 4
      %v9214 = vsel %vm8681, %v9212, %v9213
      %v9237 = vadd.f32 %v9112, %v9184
      %v9238 = vadd.f32 %v9113, %v9183
      %v9239 = vadd.f32 %v9114, %v9187
      %v9240 = vadd.f32 %v9115, %v9186
      %v9241 = vadd.f32 %v9116, %v9190
      %v9242 = vadd.f32 %v9117, %v9189
      %v9243 = vadd.f32 %v9118, %v9193
      %v9244 = vadd.f32 %v9119, %v9192
      %v9245 = vadd.f32 %v9120, %v9196
      %v9246 = vadd.f32 %v9121, %v9195
      %v9247 = vadd.f32 %v9122, %v9199
      %v9248 = vadd.f32 %v9123, %v9198
      %v9249 = vadd.f32 %v9124, %v9202
      %v9250 = vadd.f32 %v9125, %v9201
      %v9251 = vadd.f32 %v9126, %v9205
      %v9252 = vadd.f32 %v9127, %v9204
      %v9253 = vadd.f32 %v9128, %v9208
      %v9254 = vadd.f32 %v9129, %v9207
      %v9255 = vadd.f32 %v9130, %v9211
      %v9256 = vadd.f32 %v9131, %v9210
      %v9257 = vadd.f32 %v9132, %v9214
      %v9258 = vadd.f32 %v9133, %v9213
      %v9259 = vlaneseq
      %v9260 = vshrl.u32 %v9259, 7
      %v9261 = vsub.s32 2, %v9260
      %v9262 = vrot.slane %v6093, %v9261
      %v9263 = vmul.f32 %v5211, %v9262
      %v9264 = vmul.f32 %v5212, %v9262
      %v9265 = vmul.f32 %v5213, %v9262
      %v9266 = vmul.f32 %v5214, %v9262
      %v9267 = vmul.f32 %v5215, %v9262
      %v9268 = vmul.f32 %v5216, %v9262
      %v9269 = vmul.f32 %v5217, %v9262
      %v9270 = vmul.f32 %v5218, %v9262
      %v9271 = vmul.f32 %v5219, %v9262
      %v9272 = vmul.f32 %v5220, %v9262
      %v9273 = vmul.f32 %v5221, %v9262
      %v9274 = vmul.f32 %v5222, %v9262
      %v9275 = vmul.f32 %v5223, %v9262
      %v9276 = vmul.f32 %v5224, %v9262
      %v9277 = vmul.f32 %v5225, %v9262
      %v9278 = vmul.f32 %v5226, %v9262
      %v9279 = vmul.f32 %v5227, %v9262
      %v9280 = vmul.f32 %v5228, %v9262
      %v9281 = vmul.f32 %v5229, %v9262
      %v9282 = vmul.f32 %v5230, %v9262
      %v9283 = vmul.f32 %v5231, %v9262
      %v9284 = vmul.f32 %v5232, %v9262
      %v9307 = vrot.slane %v9263, 4
      %v9308 = vrot.slane %v9264, 4
      %v9309 = vsel %vm8681, %v9307, %v9308
      %v9310 = vrot.slane %v9265, 4
      %v9311 = vrot.slane %v9266, 4
      %v9312 = vsel %vm8681, %v9310, %v9311
      %v9313 = vrot.slane %v9267, 4
      %v9314 = vrot.slane %v9268, 4
      %v9315 = vsel %vm8681, %v9313, %v9314
      %v9316 = vrot.slane %v9269, 4
      %v9317 = vrot.slane %v9270, 4
      %v9318 = vsel %vm8681, %v9316, %v9317
      %v9319 = vrot.slane %v9271, 4
      %v9320 = vrot.slane %v9272, 4
      %v9321 = vsel %vm8681, %v9319, %v9320
      %v9322 = vrot.slane %v9273, 4
      %v9323 = vrot.slane %v9274, 4
      %v9324 = vsel %vm8681, %v9322, %v9323
      %v9325 = vrot.slane %v9275, 4
      %v9326 = vrot.slane %v9276, 4
      %v9327 = vsel %vm8681, %v9325, %v9326
      %v9328 = vrot.slane %v9277, 4
      %v9329 = vrot.slane %v9278, 4
      %v9330 = vsel %vm8681, %v9328, %v9329
      %v9331 = vrot.slane %v9279, 4
      %v9332 = vrot.slane %v9280, 4
      %v9333 = vsel %vm8681, %v9331, %v9332
      %v9334 = vrot.slane %v9281, 4
      %v9335 = vrot.slane %v9282, 4
      %v9336 = vsel %vm8681, %v9334, %v9335
      %v9337 = vrot.slane %v9283, 4
      %v9338 = vrot.slane %v9284, 4
      %v9339 = vsel %vm8681, %v9337, %v9338
      %v9362 = vadd.f32 %v9237, %v9309
      %v9363 = vadd.f32 %v9238, %v9308
      %v9364 = vadd.f32 %v9239, %v9312
      %v9365 = vadd.f32 %v9240, %v9311
      %v9366 = vadd.f32 %v9241, %v9315
      %v9367 = vadd.f32 %v9242, %v9314
      %v9368 = vadd.f32 %v9243, %v9318
      %v9369 = vadd.f32 %v9244, %v9317
      %v9370 = vadd.f32 %v9245, %v9321
      %v9371 = vadd.f32 %v9246, %v9320
      %v9372 = vadd.f32 %v9247, %v9324
      %v9373 = vadd.f32 %v9248, %v9323
      %v9374 = vadd.f32 %v9249, %v9327
      %v9375 = vadd.f32 %v9250, %v9326
      %v9376 = vadd.f32 %v9251, %v9330
      %v9377 = vadd.f32 %v9252, %v9329
      %v9378 = vadd.f32 %v9253, %v9333
      %v9379 = vadd.f32 %v9254, %v9332
      %v9380 = vadd.f32 %v9255, %v9336
      %v9381 = vadd.f32 %v9256, %v9335
      %v9382 = vadd.f32 %v9257, %v9339
      %v9383 = vadd.f32 %v9258, %v9338
      %v9384 = vlaneseq
      %v9385 = vshrl.u32 %v9384, 7
      %v9386 = vsub.s32 5, %v9385
      %v9387 = vrot.slane %v6089, %v9386
      %v9388 = vmul.f32 %v5201, %v9387
      %v9389 = vmul.f32 %v5202, %v9387
      %v9390 = vmul.f32 %v5203, %v9387
      %v9391 = vmul.f32 %v5204, %v9387
      %v9392 = vmul.f32 %v5205, %v9387
      %v9393 = vmul.f32 %v5206, %v9387
      %v9394 = vmul.f32 %v5207, %v9387
      %v9395 = vmul.f32 %v5208, %v9387
      %v9396 = vmul.f32 %v5209, %v9387
      %v9397 = vmul.f32 %v5210, %v9387
      %v9398 = vmul.f32 %v5211, %v9387
      %v9399 = vmul.f32 %v5212, %v9387
      %v9400 = vmul.f32 %v5213, %v9387
      %v9401 = vmul.f32 %v5214, %v9387
      %v9402 = vmul.f32 %v5215, %v9387
      %v9403 = vmul.f32 %v5216, %v9387
      %v9404 = vmul.f32 %v5217, %v9387
      %v9405 = vmul.f32 %v5218, %v9387
      %v9406 = vmul.f32 %v5219, %v9387
      %v9407 = vmul.f32 %v5220, %v9387
      %v9408 = vmul.f32 %v5221, %v9387
      %v9409 = vmul.f32 %v5222, %v9387
      %vm9432 = vcmask 1042432
      %v9433 = vrot.slane %v9388, 5
      %v9434 = vrot.slane %v9389, 5
      %v9435 = vsel %vm9432, %v9433, %v9434
      %v9436 = vrot.slane %v9390, 5
      %v9437 = vrot.slane %v9391, 5
      %v9438 = vsel %vm9432, %v9436, %v9437
      %v9439 = vrot.slane %v9392, 5
      %v9440 = vrot.slane %v9393, 5
      %v9441 = vsel %vm9432, %v9439, %v9440
      %v9442 = vrot.slane %v9394, 5
      %v9443 = vrot.slane %v9395, 5
      %v9444 = vsel %vm9432, %v9442, %v9443
      %v9445 = vrot.slane %v9396, 5
      %v9446 = vrot.slane %v9397, 5
      %v9447 = vsel %vm9432, %v9445, %v9446
      %v9448 = vrot.slane %v9398, 5
      %v9449 = vrot.slane %v9399, 5
      %v9450 = vsel %vm9432, %v9448, %v9449
      %v9451 = vrot.slane %v9400, 5
      %v9452 = vrot.slane %v9401, 5
      %v9453 = vsel %vm9432, %v9451, %v9452
      %v9454 = vrot.slane %v9402, 5
      %v9455 = vrot.slane %v9403, 5
      %v9456 = vsel %vm9432, %v9454, %v9455
      %v9457 = vrot.slane %v9404, 5
      %v9458 = vrot.slane %v9405, 5
      %v9459 = vsel %vm9432, %v9457, %v9458
      %v9460 = vrot.slane %v9406, 5
      %v9461 = vrot.slane %v9407, 5
      %v9462 = vsel %vm9432, %v9460, %v9461
      %v9463 = vrot.slane %v9408, 5
      %v9464 = vrot.slane %v9409, 5
      %v9465 = vsel %vm9432, %v9463, %v9464
      %v9488 = vadd.f32 %v9362, %v9435
      %v9489 = vadd.f32 %v9363, %v9434
      %v9490 = vadd.f32 %v9364, %v9438
      %v9491 = vadd.f32 %v9365, %v9437
      %v9492 = vadd.f32 %v9366, %v9441
      %v9493 = vadd.f32 %v9367, %v9440
      %v9494 = vadd.f32 %v9368, %v9444
      %v9495 = vadd.f32 %v9369, %v9443
      %v9496 = vadd.f32 %v9370, %v9447
      %v9497 = vadd.f32 %v9371, %v9446
      %v9498 = vadd.f32 %v9372, %v9450
      %v9499 = vadd.f32 %v9373, %v9449
      %v9500 = vadd.f32 %v9374, %v9453
      %v9501 = vadd.f32 %v9375, %v9452
      %v9502 = vadd.f32 %v9376, %v9456
      %v9503 = vadd.f32 %v9377, %v9455
      %v9504 = vadd.f32 %v9378, %v9459
      %v9505 = vadd.f32 %v9379, %v9458
      %v9506 = vadd.f32 %v9380, %v9462
      %v9507 = vadd.f32 %v9381, %v9461
      %v9508 = vadd.f32 %v9382, %v9465
      %v9509 = vadd.f32 %v9383, %v9464
      %v9510 = vlaneseq
      %v9511 = vshrl.u32 %v9510, 7
      %v9512 = vsub.s32 3, %v9511
      %v9513 = vrot.slane %v6090, %v9512
      %v9514 = vmul.f32 %v5203, %v9513
      %v9515 = vmul.f32 %v5204, %v9513
      %v9516 = vmul.f32 %v5205, %v9513
      %v9517 = vmul.f32 %v5206, %v9513
      %v9518 = vmul.f32 %v5207, %v9513
      %v9519 = vmul.f32 %v5208, %v9513
      %v9520 = vmul.f32 %v5209, %v9513
      %v9521 = vmul.f32 %v5210, %v9513
      %v9522 = vmul.f32 %v5211, %v9513
      %v9523 = vmul.f32 %v5212, %v9513
      %v9524 = vmul.f32 %v5213, %v9513
      %v9525 = vmul.f32 %v5214, %v9513
      %v9526 = vmul.f32 %v5215, %v9513
      %v9527 = vmul.f32 %v5216, %v9513
      %v9528 = vmul.f32 %v5217, %v9513
      %v9529 = vmul.f32 %v5218, %v9513
      %v9530 = vmul.f32 %v5219, %v9513
      %v9531 = vmul.f32 %v5220, %v9513
      %v9532 = vmul.f32 %v5221, %v9513
      %v9533 = vmul.f32 %v5222, %v9513
      %v9534 = vmul.f32 %v5223, %v9513
      %v9535 = vmul.f32 %v5224, %v9513
      %v9558 = vrot.slane %v9514, 5
      %v9559 = vrot.slane %v9515, 5
      %v9560 = vsel %vm9432, %v9558, %v9559
      %v9561 = vrot.slane %v9516, 5
      %v9562 = vrot.slane %v9517, 5
      %v9563 = vsel %vm9432, %v9561, %v9562
      %v9564 = vrot.slane %v9518, 5
      %v9565 = vrot.slane %v9519, 5
      %v9566 = vsel %vm9432, %v9564, %v9565
      %v9567 = vrot.slane %v9520, 5
      %v9568 = vrot.slane %v9521, 5
      %v9569 = vsel %vm9432, %v9567, %v9568
      %v9570 = vrot.slane %v9522, 5
      %v9571 = vrot.slane %v9523, 5
      %v9572 = vsel %vm9432, %v9570, %v9571
      %v9573 = vrot.slane %v9524, 5
      %v9574 = vrot.slane %v9525, 5
      %v9575 = vsel %vm9432, %v9573, %v9574
      %v9576 = vrot.slane %v9526, 5
      %v9577 = vrot.slane %v9527, 5
      %v9578 = vsel %vm9432, %v9576, %v9577
      %v9579 = vrot.slane %v9528, 5
      %v9580 = vrot.slane %v9529, 5
      %v9581 = vsel %vm9432, %v9579, %v9580
      %v9582 = vrot.slane %v9530, 5
      %v9583 = vrot.slane %v9531, 5
      %v9584 = vsel %vm9432, %v9582, %v9583
      %v9585 = vrot.slane %v9532, 5
      %v9586 = vrot.slane %v9533, 5
      %v9587 = vsel %vm9432, %v9585, %v9586
      %v9588 = vrot.slane %v9534, 5
      %v9589 = vrot.slane %v9535, 5
      %v9590 = vsel %vm9432, %v9588, %v9589
      %v9613 = vadd.f32 %v9488, %v9560
      %v9614 = vadd.f32 %v9489, %v9559
      %v9615 = vadd.f32 %v9490, %v9563
      %v9616 = vadd.f32 %v9491, %v9562
      %v9617 = vadd.f32 %v9492, %v9566
      %v9618 = vadd.f32 %v9493, %v9565
      %v9619 = vadd.f32 %v9494, %v9569
      %v9620 = vadd.f32 %v9495, %v9568
      %v9621 = vadd.f32 %v9496, %v9572
      %v9622 = vadd.f32 %v9497, %v9571
      %v9623 = vadd.f32 %v9498, %v9575
      %v9624 = vadd.f32 %v9499, %v9574
      %v9625 = vadd.f32 %v9500, %v9578
      %v9626 = vadd.f32 %v9501, %v9577
      %v9627 = vadd.f32 %v9502, %v9581
      %v9628 = vadd.f32 %v9503, %v9580
      %v9629 = vadd.f32 %v9504, %v9584
      %v9630 = vadd.f32 %v9505, %v9583
      %v9631 = vadd.f32 %v9506, %v9587
      %v9632 = vadd.f32 %v9507, %v9586
      %v9633 = vadd.f32 %v9508, %v9590
      %v9634 = vadd.f32 %v9509, %v9589
      %v9635 = vlaneseq
      %v9636 = vshrl.u32 %v9635, 7
      %v9637 = vsub.s32 1, %v9636
      %v9638 = vrot.slane %v6091, %v9637
      %v9639 = vmul.f32 %v5205, %v9638
      %v9640 = vmul.f32 %v5206, %v9638
      %v9641 = vmul.f32 %v5207, %v9638
      %v9642 = vmul.f32 %v5208, %v9638
      %v9643 = vmul.f32 %v5209, %v9638
      %v9644 = vmul.f32 %v5210, %v9638
      %v9645 = vmul.f32 %v5211, %v9638
      %v9646 = vmul.f32 %v5212, %v9638
      %v9647 = vmul.f32 %v5213, %v9638
      %v9648 = vmul.f32 %v5214, %v9638
      %v9649 = vmul.f32 %v5215, %v9638
      %v9650 = vmul.f32 %v5216, %v9638
      %v9651 = vmul.f32 %v5217, %v9638
      %v9652 = vmul.f32 %v5218, %v9638
      %v9653 = vmul.f32 %v5219, %v9638
      %v9654 = vmul.f32 %v5220, %v9638
      %v9655 = vmul.f32 %v5221, %v9638
      %v9656 = vmul.f32 %v5222, %v9638
      %v9657 = vmul.f32 %v5223, %v9638
      %v9658 = vmul.f32 %v5224, %v9638
      %v9659 = vmul.f32 %v5225, %v9638
      %v9660 = vmul.f32 %v5226, %v9638
      %v9683 = vrot.slane %v9639, 5
      %v9684 = vrot.slane %v9640, 5
      %v9685 = vsel %vm9432, %v9683, %v9684
      %v9686 = vrot.slane %v9641, 5
      %v9687 = vrot.slane %v9642, 5
      %v9688 = vsel %vm9432, %v9686, %v9687
      %v9689 = vrot.slane %v9643, 5
      %v9690 = vrot.slane %v9644, 5
      %v9691 = vsel %vm9432, %v9689, %v9690
      %v9692 = vrot.slane %v9645, 5
      %v9693 = vrot.slane %v9646, 5
      %v9694 = vsel %vm9432, %v9692, %v9693
      %v9695 = vrot.slane %v9647, 5
      %v9696 = vrot.slane %v9648, 5
      %v9697 = vsel %vm9432, %v9695, %v9696
      %v9698 = vrot.slane %v9649, 5
      %v9699 = vrot.slane %v9650, 5
      %v9700 = vsel %vm9432, %v9698, %v9699
      %v9701 = vrot.slane %v9651, 5
      %v9702 = vrot.slane %v9652, 5
      %v9703 = vsel %vm9432, %v9701, %v9702
      %v9704 = vrot.slane %v9653, 5
      %v9705 = vrot.slane %v9654, 5
      %v9706 = vsel %vm9432, %v9704, %v9705
      %v9707 = vrot.slane %v9655, 5
      %v9708 = vrot.slane %v9656, 5
      %v9709 = vsel %vm9432, %v9707, %v9708
      %v9710 = vrot.slane %v9657, 5
      %v9711 = vrot.slane %v9658, 5
      %v9712 = vsel %vm9432, %v9710, %v9711
      %v9713 = vrot.slane %v9659, 5
      %v9714 = vrot.slane %v9660, 5
      %v9715 = vsel %vm9432, %v9713, %v9714
      %v9738 = vadd.f32 %v9613, %v9685
      %v9739 = vadd.f32 %v9614, %v9684
      %v9740 = vadd.f32 %v9615, %v9688
      %v9741 = vadd.f32 %v9616, %v9687
      %v9742 = vadd.f32 %v9617, %v9691
      %v9743 = vadd.f32 %v9618, %v9690
      %v9744 = vadd.f32 %v9619, %v9694
      %v9745 = vadd.f32 %v9620, %v9693
      %v9746 = vadd.f32 %v9621, %v9697
      %v9747 = vadd.f32 %v9622, %v9696
      %v9748 = vadd.f32 %v9623, %v9700
      %v9749 = vadd.f32 %v9624, %v9699
      %v9750 = vadd.f32 %v9625, %v9703
      %v9751 = vadd.f32 %v9626, %v9702
      %v9752 = vadd.f32 %v9627, %v9706
      %v9753 = vadd.f32 %v9628, %v9705
      %v9754 = vadd.f32 %v9629, %v9709
      %v9755 = vadd.f32 %v9630, %v9708
      %v9756 = vadd.f32 %v9631, %v9712
      %v9757 = vadd.f32 %v9632, %v9711
      %v9758 = vadd.f32 %v9633, %v9715
      %v9759 = vadd.f32 %v9634, %v9714
      %v9760 = vlaneseq
      %v9761 = vshrl.u32 %v9760, 7
      %v9762 = vsub.s32 7, %v9761
      %v9763 = vrot.slane %v6091, %v9762
      %v9764 = vmul.f32 %v5207, %v9763
      %v9765 = vmul.f32 %v5208, %v9763
      %v9766 = vmul.f32 %v5209, %v9763
      %v9767 = vmul.f32 %v5210, %v9763
      %v9768 = vmul.f32 %v5211, %v9763
      %v9769 = vmul.f32 %v5212, %v9763
      %v9770 = vmul.f32 %v5213, %v9763
      %v9771 = vmul.f32 %v5214, %v9763
      %v9772 = vmul.f32 %v5215, %v9763
      %v9773 = vmul.f32 %v5216, %v9763
      %v9774 = vmul.f32 %v5217, %v9763
      %v9775 = vmul.f32 %v5218, %v9763
      %v9776 = vmul.f32 %v5219, %v9763
      %v9777 = vmul.f32 %v5220, %v9763
      %v9778 = vmul.f32 %v5221, %v9763
      %v9779 = vmul.f32 %v5222, %v9763
      %v9780 = vmul.f32 %v5223, %v9763
      %v9781 = vmul.f32 %v5224, %v9763
      %v9782 = vmul.f32 %v5225, %v9763
      %v9783 = vmul.f32 %v5226, %v9763
      %v9784 = vmul.f32 %v5227, %v9763
      %v9785 = vmul.f32 %v5228, %v9763
      %v9808 = vrot.slane %v9764, 5
      %v9809 = vrot.slane %v9765, 5
      %v9810 = vsel %vm9432, %v9808, %v9809
      %v9811 = vrot.slane %v9766, 5
      %v9812 = vrot.slane %v9767, 5
      %v9813 = vsel %vm9432, %v9811, %v9812
      %v9814 = vrot.slane %v9768, 5
      %v9815 = vrot.slane %v9769, 5
      %v9816 = vsel %vm9432, %v9814, %v9815
      %v9817 = vrot.slane %v9770, 5
      %v9818 = vrot.slane %v9771, 5
      %v9819 = vsel %vm9432, %v9817, %v9818
      %v9820 = vrot.slane %v9772, 5
      %v9821 = vrot.slane %v9773, 5
      %v9822 = vsel %vm9432, %v9820, %v9821
      %v9823 = vrot.slane %v9774, 5
      %v9824 = vrot.slane %v9775, 5
      %v9825 = vsel %vm9432, %v9823, %v9824
      %v9826 = vrot.slane %v9776, 5
      %v9827 = vrot.slane %v9777, 5
      %v9828 = vsel %vm9432, %v9826, %v9827
      %v9829 = vrot.slane %v9778, 5
      %v9830 = vrot.slane %v9779, 5
      %v9831 = vsel %vm9432, %v9829, %v9830
      %v9832 = vrot.slane %v9780, 5
      %v9833 = vrot.slane %v9781, 5
      %v9834 = vsel %vm9432, %v9832, %v9833
      %v9835 = vrot.slane %v9782, 5
      %v9836 = vrot.slane %v9783, 5
      %v9837 = vsel %vm9432, %v9835, %v9836
      %v9838 = vrot.slane %v9784, 5
      %v9839 = vrot.slane %v9785, 5
      %v9840 = vsel %vm9432, %v9838, %v9839
      %v9863 = vadd.f32 %v9738, %v9810
      %v9864 = vadd.f32 %v9739, %v9809
      %v9865 = vadd.f32 %v9740, %v9813
      %v9866 = vadd.f32 %v9741, %v9812
      %v9867 = vadd.f32 %v9742, %v9816
      %v9868 = vadd.f32 %v9743, %v9815
      %v9869 = vadd.f32 %v9744, %v9819
      %v9870 = vadd.f32 %v9745, %v9818
      %v9871 = vadd.f32 %v9746, %v9822
      %v9872 = vadd.f32 %v9747, %v9821
      %v9873 = vadd.f32 %v9748, %v9825
      %v9874 = vadd.f32 %v9749, %v9824
      %v9875 = vadd.f32 %v9750, %v9828
      %v9876 = vadd.f32 %v9751, %v9827
      %v9877 = vadd.f32 %v9752, %v9831
      %v9878 = vadd.f32 %v9753, %v9830
      %v9879 = vadd.f32 %v9754, %v9834
      %v9880 = vadd.f32 %v9755, %v9833
      %v9881 = vadd.f32 %v9756, %v9837
      %v9882 = vadd.f32 %v9757, %v9836
      %v9883 = vadd.f32 %v9758, %v9840
      %v9884 = vadd.f32 %v9759, %v9839
      %v9885 = vlaneseq
      %v9886 = vshrl.u32 %v9885, 7
      %v9887 = vsub.s32 5, %v9886
      %v9888 = vrot.slane %v6092, %v9887
      %v9889 = vmul.f32 %v5209, %v9888
      %v9890 = vmul.f32 %v5210, %v9888
      %v9891 = vmul.f32 %v5211, %v9888
      %v9892 = vmul.f32 %v5212, %v9888
      %v9893 = vmul.f32 %v5213, %v9888
      %v9894 = vmul.f32 %v5214, %v9888
      %v9895 = vmul.f32 %v5215, %v9888
      %v9896 = vmul.f32 %v5216, %v9888
      %v9897 = vmul.f32 %v5217, %v9888
      %v9898 = vmul.f32 %v5218, %v9888
      %v9899 = vmul.f32 %v5219, %v9888
      %v9900 = vmul.f32 %v5220, %v9888
      %v9901 = vmul.f32 %v5221, %v9888
      %v9902 = vmul.f32 %v5222, %v9888
      %v9903 = vmul.f32 %v5223, %v9888
      %v9904 = vmul.f32 %v5224, %v9888
      %v9905 = vmul.f32 %v5225, %v9888
      %v9906 = vmul.f32 %v5226, %v9888
      %v9907 = vmul.f32 %v5227, %v9888
      %v9908 = vmul.f32 %v5228, %v9888
      %v9909 = vmul.f32 %v5229, %v9888
      %v9910 = vmul.f32 %v5230, %v9888
      %v9933 = vrot.slane %v9889, 5
      %v9934 = vrot.slane %v9890, 5
      %v9935 = vsel %vm9432, %v9933, %v9934
      %v9936 = vrot.slane %v9891, 5
      %v9937 = vrot.slane %v9892, 5
      %v9938 = vsel %vm9432, %v9936, %v9937
      %v9939 = vrot.slane %v9893, 5
      %v9940 = vrot.slane %v9894, 5
      %v9941 = vsel %vm9432, %v9939, %v9940
      %v9942 = vrot.slane %v9895, 5
      %v9943 = vrot.slane %v9896, 5
      %v9944 = vsel %vm9432, %v9942, %v9943
      %v9945 = vrot.slane %v9897, 5
      %v9946 = vrot.slane %v9898, 5
      %v9947 = vsel %vm9432, %v9945, %v9946
      %v9948 = vrot.slane %v9899, 5
      %v9949 = vrot.slane %v9900, 5
      %v9950 = vsel %vm9432, %v9948, %v9949
      %v9951 = vrot.slane %v9901, 5
      %v9952 = vrot.slane %v9902, 5
      %v9953 = vsel %vm9432, %v9951, %v9952
      %v9954 = vrot.slane %v9903, 5
      %v9955 = vrot.slane %v9904, 5
      %v9956 = vsel %vm9432, %v9954, %v9955
      %v9957 = vrot.slane %v9905, 5
      %v9958 = vrot.slane %v9906, 5
      %v9959 = vsel %vm9432, %v9957, %v9958
      %v9960 = vrot.slane %v9907, 5
      %v9961 = vrot.slane %v9908, 5
      %v9962 = vsel %vm9432, %v9960, %v9961
      %v9963 = vrot.slane %v9909, 5
      %v9964 = vrot.slane %v9910, 5
      %v9965 = vsel %vm9432, %v9963, %v9964
      %v9988 = vadd.f32 %v9863, %v9935
      %v9989 = vadd.f32 %v9864, %v9934
      %v9990 = vadd.f32 %v9865, %v9938
      %v9991 = vadd.f32 %v9866, %v9937
      %v9992 = vadd.f32 %v9867, %v9941
      %v9993 = vadd.f32 %v9868, %v9940
      %v9994 = vadd.f32 %v9869, %v9944
      %v9995 = vadd.f32 %v9870, %v9943
      %v9996 = vadd.f32 %v9871, %v9947
      %v9997 = vadd.f32 %v9872, %v9946
      %v9998 = vadd.f32 %v9873, %v9950
      %v9999 = vadd.f32 %v9874, %v9949
      %v10000 = vadd.f32 %v9875, %v9953
      %v10001 = vadd.f32 %v9876, %v9952
      %v10002 = vadd.f32 %v9877, %v9956
      %v10003 = vadd.f32 %v9878, %v9955
      %v10004 = vadd.f32 %v9879, %v9959
      %v10005 = vadd.f32 %v9880, %v9958
      %v10006 = vadd.f32 %v9881, %v9962
      %v10007 = vadd.f32 %v9882, %v9961
      %v10008 = vadd.f32 %v9883, %v9965
      %v10009 = vadd.f32 %v9884, %v9964
      %v10010 = vlaneseq
      %v10011 = vshrl.u32 %v10010, 7
      %v10012 = vsub.s32 3, %v10011
      %v10013 = vrot.slane %v6093, %v10012
      %v10014 = vmul.f32 %v5211, %v10013
      %v10015 = vmul.f32 %v5212, %v10013
      %v10016 = vmul.f32 %v5213, %v10013
      %v10017 = vmul.f32 %v5214, %v10013
      %v10018 = vmul.f32 %v5215, %v10013
      %v10019 = vmul.f32 %v5216, %v10013
      %v10020 = vmul.f32 %v5217, %v10013
      %v10021 = vmul.f32 %v5218, %v10013
      %v10022 = vmul.f32 %v5219, %v10013
      %v10023 = vmul.f32 %v5220, %v10013
      %v10024 = vmul.f32 %v5221, %v10013
      %v10025 = vmul.f32 %v5222, %v10013
      %v10026 = vmul.f32 %v5223, %v10013
      %v10027 = vmul.f32 %v5224, %v10013
      %v10028 = vmul.f32 %v5225, %v10013
      %v10029 = vmul.f32 %v5226, %v10013
      %v10030 = vmul.f32 %v5227, %v10013
      %v10031 = vmul.f32 %v5228, %v10013
      %v10032 = vmul.f32 %v5229, %v10013
      %v10033 = vmul.f32 %v5230, %v10013
      %v10034 = vmul.f32 %v5231, %v10013
      %v10035 = vmul.f32 %v5232, %v10013
      %v10058 = vrot.slane %v10014, 5
      %v10059 = vrot.slane %v10015, 5
      %v10060 = vsel %vm9432, %v10058, %v10059
      %v10061 = vrot.slane %v10016, 5
      %v10062 = vrot.slane %v10017, 5
      %v10063 = vsel %vm9432, %v10061, %v10062
      %v10064 = vrot.slane %v10018, 5
      %v10065 = vrot.slane %v10019, 5
      %v10066 = vsel %vm9432, %v10064, %v10065
      %v10067 = vrot.slane %v10020, 5
      %v10068 = vrot.slane %v10021, 5
      %v10069 = vsel %vm9432, %v10067, %v10068
      %v10070 = vrot.slane %v10022, 5
      %v10071 = vrot.slane %v10023, 5
      %v10072 = vsel %vm9432, %v10070, %v10071
      %v10073 = vrot.slane %v10024, 5
      %v10074 = vrot.slane %v10025, 5
      %v10075 = vsel %vm9432, %v10073, %v10074
      %v10076 = vrot.slane %v10026, 5
      %v10077 = vrot.slane %v10027, 5
      %v10078 = vsel %vm9432, %v10076, %v10077
      %v10079 = vrot.slane %v10028, 5
      %v10080 = vrot.slane %v10029, 5
      %v10081 = vsel %vm9432, %v10079, %v10080
      %v10082 = vrot.slane %v10030, 5
      %v10083 = vrot.slane %v10031, 5
      %v10084 = vsel %vm9432, %v10082, %v10083
      %v10085 = vrot.slane %v10032, 5
      %v10086 = vrot.slane %v10033, 5
      %v10087 = vsel %vm9432, %v10085, %v10086
      %v10088 = vrot.slane %v10034, 5
      %v10089 = vrot.slane %v10035, 5
      %v10090 = vsel %vm9432, %v10088, %v10089
      %v10113 = vadd.f32 %v9988, %v10060
      %v10114 = vadd.f32 %v9989, %v10059
      %v10115 = vadd.f32 %v9990, %v10063
      %v10116 = vadd.f32 %v9991, %v10062
      %v10117 = vadd.f32 %v9992, %v10066
      %v10118 = vadd.f32 %v9993, %v10065
      %v10119 = vadd.f32 %v9994, %v10069
      %v10120 = vadd.f32 %v9995, %v10068
      %v10121 = vadd.f32 %v9996, %v10072
      %v10122 = vadd.f32 %v9997, %v10071
      %v10123 = vadd.f32 %v9998, %v10075
      %v10124 = vadd.f32 %v9999, %v10074
      %v10125 = vadd.f32 %v10000, %v10078
      %v10126 = vadd.f32 %v10001, %v10077
      %v10127 = vadd.f32 %v10002, %v10081
      %v10128 = vadd.f32 %v10003, %v10080
      %v10129 = vadd.f32 %v10004, %v10084
      %v10130 = vadd.f32 %v10005, %v10083
      %v10131 = vadd.f32 %v10006, %v10087
      %v10132 = vadd.f32 %v10007, %v10086
      %v10133 = vadd.f32 %v10008, %v10090
      %v10134 = vadd.f32 %v10009, %v10089
      %v10157 = vcombine.high %v10113, %v10113
      %v10159 = vunpack.c.l.s4 1966171168
      %v10160 = vunpack.c.0.s8 %v10159
      %v10161 = vlaneseq
      %v10162 = vshrl.u32 %v10161, 7
      %v10163 = vsub.s32 %v10160, %v10162
      %v10164 = vrot.slane %v10113, %v10163
      %v10166 = vunpack.c.l.s4 1966171168
      %v10167 = vunpack.c.0.s8 %v10166
      %v10168 = vlaneseq
      %v10169 = vshrl.u32 %v10168, 7
      %v10170 = vsub.s32 %v10167, %v10169
      %v10171 = vrot.slane %v10157, %v10170
      %v10172 = vcombine.high %v10164, %v10164
      %v10173 = vcombine.high %v10171, %v10171
      %v10175 = vunpack.c.l.s4 1966171168
      %v10176 = vunpack.c.0.s8 %v10175
      %v10177 = vlaneseq
      %v10178 = vshrl.u32 %v10177, 7
      %v10179 = vsub.s32 %v10176, %v10178
      %v10180 = vrot.slane %v10164, %v10179
      %v10182 = vunpack.c.l.s4 1966171168
      %v10183 = vunpack.c.0.s8 %v10182
      %v10184 = vlaneseq
      %v10185 = vshrl.u32 %v10184, 7
      %v10186 = vsub.s32 %v10183, %v10185
      %v10187 = vrot.slane %v10171, %v10186
      %v10189 = vunpack.c.l.s4 1966171168
      %v10190 = vunpack.c.0.s8 %v10189
      %v10191 = vlaneseq
      %v10192 = vshrl.u32 %v10191, 7
      %v10193 = vsub.s32 %v10190, %v10192
      %v10194 = vrot.slane %v10172, %v10193
      %v10196 = vunpack.c.l.s4 1966171168
      %v10197 = vunpack.c.0.s8 %v10196
      %v10198 = vlaneseq
      %v10199 = vshrl.u32 %v10198, 7
      %v10200 = vsub.s32 %v10197, %v10199
      %v10201 = vrot.slane %v10173, %v10200
      %v10202 = vcombine.high %v10180, %v10180
      %v10203 = vcombine.high %v10187, %v10187
      %v10204 = vcombine.high %v10194, %v10194
      %v10205 = vcombine.high %v10201, %v10201
      %v10207 = vunpack.c.l.s4 1966171168
      %v10208 = vunpack.c.0.s8 %v10207
      %v10209 = vlaneseq
      %v10210 = vshrl.u32 %v10209, 7
      %v10211 = vsub.s32 %v10208, %v10210
      %v10212 = vrot.slane %v10114, %v10211
      %v10213 = vcombine.high %v10212, %v10212
      %v10215 = vunpack.c.l.s4 1966171168
      %v10216 = vunpack.c.0.s8 %v10215
      %v10217 = vlaneseq
      %v10218 = vshrl.u32 %v10217, 7
      %v10219 = vsub.s32 %v10216, %v10218
      %v10220 = vrot.slane %v10212, %v10219
      %v10222 = vunpack.c.l.s4 1966171168
      %v10223 = vunpack.c.0.s8 %v10222
      %v10224 = vlaneseq
      %v10225 = vshrl.u32 %v10224, 7
      %v10226 = vsub.s32 %v10223, %v10225
      %v10227 = vrot.slane %v10213, %v10226
      %v10228 = vcombine.high %v10220, %v10220
      %v10229 = vcombine.high %v10115, %v10115
      %v10231 = vunpack.c.l.s4 1966171168
      %v10232 = vunpack.c.0.s8 %v10231
      %v10233 = vlaneseq
      %v10234 = vshrl.u32 %v10233, 7
      %v10235 = vsub.s32 %v10232, %v10234
      %v10236 = vrot.slane %v10115, %v10235
      %v10238 = vunpack.c.l.s4 1966171168
      %v10239 = vunpack.c.0.s8 %v10238
      %v10240 = vlaneseq
      %v10241 = vshrl.u32 %v10240, 7
      %v10242 = vsub.s32 %v10239, %v10241
      %v10243 = vrot.slane %v10229, %v10242
      %v10244 = vcombine.high %v10236, %v10236
      %v10245 = vcombine.high %v10243, %v10243
      %v10247 = vunpack.c.l.s4 1966171168
      %v10248 = vunpack.c.0.s8 %v10247
      %v10249 = vlaneseq
      %v10250 = vshrl.u32 %v10249, 7
      %v10251 = vsub.s32 %v10248, %v10250
      %v10252 = vrot.slane %v10236, %v10251
      %v10254 = vunpack.c.l.s4 1966171168
      %v10255 = vunpack.c.0.s8 %v10254
      %v10256 = vlaneseq
      %v10257 = vshrl.u32 %v10256, 7
      %v10258 = vsub.s32 %v10255, %v10257
      %v10259 = vrot.slane %v10243, %v10258
      %v10261 = vunpack.c.l.s4 1966171168
      %v10262 = vunpack.c.0.s8 %v10261
      %v10263 = vlaneseq
      %v10264 = vshrl.u32 %v10263, 7
      %v10265 = vsub.s32 %v10262, %v10264
      %v10266 = vrot.slane %v10244, %v10265
      %v10268 = vunpack.c.l.s4 1966171168
      %v10269 = vunpack.c.0.s8 %v10268
      %v10270 = vlaneseq
      %v10271 = vshrl.u32 %v10270, 7
      %v10272 = vsub.s32 %v10269, %v10271
      %v10273 = vrot.slane %v10245, %v10272
      %v10274 = vcombine.high %v10252, %v10252
      %v10275 = vcombine.high %v10259, %v10259
      %v10276 = vcombine.high %v10266, %v10266
      %v10277 = vcombine.high %v10273, %v10273
      %v10279 = vunpack.c.l.s4 1966171168
      %v10280 = vunpack.c.0.s8 %v10279
      %v10281 = vlaneseq
      %v10282 = vshrl.u32 %v10281, 7
      %v10283 = vsub.s32 %v10280, %v10282
      %v10284 = vrot.slane %v10116, %v10283
      %v10285 = vcombine.high %v10284, %v10284
      %v10287 = vunpack.c.l.s4 1966171168
      %v10288 = vunpack.c.0.s8 %v10287
      %v10289 = vlaneseq
      %v10290 = vshrl.u32 %v10289, 7
      %v10291 = vsub.s32 %v10288, %v10290
      %v10292 = vrot.slane %v10284, %v10291
      %v10294 = vunpack.c.l.s4 1966171168
      %v10295 = vunpack.c.0.s8 %v10294
      %v10296 = vlaneseq
      %v10297 = vshrl.u32 %v10296, 7
      %v10298 = vsub.s32 %v10295, %v10297
      %v10299 = vrot.slane %v10285, %v10298
      %v10300 = vcombine.high %v10292, %v10292
      %v10301 = vcombine.high %v10117, %v10117
      %v10303 = vunpack.c.l.s4 1966171168
      %v10304 = vunpack.c.0.s8 %v10303
      %v10305 = vlaneseq
      %v10306 = vshrl.u32 %v10305, 7
      %v10307 = vsub.s32 %v10304, %v10306
      %v10308 = vrot.slane %v10117, %v10307
      %v10310 = vunpack.c.l.s4 1966171168
      %v10311 = vunpack.c.0.s8 %v10310
      %v10312 = vlaneseq
      %v10313 = vshrl.u32 %v10312, 7
      %v10314 = vsub.s32 %v10311, %v10313
      %v10315 = vrot.slane %v10301, %v10314
      %v10316 = vcombine.high %v10308, %v10308
      %v10317 = vcombine.high %v10315, %v10315
      %v10319 = vunpack.c.l.s4 1966171168
      %v10320 = vunpack.c.0.s8 %v10319
      %v10321 = vlaneseq
      %v10322 = vshrl.u32 %v10321, 7
      %v10323 = vsub.s32 %v10320, %v10322
      %v10324 = vrot.slane %v10308, %v10323
      %v10326 = vunpack.c.l.s4 1966171168
      %v10327 = vunpack.c.0.s8 %v10326
      %v10328 = vlaneseq
      %v10329 = vshrl.u32 %v10328, 7
      %v10330 = vsub.s32 %v10327, %v10329
      %v10331 = vrot.slane %v10315, %v10330
      %v10333 = vunpack.c.l.s4 1966171168
      %v10334 = vunpack.c.0.s8 %v10333
      %v10335 = vlaneseq
      %v10336 = vshrl.u32 %v10335, 7
      %v10337 = vsub.s32 %v10334, %v10336
      %v10338 = vrot.slane %v10316, %v10337
      %v10340 = vunpack.c.l.s4 1966171168
      %v10341 = vunpack.c.0.s8 %v10340
      %v10342 = vlaneseq
      %v10343 = vshrl.u32 %v10342, 7
      %v10344 = vsub.s32 %v10341, %v10343
      %v10345 = vrot.slane %v10317, %v10344
      %v10346 = vcombine.high %v10324, %v10324
      %v10347 = vcombine.high %v10331, %v10331
      %v10348 = vcombine.high %v10338, %v10338
      %v10349 = vcombine.high %v10345, %v10345
      %v10351 = vunpack.c.l.s4 1966171168
      %v10352 = vunpack.c.0.s8 %v10351
      %v10353 = vlaneseq
      %v10354 = vshrl.u32 %v10353, 7
      %v10355 = vsub.s32 %v10352, %v10354
      %v10356 = vrot.slane %v10118, %v10355
      %v10357 = vcombine.high %v10356, %v10356
      %v10359 = vunpack.c.l.s4 1966171168
      %v10360 = vunpack.c.0.s8 %v10359
      %v10361 = vlaneseq
      %v10362 = vshrl.u32 %v10361, 7
      %v10363 = vsub.s32 %v10360, %v10362
      %v10364 = vrot.slane %v10356, %v10363
      %v10366 = vunpack.c.l.s4 1966171168
      %v10367 = vunpack.c.0.s8 %v10366
      %v10368 = vlaneseq
      %v10369 = vshrl.u32 %v10368, 7
      %v10370 = vsub.s32 %v10367, %v10369
      %v10371 = vrot.slane %v10357, %v10370
      %v10372 = vcombine.high %v10364, %v10364
      %v10373 = vcombine.high %v10119, %v10119
      %v10375 = vunpack.c.l.s4 1966171168
      %v10376 = vunpack.c.0.s8 %v10375
      %v10377 = vlaneseq
      %v10378 = vshrl.u32 %v10377, 7
      %v10379 = vsub.s32 %v10376, %v10378
      %v10380 = vrot.slane %v10119, %v10379
      %v10382 = vunpack.c.l.s4 1966171168
      %v10383 = vunpack.c.0.s8 %v10382
      %v10384 = vlaneseq
      %v10385 = vshrl.u32 %v10384, 7
      %v10386 = vsub.s32 %v10383, %v10385
      %v10387 = vrot.slane %v10373, %v10386
      %v10388 = vcombine.high %v10380, %v10380
      %v10389 = vcombine.high %v10387, %v10387
      %v10391 = vunpack.c.l.s4 1966171168
      %v10392 = vunpack.c.0.s8 %v10391
      %v10393 = vlaneseq
      %v10394 = vshrl.u32 %v10393, 7
      %v10395 = vsub.s32 %v10392, %v10394
      %v10396 = vrot.slane %v10380, %v10395
      %v10398 = vunpack.c.l.s4 1966171168
      %v10399 = vunpack.c.0.s8 %v10398
      %v10400 = vlaneseq
      %v10401 = vshrl.u32 %v10400, 7
      %v10402 = vsub.s32 %v10399, %v10401
      %v10403 = vrot.slane %v10387, %v10402
      %v10405 = vunpack.c.l.s4 1966171168
      %v10406 = vunpack.c.0.s8 %v10405
      %v10407 = vlaneseq
      %v10408 = vshrl.u32 %v10407, 7
      %v10409 = vsub.s32 %v10406, %v10408
      %v10410 = vrot.slane %v10388, %v10409
      %v10412 = vunpack.c.l.s4 1966171168
      %v10413 = vunpack.c.0.s8 %v10412
      %v10414 = vlaneseq
      %v10415 = vshrl.u32 %v10414, 7
      %v10416 = vsub.s32 %v10413, %v10415
      %v10417 = vrot.slane %v10389, %v10416
      %v10418 = vcombine.high %v10396, %v10396
      %v10419 = vcombine.high %v10403, %v10403
      %v10420 = vcombine.high %v10410, %v10410
      %v10421 = vcombine.high %v10417, %v10417
      %v10423 = vunpack.c.l.s4 1966171168
      %v10424 = vunpack.c.0.s8 %v10423
      %v10425 = vlaneseq
      %v10426 = vshrl.u32 %v10425, 7
      %v10427 = vsub.s32 %v10424, %v10426
      %v10428 = vrot.slane %v10120, %v10427
      %v10429 = vcombine.high %v10428, %v10428
      %v10431 = vunpack.c.l.s4 1966171168
      %v10432 = vunpack.c.0.s8 %v10431
      %v10433 = vlaneseq
      %v10434 = vshrl.u32 %v10433, 7
      %v10435 = vsub.s32 %v10432, %v10434
      %v10436 = vrot.slane %v10428, %v10435
      %v10438 = vunpack.c.l.s4 1966171168
      %v10439 = vunpack.c.0.s8 %v10438
      %v10440 = vlaneseq
      %v10441 = vshrl.u32 %v10440, 7
      %v10442 = vsub.s32 %v10439, %v10441
      %v10443 = vrot.slane %v10429, %v10442
      %v10444 = vcombine.high %v10436, %v10436
      %v10445 = vcombine.high %v10121, %v10121
      %v10447 = vunpack.c.l.s4 1966171168
      %v10448 = vunpack.c.0.s8 %v10447
      %v10449 = vlaneseq
      %v10450 = vshrl.u32 %v10449, 7
      %v10451 = vsub.s32 %v10448, %v10450
      %v10452 = vrot.slane %v10121, %v10451
      %v10454 = vunpack.c.l.s4 1966171168
      %v10455 = vunpack.c.0.s8 %v10454
      %v10456 = vlaneseq
      %v10457 = vshrl.u32 %v10456, 7
      %v10458 = vsub.s32 %v10455, %v10457
      %v10459 = vrot.slane %v10445, %v10458
      %v10460 = vcombine.high %v10452, %v10452
      %v10461 = vcombine.high %v10459, %v10459
      %v10463 = vunpack.c.l.s4 1966171168
      %v10464 = vunpack.c.0.s8 %v10463
      %v10465 = vlaneseq
      %v10466 = vshrl.u32 %v10465, 7
      %v10467 = vsub.s32 %v10464, %v10466
      %v10468 = vrot.slane %v10452, %v10467
      %v10470 = vunpack.c.l.s4 1966171168
      %v10471 = vunpack.c.0.s8 %v10470
      %v10472 = vlaneseq
      %v10473 = vshrl.u32 %v10472, 7
      %v10474 = vsub.s32 %v10471, %v10473
      %v10475 = vrot.slane %v10459, %v10474
      %v10477 = vunpack.c.l.s4 1966171168
      %v10478 = vunpack.c.0.s8 %v10477
      %v10479 = vlaneseq
      %v10480 = vshrl.u32 %v10479, 7
      %v10481 = vsub.s32 %v10478, %v10480
      %v10482 = vrot.slane %v10460, %v10481
      %v10484 = vunpack.c.l.s4 1966171168
      %v10485 = vunpack.c.0.s8 %v10484
      %v10486 = vlaneseq
      %v10487 = vshrl.u32 %v10486, 7
      %v10488 = vsub.s32 %v10485, %v10487
      %v10489 = vrot.slane %v10461, %v10488
      %v10490 = vcombine.high %v10468, %v10468
      %v10491 = vcombine.high %v10475, %v10475
      %v10492 = vcombine.high %v10482, %v10482
      %v10493 = vcombine.high %v10489, %v10489
      %v10495 = vunpack.c.l.s4 1966171168
      %v10496 = vunpack.c.0.s8 %v10495
      %v10497 = vlaneseq
      %v10498 = vshrl.u32 %v10497, 7
      %v10499 = vsub.s32 %v10496, %v10498
      %v10500 = vrot.slane %v10122, %v10499
      %v10501 = vcombine.high %v10500, %v10500
      %v10503 = vunpack.c.l.s4 1966171168
      %v10504 = vunpack.c.0.s8 %v10503
      %v10505 = vlaneseq
      %v10506 = vshrl.u32 %v10505, 7
      %v10507 = vsub.s32 %v10504, %v10506
      %v10508 = vrot.slane %v10500, %v10507
      %v10510 = vunpack.c.l.s4 1966171168
      %v10511 = vunpack.c.0.s8 %v10510
      %v10512 = vlaneseq
      %v10513 = vshrl.u32 %v10512, 7
      %v10514 = vsub.s32 %v10511, %v10513
      %v10515 = vrot.slane %v10501, %v10514
      %v10516 = vcombine.high %v10508, %v10508
      %v10517 = vcombine.high %v10123, %v10123
      %v10519 = vunpack.c.l.s4 1966171168
      %v10520 = vunpack.c.0.s8 %v10519
      %v10521 = vlaneseq
      %v10522 = vshrl.u32 %v10521, 7
      %v10523 = vsub.s32 %v10520, %v10522
      %v10524 = vrot.slane %v10123, %v10523
      %v10526 = vunpack.c.l.s4 1966171168
      %v10527 = vunpack.c.0.s8 %v10526
      %v10528 = vlaneseq
      %v10529 = vshrl.u32 %v10528, 7
      %v10530 = vsub.s32 %v10527, %v10529
      %v10531 = vrot.slane %v10517, %v10530
      %v10532 = vcombine.high %v10524, %v10524
      %v10533 = vcombine.high %v10531, %v10531
      %v10535 = vunpack.c.l.s4 1966171168
      %v10536 = vunpack.c.0.s8 %v10535
      %v10537 = vlaneseq
      %v10538 = vshrl.u32 %v10537, 7
      %v10539 = vsub.s32 %v10536, %v10538
      %v10540 = vrot.slane %v10524, %v10539
      %v10542 = vunpack.c.l.s4 1966171168
      %v10543 = vunpack.c.0.s8 %v10542
      %v10544 = vlaneseq
      %v10545 = vshrl.u32 %v10544, 7
      %v10546 = vsub.s32 %v10543, %v10545
      %v10547 = vrot.slane %v10531, %v10546
      %v10549 = vunpack.c.l.s4 1966171168
      %v10550 = vunpack.c.0.s8 %v10549
      %v10551 = vlaneseq
      %v10552 = vshrl.u32 %v10551, 7
      %v10553 = vsub.s32 %v10550, %v10552
      %v10554 = vrot.slane %v10532, %v10553
      %v10556 = vunpack.c.l.s4 1966171168
      %v10557 = vunpack.c.0.s8 %v10556
      %v10558 = vlaneseq
      %v10559 = vshrl.u32 %v10558, 7
      %v10560 = vsub.s32 %v10557, %v10559
      %v10561 = vrot.slane %v10533, %v10560
      %v10562 = vcombine.high %v10540, %v10540
      %v10563 = vcombine.high %v10547, %v10547
      %v10564 = vcombine.high %v10554, %v10554
      %v10565 = vcombine.high %v10561, %v10561
      %v10567 = vunpack.c.l.s4 1966171168
      %v10568 = vunpack.c.0.s8 %v10567
      %v10569 = vlaneseq
      %v10570 = vshrl.u32 %v10569, 7
      %v10571 = vsub.s32 %v10568, %v10570
      %v10572 = vrot.slane %v10124, %v10571
      %v10573 = vcombine.high %v10572, %v10572
      %v10575 = vunpack.c.l.s4 1966171168
      %v10576 = vunpack.c.0.s8 %v10575
      %v10577 = vlaneseq
      %v10578 = vshrl.u32 %v10577, 7
      %v10579 = vsub.s32 %v10576, %v10578
      %v10580 = vrot.slane %v10572, %v10579
      %v10582 = vunpack.c.l.s4 1966171168
      %v10583 = vunpack.c.0.s8 %v10582
      %v10584 = vlaneseq
      %v10585 = vshrl.u32 %v10584, 7
      %v10586 = vsub.s32 %v10583, %v10585
      %v10587 = vrot.slane %v10573, %v10586
      %v10588 = vcombine.high %v10580, %v10580
      %v10589 = vcombine.high %v10125, %v10125
      %v10591 = vunpack.c.l.s4 1966171168
      %v10592 = vunpack.c.0.s8 %v10591
      %v10593 = vlaneseq
      %v10594 = vshrl.u32 %v10593, 7
      %v10595 = vsub.s32 %v10592, %v10594
      %v10596 = vrot.slane %v10125, %v10595
      %v10598 = vunpack.c.l.s4 1966171168
      %v10599 = vunpack.c.0.s8 %v10598
      %v10600 = vlaneseq
      %v10601 = vshrl.u32 %v10600, 7
      %v10602 = vsub.s32 %v10599, %v10601
      %v10603 = vrot.slane %v10589, %v10602
      %v10604 = vcombine.high %v10596, %v10596
      %v10605 = vcombine.high %v10603, %v10603
      %v10607 = vunpack.c.l.s4 1966171168
      %v10608 = vunpack.c.0.s8 %v10607
      %v10609 = vlaneseq
      %v10610 = vshrl.u32 %v10609, 7
      %v10611 = vsub.s32 %v10608, %v10610
      %v10612 = vrot.slane %v10596, %v10611
      %v10614 = vunpack.c.l.s4 1966171168
      %v10615 = vunpack.c.0.s8 %v10614
      %v10616 = vlaneseq
      %v10617 = vshrl.u32 %v10616, 7
      %v10618 = vsub.s32 %v10615, %v10617
      %v10619 = vrot.slane %v10603, %v10618
      %v10621 = vunpack.c.l.s4 1966171168
      %v10622 = vunpack.c.0.s8 %v10621
      %v10623 = vlaneseq
      %v10624 = vshrl.u32 %v10623, 7
      %v10625 = vsub.s32 %v10622, %v10624
      %v10626 = vrot.slane %v10604, %v10625
      %v10628 = vunpack.c.l.s4 1966171168
      %v10629 = vunpack.c.0.s8 %v10628
      %v10630 = vlaneseq
      %v10631 = vshrl.u32 %v10630, 7
      %v10632 = vsub.s32 %v10629, %v10631
      %v10633 = vrot.slane %v10605, %v10632
      %v10634 = vcombine.high %v10612, %v10612
      %v10635 = vcombine.high %v10619, %v10619
      %v10636 = vcombine.high %v10626, %v10626
      %v10637 = vcombine.high %v10633, %v10633
      %v10639 = vunpack.c.l.s4 1966171168
      %v10640 = vunpack.c.0.s8 %v10639
      %v10641 = vlaneseq
      %v10642 = vshrl.u32 %v10641, 7
      %v10643 = vsub.s32 %v10640, %v10642
      %v10644 = vrot.slane %v10126, %v10643
      %v10645 = vcombine.high %v10644, %v10644
      %v10647 = vunpack.c.l.s4 1966171168
      %v10648 = vunpack.c.0.s8 %v10647
      %v10649 = vlaneseq
      %v10650 = vshrl.u32 %v10649, 7
      %v10651 = vsub.s32 %v10648, %v10650
      %v10652 = vrot.slane %v10644, %v10651
      %v10654 = vunpack.c.l.s4 1966171168
      %v10655 = vunpack.c.0.s8 %v10654
      %v10656 = vlaneseq
      %v10657 = vshrl.u32 %v10656, 7
      %v10658 = vsub.s32 %v10655, %v10657
      %v10659 = vrot.slane %v10645, %v10658
      %v10660 = vcombine.high %v10652, %v10652
      %v10661 = vcombine.high %v10127, %v10127
      %v10663 = vunpack.c.l.s4 1966171168
      %v10664 = vunpack.c.0.s8 %v10663
      %v10665 = vlaneseq
      %v10666 = vshrl.u32 %v10665, 7
      %v10667 = vsub.s32 %v10664, %v10666
      %v10668 = vrot.slane %v10127, %v10667
      %v10670 = vunpack.c.l.s4 1966171168
      %v10671 = vunpack.c.0.s8 %v10670
      %v10672 = vlaneseq
      %v10673 = vshrl.u32 %v10672, 7
      %v10674 = vsub.s32 %v10671, %v10673
      %v10675 = vrot.slane %v10661, %v10674
      %v10676 = vcombine.high %v10668, %v10668
      %v10677 = vcombine.high %v10675, %v10675
      %v10679 = vunpack.c.l.s4 1966171168
      %v10680 = vunpack.c.0.s8 %v10679
      %v10681 = vlaneseq
      %v10682 = vshrl.u32 %v10681, 7
      %v10683 = vsub.s32 %v10680, %v10682
      %v10684 = vrot.slane %v10668, %v10683
      %v10686 = vunpack.c.l.s4 1966171168
      %v10687 = vunpack.c.0.s8 %v10686
      %v10688 = vlaneseq
      %v10689 = vshrl.u32 %v10688, 7
      %v10690 = vsub.s32 %v10687, %v10689
      %v10691 = vrot.slane %v10675, %v10690
      %v10693 = vunpack.c.l.s4 1966171168
      %v10694 = vunpack.c.0.s8 %v10693
      %v10695 = vlaneseq
      %v10696 = vshrl.u32 %v10695, 7
      %v10697 = vsub.s32 %v10694, %v10696
      %v10698 = vrot.slane %v10676, %v10697
      %v10700 = vunpack.c.l.s4 1966171168
      %v10701 = vunpack.c.0.s8 %v10700
      %v10702 = vlaneseq
      %v10703 = vshrl.u32 %v10702, 7
      %v10704 = vsub.s32 %v10701, %v10703
      %v10705 = vrot.slane %v10677, %v10704
      %v10706 = vcombine.high %v10684, %v10684
      %v10707 = vcombine.high %v10691, %v10691
      %v10708 = vcombine.high %v10698, %v10698
      %v10709 = vcombine.high %v10705, %v10705
      %v10711 = vunpack.c.l.s4 1966171168
      %v10712 = vunpack.c.0.s8 %v10711
      %v10713 = vlaneseq
      %v10714 = vshrl.u32 %v10713, 7
      %v10715 = vsub.s32 %v10712, %v10714
      %v10716 = vrot.slane %v10128, %v10715
      %v10717 = vcombine.high %v10716, %v10716
      %v10719 = vunpack.c.l.s4 1966171168
      %v10720 = vunpack.c.0.s8 %v10719
      %v10721 = vlaneseq
      %v10722 = vshrl.u32 %v10721, 7
      %v10723 = vsub.s32 %v10720, %v10722
      %v10724 = vrot.slane %v10716, %v10723
      %v10726 = vunpack.c.l.s4 1966171168
      %v10727 = vunpack.c.0.s8 %v10726
      %v10728 = vlaneseq
      %v10729 = vshrl.u32 %v10728, 7
      %v10730 = vsub.s32 %v10727, %v10729
      %v10731 = vrot.slane %v10717, %v10730
      %v10732 = vcombine.high %v10724, %v10724
      %v10733 = vcombine.high %v10129, %v10129
      %v10735 = vunpack.c.l.s4 1966171168
      %v10736 = vunpack.c.0.s8 %v10735
      %v10737 = vlaneseq
      %v10738 = vshrl.u32 %v10737, 7
      %v10739 = vsub.s32 %v10736, %v10738
      %v10740 = vrot.slane %v10129, %v10739
      %v10742 = vunpack.c.l.s4 1966171168
      %v10743 = vunpack.c.0.s8 %v10742
      %v10744 = vlaneseq
      %v10745 = vshrl.u32 %v10744, 7
      %v10746 = vsub.s32 %v10743, %v10745
      %v10747 = vrot.slane %v10733, %v10746
      %v10748 = vcombine.high %v10740, %v10740
      %v10749 = vcombine.high %v10747, %v10747
      %v10751 = vunpack.c.l.s4 1966171168
      %v10752 = vunpack.c.0.s8 %v10751
      %v10753 = vlaneseq
      %v10754 = vshrl.u32 %v10753, 7
      %v10755 = vsub.s32 %v10752, %v10754
      %v10756 = vrot.slane %v10740, %v10755
      %v10758 = vunpack.c.l.s4 1966171168
      %v10759 = vunpack.c.0.s8 %v10758
      %v10760 = vlaneseq
      %v10761 = vshrl.u32 %v10760, 7
      %v10762 = vsub.s32 %v10759, %v10761
      %v10763 = vrot.slane %v10747, %v10762
      %v10765 = vunpack.c.l.s4 1966171168
      %v10766 = vunpack.c.0.s8 %v10765
      %v10767 = vlaneseq
      %v10768 = vshrl.u32 %v10767, 7
      %v10769 = vsub.s32 %v10766, %v10768
      %v10770 = vrot.slane %v10748, %v10769
      %v10772 = vunpack.c.l.s4 1966171168
      %v10773 = vunpack.c.0.s8 %v10772
      %v10774 = vlaneseq
      %v10775 = vshrl.u32 %v10774, 7
      %v10776 = vsub.s32 %v10773, %v10775
      %v10777 = vrot.slane %v10749, %v10776
      %v10778 = vcombine.high %v10756, %v10756
      %v10779 = vcombine.high %v10763, %v10763
      %v10780 = vcombine.high %v10770, %v10770
      %v10781 = vcombine.high %v10777, %v10777
      %v10783 = vunpack.c.l.s4 1966171168
      %v10784 = vunpack.c.0.s8 %v10783
      %v10785 = vlaneseq
      %v10786 = vshrl.u32 %v10785, 7
      %v10787 = vsub.s32 %v10784, %v10786
      %v10788 = vrot.slane %v10130, %v10787
      %v10789 = vcombine.high %v10788, %v10788
      %v10791 = vunpack.c.l.s4 1966171168
      %v10792 = vunpack.c.0.s8 %v10791
      %v10793 = vlaneseq
      %v10794 = vshrl.u32 %v10793, 7
      %v10795 = vsub.s32 %v10792, %v10794
      %v10796 = vrot.slane %v10788, %v10795
      %v10798 = vunpack.c.l.s4 1966171168
      %v10799 = vunpack.c.0.s8 %v10798
      %v10800 = vlaneseq
      %v10801 = vshrl.u32 %v10800, 7
      %v10802 = vsub.s32 %v10799, %v10801
      %v10803 = vrot.slane %v10789, %v10802
      %v10804 = vcombine.high %v10796, %v10796
      %v10805 = vcombine.high %v10131, %v10131
      %v10807 = vunpack.c.l.s4 1966171168
      %v10808 = vunpack.c.0.s8 %v10807
      %v10809 = vlaneseq
      %v10810 = vshrl.u32 %v10809, 7
      %v10811 = vsub.s32 %v10808, %v10810
      %v10812 = vrot.slane %v10131, %v10811
      %v10814 = vunpack.c.l.s4 1966171168
      %v10815 = vunpack.c.0.s8 %v10814
      %v10816 = vlaneseq
      %v10817 = vshrl.u32 %v10816, 7
      %v10818 = vsub.s32 %v10815, %v10817
      %v10819 = vrot.slane %v10805, %v10818
      %v10820 = vcombine.high %v10812, %v10812
      %v10821 = vcombine.high %v10819, %v10819
      %v10823 = vunpack.c.l.s4 1966171168
      %v10824 = vunpack.c.0.s8 %v10823
      %v10825 = vlaneseq
      %v10826 = vshrl.u32 %v10825, 7
      %v10827 = vsub.s32 %v10824, %v10826
      %v10828 = vrot.slane %v10812, %v10827
      %v10830 = vunpack.c.l.s4 1966171168
      %v10831 = vunpack.c.0.s8 %v10830
      %v10832 = vlaneseq
      %v10833 = vshrl.u32 %v10832, 7
      %v10834 = vsub.s32 %v10831, %v10833
      %v10835 = vrot.slane %v10819, %v10834
      %v10837 = vunpack.c.l.s4 1966171168
      %v10838 = vunpack.c.0.s8 %v10837
      %v10839 = vlaneseq
      %v10840 = vshrl.u32 %v10839, 7
      %v10841 = vsub.s32 %v10838, %v10840
      %v10842 = vrot.slane %v10820, %v10841
      %v10844 = vunpack.c.l.s4 1966171168
      %v10845 = vunpack.c.0.s8 %v10844
      %v10846 = vlaneseq
      %v10847 = vshrl.u32 %v10846, 7
      %v10848 = vsub.s32 %v10845, %v10847
      %v10849 = vrot.slane %v10821, %v10848
      %v10850 = vcombine.high %v10828, %v10828
      %v10851 = vcombine.high %v10835, %v10835
      %v10852 = vcombine.high %v10842, %v10842
      %v10853 = vcombine.high %v10849, %v10849
      %v10855 = vunpack.c.l.s4 1966171168
      %v10856 = vunpack.c.0.s8 %v10855
      %v10857 = vlaneseq
      %v10858 = vshrl.u32 %v10857, 7
      %v10859 = vsub.s32 %v10856, %v10858
      %v10860 = vrot.slane %v10132, %v10859
      %v10861 = vcombine.high %v10860, %v10860
      %v10863 = vunpack.c.l.s4 1966171168
      %v10864 = vunpack.c.0.s8 %v10863
      %v10865 = vlaneseq
      %v10866 = vshrl.u32 %v10865, 7
      %v10867 = vsub.s32 %v10864, %v10866
      %v10868 = vrot.slane %v10860, %v10867
      %v10870 = vunpack.c.l.s4 1966171168
      %v10871 = vunpack.c.0.s8 %v10870
      %v10872 = vlaneseq
      %v10873 = vshrl.u32 %v10872, 7
      %v10874 = vsub.s32 %v10871, %v10873
      %v10875 = vrot.slane %v10861, %v10874
      %v10876 = vcombine.high %v10868, %v10868
      %v10877 = vcombine.high %v10133, %v10133
      %v10879 = vunpack.c.l.s4 1966171168
      %v10880 = vunpack.c.0.s8 %v10879
      %v10881 = vlaneseq
      %v10882 = vshrl.u32 %v10881, 7
      %v10883 = vsub.s32 %v10880, %v10882
      %v10884 = vrot.slane %v10133, %v10883
      %v10886 = vunpack.c.l.s4 1966171168
      %v10887 = vunpack.c.0.s8 %v10886
      %v10888 = vlaneseq
      %v10889 = vshrl.u32 %v10888, 7
      %v10890 = vsub.s32 %v10887, %v10889
      %v10891 = vrot.slane %v10877, %v10890
      %v10892 = vcombine.high %v10884, %v10884
      %v10893 = vcombine.high %v10891, %v10891
      %v10895 = vunpack.c.l.s4 1966171168
      %v10896 = vunpack.c.0.s8 %v10895
      %v10897 = vlaneseq
      %v10898 = vshrl.u32 %v10897, 7
      %v10899 = vsub.s32 %v10896, %v10898
      %v10900 = vrot.slane %v10884, %v10899
      %v10902 = vunpack.c.l.s4 1966171168
      %v10903 = vunpack.c.0.s8 %v10902
      %v10904 = vlaneseq
      %v10905 = vshrl.u32 %v10904, 7
      %v10906 = vsub.s32 %v10903, %v10905
      %v10907 = vrot.slane %v10891, %v10906
      %v10909 = vunpack.c.l.s4 1966171168
      %v10910 = vunpack.c.0.s8 %v10909
      %v10911 = vlaneseq
      %v10912 = vshrl.u32 %v10911, 7
      %v10913 = vsub.s32 %v10910, %v10912
      %v10914 = vrot.slane %v10892, %v10913
      %v10916 = vunpack.c.l.s4 1966171168
      %v10917 = vunpack.c.0.s8 %v10916
      %v10918 = vlaneseq
      %v10919 = vshrl.u32 %v10918, 7
      %v10920 = vsub.s32 %v10917, %v10919
      %v10921 = vrot.slane %v10893, %v10920
      %v10922 = vcombine.high %v10900, %v10900
      %v10923 = vcombine.high %v10907, %v10907
      %v10924 = vcombine.high %v10914, %v10914
      %v10925 = vcombine.high %v10921, %v10921
      %v10927 = vunpack.c.l.s4 1966171168
      %v10928 = vunpack.c.0.s8 %v10927
      %v10929 = vlaneseq
      %v10930 = vshrl.u32 %v10929, 7
      %v10931 = vsub.s32 %v10928, %v10930
      %v10932 = vrot.slane %v10134, %v10931
      %v10933 = vcombine.high %v10932, %v10932
      %v10935 = vunpack.c.l.s4 1966171168
      %v10936 = vunpack.c.0.s8 %v10935
      %v10937 = vlaneseq
      %v10938 = vshrl.u32 %v10937, 7
      %v10939 = vsub.s32 %v10936, %v10938
      %v10940 = vrot.slane %v10932, %v10939
      %v10942 = vunpack.c.l.s4 1966171168
      %v10943 = vunpack.c.0.s8 %v10942
      %v10944 = vlaneseq
      %v10945 = vshrl.u32 %v10944, 7
      %v10946 = vsub.s32 %v10943, %v10945
      %v10947 = vrot.slane %v10933, %v10946
      %v10948 = vcombine.high %v10940, %v10940
      %v10949 = vcombine.low %v10180, %v10194
      %v10950 = vcombine.low %v10202, %v10204
      %v10951 = vcombine.low %v10187, %v10201
      %v10952 = vcombine.low %v10203, %v10205
      %v10954 = vunpack.c.l.s4 1966171168
      %v10955 = vunpack.c.0.s8 %v10954
      %v10956 = vlaneseq
      %v10957 = vshrl.u32 %v10956, 7
      %v10958 = vsub.s32 %v10955, %v10957
      %v10959 = vrot.slane %v10949, %v10958
      %v10961 = vunpack.c.l.s4 1966171168
      %v10962 = vunpack.c.0.s8 %v10961
      %v10963 = vlaneseq
      %v10964 = vshrl.u32 %v10963, 7
      %v10965 = vsub.s32 %v10962, %v10964
      %v10966 = vrot.slane %v10950, %v10965
      %v10968 = vunpack.c.l.s4 1966171168
      %v10969 = vunpack.c.0.s8 %v10968
      %v10970 = vlaneseq
      %v10971 = vshrl.u32 %v10970, 7
      %v10972 = vsub.s32 %v10969, %v10971
      %v10973 = vrot.slane %v10951, %v10972
      %v10975 = vunpack.c.l.s4 1966171168
      %v10976 = vunpack.c.0.s8 %v10975
      %v10977 = vlaneseq
      %v10978 = vshrl.u32 %v10977, 7
      %v10979 = vsub.s32 %v10976, %v10978
      %v10980 = vrot.slane %v10952, %v10979
      %v10981 = vcombine.low %v10959, %v10966
      %v10982 = vcombine.low %v10973, %v10980
      %v10984 = vunpack.c.l.s4 1966171168
      %v10985 = vunpack.c.0.s8 %v10984
      %v10986 = vlaneseq
      %v10987 = vshrl.u32 %v10986, 7
      %v10988 = vsub.s32 %v10985, %v10987
      %v10989 = vrot.slane %v10981, %v10988
      %v10991 = vunpack.c.l.s4 1966171168
      %v10992 = vunpack.c.0.s8 %v10991
      %v10993 = vlaneseq
      %v10994 = vshrl.u32 %v10993, 7
      %v10995 = vsub.s32 %v10992, %v10994
      %v10996 = vrot.slane %v10982, %v10995
      %v10997 = vcombine.low %v10989, %v10996
      %v10998 = vcombine.low %v10220, %v10227
      %v10999 = vcombine.low %v10228, %v10252
      %v11000 = vcombine.low %v10266, %v10274
      %v11001 = vcombine.low %v10276, %v10259
      %v11003 = vunpack.c.l.s4 1966171168
      %v11004 = vunpack.c.0.s8 %v11003
      %v11005 = vlaneseq
      %v11006 = vshrl.u32 %v11005, 7
      %v11007 = vsub.s32 %v11004, %v11006
      %v11008 = vrot.slane %v10998, %v11007
      %v11010 = vunpack.c.l.s4 1966171168
      %v11011 = vunpack.c.0.s8 %v11010
      %v11012 = vlaneseq
      %v11013 = vshrl.u32 %v11012, 7
      %v11014 = vsub.s32 %v11011, %v11013
      %v11015 = vrot.slane %v10999, %v11014
      %v11017 = vunpack.c.l.s4 1966171168
      %v11018 = vunpack.c.0.s8 %v11017
      %v11019 = vlaneseq
      %v11020 = vshrl.u32 %v11019, 7
      %v11021 = vsub.s32 %v11018, %v11020
      %v11022 = vrot.slane %v11000, %v11021
      %v11024 = vunpack.c.l.s4 1966171168
      %v11025 = vunpack.c.0.s8 %v11024
      %v11026 = vlaneseq
      %v11027 = vshrl.u32 %v11026, 7
      %v11028 = vsub.s32 %v11025, %v11027
      %v11029 = vrot.slane %v11001, %v11028
      %v11030 = vcombine.low %v11008, %v11015
      %v11031 = vcombine.low %v11022, %v11029
      %v11033 = vunpack.c.l.s4 1966171168
      %v11034 = vunpack.c.0.s8 %v11033
      %v11035 = vlaneseq
      %v11036 = vshrl.u32 %v11035, 7
      %v11037 = vsub.s32 %v11034, %v11036
      %v11038 = vrot.slane %v11030, %v11037
      %v11040 = vunpack.c.l.s4 1966171168
      %v11041 = vunpack.c.0.s8 %v11040
      %v11042 = vlaneseq
      %v11043 = vshrl.u32 %v11042, 7
      %v11044 = vsub.s32 %v11041, %v11043
      %v11045 = vrot.slane %v11031, %v11044
      %v11046 = vcombine.low %v11038, %v11045
      %v11047 = vcombine.low %v10273, %v10275
      %v11048 = vcombine.low %v10277, %v10292
      %v11049 = vcombine.low %v10299, %v10300
      %v11050 = vcombine.low %v10324, %v10338
      %v11052 = vunpack.c.l.s4 1966171168
      %v11053 = vunpack.c.0.s8 %v11052
      %v11054 = vlaneseq
      %v11055 = vshrl.u32 %v11054, 7
      %v11056 = vsub.s32 %v11053, %v11055
      %v11057 = vrot.slane %v11047, %v11056
      %v11059 = vunpack.c.l.s4 1966171168
      %v11060 = vunpack.c.0.s8 %v11059
      %v11061 = vlaneseq
      %v11062 = vshrl.u32 %v11061, 7
      %v11063 = vsub.s32 %v11060, %v11062
      %v11064 = vrot.slane %v11048, %v11063
      %v11066 = vunpack.c.l.s4 1966171168
      %v11067 = vunpack.c.0.s8 %v11066
      %v11068 = vlaneseq
      %v11069 = vshrl.u32 %v11068, 7
      %v11070 = vsub.s32 %v11067, %v11069
      %v11071 = vrot.slane %v11049, %v11070
      %v11073 = vunpack.c.l.s4 1966171168
      %v11074 = vunpack.c.0.s8 %v11073
      %v11075 = vlaneseq
      %v11076 = vshrl.u32 %v11075, 7
      %v11077 = vsub.s32 %v11074, %v11076
      %v11078 = vrot.slane %v11050, %v11077
      %v11079 = vcombine.low %v11057, %v11064
      %v11080 = vcombine.low %v11071, %v11078
      %v11082 = vunpack.c.l.s4 1966171168
      %v11083 = vunpack.c.0.s8 %v11082
      %v11084 = vlaneseq
      %v11085 = vshrl.u32 %v11084, 7
      %v11086 = vsub.s32 %v11083, %v11085
      %v11087 = vrot.slane %v11079, %v11086
      %v11089 = vunpack.c.l.s4 1966171168
      %v11090 = vunpack.c.0.s8 %v11089
      %v11091 = vlaneseq
      %v11092 = vshrl.u32 %v11091, 7
      %v11093 = vsub.s32 %v11090, %v11092
      %v11094 = vrot.slane %v11080, %v11093
      %v11095 = vcombine.low %v11087, %v11094
      %v11096 = vcombine.low %v10346, %v10348
      %v11097 = vcombine.low %v10331, %v10345
      %v11098 = vcombine.low %v10347, %v10349
      %v11099 = vcombine.low %v10364, %v10371
      %v11101 = vunpack.c.l.s4 1966171168
      %v11102 = vunpack.c.0.s8 %v11101
      %v11103 = vlaneseq
      %v11104 = vshrl.u32 %v11103, 7
      %v11105 = vsub.s32 %v11102, %v11104
      %v11106 = vrot.slane %v11096, %v11105
      %v11108 = vunpack.c.l.s4 1966171168
      %v11109 = vunpack.c.0.s8 %v11108
      %v11110 = vlaneseq
      %v11111 = vshrl.u32 %v11110, 7
      %v11112 = vsub.s32 %v11109, %v11111
      %v11113 = vrot.slane %v11097, %v11112
      %v11115 = vunpack.c.l.s4 1966171168
      %v11116 = vunpack.c.0.s8 %v11115
      %v11117 = vlaneseq
      %v11118 = vshrl.u32 %v11117, 7
      %v11119 = vsub.s32 %v11116, %v11118
      %v11120 = vrot.slane %v11098, %v11119
      %v11122 = vunpack.c.l.s4 1966171168
      %v11123 = vunpack.c.0.s8 %v11122
      %v11124 = vlaneseq
      %v11125 = vshrl.u32 %v11124, 7
      %v11126 = vsub.s32 %v11123, %v11125
      %v11127 = vrot.slane %v11099, %v11126
      %v11128 = vcombine.low %v11106, %v11113
      %v11129 = vcombine.low %v11120, %v11127
      %v11131 = vunpack.c.l.s4 1966171168
      %v11132 = vunpack.c.0.s8 %v11131
      %v11133 = vlaneseq
      %v11134 = vshrl.u32 %v11133, 7
      %v11135 = vsub.s32 %v11132, %v11134
      %v11136 = vrot.slane %v11128, %v11135
      %v11138 = vunpack.c.l.s4 1966171168
      %v11139 = vunpack.c.0.s8 %v11138
      %v11140 = vlaneseq
      %v11141 = vshrl.u32 %v11140, 7
      %v11142 = vsub.s32 %v11139, %v11141
      %v11143 = vrot.slane %v11129, %v11142
      %v11144 = vcombine.low %v11136, %v11143
      %v11145 = vcombine.low %v10372, %v10396
      %v11146 = vcombine.low %v10410, %v10418
      %v11147 = vcombine.low %v10420, %v10403
      %v11148 = vcombine.low %v10417, %v10419
      %v11150 = vunpack.c.l.s4 1966171168
      %v11151 = vunpack.c.0.s8 %v11150
      %v11152 = vlaneseq
      %v11153 = vshrl.u32 %v11152, 7
      %v11154 = vsub.s32 %v11151, %v11153
      %v11155 = vrot.slane %v11145, %v11154
      %v11157 = vunpack.c.l.s4 1966171168
      %v11158 = vunpack.c.0.s8 %v11157
      %v11159 = vlaneseq
      %v11160 = vshrl.u32 %v11159, 7
      %v11161 = vsub.s32 %v11158, %v11160
      %v11162 = vrot.slane %v11146, %v11161
      %v11164 = vunpack.c.l.s4 1966171168
      %v11165 = vunpack.c.0.s8 %v11164
      %v11166 = vlaneseq
      %v11167 = vshrl.u32 %v11166, 7
      %v11168 = vsub.s32 %v11165, %v11167
      %v11169 = vrot.slane %v11147, %v11168
      %v11171 = vunpack.c.l.s4 1966171168
      %v11172 = vunpack.c.0.s8 %v11171
      %v11173 = vlaneseq
      %v11174 = vshrl.u32 %v11173, 7
      %v11175 = vsub.s32 %v11172, %v11174
      %v11176 = vrot.slane %v11148, %v11175
      %v11177 = vcombine.low %v11155, %v11162
      %v11178 = vcombine.low %v11169, %v11176
      %v11180 = vunpack.c.l.s4 1966171168
      %v11181 = vunpack.c.0.s8 %v11180
      %v11182 = vlaneseq
      %v11183 = vshrl.u32 %v11182, 7
      %v11184 = vsub.s32 %v11181, %v11183
      %v11185 = vrot.slane %v11177, %v11184
      %v11187 = vunpack.c.l.s4 1966171168
      %v11188 = vunpack.c.0.s8 %v11187
      %v11189 = vlaneseq
      %v11190 = vshrl.u32 %v11189, 7
      %v11191 = vsub.s32 %v11188, %v11190
      %v11192 = vrot.slane %v11178, %v11191
      %v11193 = vcombine.low %v11185, %v11192
      %v11194 = vcombine.low %v10421, %v10436
      %v11195 = vcombine.low %v10443, %v10444
      %v11196 = vcombine.low %v10468, %v10482
      %v11197 = vcombine.low %v10490, %v10492
      %v11199 = vunpack.c.l.s4 1966171168
      %v11200 = vunpack.c.0.s8 %v11199
      %v11201 = vlaneseq
      %v11202 = vshrl.u32 %v11201, 7
      %v11203 = vsub.s32 %v11200, %v11202
      %v11204 = vrot.slane %v11194, %v11203
      %v11206 = vunpack.c.l.s4 1966171168
      %v11207 = vunpack.c.0.s8 %v11206
      %v11208 = vlaneseq
      %v11209 = vshrl.u32 %v11208, 7
      %v11210 = vsub.s32 %v11207, %v11209
      %v11211 = vrot.slane %v11195, %v11210
      %v11213 = vunpack.c.l.s4 1966171168
      %v11214 = vunpack.c.0.s8 %v11213
      %v11215 = vlaneseq
      %v11216 = vshrl.u32 %v11215, 7
      %v11217 = vsub.s32 %v11214, %v11216
      %v11218 = vrot.slane %v11196, %v11217
      %v11220 = vunpack.c.l.s4 1966171168
      %v11221 = vunpack.c.0.s8 %v11220
      %v11222 = vlaneseq
      %v11223 = vshrl.u32 %v11222, 7
      %v11224 = vsub.s32 %v11221, %v11223
      %v11225 = vrot.slane %v11197, %v11224
      %v11226 = vcombine.low %v11204, %v11211
      %v11227 = vcombine.low %v11218, %v11225
      %v11229 = vunpack.c.l.s4 1966171168
      %v11230 = vunpack.c.0.s8 %v11229
      %v11231 = vlaneseq
      %v11232 = vshrl.u32 %v11231, 7
      %v11233 = vsub.s32 %v11230, %v11232
      %v11234 = vrot.slane %v11226, %v11233
      %v11236 = vunpack.c.l.s4 1966171168
      %v11237 = vunpack.c.0.s8 %v11236
      %v11238 = vlaneseq
      %v11239 = vshrl.u32 %v11238, 7
      %v11240 = vsub.s32 %v11237, %v11239
      %v11241 = vrot.slane %v11227, %v11240
      %v11242 = vcombine.low %v11234, %v11241
      %v11243 = vcombine.low %v10475, %v10489
      %v11244 = vcombine.low %v10491, %v10493
      %v11245 = vcombine.low %v10508, %v10515
      %v11246 = vcombine.low %v10516, %v10540
      %v11248 = vunpack.c.l.s4 1966171168
      %v11249 = vunpack.c.0.s8 %v11248
      %v11250 = vlaneseq
      %v11251 = vshrl.u32 %v11250, 7
      %v11252 = vsub.s32 %v11249, %v11251
      %v11253 = vrot.slane %v11243, %v11252
      %v11255 = vunpack.c.l.s4 1966171168
      %v11256 = vunpack.c.0.s8 %v11255
      %v11257 = vlaneseq
      %v11258 = vshrl.u32 %v11257, 7
      %v11259 = vsub.s32 %v11256, %v11258
      %v11260 = vrot.slane %v11244, %v11259
      %v11262 = vunpack.c.l.s4 1966171168
      %v11263 = vunpack.c.0.s8 %v11262
      %v11264 = vlaneseq
      %v11265 = vshrl.u32 %v11264, 7
      %v11266 = vsub.s32 %v11263, %v11265
      %v11267 = vrot.slane %v11245, %v11266
      %v11269 = vunpack.c.l.s4 1966171168
      %v11270 = vunpack.c.0.s8 %v11269
      %v11271 = vlaneseq
      %v11272 = vshrl.u32 %v11271, 7
      %v11273 = vsub.s32 %v11270, %v11272
      %v11274 = vrot.slane %v11246, %v11273
      %v11275 = vcombine.low %v11253, %v11260
      %v11276 = vcombine.low %v11267, %v11274
      %v11278 = vunpack.c.l.s4 1966171168
      %v11279 = vunpack.c.0.s8 %v11278
      %v11280 = vlaneseq
      %v11281 = vshrl.u32 %v11280, 7
      %v11282 = vsub.s32 %v11279, %v11281
      %v11283 = vrot.slane %v11275, %v11282
      %v11285 = vunpack.c.l.s4 1966171168
      %v11286 = vunpack.c.0.s8 %v11285
      %v11287 = vlaneseq
      %v11288 = vshrl.u32 %v11287, 7
      %v11289 = vsub.s32 %v11286, %v11288
      %v11290 = vrot.slane %v11276, %v11289
      %v11291 = vcombine.low %v11283, %v11290
      %v11292 = vcombine.low %v10554, %v10562
      %v11293 = vcombine.low %v10564, %v10547
      %v11294 = vcombine.low %v10561, %v10563
      %v11295 = vcombine.low %v10565, %v10580
      %v11297 = vunpack.c.l.s4 1966171168
      %v11298 = vunpack.c.0.s8 %v11297
      %v11299 = vlaneseq
      %v11300 = vshrl.u32 %v11299, 7
      %v11301 = vsub.s32 %v11298, %v11300
      %v11302 = vrot.slane %v11292, %v11301
      %v11304 = vunpack.c.l.s4 1966171168
      %v11305 = vunpack.c.0.s8 %v11304
      %v11306 = vlaneseq
      %v11307 = vshrl.u32 %v11306, 7
      %v11308 = vsub.s32 %v11305, %v11307
      %v11309 = vrot.slane %v11293, %v11308
      %v11311 = vunpack.c.l.s4 1966171168
      %v11312 = vunpack.c.0.s8 %v11311
      %v11313 = vlaneseq
      %v11314 = vshrl.u32 %v11313, 7
      %v11315 = vsub.s32 %v11312, %v11314
      %v11316 = vrot.slane %v11294, %v11315
      %v11318 = vunpack.c.l.s4 1966171168
      %v11319 = vunpack.c.0.s8 %v11318
      %v11320 = vlaneseq
      %v11321 = vshrl.u32 %v11320, 7
      %v11322 = vsub.s32 %v11319, %v11321
      %v11323 = vrot.slane %v11295, %v11322
      %v11324 = vcombine.low %v11302, %v11309
      %v11325 = vcombine.low %v11316, %v11323
      %v11327 = vunpack.c.l.s4 1966171168
      %v11328 = vunpack.c.0.s8 %v11327
      %v11329 = vlaneseq
      %v11330 = vshrl.u32 %v11329, 7
      %v11331 = vsub.s32 %v11328, %v11330
      %v11332 = vrot.slane %v11324, %v11331
      %v11334 = vunpack.c.l.s4 1966171168
      %v11335 = vunpack.c.0.s8 %v11334
      %v11336 = vlaneseq
      %v11337 = vshrl.u32 %v11336, 7
      %v11338 = vsub.s32 %v11335, %v11337
      %v11339 = vrot.slane %v11325, %v11338
      %v11340 = vcombine.low %v11332, %v11339
      %v11341 = vcombine.low %v10587, %v10588
      %v11342 = vcombine.low %v10612, %v10626
      %v11343 = vcombine.low %v10634, %v10636
      %v11344 = vcombine.low %v10619, %v10633
      %v11346 = vunpack.c.l.s4 1966171168
      %v11347 = vunpack.c.0.s8 %v11346
      %v11348 = vlaneseq
      %v11349 = vshrl.u32 %v11348, 7
      %v11350 = vsub.s32 %v11347, %v11349
      %v11351 = vrot.slane %v11341, %v11350
      %v11353 = vunpack.c.l.s4 1966171168
      %v11354 = vunpack.c.0.s8 %v11353
      %v11355 = vlaneseq
      %v11356 = vshrl.u32 %v11355, 7
      %v11357 = vsub.s32 %v11354, %v11356
      %v11358 = vrot.slane %v11342, %v11357
      %v11360 = vunpack.c.l.s4 1966171168
      %v11361 = vunpack.c.0.s8 %v11360
      %v11362 = vlaneseq
      %v11363 = vshrl.u32 %v11362, 7
      %v11364 = vsub.s32 %v11361, %v11363
      %v11365 = vrot.slane %v11343, %v11364
      %v11367 = vunpack.c.l.s4 1966171168
      %v11368 = vunpack.c.0.s8 %v11367
      %v11369 = vlaneseq
      %v11370 = vshrl.u32 %v11369, 7
      %v11371 = vsub.s32 %v11368, %v11370
      %v11372 = vrot.slane %v11344, %v11371
      %v11373 = vcombine.low %v11351, %v11358
      %v11374 = vcombine.low %v11365, %v11372
      %v11376 = vunpack.c.l.s4 1966171168
      %v11377 = vunpack.c.0.s8 %v11376
      %v11378 = vlaneseq
      %v11379 = vshrl.u32 %v11378, 7
      %v11380 = vsub.s32 %v11377, %v11379
      %v11381 = vrot.slane %v11373, %v11380
      %v11383 = vunpack.c.l.s4 1966171168
      %v11384 = vunpack.c.0.s8 %v11383
      %v11385 = vlaneseq
      %v11386 = vshrl.u32 %v11385, 7
      %v11387 = vsub.s32 %v11384, %v11386
      %v11388 = vrot.slane %v11374, %v11387
      %v11389 = vcombine.low %v11381, %v11388
      %v11390 = vcombine.low %v10635, %v10637
      %v11391 = vcombine.low %v10652, %v10659
      %v11392 = vcombine.low %v10660, %v10684
      %v11393 = vcombine.low %v10698, %v10706
      %v11395 = vunpack.c.l.s4 1966171168
      %v11396 = vunpack.c.0.s8 %v11395
      %v11397 = vlaneseq
      %v11398 = vshrl.u32 %v11397, 7
      %v11399 = vsub.s32 %v11396, %v11398
      %v11400 = vrot.slane %v11390, %v11399
      %v11402 = vunpack.c.l.s4 1966171168
      %v11403 = vunpack.c.0.s8 %v11402
      %v11404 = vlaneseq
      %v11405 = vshrl.u32 %v11404, 7
      %v11406 = vsub.s32 %v11403, %v11405
      %v11407 = vrot.slane %v11391, %v11406
      %v11409 = vunpack.c.l.s4 1966171168
      %v11410 = vunpack.c.0.s8 %v11409
      %v11411 = vlaneseq
      %v11412 = vshrl.u32 %v11411, 7
      %v11413 = vsub.s32 %v11410, %v11412
      %v11414 = vrot.slane %v11392, %v11413
      %v11416 = vunpack.c.l.s4 1966171168
      %v11417 = vunpack.c.0.s8 %v11416
      %v11418 = vlaneseq
      %v11419 = vshrl.u32 %v11418, 7
      %v11420 = vsub.s32 %v11417, %v11419
      %v11421 = vrot.slane %v11393, %v11420
      %v11422 = vcombine.low %v11400, %v11407
      %v11423 = vcombine.low %v11414, %v11421
      %v11425 = vunpack.c.l.s4 1966171168
      %v11426 = vunpack.c.0.s8 %v11425
      %v11427 = vlaneseq
      %v11428 = vshrl.u32 %v11427, 7
      %v11429 = vsub.s32 %v11426, %v11428
      %v11430 = vrot.slane %v11422, %v11429
      %v11432 = vunpack.c.l.s4 1966171168
      %v11433 = vunpack.c.0.s8 %v11432
      %v11434 = vlaneseq
      %v11435 = vshrl.u32 %v11434, 7
      %v11436 = vsub.s32 %v11433, %v11435
      %v11437 = vrot.slane %v11423, %v11436
      %v11438 = vcombine.low %v11430, %v11437
      %v11439 = vcombine.low %v10708, %v10691
      %v11440 = vcombine.low %v10705, %v10707
      %v11441 = vcombine.low %v10709, %v10724
      %v11442 = vcombine.low %v10731, %v10732
      %v11444 = vunpack.c.l.s4 1966171168
      %v11445 = vunpack.c.0.s8 %v11444
      %v11446 = vlaneseq
      %v11447 = vshrl.u32 %v11446, 7
      %v11448 = vsub.s32 %v11445, %v11447
      %v11449 = vrot.slane %v11439, %v11448
      %v11451 = vunpack.c.l.s4 1966171168
      %v11452 = vunpack.c.0.s8 %v11451
      %v11453 = vlaneseq
      %v11454 = vshrl.u32 %v11453, 7
      %v11455 = vsub.s32 %v11452, %v11454
      %v11456 = vrot.slane %v11440, %v11455
      %v11458 = vunpack.c.l.s4 1966171168
      %v11459 = vunpack.c.0.s8 %v11458
      %v11460 = vlaneseq
      %v11461 = vshrl.u32 %v11460, 7
      %v11462 = vsub.s32 %v11459, %v11461
      %v11463 = vrot.slane %v11441, %v11462
      %v11465 = vunpack.c.l.s4 1966171168
      %v11466 = vunpack.c.0.s8 %v11465
      %v11467 = vlaneseq
      %v11468 = vshrl.u32 %v11467, 7
      %v11469 = vsub.s32 %v11466, %v11468
      %v11470 = vrot.slane %v11442, %v11469
      %v11471 = vcombine.low %v11449, %v11456
      %v11472 = vcombine.low %v11463, %v11470
      %v11474 = vunpack.c.l.s4 1966171168
      %v11475 = vunpack.c.0.s8 %v11474
      %v11476 = vlaneseq
      %v11477 = vshrl.u32 %v11476, 7
      %v11478 = vsub.s32 %v11475, %v11477
      %v11479 = vrot.slane %v11471, %v11478
      %v11481 = vunpack.c.l.s4 1966171168
      %v11482 = vunpack.c.0.s8 %v11481
      %v11483 = vlaneseq
      %v11484 = vshrl.u32 %v11483, 7
      %v11485 = vsub.s32 %v11482, %v11484
      %v11486 = vrot.slane %v11472, %v11485
      %v11487 = vcombine.low %v11479, %v11486
      %v11488 = vcombine.low %v10756, %v10770
      %v11489 = vcombine.low %v10778, %v10780
      %v11490 = vcombine.low %v10763, %v10777
      %v11491 = vcombine.low %v10779, %v10781
      %v11493 = vunpack.c.l.s4 1966171168
      %v11494 = vunpack.c.0.s8 %v11493
      %v11495 = vlaneseq
      %v11496 = vshrl.u32 %v11495, 7
      %v11497 = vsub.s32 %v11494, %v11496
      %v11498 = vrot.slane %v11488, %v11497
      %v11500 = vunpack.c.l.s4 1966171168
      %v11501 = vunpack.c.0.s8 %v11500
      %v11502 = vlaneseq
      %v11503 = vshrl.u32 %v11502, 7
      %v11504 = vsub.s32 %v11501, %v11503
      %v11505 = vrot.slane %v11489, %v11504
      %v11507 = vunpack.c.l.s4 1966171168
      %v11508 = vunpack.c.0.s8 %v11507
      %v11509 = vlaneseq
      %v11510 = vshrl.u32 %v11509, 7
      %v11511 = vsub.s32 %v11508, %v11510
      %v11512 = vrot.slane %v11490, %v11511
      %v11514 = vunpack.c.l.s4 1966171168
      %v11515 = vunpack.c.0.s8 %v11514
      %v11516 = vlaneseq
      %v11517 = vshrl.u32 %v11516, 7
      %v11518 = vsub.s32 %v11515, %v11517
      %v11519 = vrot.slane %v11491, %v11518
      %v11520 = vcombine.low %v11498, %v11505
      %v11521 = vcombine.low %v11512, %v11519
      %v11523 = vunpack.c.l.s4 1966171168
      %v11524 = vunpack.c.0.s8 %v11523
      %v11525 = vlaneseq
      %v11526 = vshrl.u32 %v11525, 7
      %v11527 = vsub.s32 %v11524, %v11526
      %v11528 = vrot.slane %v11520, %v11527
      %v11530 = vunpack.c.l.s4 1966171168
      %v11531 = vunpack.c.0.s8 %v11530
      %v11532 = vlaneseq
      %v11533 = vshrl.u32 %v11532, 7
      %v11534 = vsub.s32 %v11531, %v11533
      %v11535 = vrot.slane %v11521, %v11534
      %v11536 = vcombine.low %v11528, %v11535
      %v11537 = vcombine.low %v10796, %v10803
      %v11538 = vcombine.low %v10804, %v10828
      %v11539 = vcombine.low %v10842, %v10850
      %v11540 = vcombine.low %v10852, %v10835
      %v11542 = vunpack.c.l.s4 1966171168
      %v11543 = vunpack.c.0.s8 %v11542
      %v11544 = vlaneseq
      %v11545 = vshrl.u32 %v11544, 7
      %v11546 = vsub.s32 %v11543, %v11545
      %v11547 = vrot.slane %v11537, %v11546
      %v11549 = vunpack.c.l.s4 1966171168
      %v11550 = vunpack.c.0.s8 %v11549
      %v11551 = vlaneseq
      %v11552 = vshrl.u32 %v11551, 7
      %v11553 = vsub.s32 %v11550, %v11552
      %v11554 = vrot.slane %v11538, %v11553
      %v11556 = vunpack.c.l.s4 1966171168
      %v11557 = vunpack.c.0.s8 %v11556
      %v11558 = vlaneseq
      %v11559 = vshrl.u32 %v11558, 7
      %v11560 = vsub.s32 %v11557, %v11559
      %v11561 = vrot.slane %v11539, %v11560
      %v11563 = vunpack.c.l.s4 1966171168
      %v11564 = vunpack.c.0.s8 %v11563
      %v11565 = vlaneseq
      %v11566 = vshrl.u32 %v11565, 7
      %v11567 = vsub.s32 %v11564, %v11566
      %v11568 = vrot.slane %v11540, %v11567
      %v11569 = vcombine.low %v11547, %v11554
      %v11570 = vcombine.low %v11561, %v11568
      %v11572 = vunpack.c.l.s4 1966171168
      %v11573 = vunpack.c.0.s8 %v11572
      %v11574 = vlaneseq
      %v11575 = vshrl.u32 %v11574, 7
      %v11576 = vsub.s32 %v11573, %v11575
      %v11577 = vrot.slane %v11569, %v11576
      %v11579 = vunpack.c.l.s4 1966171168
      %v11580 = vunpack.c.0.s8 %v11579
      %v11581 = vlaneseq
      %v11582 = vshrl.u32 %v11581, 7
      %v11583 = vsub.s32 %v11580, %v11582
      %v11584 = vrot.slane %v11570, %v11583
      %v11585 = vcombine.low %v11577, %v11584
      %v11586 = vcombine.low %v10849, %v10851
      %v11587 = vcombine.low %v10853, %v10868
      %v11588 = vcombine.low %v10875, %v10876
      %v11589 = vcombine.low %v10900, %v10914
      %v11591 = vunpack.c.l.s4 1966171168
      %v11592 = vunpack.c.0.s8 %v11591
      %v11593 = vlaneseq
      %v11594 = vshrl.u32 %v11593, 7
      %v11595 = vsub.s32 %v11592, %v11594
      %v11596 = vrot.slane %v11586, %v11595
      %v11598 = vunpack.c.l.s4 1966171168
      %v11599 = vunpack.c.0.s8 %v11598
      %v11600 = vlaneseq
      %v11601 = vshrl.u32 %v11600, 7
      %v11602 = vsub.s32 %v11599, %v11601
      %v11603 = vrot.slane %v11587, %v11602
      %v11605 = vunpack.c.l.s4 1966171168
      %v11606 = vunpack.c.0.s8 %v11605
      %v11607 = vlaneseq
      %v11608 = vshrl.u32 %v11607, 7
      %v11609 = vsub.s32 %v11606, %v11608
      %v11610 = vrot.slane %v11588, %v11609
      %v11612 = vunpack.c.l.s4 1966171168
      %v11613 = vunpack.c.0.s8 %v11612
      %v11614 = vlaneseq
      %v11615 = vshrl.u32 %v11614, 7
      %v11616 = vsub.s32 %v11613, %v11615
      %v11617 = vrot.slane %v11589, %v11616
      %v11618 = vcombine.low %v11596, %v11603
      %v11619 = vcombine.low %v11610, %v11617
      %v11621 = vunpack.c.l.s4 1966171168
      %v11622 = vunpack.c.0.s8 %v11621
      %v11623 = vlaneseq
      %v11624 = vshrl.u32 %v11623, 7
      %v11625 = vsub.s32 %v11622, %v11624
      %v11626 = vrot.slane %v11618, %v11625
      %v11628 = vunpack.c.l.s4 1966171168
      %v11629 = vunpack.c.0.s8 %v11628
      %v11630 = vlaneseq
      %v11631 = vshrl.u32 %v11630, 7
      %v11632 = vsub.s32 %v11629, %v11631
      %v11633 = vrot.slane %v11619, %v11632
      %v11634 = vcombine.low %v11626, %v11633
      %v11635 = vcombine.low %v10922, %v10924
      %v11636 = vcombine.low %v10907, %v10921
      %v11637 = vcombine.low %v10923, %v10925
      %v11638 = vcombine.low %v10940, %v10947
      %v11640 = vunpack.c.l.s4 1966171168
      %v11641 = vunpack.c.0.s8 %v11640
      %v11642 = vlaneseq
      %v11643 = vshrl.u32 %v11642, 7
      %v11644 = vsub.s32 %v11641, %v11643
      %v11645 = vrot.slane %v11635, %v11644
      %v11647 = vunpack.c.l.s4 1966171168
      %v11648 = vunpack.c.0.s8 %v11647
      %v11649 = vlaneseq
      %v11650 = vshrl.u32 %v11649, 7
      %v11651 = vsub.s32 %v11648, %v11650
      %v11652 = vrot.slane %v11636, %v11651
      %v11654 = vunpack.c.l.s4 1966171168
      %v11655 = vunpack.c.0.s8 %v11654
      %v11656 = vlaneseq
      %v11657 = vshrl.u32 %v11656, 7
      %v11658 = vsub.s32 %v11655, %v11657
      %v11659 = vrot.slane %v11637, %v11658
      %v11661 = vunpack.c.l.s4 1966171168
      %v11662 = vunpack.c.0.s8 %v11661
      %v11663 = vlaneseq
      %v11664 = vshrl.u32 %v11663, 7
      %v11665 = vsub.s32 %v11662, %v11664
      %v11666 = vrot.slane %v11638, %v11665
      %v11667 = vcombine.low %v11645, %v11652
      %v11668 = vcombine.low %v11659, %v11666
      %v11670 = vunpack.c.l.s4 1966171168
      %v11671 = vunpack.c.0.s8 %v11670
      %v11672 = vlaneseq
      %v11673 = vshrl.u32 %v11672, 7
      %v11674 = vsub.s32 %v11671, %v11673
      %v11675 = vrot.slane %v11667, %v11674
      %v11677 = vunpack.c.l.s4 1966171168
      %v11678 = vunpack.c.0.s8 %v11677
      %v11679 = vlaneseq
      %v11680 = vshrl.u32 %v11679, 7
      %v11681 = vsub.s32 %v11678, %v11680
      %v11682 = vrot.slane %v11668, %v11681
      %v11683 = vcombine.low %v11675, %v11682
      %v11685 = vunpack.c.l.s4 1966171168
      %v11686 = vunpack.c.0.s8 %v11685
      %v11687 = vlaneseq
      %v11688 = vshrl.u32 %v11687, 7
      %v11689 = vsub.s32 %v11686, %v11688
      %v11690 = vrot.slane %v10948, %v11689
      %v11692 = vunpack.c.l.s4 1966171168
      %v11693 = vunpack.c.0.s8 %v11692
      %v11694 = vlaneseq
      %v11695 = vshrl.u32 %v11694, 7
      %v11696 = vsub.s32 %v11693, %v11695
      %v11697 = vrot.slane %v11690, %v11696
      %vm11714 = vcmask 1040384
      %v11715 = vsel %vm11714, %v11697, 0.0
      %v11716 = vpack.c.bf16 %v11046, %v10997
      %v11717 = vpack.c.bf16 %v11144, %v11095
      %v11718 = vpack.c.bf16 %v11242, %v11193
      %v11719 = vpack.c.bf16 %v11340, %v11291
      %v11720 = vpack.c.bf16 %v11438, %v11389
      %v11721 = vpack.c.bf16 %v11536, %v11487
      %v11722 = vpack.c.bf16 %v11634, %v11585
      %v11723 = vpack.c.bf16 %v11715, %v11683
      %v11724 = vld [vmem:[%s7] sm:$0xf]
      %v11725 = vld [vmem:[%s7 + $0x4] sm:$0xf]
      %v11726 = vld [vmem:[%s7 + $0x8] sm:$0xf]
      %v11727 = vld [vmem:[%s7 + $0xc] sm:$0xf]
      %v11728 = vld [vmem:[%s7 + $0x10] sm:$0xf]
      %v11729 = vld [vmem:[%s7 + $0x14] sm:$0xf]
      %v11730 = vld [vmem:[%s7 + $0x18] sm:$0xf]
      %v11731 = vld [vmem:[%s7 + $0x1c] sm:$0xf]
      %v11732 = vld [vmem:[%s8] sm:$0x1]
      %v11734 = vlaneseq
      %v11735 = vshrl.u32 %v11734, 7
      %v11736 = vsub.s32 0, %v11735
      %v11737 = vrot.slane %v11732, %v11736
      %v11747 = vunpack.c.l.b16 %v11724
      %v11748 = vunpack.c.l.b16 %v11725
      %v11749 = vunpack.c.l.b16 %v11726
      %v11750 = vunpack.c.l.b16 %v11727
      %v11751 = vunpack.c.l.b16 %v11728
      %v11752 = vunpack.c.l.b16 %v11729
      %v11753 = vunpack.c.l.b16 %v11730
      %v11754 = vunpack.c.l.b16 %v11731
      %v11755 = vpack.c.b16 %v11748, %v11747
      %v11756 = vpack.c.b16 %v11750, %v11749
      %v11757 = vpack.c.b16 %v11752, %v11751
      %v11758 = vpack.c.b16 %v11754, %v11753
      %v11764 = vsel %vm4470, %v11716, 0
      %v11767 = vsel %vm4470, %v11717, 0
      %v11770 = vsel %vm4470, %v11718, 0
      %v11773 = vsel %vm4470, %v11719, 0
      %v11776 = vsel %vm4470, %v11720, 0
      %v11779 = vsel %vm4470, %v11721, 0
      %v11782 = vsel %vm4470, %v11722, 0
      %v11785 = vsel %vm4470, %v11723, 0
      %11787 = vmatprep.subr.bf16.mxu0 0
      %11788 = vmatpush1.bf16.msra.mxu0 %v11755
      %11789 = vmatprep.subr.bf16.mxu0 0
      %11790 = vmatpush1.bf16.msra.mxu0 %v11756
      %11791 = vmatprep.subr.bf16.mxu0 0
      %11792 = vmatpush1.bf16.msra.mxu0 %v11757
      %11793 = vmatprep.subr.bf16.mxu0 0
      %11794 = vmatpush1.bf16.msra.mxu0 %v11758
      %11795 = vmatprep.subr.bf16.mxu0 0
      %11796 = vmatpush1.bf16.msra.mxu0 0
      %11797 = vmatprep.subr.bf16.mxu0 0
      %11798 = vmatpush1.bf16.msra.mxu0 0
      %11799 = vmatprep.subr.bf16.mxu0 0
      %11800 = vmatpush1.bf16.msra.mxu0 0
      %11801 = vmatprep.subr.bf16.mxu0 0
      %11802 = vmatpush1.bf16.msra.mxu0 0
      %11803 = vmatprep.subr.bf16.mxu0 0
      %11804 = vmatpush1.bf16.msra.mxu0 0
      %11805 = vmatprep.subr.bf16.mxu0 0
      %11806 = vmatpush1.bf16.msra.mxu0 0
      %11807 = vmatprep.subr.bf16.mxu0 0
      %11808 = vmatpush1.bf16.msra.mxu0 0
      %11809 = vmatprep.subr.bf16.mxu0 0
      %11810 = vmatpush1.bf16.msra.mxu0 0
      %11811 = vmatprep.subr.bf16.mxu0 0
      %11812 = vmatpush1.bf16.msra.mxu0 0
      %11813 = vmatprep.subr.bf16.mxu0 0
      %11814 = vmatpush1.bf16.msra.mxu0 0
      %11815 = vmatprep.subr.bf16.mxu0 0
      %11816 = vmatpush1.bf16.msra.mxu0 0
      %11817 = vmatprep.subr.bf16.mxu0 0
      %11818 = vmatpush1.bf16.msra.mxu0 0
      %11819 = vmatprep.mubr.bf16.mxu0 0
      %11820 = vmatmul.mubr.bf16.gmra.mrb[0].mxu0 %v11764
      %v11821 = vpop.f32.mrb[0].mxu0
      %v11822 = vadd.f32 %v11737, %v11821
      %v11823 = vpop.f32.mrb[0].mxu0
      %v11824 = vpop.f32.mrb[0].mxu0
      %v11825 = vadd.f32 %v11737, %v11824
      %v11826 = vpop.f32.mrb[0].mxu0
      %11827 = vmatprep.mubr.bf16.mxu0 0
      %11828 = vmatmul.mubr.bf16.gmra.mrb[0].mxu0 %v11767
      %v11829 = vpop.f32.mrb[0].mxu0
      %v11830 = vadd.f32 %v11737, %v11829
      %v11831 = vpop.f32.mrb[0].mxu0
      %v11832 = vpop.f32.mrb[0].mxu0
      %v11833 = vadd.f32 %v11737, %v11832
      %v11834 = vpop.f32.mrb[0].mxu0
      %11835 = vmatprep.mubr.bf16.mxu0 0
      %11836 = vmatmul.mubr.bf16.gmra.mrb[0].mxu0 %v11770
      %v11837 = vpop.f32.mrb[0].mxu0
      %v11838 = vadd.f32 %v11737, %v11837
      %v11839 = vpop.f32.mrb[0].mxu0
      %v11840 = vpop.f32.mrb[0].mxu0
      %v11841 = vadd.f32 %v11737, %v11840
      %v11842 = vpop.f32.mrb[0].mxu0
      %11843 = vmatprep.mubr.bf16.mxu0 0
      %11844 = vmatmul.mubr.bf16.gmra.mrb[0].mxu0 %v11773
      %v11845 = vpop.f32.mrb[0].mxu0
      %v11846 = vadd.f32 %v11737, %v11845
      %v11847 = vpop.f32.mrb[0].mxu0
      %v11848 = vpop.f32.mrb[0].mxu0
      %v11849 = vadd.f32 %v11737, %v11848
      %v11850 = vpop.f32.mrb[0].mxu0
      %11851 = vmatprep.mubr.bf16.mxu0 0
      %11852 = vmatmul.mubr.bf16.gmra.mrb[0].mxu0 %v11776
      %v11853 = vpop.f32.mrb[0].mxu0
      %v11854 = vadd.f32 %v11737, %v11853
      %v11855 = vpop.f32.mrb[0].mxu0
      %v11856 = vpop.f32.mrb[0].mxu0
      %v11857 = vadd.f32 %v11737, %v11856
      %v11858 = vpop.f32.mrb[0].mxu0
      %11859 = vmatprep.mubr.bf16.mxu0 0
      %11860 = vmatmul.mubr.bf16.gmra.mrb[0].mxu0 %v11779
      %v11861 = vpop.f32.mrb[0].mxu0
      %v11862 = vadd.f32 %v11737, %v11861
      %v11863 = vpop.f32.mrb[0].mxu0
      %v11864 = vpop.f32.mrb[0].mxu0
      %v11865 = vadd.f32 %v11737, %v11864
      %v11866 = vpop.f32.mrb[0].mxu0
      %11867 = vmatprep.mubr.bf16.mxu0 0
      %11868 = vmatmul.mubr.bf16.gmra.mrb[0].mxu0 %v11782
      %v11869 = vpop.f32.mrb[0].mxu0
      %v11870 = vadd.f32 %v11737, %v11869
      %v11871 = vpop.f32.mrb[0].mxu0
      %v11872 = vpop.f32.mrb[0].mxu0
      %v11873 = vadd.f32 %v11737, %v11872
      %v11874 = vpop.f32.mrb[0].mxu0
      %11875 = vmatprep.mubr.bf16.mxu0 0
      %11876 = vmatmul.mubr.bf16.gmra.mrb[0].mxu0 %v11785
      %v11877 = vpop.f32.mrb[0].mxu0
      %v11878 = vadd.f32 %v11737, %v11877
      %v11879 = vpop.f32.mrb[0].mxu0
      %v11880 = vpop.f32.mrb[0].mxu0
      %v11881 = vadd.f32 %v11737, %v11880
      %v11882 = vpop.f32.mrb[0].mxu0
      %11883 = vdwg.mxu0
      %v11884 = vmax.f32 %v11822, 0.0
      %v11885 = vmax.f32 %v11825, 0.0
      %v11886 = vmax.f32 %v11830, 0.0
      %v11887 = vmax.f32 %v11833, 0.0
      %v11888 = vmax.f32 %v11838, 0.0
      %v11889 = vmax.f32 %v11841, 0.0
      %v11890 = vmax.f32 %v11846, 0.0
      %v11891 = vmax.f32 %v11849, 0.0
      %v11892 = vmax.f32 %v11854, 0.0
      %v11893 = vmax.f32 %v11857, 0.0
      %v11894 = vmax.f32 %v11862, 0.0
      %v11895 = vmax.f32 %v11865, 0.0
      %v11896 = vmax.f32 %v11870, 0.0
      %v11897 = vmax.f32 %v11873, 0.0
      %v11898 = vmax.f32 %v11878, 0.0
      %v11899 = vmax.f32 %v11881, 0.0
      %v11900 = vpack.c.bf16 %v11885, %v11884
      %v11901 = vpack.c.bf16 %v11887, %v11886
      %v11902 = vpack.c.bf16 %v11889, %v11888
      %v11903 = vpack.c.bf16 %v11891, %v11890
      %v11904 = vpack.c.bf16 %v11893, %v11892
      %v11905 = vpack.c.bf16 %v11895, %v11894
      %v11906 = vpack.c.bf16 %v11897, %v11896
      %v11907 = vpack.c.bf16 %v11899, %v11898
      %v11908 = vld [vmem:[%s9] sm:$0xf]
      %v11909 = vld [vmem:[%s9 + $0x4] sm:$0xf]
      %v11910 = vld [vmem:[%s9 + $0x8] sm:$0xf]
      %v11911 = vld [vmem:[%s9 + $0xc] sm:$0xf]
      %v11912 = vld [vmem:[%s9 + $0x10] sm:$0xf]
      %v11913 = vld [vmem:[%s9 + $0x14] sm:$0xf]
      %v11914 = vld [vmem:[%s9 + $0x18] sm:$0xf]
      %v11915 = vld [vmem:[%s9 + $0x1c] sm:$0xf]
      %v11916 = vld [vmem:[%s10] sm:$0x1]
      %v11918 = vlaneseq
      %v11919 = vshrl.u32 %v11918, 7
      %v11920 = vsub.s32 0, %v11919
      %v11921 = vrot.slane %v11916, %v11920
      %v11931 = vunpack.c.l.b16 %v11908
      %v11932 = vunpack.c.l.b16 %v11909
      %v11933 = vunpack.c.l.b16 %v11910
      %v11934 = vunpack.c.l.b16 %v11911
      %v11935 = vunpack.c.l.b16 %v11912
      %v11936 = vunpack.c.l.b16 %v11913
      %v11937 = vunpack.c.l.b16 %v11914
      %v11938 = vunpack.c.l.b16 %v11915
      %v11939 = vpack.c.b16 %v11932, %v11931
      %v11940 = vpack.c.b16 %v11934, %v11933
      %v11941 = vpack.c.b16 %v11936, %v11935
      %v11942 = vpack.c.b16 %v11938, %v11937
      %v11948 = vsel %vm4470, %v11900, 0
      %v11951 = vsel %vm4470, %v11901, 0
      %v11954 = vsel %vm4470, %v11902, 0
      %v11957 = vsel %vm4470, %v11903, 0
      %v11960 = vsel %vm4470, %v11904, 0
      %v11963 = vsel %vm4470, %v11905, 0
      %v11966 = vsel %vm4470, %v11906, 0
      %v11969 = vsel %vm4470, %v11907, 0
      %11971 = vmatprep.subr.bf16.mxu0 0
      %11972 = vmatpush1.bf16.msra.mxu0 %v11939
      %11973 = vmatprep.subr.bf16.mxu0 0
      %11974 = vmatpush1.bf16.msra.mxu0 %v11940
      %11975 = vmatprep.subr.bf16.mxu0 0
      %11976 = vmatpush1.bf16.msra.mxu0 %v11941
      %11977 = vmatprep.subr.bf16.mxu0 0
      %11978 = vmatpush1.bf16.msra.mxu0 %v11942
      %11979 = vmatprep.subr.bf16.mxu0 0
      %11980 = vmatpush1.bf16.msra.mxu0 0
      %11981 = vmatprep.subr.bf16.mxu0 0
      %11982 = vmatpush1.bf16.msra.mxu0 0
      %11983 = vmatprep.subr.bf16.mxu0 0
      %11984 = vmatpush1.bf16.msra.mxu0 0
      %11985 = vmatprep.subr.bf16.mxu0 0
      %11986 = vmatpush1.bf16.msra.mxu0 0
      %11987 = vmatprep.subr.bf16.mxu0 0
      %11988 = vmatpush1.bf16.msra.mxu0 0
      %11989 = vmatprep.subr.bf16.mxu0 0
      %11990 = vmatpush1.bf16.msra.mxu0 0
      %11991 = vmatprep.subr.bf16.mxu0 0
      %11992 = vmatpush1.bf16.msra.mxu0 0
      %11993 = vmatprep.subr.bf16.mxu0 0
      %11994 = vmatpush1.bf16.msra.mxu0 0
      %11995 = vmatprep.subr.bf16.mxu0 0
      %11996 = vmatpush1.bf16.msra.mxu0 0
      %11997 = vmatprep.subr.bf16.mxu0 0
      %11998 = vmatpush1.bf16.msra.mxu0 0
      %11999 = vmatprep.subr.bf16.mxu0 0
      %12000 = vmatpush1.bf16.msra.mxu0 0
      %12001 = vmatprep.subr.bf16.mxu0 0
      %12002 = vmatpush1.bf16.msra.mxu0 0
      %12003 = vmatprep.mubr.bf16.mxu0 0
      %12004 = vmatmul.mubr.bf16.gmra.mrb[0].mxu0 %v11948
      %v12005 = vpop.f32.mrb[0].mxu0
      %v12006 = vadd.f32 %v11921, %v12005
      %v12007 = vpop.f32.mrb[0].mxu0
      %v12008 = vpop.f32.mrb[0].mxu0
      %v12009 = vadd.f32 %v11921, %v12008
      %v12010 = vpop.f32.mrb[0].mxu0
      %12011 = vmatprep.mubr.bf16.mxu0 0
      %12012 = vmatmul.mubr.bf16.gmra.mrb[0].mxu0 %v11951
      %v12013 = vpop.f32.mrb[0].mxu0
      %v12014 = vadd.f32 %v11921, %v12013
      %v12015 = vpop.f32.mrb[0].mxu0
      %v12016 = vpop.f32.mrb[0].mxu0
      %v12017 = vadd.f32 %v11921, %v12016
      %v12018 = vpop.f32.mrb[0].mxu0
      %12019 = vmatprep.mubr.bf16.mxu0 0
      %12020 = vmatmul.mubr.bf16.gmra.mrb[0].mxu0 %v11954
      %v12021 = vpop.f32.mrb[0].mxu0
      %v12022 = vadd.f32 %v11921, %v12021
      %v12023 = vpop.f32.mrb[0].mxu0
      %v12024 = vpop.f32.mrb[0].mxu0
      %v12025 = vadd.f32 %v11921, %v12024
      %v12026 = vpop.f32.mrb[0].mxu0
      %12027 = vmatprep.mubr.bf16.mxu0 0
      %12028 = vmatmul.mubr.bf16.gmra.mrb[0].mxu0 %v11957
      %v12029 = vpop.f32.mrb[0].mxu0
      %v12030 = vadd.f32 %v11921, %v12029
      %v12031 = vpop.f32.mrb[0].mxu0
      %v12032 = vpop.f32.mrb[0].mxu0
      %v12033 = vadd.f32 %v11921, %v12032
      %v12034 = vpop.f32.mrb[0].mxu0
      %12035 = vmatprep.mubr.bf16.mxu0 0
      %12036 = vmatmul.mubr.bf16.gmra.mrb[0].mxu0 %v11960
      %v12037 = vpop.f32.mrb[0].mxu0
      %v12038 = vadd.f32 %v11921, %v12037
      %v12039 = vpop.f32.mrb[0].mxu0
      %v12040 = vpop.f32.mrb[0].mxu0
      %v12041 = vadd.f32 %v11921, %v12040
      %v12042 = vpop.f32.mrb[0].mxu0
      %12043 = vmatprep.mubr.bf16.mxu0 0
      %12044 = vmatmul.mubr.bf16.gmra.mrb[0].mxu0 %v11963
      %v12045 = vpop.f32.mrb[0].mxu0
      %v12046 = vadd.f32 %v11921, %v12045
      %v12047 = vpop.f32.mrb[0].mxu0
      %v12048 = vpop.f32.mrb[0].mxu0
      %v12049 = vadd.f32 %v11921, %v12048
      %v12050 = vpop.f32.mrb[0].mxu0
      %12051 = vmatprep.mubr.bf16.mxu0 0
      %12052 = vmatmul.mubr.bf16.gmra.mrb[0].mxu0 %v11966
      %v12053 = vpop.f32.mrb[0].mxu0
      %v12054 = vadd.f32 %v11921, %v12053
      %v12055 = vpop.f32.mrb[0].mxu0
      %v12056 = vpop.f32.mrb[0].mxu0
      %v12057 = vadd.f32 %v11921, %v12056
      %v12058 = vpop.f32.mrb[0].mxu0
      %12059 = vmatprep.mubr.bf16.mxu0 0
      %12060 = vmatmul.mubr.bf16.gmra.mrb[0].mxu0 %v11969
      %v12061 = vpop.f32.mrb[0].mxu0
      %v12062 = vadd.f32 %v11921, %v12061
      %v12063 = vpop.f32.mrb[0].mxu0
      %v12064 = vpop.f32.mrb[0].mxu0
      %v12065 = vadd.f32 %v11921, %v12064
      %v12066 = vpop.f32.mrb[0].mxu0
      %12067 = vdwg.mxu0
      %12068 = vst [vmem:[%s386] sm:$0xff] %v12006
      %12069 = vst [vmem:[%s386 + $0x8] sm:$0xff] %v12009
      %12070 = vst [vmem:[%s386 + $0x10] sm:$0xff] %v12014
      %12071 = vst [vmem:[%s386 + $0x18] sm:$0xff] %v12017
      %12072 = vst [vmem:[%s386 + $0x20] sm:$0xff] %v12022
      %12073 = vst [vmem:[%s386 + $0x28] sm:$0xff] %v12025
      %12074 = vst [vmem:[%s386 + $0x30] sm:$0xff] %v12030
      %12075 = vst [vmem:[%s386 + $0x38] sm:$0xff] %v12033
      %12076 = vst [vmem:[%s386 + $0x40] sm:$0xff] %v12038
      %12077 = vst [vmem:[%s386 + $0x48] sm:$0xff] %v12041
      %12078 = vst [vmem:[%s386 + $0x50] sm:$0xff] %v12046
      %12079 = vst [vmem:[%s386 + $0x58] sm:$0xff] %v12049
      %12080 = vst [vmem:[%s386 + $0x60] sm:$0xff] %v12054
      %12081 = vst [vmem:[%s386 + $0x68] sm:$0xff] %v12057
      %12082 = vst [vmem:[%s386 + $0x70] sm:$0xff] %v12062
      %12083 = vst [vmem:[%s386 + $0x78] sm:$0xff] %v12065
      %p12084 = scmp.lt.s32.totalorder %s22, 1
      %s12085 = scalar_select %p12084, %s22, 1
      %s12086 = smul.addr %s12085, 16
      %s12087 = smul.addr %s12086, 8
      %s12088 = scalar_lea.vmem %s11, %s12087
      // Predicated region
      $region65: #{dataloop_tracker_forward.1} parent=63 // pred_check
        %p12089 = pneg %p276
      $region66: #{dataloop_tracker_forward.1} parent=63 // pred_check_branch
        %12091 = sbr.rel (%p12089) target = $region68
      $region67: #{dataloop_tracker_forward.1} parent=63 // pred_region
        _
      $region68: #{dataloop_tracker_forward.1} parent=63 // pred_fallthru
        _
    $region64: #{dataloop_tracker_forward.1} parent=5 // pred_fallthru
      _
    %p12092 = scmp.le.s32.totalorder 2, %s17
    // Predicated region
    $region69: #{dataloop_tracker_forward.1} parent=5 // pred_check
      %p12093 = pneg %p12092
    $region70: #{dataloop_tracker_forward.1} parent=5 // pred_check_branch
      %12095 = sbr.rel (%p12093) target = $region72
    $region71: #{dataloop_tracker_forward.1} parent=5 // pred_region
      %s12096 = ssub.s32 %s17, 2
      // Predicated region
      $region73: #{dataloop_tracker_forward.1} parent=71 // pred_check
        %p12097 = pneg %p282
      $region74: #{dataloop_tracker_forward.1} parent=71 // pred_check_branch
        %12099 = sbr.rel (%p12097) target = $region76
      $region75: #{dataloop_tracker_forward.1} parent=71 // pred_region
        %p12100 = scmp.lt.s32.totalorder %s23, 1
        %s12101 = scalar_select %p12100, %s23, 1
        %s12102 = smul.addr %s12101, 16
        %s12103 = smul.addr %s12102, 8
        %s12104 = scalar_lea.vmem %s11, %s12103
      $region76: #{dataloop_tracker_forward.1} parent=71 // pred_fallthru
        _
    $region72: #{dataloop_tracker_forward.1} parent=5 // pred_fallthru
      _
  $region6: #{dataloop_tracker_forward.1} parent=0 // loop_footer
    %s21 = sadd.s32 1, %s17
  $region7: #{dataloop_tracker_forward.1} parent=0 // loop_footer_branch
    %16 = sbr.rel target = $region3
  $region8: #{dataloop_tracker_forward.1} parent=0 // loop_exit
    _

</llo_original>
